<compile_context>
chip_gen: v7x
topology: tpu7x:2x2x1
jax: 0.10.0
libtpu: 0.0.40
codegen_flags: <defaults>
</compile_context>

<pallas_src>
import functools

import jax
import jax.numpy as jnp
from jax import lax
from jax.experimental import pallas as pl
from jax.experimental.pallas import tpu as pltpu


def _make_pool_selectors(h_blocks, w_in):
    """One-hot bf16 matrices selecting even / odd W-columns (exact 0/1)."""
    w_out = w_in // 2
    q = jnp.arange(h_blocks * w_out)
    r = jnp.arange(h_blocks * w_in)
    base = (q // w_out) * w_in + 2 * (q % w_out)
    sel_e = (r[None, :] == base[:, None]).astype(jnp.bfloat16)
    sel_o = (r[None, :] == base[:, None] + 1).astype(jnp.bfloat16)
    return sel_e, sel_o


def _fused_kernel(x_ref, lidar_ref,
                  w1_ref, b1_ref, w2_ref, b2_ref,
                  wl1_ref, bl1_ref, wl2_ref, bl2_ref,
                  wfi_ref, wfl_ref, bf_ref, wc_ref, bc_ref,
                  s1e_ref, s1o_ref, s2e_ref, s2o_ref,
                  out_ref,
                  p2_ref, im1_ref, im2_ref, feat_ref,
                  *, H, W, cin, bb):
    f32 = jnp.float32
    bf16 = jnp.bfloat16
    c1 = w1_ref.shape[-1]
    c2 = w2_ref.shape[-1]
    H2, W2, H4, W4 = H // 2, W // 2, H // 4, W // 4

    # conv2's padded-input scratch persists across grid steps: zero it exactly
    # once (halo stays zero; the interior is rewritten every step before use).
    @pl.when(pl.program_id(0) == 0)
    def _():
        p2_ref[...] = jnp.zeros_like(p2_ref)

    def conv3x3(src_ref, b, h, w, ci, im_ref, wk_ref, bias_ref):
        # im2col: fold the 9 taps into K so the conv is a single MXU matmul.
        for k in range(9):
            ky, kx = k // 3, k % 3
            patch = src_ref[b, ky:ky + h, kx:kx + w, :]        # (h, w, ci) bf16
            im_ref[:, k * ci:(k + 1) * ci] = patch.reshape(h * w, ci)
        y = jnp.dot(im_ref[...], wk_ref[...], preferred_element_type=f32)
        return jnp.maximum(y + bias_ref[...], 0.0)             # (h*w, cout) f32

    def pool2x2(y, h, w, cout, se_ref, so_ref):
        # H direction: pair rows via a leading-dim split (register-only max).
        y = y.reshape(h // 2, 2, w, cout)
        z = jnp.maximum(y[:, 0], y[:, 1]).reshape((h // 2) * w, cout)
        # W direction: host-precomputed one-hot selection matmuls + VPU max.
        zb = z.astype(bf16)
        even = jnp.dot(se_ref[...], zb, preferred_element_type=f32)
        odd = jnp.dot(so_ref[...], zb, preferred_element_type=f32)
        return jnp.maximum(even, odd)                          # (h/2*w/2, cout)

    for b in range(bb):
        # ---- conv1 + ReLU + pool (input already halo-padded, bf16) ---------
        f1 = pool2x2(conv3x3(x_ref, b, H, W, cin, im1_ref, w1_ref, b1_ref),
                     H, W, c1, s1e_ref, s1o_ref)               # (H2*W2, c1)
        # single bf16 cast at the pad-store; halo stays zero from step 0.
        p2_ref[b, 1:H2 + 1, 1:W2 + 1, :] = f1.astype(bf16).reshape(H2, W2, c1)

        # ---- conv2 + ReLU + pool (f1 never leaves VMEM) ---------------------
        f2 = pool2x2(conv3x3(p2_ref, b, H2, W2, c1, im2_ref, w2_ref, b2_ref),
                     H2, W2, c2, s2e_ref, s2o_ref)             # (H4*W4, c2)
        f2 = f2.astype(bf16)
        # flatten row b of the feature matrix; torch's (C, H, W) flatten order
        # is folded into fus_w_img's row permutation on the host, so (h, w, c)
        # ordering here is correct.
        for r in range(H4 * W4):
            feat_ref[b:b + 1, r * c2:(r + 1) * c2] = f2[r:r + 1, :]

    # ---- lidar MLP + fusion + classifier (M = bb rows, single matmuls) ------
    lvec = lidar_ref[...].astype(bf16)                         # (bb, L)
    l1 = jnp.maximum(
        jnp.dot(lvec, wl1_ref[...], preferred_element_type=f32) + bl1_ref[...],
        0.0)
    l2 = jnp.maximum(
        jnp.dot(l1.astype(bf16), wl2_ref[...], preferred_element_type=f32)
        + bl2_ref[...], 0.0)
    # torch.cat + Linear == split-weight sum of the image and lidar matmuls.
    fused = (jnp.dot(feat_ref[...], wfi_ref[...], preferred_element_type=f32)
             + jnp.dot(l2.astype(bf16), wfl_ref[...], preferred_element_type=f32)
             + bf_ref[...])
    hidden = jnp.maximum(fused, 0.0)
    out_ref[...] = (jnp.dot(hidden.astype(bf16), wc_ref[...],
                            preferred_element_type=f32) + bc_ref[...])


def multimodal_forward(image_nchw, lidar, kp):
    """Fused forward pass.  kp = prepare_params(init_params(...), (H, W))."""
    B, cin, H, W = image_nchw.shape
    assert H % 4 == 0 and W % 4 == 0
    L = lidar.shape[-1]
    c1 = kp["conv1_w"].shape[-1]
    c2 = kp["conv2_w"].shape[-1]
    hid = kp["fus_b"].shape[-1]
    nc = kp["cls_b"].shape[-1]
    H2, W2, H4, W4 = H // 2, W // 2, H // 4, W // 4
    img_feat = H4 * W4 * c2

    bb = B if B <= 8 else 8                 # images per grid step (M of matmuls)
    assert B % bb == 0

    # Host-side layout plumbing only: NCHW -> NHWC, 1px zero halo for conv1's
    # "same" padding, single bf16 cast.
    x = jnp.transpose(image_nchw, (0, 2, 3, 1))
    x = jnp.pad(x, ((0, 0), (1, 1), (1, 1), (0, 0))).astype(jnp.bfloat16)

    kern = functools.partial(_fused_kernel, H=H, W=W, cin=cin, bb=bb)

    out = pl.pallas_call(
        kern,
        out_shape=jax.ShapeDtypeStruct((B, nc), jnp.float32),
        grid=(B // bb,),
        in_specs=[
            pl.BlockSpec((bb, H + 2, W + 2, cin), lambda i: (i, 0, 0, 0)),
            pl.BlockSpec((bb, L), lambda i: (i, 0)),
            pl.BlockSpec((9 * cin, c1), lambda i: (0, 0)),
            pl.BlockSpec((1, c1), lambda i: (0, 0)),
            pl.BlockSpec((9 * c1, c2), lambda i: (0, 0)),
            pl.BlockSpec((1, c2), lambda i: (0, 0)),
            pl.BlockSpec((L, 128), lambda i: (0, 0)),
            pl.BlockSpec((1, 128), lambda i: (0, 0)),
            pl.BlockSpec((128, 64), lambda i: (0, 0)),
            pl.BlockSpec((1, 64), lambda i: (0, 0)),
            pl.BlockSpec((img_feat, hid), lambda i: (0, 0)),
            pl.BlockSpec((64, hid), lambda i: (0, 0)),
            pl.BlockSpec((1, hid), lambda i: (0, 0)),
            pl.BlockSpec((hid, nc), lambda i: (0, 0)),
            pl.BlockSpec((1, nc), lambda i: (0, 0)),
            pl.BlockSpec((H2 * W2, H2 * W), lambda i: (0, 0)),
            pl.BlockSpec((H2 * W2, H2 * W), lambda i: (0, 0)),
            pl.BlockSpec((H4 * W4, H4 * W2), lambda i: (0, 0)),
            pl.BlockSpec((H4 * W4, H4 * W2), lambda i: (0, 0)),
        ],
        out_specs=pl.BlockSpec((bb, nc), lambda i: (i, 0)),
        scratch_shapes=[
            pltpu.VMEM((bb, H2 + 2, W2 + 2, c1), jnp.bfloat16),   # conv2 pad
            pltpu.VMEM((H * W, 9 * cin), jnp.bfloat16),           # conv1 im2col
            pltpu.VMEM((H2 * W2, 9 * c1), jnp.bfloat16),          # conv2 im2col
            pltpu.VMEM((bb, img_feat), jnp.bfloat16),             # flat features
        ],
        compiler_params=pltpu.CompilerParams(
            dimension_semantics=("parallel",)),
    )(x, lidar,
      kp["conv1_w"], kp["conv1_b"], kp["conv2_w"], kp["conv2_b"],
      kp["lid_w1"], kp["lid_b1"], kp["lid_w2"], kp["lid_b2"],
      kp["fus_w_img"], kp["fus_w_lid"], kp["fus_b"], kp["cls_w"], kp["cls_b"],
      kp["sel1_e"], kp["sel1_o"], kp["sel2_e"], kp["sel2_o"])
    return out


def init_params(key, image_hw, image_channels, lidar_channels, hidden_size,
                num_classes):
    H, W = image_hw
    img_feat_dim = 64 * (H // 4) * (W // 4)
    ks = jax.random.split(key, 12)

    def nrm(k, shape, scale=0.05):
        return scale * jax.random.normal(k, shape, dtype=jnp.float32)

    return {
        "conv1_w": nrm(ks[0], (3, 3, image_channels, 32)),
        "conv1_b": nrm(ks[1], (1, 32)),
        "conv2_w": nrm(ks[2], (3, 3, 32, 64)),
        "conv2_b": nrm(ks[3], (1, 64)),
        "lid_w1": nrm(ks[4], (lidar_channels, 128)),
        "lid_b1": nrm(ks[5], (1, 128)),
        "lid_w2": nrm(ks[6], (128, 64)),
        "lid_b2": nrm(ks[7], (1, 64)),
        # rows follow the PyTorch (C, H, W) flatten order of the image features
        "fus_w_img": nrm(ks[8], (img_feat_dim, hidden_size)),
        "fus_w_lid": nrm(ks[9], (64, hidden_size)),
        "fus_b": nrm(ks[10], (1, hidden_size)),
        "cls_w": nrm(ks[11], (hidden_size, num_classes)),
        "cls_b": jnp.zeros((1, num_classes), dtype=jnp.float32),
    }


def prepare_params(p, image_hw):
    """One-time host packing: bf16 casts, fold 3x3 taps into K, fold torch's
    (C, H, W) flatten into fus_w_img's row order, build pool selectors."""
    H, W = image_hw
    H2, W2, H4, W4 = H // 2, W // 2, H // 4, W // 4
    cin = p["conv1_w"].shape[2]
    c1 = p["conv1_w"].shape[-1]
    c2 = p["conv2_w"].shape[-1]
    hid = p["fus_w_img"].shape[-1]
    bf = jnp.bfloat16
    w1k = p["conv1_w"].reshape(9 * cin, c1).astype(bf)        # rows (ky, kx, ci)
    w2k = p["conv2_w"].reshape(9 * c1, c2).astype(bf)
    w_img = (p["fus_w_img"].reshape(c2, H4, W4, hid)
             .transpose(1, 2, 0, 3)
             .reshape(H4 * W4 * c2, hid)).astype(bf)          # (h, w, c) rows
    s1e, s1o = _make_pool_selectors(H2, W)
    s2e, s2o = _make_pool_selectors(H4, W2)
    return {
        "conv1_w": w1k, "conv1_b": p["conv1_b"],
        "conv2_w": w2k, "conv2_b": p["conv2_b"],
        "lid_w1": p["lid_w1"].astype(bf), "lid_b1": p["lid_b1"],
        "lid_w2": p["lid_w2"].astype(bf), "lid_b2": p["lid_b2"],
        "fus_w_img": w_img,
        "fus_w_lid": p["fus_w_lid"].astype(bf),
        "fus_b": p["fus_b"],
        "cls_w": p["cls_w"].astype(bf), "cls_b": p["cls_b"],
        "sel1_e": s1e, "sel1_o": s1o, "sel2_e": s2e, "sel2_o": s2o,
    }


def _reference_forward(image_nchw, lidar, p):
    """Pure-JAX f32 reference of the same math (torch-ordered weights)."""
    x = jnp.transpose(image_nchw, (0, 2, 3, 1))

    def conv_block(x, w, b):
        y = lax.conv_general_dilated(
            x, w, (1, 1), "SAME", dimension_numbers=("NHWC", "HWIO", "NHWC"))
        y = jnp.maximum(y + b.reshape(1, 1, 1, -1), 0.0)
        return lax.reduce_window(y, -jnp.inf, lax.max,
                                 (1, 2, 2, 1), (1, 2, 2, 1), "VALID")

    f = conv_block(conv_block(x, p["conv1_w"], p["conv1_b"]),
                   p["conv2_w"], p["conv2_b"])
    img_flat = jnp.transpose(f, (0, 3, 1, 2)).reshape(x.shape[0], -1)
    l = jnp.maximum(lidar @ p["lid_w1"] + p["lid_b1"], 0.0)
    l = jnp.maximum(l @ p["lid_w2"] + p["lid_b2"], 0.0)
    h = jnp.maximum(img_flat @ p["fus_w_img"] + l @ p["fus_w_lid"] + p["fus_b"],
                    0.0)
    return h @ p["cls_w"] + p["cls_b"]


if __name__ == "__main__":
    B, C_IMG, H, W = 2, 3, 16, 16
    LIDAR_CH, HIDDEN, NUM_CLASSES = 10, 128, 3

    key = jax.random.PRNGKey(0)
    k_img, k_lidar, k_params = jax.random.split(key, 3)

    image = jax.random.normal(k_img, (B, C_IMG, H, W), dtype=jnp.float32)
    lidar = jax.random.normal(k_lidar, (B, LIDAR_CH), dtype=jnp.float32)
    params = init_params(k_params, (H, W), C_IMG, LIDAR_CH, HIDDEN, NUM_CLASSES)
    kparams = prepare_params(params, (H, W))

    fwd = jax.jit(multimodal_forward)
    out = jax.block_until_ready(fwd(image, lidar, kparams))
    assert out.shape == (B, NUM_CLASSES)

    ref = jax.block_until_ready(_reference_forward(image, lidar, params))
    assert jnp.allclose(out, ref, atol=2e-2, rtol=2e-2), (out, ref)

    print("KERNEL_OK")
</pallas_src>

<mosaic_0001>
module attributes {stable_mosaic.version = 11 : i64} {
  func.func @_fused_kernel(%arg0: i32, %arg1: memref<2x18x18x3xbf16, #tpu.memory_space<vmem>>, %arg2: memref<2x10xf32, #tpu.memory_space<vmem>>, %arg3: memref<27x32xbf16, #tpu.memory_space<vmem>>, %arg4: memref<1x32xf32, #tpu.memory_space<vmem>>, %arg5: memref<288x64xbf16, #tpu.memory_space<vmem>>, %arg6: memref<1x64xf32, #tpu.memory_space<vmem>>, %arg7: memref<10x128xbf16, #tpu.memory_space<vmem>>, %arg8: memref<1x128xf32, #tpu.memory_space<vmem>>, %arg9: memref<128x64xbf16, #tpu.memory_space<vmem>>, %arg10: memref<1x64xf32, #tpu.memory_space<vmem>>, %arg11: memref<1024x128xbf16, #tpu.memory_space<vmem>>, %arg12: memref<64x128xbf16, #tpu.memory_space<vmem>>, %arg13: memref<1x128xf32, #tpu.memory_space<vmem>>, %arg14: memref<128x3xbf16, #tpu.memory_space<vmem>>, %arg15: memref<1x3xf32, #tpu.memory_space<vmem>>, %arg16: memref<64x128xbf16, #tpu.memory_space<vmem>>, %arg17: memref<64x128xbf16, #tpu.memory_space<vmem>>, %arg18: memref<16x32xbf16, #tpu.memory_space<vmem>>, %arg19: memref<16x32xbf16, #tpu.memory_space<vmem>>, %arg20: memref<2x3xf32, #tpu.memory_space<vmem>>, %arg21: memref<2x10x10x32xbf16, #tpu.memory_space<vmem>>, %arg22: memref<256x27xbf16, #tpu.memory_space<vmem>>, %arg23: memref<64x288xbf16, #tpu.memory_space<vmem>>, %arg24: memref<2x1024xbf16, #tpu.memory_space<vmem>>) attributes {dimension_semantics = [#tpu.dimension_semantics<parallel>], iteration_bounds = array<i64: 1>, scalar_prefetch = 0 : i64, scratch_operands = 4 : i64, tpu.core_type = #tpu.core_type<tc>, window_params = [{transform_indices = @transform_0, window_bounds = array<i64: 2, 18, 18, 3>}, {transform_indices = @transform_1, window_bounds = array<i64: 2, 10>}, {pipeline_mode = #tpu.pipeline_mode<synchronous>, transform_indices = @transform_2, window_bounds = array<i64: 27, 32>}, {pipeline_mode = #tpu.pipeline_mode<synchronous>, transform_indices = @transform_3, window_bounds = array<i64: 1, 32>}, {pipeline_mode = #tpu.pipeline_mode<synchronous>, transform_indices = @transform_4, window_bounds = array<i64: 288, 64>}, {pipeline_mode = #tpu.pipeline_mode<synchronous>, transform_indices = @transform_5, window_bounds = array<i64: 1, 64>}, {pipeline_mode = #tpu.pipeline_mode<synchronous>, transform_indices = @transform_6, window_bounds = array<i64: 10, 128>}, {pipeline_mode = #tpu.pipeline_mode<synchronous>, transform_indices = @transform_7, window_bounds = array<i64: 1, 128>}, {pipeline_mode = #tpu.pipeline_mode<synchronous>, transform_indices = @transform_8, window_bounds = array<i64: 128, 64>}, {pipeline_mode = #tpu.pipeline_mode<synchronous>, transform_indices = @transform_9, window_bounds = array<i64: 1, 64>}, {pipeline_mode = #tpu.pipeline_mode<synchronous>, transform_indices = @transform_10, window_bounds = array<i64: 1024, 128>}, {pipeline_mode = #tpu.pipeline_mode<synchronous>, transform_indices = @transform_11, window_bounds = array<i64: 64, 128>}, {pipeline_mode = #tpu.pipeline_mode<synchronous>, transform_indices = @transform_12, window_bounds = array<i64: 1, 128>}, {pipeline_mode = #tpu.pipeline_mode<synchronous>, transform_indices = @transform_13, window_bounds = array<i64: 128, 3>}, {pipeline_mode = #tpu.pipeline_mode<synchronous>, transform_indices = @transform_14, window_bounds = array<i64: 1, 3>}, {pipeline_mode = #tpu.pipeline_mode<synchronous>, transform_indices = @transform_15, window_bounds = array<i64: 64, 128>}, {pipeline_mode = #tpu.pipeline_mode<synchronous>, transform_indices = @transform_16, window_bounds = array<i64: 64, 128>}, {pipeline_mode = #tpu.pipeline_mode<synchronous>, transform_indices = @transform_17, window_bounds = array<i64: 16, 32>}, {pipeline_mode = #tpu.pipeline_mode<synchronous>, transform_indices = @transform_18, window_bounds = array<i64: 16, 32>}, {transform_indices = @transform_19, window_bounds = array<i64: 2, 3>}]} {
    %c0_i32 = arith.constant 0 : i32
    %0 = arith.cmpi eq, %arg0, %c0_i32 : i32
    %1 = arith.extui %0 : i1 to i32
    %c0_i32_0 = arith.constant 0 : i32
    %2 = arith.cmpi ne, %1, %c0_i32_0 : i32
    scf.if %2 {
      %cst_346 = arith.constant 0.000000e+00 : bf16
      %343 = vector.broadcast %cst_346 : bf16 to vector<2x10x10x32xbf16>
      %c0_347 = arith.constant 0 : index
      %c0_348 = arith.constant 0 : index
      %c0_349 = arith.constant 0 : index
      %c0_350 = arith.constant 0 : index
      %344 = vector.load %arg21[%c0_347, %c0_348, %c0_349, %c0_350] : memref<2x10x10x32xbf16, #tpu.memory_space<vmem>>, vector<2x10x10x32xbf16>
      tpu.vector_store %arg21[%c0_347, %c0_348, %c0_349, %c0_350], %343 {strides = array<i32>} : memref<2x10x10x32xbf16, #tpu.memory_space<vmem>>, vector<2x10x10x32xbf16>,
    } else {
    }
    %c0 = arith.constant 0 : index
    %c0_1 = arith.constant 0 : index
    %c0_2 = arith.constant 0 : index
    %c0_3 = arith.constant 0 : index
    %3 = vector.load %arg1[%c0, %c0_1, %c0_2, %c0_3] : memref<2x18x18x3xbf16, #tpu.memory_space<vmem>>, vector<1x16x16x3xbf16>
    %4 = vector.shape_cast %3 : vector<1x16x16x3xbf16> to vector<16x16x3xbf16>
    %5 = vector.shape_cast %4 : vector<16x16x3xbf16> to vector<256x3xbf16>
    %c0_4 = arith.constant 0 : index
    %c0_5 = arith.constant 0 : index
    %6 = vector.load %arg22[%c0_4, %c0_5] : memref<256x27xbf16, #tpu.memory_space<vmem>>, vector<256x3xbf16>
    tpu.vector_store %arg22[%c0_4, %c0_5], %5 {strides = array<i32>} : memref<256x27xbf16, #tpu.memory_space<vmem>>, vector<256x3xbf16>,
    %c0_6 = arith.constant 0 : index
    %c0_7 = arith.constant 0 : index
    %c1 = arith.constant 1 : index
    %c0_8 = arith.constant 0 : index
    %7 = vector.load %arg1[%c0_6, %c0_7, %c1, %c0_8] : memref<2x18x18x3xbf16, #tpu.memory_space<vmem>>, vector<1x16x16x3xbf16>
    %8 = vector.shape_cast %7 : vector<1x16x16x3xbf16> to vector<16x16x3xbf16>
    %9 = vector.shape_cast %8 : vector<16x16x3xbf16> to vector<256x3xbf16>
    %c0_9 = arith.constant 0 : index
    %c3 = arith.constant 3 : index
    %10 = vector.load %arg22[%c0_9, %c3] : memref<256x27xbf16, #tpu.memory_space<vmem>>, vector<256x3xbf16>
    tpu.vector_store %arg22[%c0_9, %c3], %9 {strides = array<i32>} : memref<256x27xbf16, #tpu.memory_space<vmem>>, vector<256x3xbf16>,
    %c0_10 = arith.constant 0 : index
    %c0_11 = arith.constant 0 : index
    %c2 = arith.constant 2 : index
    %c0_12 = arith.constant 0 : index
    %11 = vector.load %arg1[%c0_10, %c0_11, %c2, %c0_12] : memref<2x18x18x3xbf16, #tpu.memory_space<vmem>>, vector<1x16x16x3xbf16>
    %12 = vector.shape_cast %11 : vector<1x16x16x3xbf16> to vector<16x16x3xbf16>
    %13 = vector.shape_cast %12 : vector<16x16x3xbf16> to vector<256x3xbf16>
    %c0_13 = arith.constant 0 : index
    %c6 = arith.constant 6 : index
    %14 = vector.load %arg22[%c0_13, %c6] : memref<256x27xbf16, #tpu.memory_space<vmem>>, vector<256x3xbf16>
    tpu.vector_store %arg22[%c0_13, %c6], %13 {strides = array<i32>} : memref<256x27xbf16, #tpu.memory_space<vmem>>, vector<256x3xbf16>,
    %c0_14 = arith.constant 0 : index
    %c1_15 = arith.constant 1 : index
    %c0_16 = arith.constant 0 : index
    %c0_17 = arith.constant 0 : index
    %15 = vector.load %arg1[%c0_14, %c1_15, %c0_16, %c0_17] : memref<2x18x18x3xbf16, #tpu.memory_space<vmem>>, vector<1x16x16x3xbf16>
    %16 = vector.shape_cast %15 : vector<1x16x16x3xbf16> to vector<16x16x3xbf16>
    %17 = vector.shape_cast %16 : vector<16x16x3xbf16> to vector<256x3xbf16>
    %c0_18 = arith.constant 0 : index
    %c9 = arith.constant 9 : index
    %18 = vector.load %arg22[%c0_18, %c9] : memref<256x27xbf16, #tpu.memory_space<vmem>>, vector<256x3xbf16>
    tpu.vector_store %arg22[%c0_18, %c9], %17 {strides = array<i32>} : memref<256x27xbf16, #tpu.memory_space<vmem>>, vector<256x3xbf16>,
    %c0_19 = arith.constant 0 : index
    %c1_20 = arith.constant 1 : index
    %c1_21 = arith.constant 1 : index
    %c0_22 = arith.constant 0 : index
    %19 = vector.load %arg1[%c0_19, %c1_20, %c1_21, %c0_22] : memref<2x18x18x3xbf16, #tpu.memory_space<vmem>>, vector<1x16x16x3xbf16>
    %20 = vector.shape_cast %19 : vector<1x16x16x3xbf16> to vector<16x16x3xbf16>
    %21 = vector.shape_cast %20 : vector<16x16x3xbf16> to vector<256x3xbf16>
    %c0_23 = arith.constant 0 : index
    %c12 = arith.constant 12 : index
    %22 = vector.load %arg22[%c0_23, %c12] : memref<256x27xbf16, #tpu.memory_space<vmem>>, vector<256x3xbf16>
    tpu.vector_store %arg22[%c0_23, %c12], %21 {strides = array<i32>} : memref<256x27xbf16, #tpu.memory_space<vmem>>, vector<256x3xbf16>,
    %c0_24 = arith.constant 0 : index
    %c1_25 = arith.constant 1 : index
    %c2_26 = arith.constant 2 : index
    %c0_27 = arith.constant 0 : index
    %23 = vector.load %arg1[%c0_24, %c1_25, %c2_26, %c0_27] : memref<2x18x18x3xbf16, #tpu.memory_space<vmem>>, vector<1x16x16x3xbf16>
    %24 = vector.shape_cast %23 : vector<1x16x16x3xbf16> to vector<16x16x3xbf16>
    %25 = vector.shape_cast %24 : vector<16x16x3xbf16> to vector<256x3xbf16>
    %c0_28 = arith.constant 0 : index
    %c15 = arith.constant 15 : index
    %26 = vector.load %arg22[%c0_28, %c15] : memref<256x27xbf16, #tpu.memory_space<vmem>>, vector<256x3xbf16>
    tpu.vector_store %arg22[%c0_28, %c15], %25 {strides = array<i32>} : memref<256x27xbf16, #tpu.memory_space<vmem>>, vector<256x3xbf16>,
    %c0_29 = arith.constant 0 : index
    %c2_30 = arith.constant 2 : index
    %c0_31 = arith.constant 0 : index
    %c0_32 = arith.constant 0 : index
    %27 = vector.load %arg1[%c0_29, %c2_30, %c0_31, %c0_32] : memref<2x18x18x3xbf16, #tpu.memory_space<vmem>>, vector<1x16x16x3xbf16>
    %28 = vector.shape_cast %27 : vector<1x16x16x3xbf16> to vector<16x16x3xbf16>
    %29 = vector.shape_cast %28 : vector<16x16x3xbf16> to vector<256x3xbf16>
    %c0_33 = arith.constant 0 : index
    %c18 = arith.constant 18 : index
    %30 = vector.load %arg22[%c0_33, %c18] : memref<256x27xbf16, #tpu.memory_space<vmem>>, vector<256x3xbf16>
    tpu.vector_store %arg22[%c0_33, %c18], %29 {strides = array<i32>} : memref<256x27xbf16, #tpu.memory_space<vmem>>, vector<256x3xbf16>,
    %c0_34 = arith.constant 0 : index
    %c2_35 = arith.constant 2 : index
    %c1_36 = arith.constant 1 : index
    %c0_37 = arith.constant 0 : index
    %31 = vector.load %arg1[%c0_34, %c2_35, %c1_36, %c0_37] : memref<2x18x18x3xbf16, #tpu.memory_space<vmem>>, vector<1x16x16x3xbf16>
    %32 = vector.shape_cast %31 : vector<1x16x16x3xbf16> to vector<16x16x3xbf16>
    %33 = vector.shape_cast %32 : vector<16x16x3xbf16> to vector<256x3xbf16>
    %c0_38 = arith.constant 0 : index
    %c21 = arith.constant 21 : index
    %34 = vector.load %arg22[%c0_38, %c21] : memref<256x27xbf16, #tpu.memory_space<vmem>>, vector<256x3xbf16>
    tpu.vector_store %arg22[%c0_38, %c21], %33 {strides = array<i32>} : memref<256x27xbf16, #tpu.memory_space<vmem>>, vector<256x3xbf16>,
    %c0_39 = arith.constant 0 : index
    %c2_40 = arith.constant 2 : index
    %c2_41 = arith.constant 2 : index
    %c0_42 = arith.constant 0 : index
    %35 = vector.load %arg1[%c0_39, %c2_40, %c2_41, %c0_42] : memref<2x18x18x3xbf16, #tpu.memory_space<vmem>>, vector<1x16x16x3xbf16>
    %36 = vector.shape_cast %35 : vector<1x16x16x3xbf16> to vector<16x16x3xbf16>
    %37 = vector.shape_cast %36 : vector<16x16x3xbf16> to vector<256x3xbf16>
    %c0_43 = arith.constant 0 : index
    %c24 = arith.constant 24 : index
    %38 = vector.load %arg22[%c0_43, %c24] : memref<256x27xbf16, #tpu.memory_space<vmem>>, vector<256x3xbf16>
    tpu.vector_store %arg22[%c0_43, %c24], %37 {strides = array<i32>} : memref<256x27xbf16, #tpu.memory_space<vmem>>, vector<256x3xbf16>,
    %c0_44 = arith.constant 0 : index
    %c0_45 = arith.constant 0 : index
    %39 = vector.load %arg22[%c0_44, %c0_45] : memref<256x27xbf16, #tpu.memory_space<vmem>>, vector<256x27xbf16>
    %c0_46 = arith.constant 0 : index
    %c0_47 = arith.constant 0 : index
    %40 = vector.load %arg3[%c0_46, %c0_47] : memref<27x32xbf16, #tpu.memory_space<vmem>>, vector<27x32xbf16>
    %cst = arith.constant dense<0.000000e+00> : vector<256x32xf32>
    %41 = tpu.matmul %39, %40, %cst {dimension_numbers = #tpu.dot_dimension_numbers<[1], [0], [0], [1], [0, 0, 1, 1], [], []>} : vector<256x27xbf16>, vector<27x32xbf16>, vector<256x32xf32> -> vector<256x32xf32>
    %c0_48 = arith.constant 0 : index
    %c0_49 = arith.constant 0 : index
    %42 = vector.load %arg4[%c0_48, %c0_49] : memref<1x32xf32, #tpu.memory_space<vmem>>, vector<1x32xf32>
    %43 = vector.broadcast %42 : vector<1x32xf32> to vector<256x32xf32>
    %44 = arith.addf %41, %43 : vector<256x32xf32>
    %cst_50 = arith.constant 0.000000e+00 : f32
    %45 = vector.broadcast %cst_50 : f32 to vector<256x32xf32>
    %46 = arith.maximumf %44, %45 : vector<256x32xf32>
    %47 = vector.shape_cast %46 : vector<256x32xf32> to vector<8x2x16x32xf32>
    %48 = vector.extract_strided_slice %47 {offsets = [0, 0, 0, 0], sizes = [8, 1, 16, 32], strides = [1, 1, 1, 1]} : vector<8x2x16x32xf32> to vector<8x1x16x32xf32>
    %49 = vector.shape_cast %48 : vector<8x1x16x32xf32> to vector<8x16x32xf32>
    %50 = vector.extract_strided_slice %47 {offsets = [0, 1, 0, 0], sizes = [8, 1, 16, 32], strides = [1, 1, 1, 1]} : vector<8x2x16x32xf32> to vector<8x1x16x32xf32>
    %51 = vector.shape_cast %50 : vector<8x1x16x32xf32> to vector<8x16x32xf32>
    %52 = arith.maximumf %49, %51 : vector<8x16x32xf32>
    %53 = vector.shape_cast %52 : vector<8x16x32xf32> to vector<128x32xf32>
    %54 = arith.truncf %53 : vector<128x32xf32> to vector<128x32xbf16>
    %c0_51 = arith.constant 0 : index
    %c0_52 = arith.constant 0 : index
    %55 = vector.load %arg16[%c0_51, %c0_52] : memref<64x128xbf16, #tpu.memory_space<vmem>>, vector<64x128xbf16>
    %cst_53 = arith.constant dense<0.000000e+00> : vector<64x32xf32>
    %56 = tpu.matmul %55, %54, %cst_53 {dimension_numbers = #tpu.dot_dimension_numbers<[1], [0], [0], [1], [0, 0, 1, 1], [], []>} : vector<64x128xbf16>, vector<128x32xbf16>, vector<64x32xf32> -> vector<64x32xf32>
    %c0_54 = arith.constant 0 : index
    %c0_55 = arith.constant 0 : index
    %57 = vector.load %arg17[%c0_54, %c0_55] : memref<64x128xbf16, #tpu.memory_space<vmem>>, vector<64x128xbf16>
    %cst_56 = arith.constant dense<0.000000e+00> : vector<64x32xf32>
    %58 = tpu.matmul %57, %54, %cst_56 {dimension_numbers = #tpu.dot_dimension_numbers<[1], [0], [0], [1], [0, 0, 1, 1], [], []>} : vector<64x128xbf16>, vector<128x32xbf16>, vector<64x32xf32> -> vector<64x32xf32>
    %59 = arith.maximumf %56, %58 : vector<64x32xf32>
    %60 = arith.truncf %59 : vector<64x32xf32> to vector<64x32xbf16>
    %61 = vector.shape_cast %60 : vector<64x32xbf16> to vector<8x8x32xbf16>
    %c0_57 = arith.constant 0 : index
    %c1_58 = arith.constant 1 : index
    %c1_59 = arith.constant 1 : index
    %c0_60 = arith.constant 0 : index
    %62 = vector.load %arg21[%c0_57, %c1_58, %c1_59, %c0_60] : memref<2x10x10x32xbf16, #tpu.memory_space<vmem>>, vector<1x8x8x32xbf16>
    %63 = vector.shape_cast %62 : vector<1x8x8x32xbf16> to vector<8x8x32xbf16>
    %64 = vector.shape_cast %61 : vector<8x8x32xbf16> to vector<1x8x8x32xbf16>
    tpu.vector_store %arg21[%c0_57, %c1_58, %c1_59, %c0_60], %64 {strides = array<i32>} : memref<2x10x10x32xbf16, #tpu.memory_space<vmem>>, vector<1x8x8x32xbf16>,
    %c0_61 = arith.constant 0 : index
    %c0_62 = arith.constant 0 : index
    %c0_63 = arith.constant 0 : index
    %c0_64 = arith.constant 0 : index
    %65 = vector.load %arg21[%c0_61, %c0_62, %c0_63, %c0_64] : memref<2x10x10x32xbf16, #tpu.memory_space<vmem>>, vector<1x8x8x32xbf16>
    %66 = vector.shape_cast %65 : vector<1x8x8x32xbf16> to vector<8x8x32xbf16>
    %67 = vector.shape_cast %66 : vector<8x8x32xbf16> to vector<64x32xbf16>
    %c0_65 = arith.constant 0 : index
    %c0_66 = arith.constant 0 : index
    %68 = vector.load %arg23[%c0_65, %c0_66] : memref<64x288xbf16, #tpu.memory_space<vmem>>, vector<64x32xbf16>
    tpu.vector_store %arg23[%c0_65, %c0_66], %67 {strides = array<i32>} : memref<64x288xbf16, #tpu.memory_space<vmem>>, vector<64x32xbf16>,
    %c0_67 = arith.constant 0 : index
    %c0_68 = arith.constant 0 : index
    %c1_69 = arith.constant 1 : index
    %c0_70 = arith.constant 0 : index
    %69 = vector.load %arg21[%c0_67, %c0_68, %c1_69, %c0_70] : memref<2x10x10x32xbf16, #tpu.memory_space<vmem>>, vector<1x8x8x32xbf16>
    %70 = vector.shape_cast %69 : vector<1x8x8x32xbf16> to vector<8x8x32xbf16>
    %71 = vector.shape_cast %70 : vector<8x8x32xbf16> to vector<64x32xbf16>
    %c0_71 = arith.constant 0 : index
    %c32 = arith.constant 32 : index
    %72 = vector.load %arg23[%c0_71, %c32] : memref<64x288xbf16, #tpu.memory_space<vmem>>, vector<64x32xbf16>
    tpu.vector_store %arg23[%c0_71, %c32], %71 {strides = array<i32>} : memref<64x288xbf16, #tpu.memory_space<vmem>>, vector<64x32xbf16>,
    %c0_72 = arith.constant 0 : index
    %c0_73 = arith.constant 0 : index
    %c2_74 = arith.constant 2 : index
    %c0_75 = arith.constant 0 : index
    %73 = vector.load %arg21[%c0_72, %c0_73, %c2_74, %c0_75] : memref<2x10x10x32xbf16, #tpu.memory_space<vmem>>, vector<1x8x8x32xbf16>
    %74 = vector.shape_cast %73 : vector<1x8x8x32xbf16> to vector<8x8x32xbf16>
    %75 = vector.shape_cast %74 : vector<8x8x32xbf16> to vector<64x32xbf16>
    %c0_76 = arith.constant 0 : index
    %c64 = arith.constant 64 : index
    %76 = vector.load %arg23[%c0_76, %c64] : memref<64x288xbf16, #tpu.memory_space<vmem>>, vector<64x32xbf16>
    tpu.vector_store %arg23[%c0_76, %c64], %75 {strides = array<i32>} : memref<64x288xbf16, #tpu.memory_space<vmem>>, vector<64x32xbf16>,
    %c0_77 = arith.constant 0 : index
    %c1_78 = arith.constant 1 : index
    %c0_79 = arith.constant 0 : index
    %c0_80 = arith.constant 0 : index
    %77 = vector.load %arg21[%c0_77, %c1_78, %c0_79, %c0_80] : memref<2x10x10x32xbf16, #tpu.memory_space<vmem>>, vector<1x8x8x32xbf16>
    %78 = vector.shape_cast %77 : vector<1x8x8x32xbf16> to vector<8x8x32xbf16>
    %79 = vector.shape_cast %78 : vector<8x8x32xbf16> to vector<64x32xbf16>
    %c0_81 = arith.constant 0 : index
    %c96 = arith.constant 96 : index
    %80 = vector.load %arg23[%c0_81, %c96] : memref<64x288xbf16, #tpu.memory_space<vmem>>, vector<64x32xbf16>
    tpu.vector_store %arg23[%c0_81, %c96], %79 {strides = array<i32>} : memref<64x288xbf16, #tpu.memory_space<vmem>>, vector<64x32xbf16>,
    %c0_82 = arith.constant 0 : index
    %c1_83 = arith.constant 1 : index
    %c1_84 = arith.constant 1 : index
    %c0_85 = arith.constant 0 : index
    %81 = vector.load %arg21[%c0_82, %c1_83, %c1_84, %c0_85] : memref<2x10x10x32xbf16, #tpu.memory_space<vmem>>, vector<1x8x8x32xbf16>
    %82 = vector.shape_cast %81 : vector<1x8x8x32xbf16> to vector<8x8x32xbf16>
    %83 = vector.shape_cast %82 : vector<8x8x32xbf16> to vector<64x32xbf16>
    %c0_86 = arith.constant 0 : index
    %c128 = arith.constant 128 : index
    %84 = vector.load %arg23[%c0_86, %c128] : memref<64x288xbf16, #tpu.memory_space<vmem>>, vector<64x32xbf16>
    tpu.vector_store %arg23[%c0_86, %c128], %83 {strides = array<i32>} : memref<64x288xbf16, #tpu.memory_space<vmem>>, vector<64x32xbf16>,
    %c0_87 = arith.constant 0 : index
    %c1_88 = arith.constant 1 : index
    %c2_89 = arith.constant 2 : index
    %c0_90 = arith.constant 0 : index
    %85 = vector.load %arg21[%c0_87, %c1_88, %c2_89, %c0_90] : memref<2x10x10x32xbf16, #tpu.memory_space<vmem>>, vector<1x8x8x32xbf16>
    %86 = vector.shape_cast %85 : vector<1x8x8x32xbf16> to vector<8x8x32xbf16>
    %87 = vector.shape_cast %86 : vector<8x8x32xbf16> to vector<64x32xbf16>
    %c0_91 = arith.constant 0 : index
    %c160 = arith.constant 160 : index
    %88 = vector.load %arg23[%c0_91, %c160] : memref<64x288xbf16, #tpu.memory_space<vmem>>, vector<64x32xbf16>
    tpu.vector_store %arg23[%c0_91, %c160], %87 {strides = array<i32>} : memref<64x288xbf16, #tpu.memory_space<vmem>>, vector<64x32xbf16>,
    %c0_92 = arith.constant 0 : index
    %c2_93 = arith.constant 2 : index
    %c0_94 = arith.constant 0 : index
    %c0_95 = arith.constant 0 : index
    %89 = vector.load %arg21[%c0_92, %c2_93, %c0_94, %c0_95] : memref<2x10x10x32xbf16, #tpu.memory_space<vmem>>, vector<1x8x8x32xbf16>
    %90 = vector.shape_cast %89 : vector<1x8x8x32xbf16> to vector<8x8x32xbf16>
    %91 = vector.shape_cast %90 : vector<8x8x32xbf16> to vector<64x32xbf16>
    %c0_96 = arith.constant 0 : index
    %c192 = arith.constant 192 : index
    %92 = vector.load %arg23[%c0_96, %c192] : memref<64x288xbf16, #tpu.memory_space<vmem>>, vector<64x32xbf16>
    tpu.vector_store %arg23[%c0_96, %c192], %91 {strides = array<i32>} : memref<64x288xbf16, #tpu.memory_space<vmem>>, vector<64x32xbf16>,
    %c0_97 = arith.constant 0 : index
    %c2_98 = arith.constant 2 : index
    %c1_99 = arith.constant 1 : index
    %c0_100 = arith.constant 0 : index
    %93 = vector.load %arg21[%c0_97, %c2_98, %c1_99, %c0_100] : memref<2x10x10x32xbf16, #tpu.memory_space<vmem>>, vector<1x8x8x32xbf16>
    %94 = vector.shape_cast %93 : vector<1x8x8x32xbf16> to vector<8x8x32xbf16>
    %95 = vector.shape_cast %94 : vector<8x8x32xbf16> to vector<64x32xbf16>
    %c0_101 = arith.constant 0 : index
    %c224 = arith.constant 224 : index
    %96 = vector.load %arg23[%c0_101, %c224] : memref<64x288xbf16, #tpu.memory_space<vmem>>, vector<64x32xbf16>
    tpu.vector_store %arg23[%c0_101, %c224], %95 {strides = array<i32>} : memref<64x288xbf16, #tpu.memory_space<vmem>>, vector<64x32xbf16>,
    %c0_102 = arith.constant 0 : index
    %c2_103 = arith.constant 2 : index
    %c2_104 = arith.constant 2 : index
    %c0_105 = arith.constant 0 : index
    %97 = vector.load %arg21[%c0_102, %c2_103, %c2_104, %c0_105] : memref<2x10x10x32xbf16, #tpu.memory_space<vmem>>, vector<1x8x8x32xbf16>
    %98 = vector.shape_cast %97 : vector<1x8x8x32xbf16> to vector<8x8x32xbf16>
    %99 = vector.shape_cast %98 : vector<8x8x32xbf16> to vector<64x32xbf16>
    %c0_106 = arith.constant 0 : index
    %c256 = arith.constant 256 : index
    %100 = vector.load %arg23[%c0_106, %c256] : memref<64x288xbf16, #tpu.memory_space<vmem>>, vector<64x32xbf16>
    tpu.vector_store %arg23[%c0_106, %c256], %99 {strides = array<i32>} : memref<64x288xbf16, #tpu.memory_space<vmem>>, vector<64x32xbf16>,
    %c0_107 = arith.constant 0 : index
    %c0_108 = arith.constant 0 : index
    %101 = vector.load %arg23[%c0_107, %c0_108] : memref<64x288xbf16, #tpu.memory_space<vmem>>, vector<64x288xbf16>
    %c0_109 = arith.constant 0 : index
    %c0_110 = arith.constant 0 : index
    %102 = vector.load %arg5[%c0_109, %c0_110] : memref<288x64xbf16, #tpu.memory_space<vmem>>, vector<288x64xbf16>
    %cst_111 = arith.constant dense<0.000000e+00> : vector<64x64xf32>
    %103 = tpu.matmul %101, %102, %cst_111 {dimension_numbers = #tpu.dot_dimension_numbers<[1], [0], [0], [1], [0, 0, 1, 1], [], []>} : vector<64x288xbf16>, vector<288x64xbf16>, vector<64x64xf32> -> vector<64x64xf32>
    %c0_112 = arith.constant 0 : index
    %c0_113 = arith.constant 0 : index
    %104 = vector.load %arg6[%c0_112, %c0_113] : memref<1x64xf32, #tpu.memory_space<vmem>>, vector<1x64xf32>
    %105 = vector.broadcast %104 : vector<1x64xf32> to vector<64x64xf32>
    %106 = arith.addf %103, %105 : vector<64x64xf32>
    %cst_114 = arith.constant 0.000000e+00 : f32
    %107 = vector.broadcast %cst_114 : f32 to vector<64x64xf32>
    %108 = arith.maximumf %106, %107 : vector<64x64xf32>
    %109 = vector.shape_cast %108 : vector<64x64xf32> to vector<4x2x8x64xf32>
    %110 = vector.extract_strided_slice %109 {offsets = [0, 0, 0, 0], sizes = [4, 1, 8, 64], strides = [1, 1, 1, 1]} : vector<4x2x8x64xf32> to vector<4x1x8x64xf32>
    %111 = vector.shape_cast %110 : vector<4x1x8x64xf32> to vector<4x8x64xf32>
    %112 = vector.extract_strided_slice %109 {offsets = [0, 1, 0, 0], sizes = [4, 1, 8, 64], strides = [1, 1, 1, 1]} : vector<4x2x8x64xf32> to vector<4x1x8x64xf32>
    %113 = vector.shape_cast %112 : vector<4x1x8x64xf32> to vector<4x8x64xf32>
    %114 = arith.maximumf %111, %113 : vector<4x8x64xf32>
    %115 = vector.shape_cast %114 : vector<4x8x64xf32> to vector<32x64xf32>
    %116 = arith.truncf %115 : vector<32x64xf32> to vector<32x64xbf16>
    %c0_115 = arith.constant 0 : index
    %c0_116 = arith.constant 0 : index
    %117 = vector.load %arg18[%c0_115, %c0_116] : memref<16x32xbf16, #tpu.memory_space<vmem>>, vector<16x32xbf16>
    %cst_117 = arith.constant dense<0.000000e+00> : vector<16x64xf32>
    %118 = tpu.matmul %117, %116, %cst_117 {dimension_numbers = #tpu.dot_dimension_numbers<[1], [0], [0], [1], [0, 0, 1, 1], [], []>} : vector<16x32xbf16>, vector<32x64xbf16>, vector<16x64xf32> -> vector<16x64xf32>
    %c0_118 = arith.constant 0 : index
    %c0_119 = arith.constant 0 : index
    %119 = vector.load %arg19[%c0_118, %c0_119] : memref<16x32xbf16, #tpu.memory_space<vmem>>, vector<16x32xbf16>
    %cst_120 = arith.constant dense<0.000000e+00> : vector<16x64xf32>
    %120 = tpu.matmul %119, %116, %cst_120 {dimension_numbers = #tpu.dot_dimension_numbers<[1], [0], [0], [1], [0, 0, 1, 1], [], []>} : vector<16x32xbf16>, vector<32x64xbf16>, vector<16x64xf32> -> vector<16x64xf32>
    %121 = arith.maximumf %118, %120 : vector<16x64xf32>
    %122 = arith.truncf %121 : vector<16x64xf32> to vector<16x64xbf16>
    %123 = vector.extract_strided_slice %122 {offsets = [0, 0], sizes = [1, 64], strides = [1, 1]} : vector<16x64xbf16> to vector<1x64xbf16>
    %c0_121 = arith.constant 0 : index
    %c0_122 = arith.constant 0 : index
    %124 = vector.load %arg24[%c0_121, %c0_122] : memref<2x1024xbf16, #tpu.memory_space<vmem>>, vector<1x64xbf16>
    tpu.vector_store %arg24[%c0_121, %c0_122], %123 {strides = array<i32>} : memref<2x1024xbf16, #tpu.memory_space<vmem>>, vector<1x64xbf16>,
    %125 = vector.extract_strided_slice %122 {offsets = [1, 0], sizes = [1, 64], strides = [1, 1]} : vector<16x64xbf16> to vector<1x64xbf16>
    %c0_123 = arith.constant 0 : index
    %c64_124 = arith.constant 64 : index
    %126 = vector.load %arg24[%c0_123, %c64_124] : memref<2x1024xbf16, #tpu.memory_space<vmem>>, vector<1x64xbf16>
    tpu.vector_store %arg24[%c0_123, %c64_124], %125 {strides = array<i32>} : memref<2x1024xbf16, #tpu.memory_space<vmem>>, vector<1x64xbf16>,
    %127 = vector.extract_strided_slice %122 {offsets = [2, 0], sizes = [1, 64], strides = [1, 1]} : vector<16x64xbf16> to vector<1x64xbf16>
    %c0_125 = arith.constant 0 : index
    %c128_126 = arith.constant 128 : index
    %128 = vector.load %arg24[%c0_125, %c128_126] : memref<2x1024xbf16, #tpu.memory_space<vmem>>, vector<1x64xbf16>
    tpu.vector_store %arg24[%c0_125, %c128_126], %127 {strides = array<i32>} : memref<2x1024xbf16, #tpu.memory_space<vmem>>, vector<1x64xbf16>,
    %129 = vector.extract_strided_slice %122 {offsets = [3, 0], sizes = [1, 64], strides = [1, 1]} : vector<16x64xbf16> to vector<1x64xbf16>
    %c0_127 = arith.constant 0 : index
    %c192_128 = arith.constant 192 : index
    %130 = vector.load %arg24[%c0_127, %c192_128] : memref<2x1024xbf16, #tpu.memory_space<vmem>>, vector<1x64xbf16>
    tpu.vector_store %arg24[%c0_127, %c192_128], %129 {strides = array<i32>} : memref<2x1024xbf16, #tpu.memory_space<vmem>>, vector<1x64xbf16>,
    %131 = vector.extract_strided_slice %122 {offsets = [4, 0], sizes = [1, 64], strides = [1, 1]} : vector<16x64xbf16> to vector<1x64xbf16>
    %c0_129 = arith.constant 0 : index
    %c256_130 = arith.constant 256 : index
    %132 = vector.load %arg24[%c0_129, %c256_130] : memref<2x1024xbf16, #tpu.memory_space<vmem>>, vector<1x64xbf16>
    tpu.vector_store %arg24[%c0_129, %c256_130], %131 {strides = array<i32>} : memref<2x1024xbf16, #tpu.memory_space<vmem>>, vector<1x64xbf16>,
    %133 = vector.extract_strided_slice %122 {offsets = [5, 0], sizes = [1, 64], strides = [1, 1]} : vector<16x64xbf16> to vector<1x64xbf16>
    %c0_131 = arith.constant 0 : index
    %c320 = arith.constant 320 : index
    %134 = vector.load %arg24[%c0_131, %c320] : memref<2x1024xbf16, #tpu.memory_space<vmem>>, vector<1x64xbf16>
    tpu.vector_store %arg24[%c0_131, %c320], %133 {strides = array<i32>} : memref<2x1024xbf16, #tpu.memory_space<vmem>>, vector<1x64xbf16>,
    %135 = vector.extract_strided_slice %122 {offsets = [6, 0], sizes = [1, 64], strides = [1, 1]} : vector<16x64xbf16> to vector<1x64xbf16>
    %c0_132 = arith.constant 0 : index
    %c384 = arith.constant 384 : index
    %136 = vector.load %arg24[%c0_132, %c384] : memref<2x1024xbf16, #tpu.memory_space<vmem>>, vector<1x64xbf16>
    tpu.vector_store %arg24[%c0_132, %c384], %135 {strides = array<i32>} : memref<2x1024xbf16, #tpu.memory_space<vmem>>, vector<1x64xbf16>,
    %137 = vector.extract_strided_slice %122 {offsets = [7, 0], sizes = [1, 64], strides = [1, 1]} : vector<16x64xbf16> to vector<1x64xbf16>
    %c0_133 = arith.constant 0 : index
    %c448 = arith.constant 448 : index
    %138 = vector.load %arg24[%c0_133, %c448] : memref<2x1024xbf16, #tpu.memory_space<vmem>>, vector<1x64xbf16>
    tpu.vector_store %arg24[%c0_133, %c448], %137 {strides = array<i32>} : memref<2x1024xbf16, #tpu.memory_space<vmem>>, vector<1x64xbf16>,
    %139 = vector.extract_strided_slice %122 {offsets = [8, 0], sizes = [1, 64], strides = [1, 1]} : vector<16x64xbf16> to vector<1x64xbf16>
    %c0_134 = arith.constant 0 : index
    %c512 = arith.constant 512 : index
    %140 = vector.load %arg24[%c0_134, %c512] : memref<2x1024xbf16, #tpu.memory_space<vmem>>, vector<1x64xbf16>
    tpu.vector_store %arg24[%c0_134, %c512], %139 {strides = array<i32>} : memref<2x1024xbf16, #tpu.memory_space<vmem>>, vector<1x64xbf16>,
    %141 = vector.extract_strided_slice %122 {offsets = [9, 0], sizes = [1, 64], strides = [1, 1]} : vector<16x64xbf16> to vector<1x64xbf16>
    %c0_135 = arith.constant 0 : index
    %c576 = arith.constant 576 : index
    %142 = vector.load %arg24[%c0_135, %c576] : memref<2x1024xbf16, #tpu.memory_space<vmem>>, vector<1x64xbf16>
    tpu.vector_store %arg24[%c0_135, %c576], %141 {strides = array<i32>} : memref<2x1024xbf16, #tpu.memory_space<vmem>>, vector<1x64xbf16>,
    %143 = vector.extract_strided_slice %122 {offsets = [10, 0], sizes = [1, 64], strides = [1, 1]} : vector<16x64xbf16> to vector<1x64xbf16>
    %c0_136 = arith.constant 0 : index
    %c640 = arith.constant 640 : index
    %144 = vector.load %arg24[%c0_136, %c640] : memref<2x1024xbf16, #tpu.memory_space<vmem>>, vector<1x64xbf16>
    tpu.vector_store %arg24[%c0_136, %c640], %143 {strides = array<i32>} : memref<2x1024xbf16, #tpu.memory_space<vmem>>, vector<1x64xbf16>,
    %145 = vector.extract_strided_slice %122 {offsets = [11, 0], sizes = [1, 64], strides = [1, 1]} : vector<16x64xbf16> to vector<1x64xbf16>
    %c0_137 = arith.constant 0 : index
    %c704 = arith.constant 704 : index
    %146 = vector.load %arg24[%c0_137, %c704] : memref<2x1024xbf16, #tpu.memory_space<vmem>>, vector<1x64xbf16>
    tpu.vector_store %arg24[%c0_137, %c704], %145 {strides = array<i32>} : memref<2x1024xbf16, #tpu.memory_space<vmem>>, vector<1x64xbf16>,
    %147 = vector.extract_strided_slice %122 {offsets = [12, 0], sizes = [1, 64], strides = [1, 1]} : vector<16x64xbf16> to vector<1x64xbf16>
    %c0_138 = arith.constant 0 : index
    %c768 = arith.constant 768 : index
    %148 = vector.load %arg24[%c0_138, %c768] : memref<2x1024xbf16, #tpu.memory_space<vmem>>, vector<1x64xbf16>
    tpu.vector_store %arg24[%c0_138, %c768], %147 {strides = array<i32>} : memref<2x1024xbf16, #tpu.memory_space<vmem>>, vector<1x64xbf16>,
    %149 = vector.extract_strided_slice %122 {offsets = [13, 0], sizes = [1, 64], strides = [1, 1]} : vector<16x64xbf16> to vector<1x64xbf16>
    %c0_139 = arith.constant 0 : index
    %c832 = arith.constant 832 : index
    %150 = vector.load %arg24[%c0_139, %c832] : memref<2x1024xbf16, #tpu.memory_space<vmem>>, vector<1x64xbf16>
    tpu.vector_store %arg24[%c0_139, %c832], %149 {strides = array<i32>} : memref<2x1024xbf16, #tpu.memory_space<vmem>>, vector<1x64xbf16>,
    %151 = vector.extract_strided_slice %122 {offsets = [14, 0], sizes = [1, 64], strides = [1, 1]} : vector<16x64xbf16> to vector<1x64xbf16>
    %c0_140 = arith.constant 0 : index
    %c896 = arith.constant 896 : index
    %152 = vector.load %arg24[%c0_140, %c896] : memref<2x1024xbf16, #tpu.memory_space<vmem>>, vector<1x64xbf16>
    tpu.vector_store %arg24[%c0_140, %c896], %151 {strides = array<i32>} : memref<2x1024xbf16, #tpu.memory_space<vmem>>, vector<1x64xbf16>,
    %153 = vector.extract_strided_slice %122 {offsets = [15, 0], sizes = [1, 64], strides = [1, 1]} : vector<16x64xbf16> to vector<1x64xbf16>
    %c0_141 = arith.constant 0 : index
    %c960 = arith.constant 960 : index
    %154 = vector.load %arg24[%c0_141, %c960] : memref<2x1024xbf16, #tpu.memory_space<vmem>>, vector<1x64xbf16>
    tpu.vector_store %arg24[%c0_141, %c960], %153 {strides = array<i32>} : memref<2x1024xbf16, #tpu.memory_space<vmem>>, vector<1x64xbf16>,
    %c1_142 = arith.constant 1 : index
    %c0_143 = arith.constant 0 : index
    %c0_144 = arith.constant 0 : index
    %c0_145 = arith.constant 0 : index
    %155 = vector.load %arg1[%c1_142, %c0_143, %c0_144, %c0_145] : memref<2x18x18x3xbf16, #tpu.memory_space<vmem>>, vector<1x16x16x3xbf16>
    %156 = vector.shape_cast %155 : vector<1x16x16x3xbf16> to vector<16x16x3xbf16>
    %157 = vector.shape_cast %156 : vector<16x16x3xbf16> to vector<256x3xbf16>
    %c0_146 = arith.constant 0 : index
    %c0_147 = arith.constant 0 : index
    %158 = vector.load %arg22[%c0_146, %c0_147] : memref<256x27xbf16, #tpu.memory_space<vmem>>, vector<256x3xbf16>
    tpu.vector_store %arg22[%c0_146, %c0_147], %157 {strides = array<i32>} : memref<256x27xbf16, #tpu.memory_space<vmem>>, vector<256x3xbf16>,
    %c1_148 = arith.constant 1 : index
    %c0_149 = arith.constant 0 : index
    %c1_150 = arith.constant 1 : index
    %c0_151 = arith.constant 0 : index
    %159 = vector.load %arg1[%c1_148, %c0_149, %c1_150, %c0_151] : memref<2x18x18x3xbf16, #tpu.memory_space<vmem>>, vector<1x16x16x3xbf16>
    %160 = vector.shape_cast %159 : vector<1x16x16x3xbf16> to vector<16x16x3xbf16>
    %161 = vector.shape_cast %160 : vector<16x16x3xbf16> to vector<256x3xbf16>
    %c0_152 = arith.constant 0 : index
    %c3_153 = arith.constant 3 : index
    %162 = vector.load %arg22[%c0_152, %c3_153] : memref<256x27xbf16, #tpu.memory_space<vmem>>, vector<256x3xbf16>
    tpu.vector_store %arg22[%c0_152, %c3_153], %161 {strides = array<i32>} : memref<256x27xbf16, #tpu.memory_space<vmem>>, vector<256x3xbf16>,
    %c1_154 = arith.constant 1 : index
    %c0_155 = arith.constant 0 : index
    %c2_156 = arith.constant 2 : index
    %c0_157 = arith.constant 0 : index
    %163 = vector.load %arg1[%c1_154, %c0_155, %c2_156, %c0_157] : memref<2x18x18x3xbf16, #tpu.memory_space<vmem>>, vector<1x16x16x3xbf16>
    %164 = vector.shape_cast %163 : vector<1x16x16x3xbf16> to vector<16x16x3xbf16>
    %165 = vector.shape_cast %164 : vector<16x16x3xbf16> to vector<256x3xbf16>
    %c0_158 = arith.constant 0 : index
    %c6_159 = arith.constant 6 : index
    %166 = vector.load %arg22[%c0_158, %c6_159] : memref<256x27xbf16, #tpu.memory_space<vmem>>, vector<256x3xbf16>
    tpu.vector_store %arg22[%c0_158, %c6_159], %165 {strides = array<i32>} : memref<256x27xbf16, #tpu.memory_space<vmem>>, vector<256x3xbf16>,
    %c1_160 = arith.constant 1 : index
    %c1_161 = arith.constant 1 : index
    %c0_162 = arith.constant 0 : index
    %c0_163 = arith.constant 0 : index
    %167 = vector.load %arg1[%c1_160, %c1_161, %c0_162, %c0_163] : memref<2x18x18x3xbf16, #tpu.memory_space<vmem>>, vector<1x16x16x3xbf16>
    %168 = vector.shape_cast %167 : vector<1x16x16x3xbf16> to vector<16x16x3xbf16>
    %169 = vector.shape_cast %168 : vector<16x16x3xbf16> to vector<256x3xbf16>
    %c0_164 = arith.constant 0 : index
    %c9_165 = arith.constant 9 : index
    %170 = vector.load %arg22[%c0_164, %c9_165] : memref<256x27xbf16, #tpu.memory_space<vmem>>, vector<256x3xbf16>
    tpu.vector_store %arg22[%c0_164, %c9_165], %169 {strides = array<i32>} : memref<256x27xbf16, #tpu.memory_space<vmem>>, vector<256x3xbf16>,
    %c1_166 = arith.constant 1 : index
    %c1_167 = arith.constant 1 : index
    %c1_168 = arith.constant 1 : index
    %c0_169 = arith.constant 0 : index
    %171 = vector.load %arg1[%c1_166, %c1_167, %c1_168, %c0_169] : memref<2x18x18x3xbf16, #tpu.memory_space<vmem>>, vector<1x16x16x3xbf16>
    %172 = vector.shape_cast %171 : vector<1x16x16x3xbf16> to vector<16x16x3xbf16>
    %173 = vector.shape_cast %172 : vector<16x16x3xbf16> to vector<256x3xbf16>
    %c0_170 = arith.constant 0 : index
    %c12_171 = arith.constant 12 : index
    %174 = vector.load %arg22[%c0_170, %c12_171] : memref<256x27xbf16, #tpu.memory_space<vmem>>, vector<256x3xbf16>
    tpu.vector_store %arg22[%c0_170, %c12_171], %173 {strides = array<i32>} : memref<256x27xbf16, #tpu.memory_space<vmem>>, vector<256x3xbf16>,
    %c1_172 = arith.constant 1 : index
    %c1_173 = arith.constant 1 : index
    %c2_174 = arith.constant 2 : index
    %c0_175 = arith.constant 0 : index
    %175 = vector.load %arg1[%c1_172, %c1_173, %c2_174, %c0_175] : memref<2x18x18x3xbf16, #tpu.memory_space<vmem>>, vector<1x16x16x3xbf16>
    %176 = vector.shape_cast %175 : vector<1x16x16x3xbf16> to vector<16x16x3xbf16>
    %177 = vector.shape_cast %176 : vector<16x16x3xbf16> to vector<256x3xbf16>
    %c0_176 = arith.constant 0 : index
    %c15_177 = arith.constant 15 : index
    %178 = vector.load %arg22[%c0_176, %c15_177] : memref<256x27xbf16, #tpu.memory_space<vmem>>, vector<256x3xbf16>
    tpu.vector_store %arg22[%c0_176, %c15_177], %177 {strides = array<i32>} : memref<256x27xbf16, #tpu.memory_space<vmem>>, vector<256x3xbf16>,
    %c1_178 = arith.constant 1 : index
    %c2_179 = arith.constant 2 : index
    %c0_180 = arith.constant 0 : index
    %c0_181 = arith.constant 0 : index
    %179 = vector.load %arg1[%c1_178, %c2_179, %c0_180, %c0_181] : memref<2x18x18x3xbf16, #tpu.memory_space<vmem>>, vector<1x16x16x3xbf16>
    %180 = vector.shape_cast %179 : vector<1x16x16x3xbf16> to vector<16x16x3xbf16>
    %181 = vector.shape_cast %180 : vector<16x16x3xbf16> to vector<256x3xbf16>
    %c0_182 = arith.constant 0 : index
    %c18_183 = arith.constant 18 : index
    %182 = vector.load %arg22[%c0_182, %c18_183] : memref<256x27xbf16, #tpu.memory_space<vmem>>, vector<256x3xbf16>
    tpu.vector_store %arg22[%c0_182, %c18_183], %181 {strides = array<i32>} : memref<256x27xbf16, #tpu.memory_space<vmem>>, vector<256x3xbf16>,
    %c1_184 = arith.constant 1 : index
    %c2_185 = arith.constant 2 : index
    %c1_186 = arith.constant 1 : index
    %c0_187 = arith.constant 0 : index
    %183 = vector.load %arg1[%c1_184, %c2_185, %c1_186, %c0_187] : memref<2x18x18x3xbf16, #tpu.memory_space<vmem>>, vector<1x16x16x3xbf16>
    %184 = vector.shape_cast %183 : vector<1x16x16x3xbf16> to vector<16x16x3xbf16>
    %185 = vector.shape_cast %184 : vector<16x16x3xbf16> to vector<256x3xbf16>
    %c0_188 = arith.constant 0 : index
    %c21_189 = arith.constant 21 : index
    %186 = vector.load %arg22[%c0_188, %c21_189] : memref<256x27xbf16, #tpu.memory_space<vmem>>, vector<256x3xbf16>
    tpu.vector_store %arg22[%c0_188, %c21_189], %185 {strides = array<i32>} : memref<256x27xbf16, #tpu.memory_space<vmem>>, vector<256x3xbf16>,
    %c1_190 = arith.constant 1 : index
    %c2_191 = arith.constant 2 : index
    %c2_192 = arith.constant 2 : index
    %c0_193 = arith.constant 0 : index
    %187 = vector.load %arg1[%c1_190, %c2_191, %c2_192, %c0_193] : memref<2x18x18x3xbf16, #tpu.memory_space<vmem>>, vector<1x16x16x3xbf16>
    %188 = vector.shape_cast %187 : vector<1x16x16x3xbf16> to vector<16x16x3xbf16>
    %189 = vector.shape_cast %188 : vector<16x16x3xbf16> to vector<256x3xbf16>
    %c0_194 = arith.constant 0 : index
    %c24_195 = arith.constant 24 : index
    %190 = vector.load %arg22[%c0_194, %c24_195] : memref<256x27xbf16, #tpu.memory_space<vmem>>, vector<256x3xbf16>
    tpu.vector_store %arg22[%c0_194, %c24_195], %189 {strides = array<i32>} : memref<256x27xbf16, #tpu.memory_space<vmem>>, vector<256x3xbf16>,
    %c0_196 = arith.constant 0 : index
    %c0_197 = arith.constant 0 : index
    %191 = vector.load %arg22[%c0_196, %c0_197] : memref<256x27xbf16, #tpu.memory_space<vmem>>, vector<256x27xbf16>
    %c0_198 = arith.constant 0 : index
    %c0_199 = arith.constant 0 : index
    %192 = vector.load %arg3[%c0_198, %c0_199] : memref<27x32xbf16, #tpu.memory_space<vmem>>, vector<27x32xbf16>
    %cst_200 = arith.constant dense<0.000000e+00> : vector<256x32xf32>
    %193 = tpu.matmul %191, %192, %cst_200 {dimension_numbers = #tpu.dot_dimension_numbers<[1], [0], [0], [1], [0, 0, 1, 1], [], []>} : vector<256x27xbf16>, vector<27x32xbf16>, vector<256x32xf32> -> vector<256x32xf32>
    %c0_201 = arith.constant 0 : index
    %c0_202 = arith.constant 0 : index
    %194 = vector.load %arg4[%c0_201, %c0_202] : memref<1x32xf32, #tpu.memory_space<vmem>>, vector<1x32xf32>
    %195 = vector.broadcast %194 : vector<1x32xf32> to vector<256x32xf32>
    %196 = arith.addf %193, %195 : vector<256x32xf32>
    %cst_203 = arith.constant 0.000000e+00 : f32
    %197 = vector.broadcast %cst_203 : f32 to vector<256x32xf32>
    %198 = arith.maximumf %196, %197 : vector<256x32xf32>
    %199 = vector.shape_cast %198 : vector<256x32xf32> to vector<8x2x16x32xf32>
    %200 = vector.extract_strided_slice %199 {offsets = [0, 0, 0, 0], sizes = [8, 1, 16, 32], strides = [1, 1, 1, 1]} : vector<8x2x16x32xf32> to vector<8x1x16x32xf32>
    %201 = vector.shape_cast %200 : vector<8x1x16x32xf32> to vector<8x16x32xf32>
    %202 = vector.extract_strided_slice %199 {offsets = [0, 1, 0, 0], sizes = [8, 1, 16, 32], strides = [1, 1, 1, 1]} : vector<8x2x16x32xf32> to vector<8x1x16x32xf32>
    %203 = vector.shape_cast %202 : vector<8x1x16x32xf32> to vector<8x16x32xf32>
    %204 = arith.maximumf %201, %203 : vector<8x16x32xf32>
    %205 = vector.shape_cast %204 : vector<8x16x32xf32> to vector<128x32xf32>
    %206 = arith.truncf %205 : vector<128x32xf32> to vector<128x32xbf16>
    %c0_204 = arith.constant 0 : index
    %c0_205 = arith.constant 0 : index
    %207 = vector.load %arg16[%c0_204, %c0_205] : memref<64x128xbf16, #tpu.memory_space<vmem>>, vector<64x128xbf16>
    %cst_206 = arith.constant dense<0.000000e+00> : vector<64x32xf32>
    %208 = tpu.matmul %207, %206, %cst_206 {dimension_numbers = #tpu.dot_dimension_numbers<[1], [0], [0], [1], [0, 0, 1, 1], [], []>} : vector<64x128xbf16>, vector<128x32xbf16>, vector<64x32xf32> -> vector<64x32xf32>
    %c0_207 = arith.constant 0 : index
    %c0_208 = arith.constant 0 : index
    %209 = vector.load %arg17[%c0_207, %c0_208] : memref<64x128xbf16, #tpu.memory_space<vmem>>, vector<64x128xbf16>
    %cst_209 = arith.constant dense<0.000000e+00> : vector<64x32xf32>
    %210 = tpu.matmul %209, %206, %cst_209 {dimension_numbers = #tpu.dot_dimension_numbers<[1], [0], [0], [1], [0, 0, 1, 1], [], []>} : vector<64x128xbf16>, vector<128x32xbf16>, vector<64x32xf32> -> vector<64x32xf32>
    %211 = arith.maximumf %208, %210 : vector<64x32xf32>
    %212 = arith.truncf %211 : vector<64x32xf32> to vector<64x32xbf16>
    %213 = vector.shape_cast %212 : vector<64x32xbf16> to vector<8x8x32xbf16>
    %c1_210 = arith.constant 1 : index
    %c1_211 = arith.constant 1 : index
    %c1_212 = arith.constant 1 : index
    %c0_213 = arith.constant 0 : index
    %214 = vector.load %arg21[%c1_210, %c1_211, %c1_212, %c0_213] : memref<2x10x10x32xbf16, #tpu.memory_space<vmem>>, vector<1x8x8x32xbf16>
    %215 = vector.shape_cast %214 : vector<1x8x8x32xbf16> to vector<8x8x32xbf16>
    %216 = vector.shape_cast %213 : vector<8x8x32xbf16> to vector<1x8x8x32xbf16>
    tpu.vector_store %arg21[%c1_210, %c1_211, %c1_212, %c0_213], %216 {strides = array<i32>} : memref<2x10x10x32xbf16, #tpu.memory_space<vmem>>, vector<1x8x8x32xbf16>,
    %c1_214 = arith.constant 1 : index
    %c0_215 = arith.constant 0 : index
    %c0_216 = arith.constant 0 : index
    %c0_217 = arith.constant 0 : index
    %217 = vector.load %arg21[%c1_214, %c0_215, %c0_216, %c0_217] : memref<2x10x10x32xbf16, #tpu.memory_space<vmem>>, vector<1x8x8x32xbf16>
    %218 = vector.shape_cast %217 : vector<1x8x8x32xbf16> to vector<8x8x32xbf16>
    %219 = vector.shape_cast %218 : vector<8x8x32xbf16> to vector<64x32xbf16>
    %c0_218 = arith.constant 0 : index
    %c0_219 = arith.constant 0 : index
    %220 = vector.load %arg23[%c0_218, %c0_219] : memref<64x288xbf16, #tpu.memory_space<vmem>>, vector<64x32xbf16>
    tpu.vector_store %arg23[%c0_218, %c0_219], %219 {strides = array<i32>} : memref<64x288xbf16, #tpu.memory_space<vmem>>, vector<64x32xbf16>,
    %c1_220 = arith.constant 1 : index
    %c0_221 = arith.constant 0 : index
    %c1_222 = arith.constant 1 : index
    %c0_223 = arith.constant 0 : index
    %221 = vector.load %arg21[%c1_220, %c0_221, %c1_222, %c0_223] : memref<2x10x10x32xbf16, #tpu.memory_space<vmem>>, vector<1x8x8x32xbf16>
    %222 = vector.shape_cast %221 : vector<1x8x8x32xbf16> to vector<8x8x32xbf16>
    %223 = vector.shape_cast %222 : vector<8x8x32xbf16> to vector<64x32xbf16>
    %c0_224 = arith.constant 0 : index
    %c32_225 = arith.constant 32 : index
    %224 = vector.load %arg23[%c0_224, %c32_225] : memref<64x288xbf16, #tpu.memory_space<vmem>>, vector<64x32xbf16>
    tpu.vector_store %arg23[%c0_224, %c32_225], %223 {strides = array<i32>} : memref<64x288xbf16, #tpu.memory_space<vmem>>, vector<64x32xbf16>,
    %c1_226 = arith.constant 1 : index
    %c0_227 = arith.constant 0 : index
    %c2_228 = arith.constant 2 : index
    %c0_229 = arith.constant 0 : index
    %225 = vector.load %arg21[%c1_226, %c0_227, %c2_228, %c0_229] : memref<2x10x10x32xbf16, #tpu.memory_space<vmem>>, vector<1x8x8x32xbf16>
    %226 = vector.shape_cast %225 : vector<1x8x8x32xbf16> to vector<8x8x32xbf16>
    %227 = vector.shape_cast %226 : vector<8x8x32xbf16> to vector<64x32xbf16>
    %c0_230 = arith.constant 0 : index
    %c64_231 = arith.constant 64 : index
    %228 = vector.load %arg23[%c0_230, %c64_231] : memref<64x288xbf16, #tpu.memory_space<vmem>>, vector<64x32xbf16>
    tpu.vector_store %arg23[%c0_230, %c64_231], %227 {strides = array<i32>} : memref<64x288xbf16, #tpu.memory_space<vmem>>, vector<64x32xbf16>,
    %c1_232 = arith.constant 1 : index
    %c1_233 = arith.constant 1 : index
    %c0_234 = arith.constant 0 : index
    %c0_235 = arith.constant 0 : index
    %229 = vector.load %arg21[%c1_232, %c1_233, %c0_234, %c0_235] : memref<2x10x10x32xbf16, #tpu.memory_space<vmem>>, vector<1x8x8x32xbf16>
    %230 = vector.shape_cast %229 : vector<1x8x8x32xbf16> to vector<8x8x32xbf16>
    %231 = vector.shape_cast %230 : vector<8x8x32xbf16> to vector<64x32xbf16>
    %c0_236 = arith.constant 0 : index
    %c96_237 = arith.constant 96 : index
    %232 = vector.load %arg23[%c0_236, %c96_237] : memref<64x288xbf16, #tpu.memory_space<vmem>>, vector<64x32xbf16>
    tpu.vector_store %arg23[%c0_236, %c96_237], %231 {strides = array<i32>} : memref<64x288xbf16, #tpu.memory_space<vmem>>, vector<64x32xbf16>,
    %c1_238 = arith.constant 1 : index
    %c1_239 = arith.constant 1 : index
    %c1_240 = arith.constant 1 : index
    %c0_241 = arith.constant 0 : index
    %233 = vector.load %arg21[%c1_238, %c1_239, %c1_240, %c0_241] : memref<2x10x10x32xbf16, #tpu.memory_space<vmem>>, vector<1x8x8x32xbf16>
    %234 = vector.shape_cast %233 : vector<1x8x8x32xbf16> to vector<8x8x32xbf16>
    %235 = vector.shape_cast %234 : vector<8x8x32xbf16> to vector<64x32xbf16>
    %c0_242 = arith.constant 0 : index
    %c128_243 = arith.constant 128 : index
    %236 = vector.load %arg23[%c0_242, %c128_243] : memref<64x288xbf16, #tpu.memory_space<vmem>>, vector<64x32xbf16>
    tpu.vector_store %arg23[%c0_242, %c128_243], %235 {strides = array<i32>} : memref<64x288xbf16, #tpu.memory_space<vmem>>, vector<64x32xbf16>,
    %c1_244 = arith.constant 1 : index
    %c1_245 = arith.constant 1 : index
    %c2_246 = arith.constant 2 : index
    %c0_247 = arith.constant 0 : index
    %237 = vector.load %arg21[%c1_244, %c1_245, %c2_246, %c0_247] : memref<2x10x10x32xbf16, #tpu.memory_space<vmem>>, vector<1x8x8x32xbf16>
    %238 = vector.shape_cast %237 : vector<1x8x8x32xbf16> to vector<8x8x32xbf16>
    %239 = vector.shape_cast %238 : vector<8x8x32xbf16> to vector<64x32xbf16>
    %c0_248 = arith.constant 0 : index
    %c160_249 = arith.constant 160 : index
    %240 = vector.load %arg23[%c0_248, %c160_249] : memref<64x288xbf16, #tpu.memory_space<vmem>>, vector<64x32xbf16>
    tpu.vector_store %arg23[%c0_248, %c160_249], %239 {strides = array<i32>} : memref<64x288xbf16, #tpu.memory_space<vmem>>, vector<64x32xbf16>,
    %c1_250 = arith.constant 1 : index
    %c2_251 = arith.constant 2 : index
    %c0_252 = arith.constant 0 : index
    %c0_253 = arith.constant 0 : index
    %241 = vector.load %arg21[%c1_250, %c2_251, %c0_252, %c0_253] : memref<2x10x10x32xbf16, #tpu.memory_space<vmem>>, vector<1x8x8x32xbf16>
    %242 = vector.shape_cast %241 : vector<1x8x8x32xbf16> to vector<8x8x32xbf16>
    %243 = vector.shape_cast %242 : vector<8x8x32xbf16> to vector<64x32xbf16>
    %c0_254 = arith.constant 0 : index
    %c192_255 = arith.constant 192 : index
    %244 = vector.load %arg23[%c0_254, %c192_255] : memref<64x288xbf16, #tpu.memory_space<vmem>>, vector<64x32xbf16>
    tpu.vector_store %arg23[%c0_254, %c192_255], %243 {strides = array<i32>} : memref<64x288xbf16, #tpu.memory_space<vmem>>, vector<64x32xbf16>,
    %c1_256 = arith.constant 1 : index
    %c2_257 = arith.constant 2 : index
    %c1_258 = arith.constant 1 : index
    %c0_259 = arith.constant 0 : index
    %245 = vector.load %arg21[%c1_256, %c2_257, %c1_258, %c0_259] : memref<2x10x10x32xbf16, #tpu.memory_space<vmem>>, vector<1x8x8x32xbf16>
    %246 = vector.shape_cast %245 : vector<1x8x8x32xbf16> to vector<8x8x32xbf16>
    %247 = vector.shape_cast %246 : vector<8x8x32xbf16> to vector<64x32xbf16>
    %c0_260 = arith.constant 0 : index
    %c224_261 = arith.constant 224 : index
    %248 = vector.load %arg23[%c0_260, %c224_261] : memref<64x288xbf16, #tpu.memory_space<vmem>>, vector<64x32xbf16>
    tpu.vector_store %arg23[%c0_260, %c224_261], %247 {strides = array<i32>} : memref<64x288xbf16, #tpu.memory_space<vmem>>, vector<64x32xbf16>,
    %c1_262 = arith.constant 1 : index
    %c2_263 = arith.constant 2 : index
    %c2_264 = arith.constant 2 : index
    %c0_265 = arith.constant 0 : index
    %249 = vector.load %arg21[%c1_262, %c2_263, %c2_264, %c0_265] : memref<2x10x10x32xbf16, #tpu.memory_space<vmem>>, vector<1x8x8x32xbf16>
    %250 = vector.shape_cast %249 : vector<1x8x8x32xbf16> to vector<8x8x32xbf16>
    %251 = vector.shape_cast %250 : vector<8x8x32xbf16> to vector<64x32xbf16>
    %c0_266 = arith.constant 0 : index
    %c256_267 = arith.constant 256 : index
    %252 = vector.load %arg23[%c0_266, %c256_267] : memref<64x288xbf16, #tpu.memory_space<vmem>>, vector<64x32xbf16>
    tpu.vector_store %arg23[%c0_266, %c256_267], %251 {strides = array<i32>} : memref<64x288xbf16, #tpu.memory_space<vmem>>, vector<64x32xbf16>,
    %c0_268 = arith.constant 0 : index
    %c0_269 = arith.constant 0 : index
    %253 = vector.load %arg23[%c0_268, %c0_269] : memref<64x288xbf16, #tpu.memory_space<vmem>>, vector<64x288xbf16>
    %c0_270 = arith.constant 0 : index
    %c0_271 = arith.constant 0 : index
    %254 = vector.load %arg5[%c0_270, %c0_271] : memref<288x64xbf16, #tpu.memory_space<vmem>>, vector<288x64xbf16>
    %cst_272 = arith.constant dense<0.000000e+00> : vector<64x64xf32>
    %255 = tpu.matmul %253, %254, %cst_272 {dimension_numbers = #tpu.dot_dimension_numbers<[1], [0], [0], [1], [0, 0, 1, 1], [], []>} : vector<64x288xbf16>, vector<288x64xbf16>, vector<64x64xf32> -> vector<64x64xf32>
    %c0_273 = arith.constant 0 : index
    %c0_274 = arith.constant 0 : index
    %256 = vector.load %arg6[%c0_273, %c0_274] : memref<1x64xf32, #tpu.memory_space<vmem>>, vector<1x64xf32>
    %257 = vector.broadcast %256 : vector<1x64xf32> to vector<64x64xf32>
    %258 = arith.addf %255, %257 : vector<64x64xf32>
    %cst_275 = arith.constant 0.000000e+00 : f32
    %259 = vector.broadcast %cst_275 : f32 to vector<64x64xf32>
    %260 = arith.maximumf %258, %259 : vector<64x64xf32>
    %261 = vector.shape_cast %260 : vector<64x64xf32> to vector<4x2x8x64xf32>
    %262 = vector.extract_strided_slice %261 {offsets = [0, 0, 0, 0], sizes = [4, 1, 8, 64], strides = [1, 1, 1, 1]} : vector<4x2x8x64xf32> to vector<4x1x8x64xf32>
    %263 = vector.shape_cast %262 : vector<4x1x8x64xf32> to vector<4x8x64xf32>
    %264 = vector.extract_strided_slice %261 {offsets = [0, 1, 0, 0], sizes = [4, 1, 8, 64], strides = [1, 1, 1, 1]} : vector<4x2x8x64xf32> to vector<4x1x8x64xf32>
    %265 = vector.shape_cast %264 : vector<4x1x8x64xf32> to vector<4x8x64xf32>
    %266 = arith.maximumf %263, %265 : vector<4x8x64xf32>
    %267 = vector.shape_cast %266 : vector<4x8x64xf32> to vector<32x64xf32>
    %268 = arith.truncf %267 : vector<32x64xf32> to vector<32x64xbf16>
    %c0_276 = arith.constant 0 : index
    %c0_277 = arith.constant 0 : index
    %269 = vector.load %arg18[%c0_276, %c0_277] : memref<16x32xbf16, #tpu.memory_space<vmem>>, vector<16x32xbf16>
    %cst_278 = arith.constant dense<0.000000e+00> : vector<16x64xf32>
    %270 = tpu.matmul %269, %268, %cst_278 {dimension_numbers = #tpu.dot_dimension_numbers<[1], [0], [0], [1], [0, 0, 1, 1], [], []>} : vector<16x32xbf16>, vector<32x64xbf16>, vector<16x64xf32> -> vector<16x64xf32>
    %c0_279 = arith.constant 0 : index
    %c0_280 = arith.constant 0 : index
    %271 = vector.load %arg19[%c0_279, %c0_280] : memref<16x32xbf16, #tpu.memory_space<vmem>>, vector<16x32xbf16>
    %cst_281 = arith.constant dense<0.000000e+00> : vector<16x64xf32>
    %272 = tpu.matmul %271, %268, %cst_281 {dimension_numbers = #tpu.dot_dimension_numbers<[1], [0], [0], [1], [0, 0, 1, 1], [], []>} : vector<16x32xbf16>, vector<32x64xbf16>, vector<16x64xf32> -> vector<16x64xf32>
    %273 = arith.maximumf %270, %272 : vector<16x64xf32>
    %274 = arith.truncf %273 : vector<16x64xf32> to vector<16x64xbf16>
    %275 = vector.extract_strided_slice %274 {offsets = [0, 0], sizes = [1, 64], strides = [1, 1]} : vector<16x64xbf16> to vector<1x64xbf16>
    %c1_282 = arith.constant 1 : index
    %c0_283 = arith.constant 0 : index
    %276 = vector.load %arg24[%c1_282, %c0_283] : memref<2x1024xbf16, #tpu.memory_space<vmem>>, vector<1x64xbf16>
    tpu.vector_store %arg24[%c1_282, %c0_283], %275 {strides = array<i32>} : memref<2x1024xbf16, #tpu.memory_space<vmem>>, vector<1x64xbf16>,
    %277 = vector.extract_strided_slice %274 {offsets = [1, 0], sizes = [1, 64], strides = [1, 1]} : vector<16x64xbf16> to vector<1x64xbf16>
    %c1_284 = arith.constant 1 : index
    %c64_285 = arith.constant 64 : index
    %278 = vector.load %arg24[%c1_284, %c64_285] : memref<2x1024xbf16, #tpu.memory_space<vmem>>, vector<1x64xbf16>
    tpu.vector_store %arg24[%c1_284, %c64_285], %277 {strides = array<i32>} : memref<2x1024xbf16, #tpu.memory_space<vmem>>, vector<1x64xbf16>,
    %279 = vector.extract_strided_slice %274 {offsets = [2, 0], sizes = [1, 64], strides = [1, 1]} : vector<16x64xbf16> to vector<1x64xbf16>
    %c1_286 = arith.constant 1 : index
    %c128_287 = arith.constant 128 : index
    %280 = vector.load %arg24[%c1_286, %c128_287] : memref<2x1024xbf16, #tpu.memory_space<vmem>>, vector<1x64xbf16>
    tpu.vector_store %arg24[%c1_286, %c128_287], %279 {strides = array<i32>} : memref<2x1024xbf16, #tpu.memory_space<vmem>>, vector<1x64xbf16>,
    %281 = vector.extract_strided_slice %274 {offsets = [3, 0], sizes = [1, 64], strides = [1, 1]} : vector<16x64xbf16> to vector<1x64xbf16>
    %c1_288 = arith.constant 1 : index
    %c192_289 = arith.constant 192 : index
    %282 = vector.load %arg24[%c1_288, %c192_289] : memref<2x1024xbf16, #tpu.memory_space<vmem>>, vector<1x64xbf16>
    tpu.vector_store %arg24[%c1_288, %c192_289], %281 {strides = array<i32>} : memref<2x1024xbf16, #tpu.memory_space<vmem>>, vector<1x64xbf16>,
    %283 = vector.extract_strided_slice %274 {offsets = [4, 0], sizes = [1, 64], strides = [1, 1]} : vector<16x64xbf16> to vector<1x64xbf16>
    %c1_290 = arith.constant 1 : index
    %c256_291 = arith.constant 256 : index
    %284 = vector.load %arg24[%c1_290, %c256_291] : memref<2x1024xbf16, #tpu.memory_space<vmem>>, vector<1x64xbf16>
    tpu.vector_store %arg24[%c1_290, %c256_291], %283 {strides = array<i32>} : memref<2x1024xbf16, #tpu.memory_space<vmem>>, vector<1x64xbf16>,
    %285 = vector.extract_strided_slice %274 {offsets = [5, 0], sizes = [1, 64], strides = [1, 1]} : vector<16x64xbf16> to vector<1x64xbf16>
    %c1_292 = arith.constant 1 : index
    %c320_293 = arith.constant 320 : index
    %286 = vector.load %arg24[%c1_292, %c320_293] : memref<2x1024xbf16, #tpu.memory_space<vmem>>, vector<1x64xbf16>
    tpu.vector_store %arg24[%c1_292, %c320_293], %285 {strides = array<i32>} : memref<2x1024xbf16, #tpu.memory_space<vmem>>, vector<1x64xbf16>,
    %287 = vector.extract_strided_slice %274 {offsets = [6, 0], sizes = [1, 64], strides = [1, 1]} : vector<16x64xbf16> to vector<1x64xbf16>
    %c1_294 = arith.constant 1 : index
    %c384_295 = arith.constant 384 : index
    %288 = vector.load %arg24[%c1_294, %c384_295] : memref<2x1024xbf16, #tpu.memory_space<vmem>>, vector<1x64xbf16>
    tpu.vector_store %arg24[%c1_294, %c384_295], %287 {strides = array<i32>} : memref<2x1024xbf16, #tpu.memory_space<vmem>>, vector<1x64xbf16>,
    %289 = vector.extract_strided_slice %274 {offsets = [7, 0], sizes = [1, 64], strides = [1, 1]} : vector<16x64xbf16> to vector<1x64xbf16>
    %c1_296 = arith.constant 1 : index
    %c448_297 = arith.constant 448 : index
    %290 = vector.load %arg24[%c1_296, %c448_297] : memref<2x1024xbf16, #tpu.memory_space<vmem>>, vector<1x64xbf16>
    tpu.vector_store %arg24[%c1_296, %c448_297], %289 {strides = array<i32>} : memref<2x1024xbf16, #tpu.memory_space<vmem>>, vector<1x64xbf16>,
    %291 = vector.extract_strided_slice %274 {offsets = [8, 0], sizes = [1, 64], strides = [1, 1]} : vector<16x64xbf16> to vector<1x64xbf16>
    %c1_298 = arith.constant 1 : index
    %c512_299 = arith.constant 512 : index
    %292 = vector.load %arg24[%c1_298, %c512_299] : memref<2x1024xbf16, #tpu.memory_space<vmem>>, vector<1x64xbf16>
    tpu.vector_store %arg24[%c1_298, %c512_299], %291 {strides = array<i32>} : memref<2x1024xbf16, #tpu.memory_space<vmem>>, vector<1x64xbf16>,
    %293 = vector.extract_strided_slice %274 {offsets = [9, 0], sizes = [1, 64], strides = [1, 1]} : vector<16x64xbf16> to vector<1x64xbf16>
    %c1_300 = arith.constant 1 : index
    %c576_301 = arith.constant 576 : index
    %294 = vector.load %arg24[%c1_300, %c576_301] : memref<2x1024xbf16, #tpu.memory_space<vmem>>, vector<1x64xbf16>
    tpu.vector_store %arg24[%c1_300, %c576_301], %293 {strides = array<i32>} : memref<2x1024xbf16, #tpu.memory_space<vmem>>, vector<1x64xbf16>,
    %295 = vector.extract_strided_slice %274 {offsets = [10, 0], sizes = [1, 64], strides = [1, 1]} : vector<16x64xbf16> to vector<1x64xbf16>
    %c1_302 = arith.constant 1 : index
    %c640_303 = arith.constant 640 : index
    %296 = vector.load %arg24[%c1_302, %c640_303] : memref<2x1024xbf16, #tpu.memory_space<vmem>>, vector<1x64xbf16>
    tpu.vector_store %arg24[%c1_302, %c640_303], %295 {strides = array<i32>} : memref<2x1024xbf16, #tpu.memory_space<vmem>>, vector<1x64xbf16>,
    %297 = vector.extract_strided_slice %274 {offsets = [11, 0], sizes = [1, 64], strides = [1, 1]} : vector<16x64xbf16> to vector<1x64xbf16>
    %c1_304 = arith.constant 1 : index
    %c704_305 = arith.constant 704 : index
    %298 = vector.load %arg24[%c1_304, %c704_305] : memref<2x1024xbf16, #tpu.memory_space<vmem>>, vector<1x64xbf16>
    tpu.vector_store %arg24[%c1_304, %c704_305], %297 {strides = array<i32>} : memref<2x1024xbf16, #tpu.memory_space<vmem>>, vector<1x64xbf16>,
    %299 = vector.extract_strided_slice %274 {offsets = [12, 0], sizes = [1, 64], strides = [1, 1]} : vector<16x64xbf16> to vector<1x64xbf16>
    %c1_306 = arith.constant 1 : index
    %c768_307 = arith.constant 768 : index
    %300 = vector.load %arg24[%c1_306, %c768_307] : memref<2x1024xbf16, #tpu.memory_space<vmem>>, vector<1x64xbf16>
    tpu.vector_store %arg24[%c1_306, %c768_307], %299 {strides = array<i32>} : memref<2x1024xbf16, #tpu.memory_space<vmem>>, vector<1x64xbf16>,
    %301 = vector.extract_strided_slice %274 {offsets = [13, 0], sizes = [1, 64], strides = [1, 1]} : vector<16x64xbf16> to vector<1x64xbf16>
    %c1_308 = arith.constant 1 : index
    %c832_309 = arith.constant 832 : index
    %302 = vector.load %arg24[%c1_308, %c832_309] : memref<2x1024xbf16, #tpu.memory_space<vmem>>, vector<1x64xbf16>
    tpu.vector_store %arg24[%c1_308, %c832_309], %301 {strides = array<i32>} : memref<2x1024xbf16, #tpu.memory_space<vmem>>, vector<1x64xbf16>,
    %303 = vector.extract_strided_slice %274 {offsets = [14, 0], sizes = [1, 64], strides = [1, 1]} : vector<16x64xbf16> to vector<1x64xbf16>
    %c1_310 = arith.constant 1 : index
    %c896_311 = arith.constant 896 : index
    %304 = vector.load %arg24[%c1_310, %c896_311] : memref<2x1024xbf16, #tpu.memory_space<vmem>>, vector<1x64xbf16>
    tpu.vector_store %arg24[%c1_310, %c896_311], %303 {strides = array<i32>} : memref<2x1024xbf16, #tpu.memory_space<vmem>>, vector<1x64xbf16>,
    %305 = vector.extract_strided_slice %274 {offsets = [15, 0], sizes = [1, 64], strides = [1, 1]} : vector<16x64xbf16> to vector<1x64xbf16>
    %c1_312 = arith.constant 1 : index
    %c960_313 = arith.constant 960 : index
    %306 = vector.load %arg24[%c1_312, %c960_313] : memref<2x1024xbf16, #tpu.memory_space<vmem>>, vector<1x64xbf16>
    tpu.vector_store %arg24[%c1_312, %c960_313], %305 {strides = array<i32>} : memref<2x1024xbf16, #tpu.memory_space<vmem>>, vector<1x64xbf16>,
    %c0_314 = arith.constant 0 : index
    %c0_315 = arith.constant 0 : index
    %307 = vector.load %arg2[%c0_314, %c0_315] : memref<2x10xf32, #tpu.memory_space<vmem>>, vector<2x10xf32>
    %308 = arith.truncf %307 : vector<2x10xf32> to vector<2x10xbf16>
    %c0_316 = arith.constant 0 : index
    %c0_317 = arith.constant 0 : index
    %309 = vector.load %arg7[%c0_316, %c0_317] : memref<10x128xbf16, #tpu.memory_space<vmem>>, vector<10x128xbf16>
    %cst_318 = arith.constant dense<0.000000e+00> : vector<2x128xf32>
    %310 = tpu.matmul %308, %309, %cst_318 {dimension_numbers = #tpu.dot_dimension_numbers<[1], [0], [0], [1], [0, 0, 1, 1], [], []>} : vector<2x10xbf16>, vector<10x128xbf16>, vector<2x128xf32> -> vector<2x128xf32>
    %c0_319 = arith.constant 0 : index
    %c0_320 = arith.constant 0 : index
    %311 = vector.load %arg8[%c0_319, %c0_320] : memref<1x128xf32, #tpu.memory_space<vmem>>, vector<1x128xf32>
    %312 = vector.broadcast %311 : vector<1x128xf32> to vector<2x128xf32>
    %313 = arith.addf %310, %312 : vector<2x128xf32>
    %cst_321 = arith.constant 0.000000e+00 : f32
    %314 = vector.broadcast %cst_321 : f32 to vector<2x128xf32>
    %315 = arith.maximumf %313, %314 : vector<2x128xf32>
    %316 = arith.truncf %315 : vector<2x128xf32> to vector<2x128xbf16>
    %c0_322 = arith.constant 0 : index
    %c0_323 = arith.constant 0 : index
    %317 = vector.load %arg9[%c0_322, %c0_323] : memref<128x64xbf16, #tpu.memory_space<vmem>>, vector<128x64xbf16>
    %cst_324 = arith.constant dense<0.000000e+00> : vector<2x64xf32>
    %318 = tpu.matmul %316, %317, %cst_324 {dimension_numbers = #tpu.dot_dimension_numbers<[1], [0], [0], [1], [0, 0, 1, 1], [], []>} : vector<2x128xbf16>, vector<128x64xbf16>, vector<2x64xf32> -> vector<2x64xf32>
    %c0_325 = arith.constant 0 : index
    %c0_326 = arith.constant 0 : index
    %319 = vector.load %arg10[%c0_325, %c0_326] : memref<1x64xf32, #tpu.memory_space<vmem>>, vector<1x64xf32>
    %320 = vector.broadcast %319 : vector<1x64xf32> to vector<2x64xf32>
    %321 = arith.addf %318, %320 : vector<2x64xf32>
    %cst_327 = arith.constant 0.000000e+00 : f32
    %322 = vector.broadcast %cst_327 : f32 to vector<2x64xf32>
    %323 = arith.maximumf %321, %322 : vector<2x64xf32>
    %c0_328 = arith.constant 0 : index
    %c0_329 = arith.constant 0 : index
    %324 = vector.load %arg24[%c0_328, %c0_329] : memref<2x1024xbf16, #tpu.memory_space<vmem>>, vector<2x1024xbf16>
    %c0_330 = arith.constant 0 : index
    %c0_331 = arith.constant 0 : index
    %325 = vector.load %arg11[%c0_330, %c0_331] : memref<1024x128xbf16, #tpu.memory_space<vmem>>, vector<1024x128xbf16>
    %cst_332 = arith.constant dense<0.000000e+00> : vector<2x128xf32>
    %326 = tpu.matmul %324, %325, %cst_332 {dimension_numbers = #tpu.dot_dimension_numbers<[1], [0], [0], [1], [0, 0, 1, 1], [], []>} : vector<2x1024xbf16>, vector<1024x128xbf16>, vector<2x128xf32> -> vector<2x128xf32>
    %327 = arith.truncf %323 : vector<2x64xf32> to vector<2x64xbf16>
    %c0_333 = arith.constant 0 : index
    %c0_334 = arith.constant 0 : index
    %328 = vector.load %arg12[%c0_333, %c0_334] : memref<64x128xbf16, #tpu.memory_space<vmem>>, vector<64x128xbf16>
    %cst_335 = arith.constant dense<0.000000e+00> : vector<2x128xf32>
    %329 = tpu.matmul %327, %328, %cst_335 {dimension_numbers = #tpu.dot_dimension_numbers<[1], [0], [0], [1], [0, 0, 1, 1], [], []>} : vector<2x64xbf16>, vector<64x128xbf16>, vector<2x128xf32> -> vector<2x128xf32>
    %330 = arith.addf %326, %329 : vector<2x128xf32>
    %c0_336 = arith.constant 0 : index
    %c0_337 = arith.constant 0 : index
    %331 = vector.load %arg13[%c0_336, %c0_337] : memref<1x128xf32, #tpu.memory_space<vmem>>, vector<1x128xf32>
    %332 = vector.broadcast %331 : vector<1x128xf32> to vector<2x128xf32>
    %333 = arith.addf %330, %332 : vector<2x128xf32>
    %cst_338 = arith.constant 0.000000e+00 : f32
    %334 = vector.broadcast %cst_338 : f32 to vector<2x128xf32>
    %335 = arith.maximumf %333, %334 : vector<2x128xf32>
    %336 = arith.truncf %335 : vector<2x128xf32> to vector<2x128xbf16>
    %c0_339 = arith.constant 0 : index
    %c0_340 = arith.constant 0 : index
    %337 = vector.load %arg14[%c0_339, %c0_340] : memref<128x3xbf16, #tpu.memory_space<vmem>>, vector<128x3xbf16>
    %cst_341 = arith.constant dense<0.000000e+00> : vector<2x3xf32>
    %338 = tpu.matmul %336, %337, %cst_341 {dimension_numbers = #tpu.dot_dimension_numbers<[1], [0], [0], [1], [0, 0, 1, 1], [], []>} : vector<2x128xbf16>, vector<128x3xbf16>, vector<2x3xf32> -> vector<2x3xf32>
    %c0_342 = arith.constant 0 : index
    %c0_343 = arith.constant 0 : index
    %339 = vector.load %arg15[%c0_342, %c0_343] : memref<1x3xf32, #tpu.memory_space<vmem>>, vector<1x3xf32>
    %340 = vector.broadcast %339 : vector<1x3xf32> to vector<2x3xf32>
    %341 = arith.addf %338, %340 : vector<2x3xf32>
    %c0_344 = arith.constant 0 : index
    %c0_345 = arith.constant 0 : index
    %342 = vector.load %arg20[%c0_344, %c0_345] : memref<2x3xf32, #tpu.memory_space<vmem>>, vector<2x3xf32>
    tpu.vector_store %arg20[%c0_344, %c0_345], %341 {strides = array<i32>} : memref<2x3xf32, #tpu.memory_space<vmem>>, vector<2x3xf32>,
    return
  }
  func.func @transform_0(%arg0: i32) -> (i32, i32, i32, i32) {
    %c0_i32 = arith.constant 0 : i32
    %c0_i32_0 = arith.constant 0 : i32
    %c0_i32_1 = arith.constant 0 : i32
    %c0_i32_2 = arith.constant 0 : i32
    return %arg0, %c0_i32, %c0_i32_0, %c0_i32_1 : i32, i32, i32, i32
  }
  func.func @transform_1(%arg0: i32) -> (i32, i32) {
    %c0_i32 = arith.constant 0 : i32
    %c0_i32_0 = arith.constant 0 : i32
    return %arg0, %c0_i32 : i32, i32
  }
  func.func @transform_2(%arg0: i32) -> (i32, i32) {
    %c0_i32 = arith.constant 0 : i32
    %c0_i32_0 = arith.constant 0 : i32
    %c0_i32_1 = arith.constant 0 : i32
    return %c0_i32, %c0_i32_0 : i32, i32
  }
  func.func @transform_3(%arg0: i32) -> (i32, i32) {
    %c0_i32 = arith.constant 0 : i32
    %c0_i32_0 = arith.constant 0 : i32
    %c0_i32_1 = arith.constant 0 : i32
    return %c0_i32, %c0_i32_0 : i32, i32
  }
  func.func @transform_4(%arg0: i32) -> (i32, i32) {
    %c0_i32 = arith.constant 0 : i32
    %c0_i32_0 = arith.constant 0 : i32
    %c0_i32_1 = arith.constant 0 : i32
    return %c0_i32, %c0_i32_0 : i32, i32
  }
  func.func @transform_5(%arg0: i32) -> (i32, i32) {
    %c0_i32 = arith.constant 0 : i32
    %c0_i32_0 = arith.constant 0 : i32
    %c0_i32_1 = arith.constant 0 : i32
    return %c0_i32, %c0_i32_0 : i32, i32
  }
  func.func @transform_6(%arg0: i32) -> (i32, i32) {
    %c0_i32 = arith.constant 0 : i32
    %c0_i32_0 = arith.constant 0 : i32
    %c0_i32_1 = arith.constant 0 : i32
    return %c0_i32, %c0_i32_0 : i32, i32
  }
  func.func @transform_7(%arg0: i32) -> (i32, i32) {
    %c0_i32 = arith.constant 0 : i32
    %c0_i32_0 = arith.constant 0 : i32
    %c0_i32_1 = arith.constant 0 : i32
    return %c0_i32, %c0_i32_0 : i32, i32
  }
  func.func @transform_8(%arg0: i32) -> (i32, i32) {
    %c0_i32 = arith.constant 0 : i32
    %c0_i32_0 = arith.constant 0 : i32
    %c0_i32_1 = arith.constant 0 : i32
    return %c0_i32, %c0_i32_0 : i32, i32
  }
  func.func @transform_9(%arg0: i32) -> (i32, i32) {
    %c0_i32 = arith.constant 0 : i32
    %c0_i32_0 = arith.constant 0 : i32
    %c0_i32_1 = arith.constant 0 : i32
    return %c0_i32, %c0_i32_0 : i32, i32
  }
  func.func @transform_10(%arg0: i32) -> (i32, i32) {
    %c0_i32 = arith.constant 0 : i32
    %c0_i32_0 = arith.constant 0 : i32
    %c0_i32_1 = arith.constant 0 : i32
    return %c0_i32, %c0_i32_0 : i32, i32
  }
  func.func @transform_11(%arg0: i32) -> (i32, i32) {
    %c0_i32 = arith.constant 0 : i32
    %c0_i32_0 = arith.constant 0 : i32
    %c0_i32_1 = arith.constant 0 : i32
    return %c0_i32, %c0_i32_0 : i32, i32
  }
  func.func @transform_12(%arg0: i32) -> (i32, i32) {
    %c0_i32 = arith.constant 0 : i32
    %c0_i32_0 = arith.constant 0 : i32
    %c0_i32_1 = arith.constant 0 : i32
    return %c0_i32, %c0_i32_0 : i32, i32
  }
  func.func @transform_13(%arg0: i32) -> (i32, i32) {
    %c0_i32 = arith.constant 0 : i32
    %c0_i32_0 = arith.constant 0 : i32
    %c0_i32_1 = arith.constant 0 : i32
    return %c0_i32, %c0_i32_0 : i32, i32
  }
  func.func @transform_14(%arg0: i32) -> (i32, i32) {
    %c0_i32 = arith.constant 0 : i32
    %c0_i32_0 = arith.constant 0 : i32
    %c0_i32_1 = arith.constant 0 : i32
    return %c0_i32, %c0_i32_0 : i32, i32
  }
  func.func @transform_15(%arg0: i32) -> (i32, i32) {
    %c0_i32 = arith.constant 0 : i32
    %c0_i32_0 = arith.constant 0 : i32
    %c0_i32_1 = arith.constant 0 : i32
    return %c0_i32, %c0_i32_0 : i32, i32
  }
  func.func @transform_16(%arg0: i32) -> (i32, i32) {
    %c0_i32 = arith.constant 0 : i32
    %c0_i32_0 = arith.constant 0 : i32
    %c0_i32_1 = arith.constant 0 : i32
    return %c0_i32, %c0_i32_0 : i32, i32
  }
  func.func @transform_17(%arg0: i32) -> (i32, i32) {
    %c0_i32 = arith.constant 0 : i32
    %c0_i32_0 = arith.constant 0 : i32
    %c0_i32_1 = arith.constant 0 : i32
    return %c0_i32, %c0_i32_0 : i32, i32
  }
  func.func @transform_18(%arg0: i32) -> (i32, i32) {
    %c0_i32 = arith.constant 0 : i32
    %c0_i32_0 = arith.constant 0 : i32
    %c0_i32_1 = arith.constant 0 : i32
    return %c0_i32, %c0_i32_0 : i32, i32
  }
  func.func @transform_19(%arg0: i32) -> (i32, i32) {
    %c0_i32 = arith.constant 0 : i32
    %c0_i32_0 = arith.constant 0 : i32
    return %arg0, %c0_i32 : i32, i32
  }
}

</mosaic_0001>

<llo_original>
// kernel: multimodal_forward.1
$region0: #{multimodal_forward.1}
  #allocation0 [shape = 'u32[]', space=smem, size = 0x4, offset = 0x4, fixed_abs, tag = 'smem constant byte address 0x4 - core index']
  #allocation1 [shape = 'u32[144,128]{1,0:T(1,128)}', space=vmem, size = 0x12000, scoped, tag = 'internal scratch']
  #allocation2 [shape = 'bf16[2,10,10,32]{3,2,1,0:T(8,128)(2,1)}', space=vmem, size = 0x14000, scoped, tag = 'scratch operand']
  #allocation3 [shape = 'bf16[256,27]{1,0:T(16,128)(2,1)}', space=vmem, size = 0x10000, scoped, tag = 'scratch operand']
  #allocation4 [shape = 'bf16[64,288]{1,0:T(16,128)(2,1)}', space=vmem, size = 0xc000, scoped, tag = 'scratch operand']
  #allocation5 [shape = 'bf16[2,1024]{1,0:T(2,128)(2,1)}', space=vmem, size = 0x1000, scoped, tag = 'scratch operand']
  %s0 = inlined_call_operand.vmem [shape: bf16[2,18,18,3], index: 0, kind: input, shape index: {}]
  %s1 = inlined_call_operand.vmem [shape: f32[2,10], index: 1, kind: input, shape index: {}]
  %s2 = inlined_call_operand.vmem [shape: bf16[27,32], index: 2, kind: input, shape index: {}]
  %s3 = inlined_call_operand.vmem [shape: f32[1,32], index: 3, kind: input, shape index: {}]
  %s4 = inlined_call_operand.vmem [shape: bf16[288,64], index: 4, kind: input, shape index: {}]
  %s5 = inlined_call_operand.vmem [shape: f32[1,64], index: 5, kind: input, shape index: {}]
  %s6 = inlined_call_operand.vmem [shape: bf16[10,128], index: 6, kind: input, shape index: {}]
  %s7 = inlined_call_operand.vmem [shape: f32[1,128], index: 7, kind: input, shape index: {}]
  %s8 = inlined_call_operand.vmem [shape: bf16[128,64], index: 8, kind: input, shape index: {}]
  %s9 = inlined_call_operand.vmem [shape: f32[1,64], index: 9, kind: input, shape index: {}]
  %s10 = inlined_call_operand.vmem [shape: bf16[1024,128], index: 10, kind: input, shape index: {}]
  %s11 = inlined_call_operand.vmem [shape: bf16[64,128], index: 11, kind: input, shape index: {}]
  %s12 = inlined_call_operand.vmem [shape: f32[1,128], index: 12, kind: input, shape index: {}]
  %s13 = inlined_call_operand.vmem [shape: bf16[128,3], index: 13, kind: input, shape index: {}]
  %s14 = inlined_call_operand.vmem [shape: f32[1,3], index: 14, kind: input, shape index: {}]
  %s15 = inlined_call_operand.vmem [shape: bf16[64,128], index: 15, kind: input, shape index: {}]
  %s16 = inlined_call_operand.vmem [shape: bf16[64,128], index: 16, kind: input, shape index: {}]
  %s17 = inlined_call_operand.vmem [shape: bf16[16,32], index: 17, kind: input, shape index: {}]
  %s18 = inlined_call_operand.vmem [shape: bf16[16,32], index: 18, kind: input, shape index: {}]
  %s19 = inlined_call_operand.hbm [shape: f32[2,3], index: 19, kind: output, shape index: {}]
  %s20 = sld [smem:[#allocation0]]
  $region90: #{multimodal_forward.1} parent=0
    _
  %s22 = ssub.s32 1, %s20
  %s23 = scalar_select 0, %s22, %s20
  $region1: #{multimodal_forward.1} parent=0
    #allocation6 [shape = 'u8[1024]{0}', space=vmem, size = 0x400, scoped, tag = 'output window, operand 0, single buffered']
    #allocation7 [shape = 's32[1]{0}', space=sflag, size = 0x4, scoped, tag = 'scoped memory for multimodal_forward.1']
    %24 = vsyncpa [#allocation7], 0
    // Predicated region
    $region2: #{multimodal_forward.1} parent=1 // pred_check
      _
    $region3: #{multimodal_forward.1} parent=1 // pred_check_branch
      %26 = sbr.rel (0) target = $region5
    $region4: #{multimodal_forward.1} parent=1 // pred_region
      _
    $region5: #{multimodal_forward.1} parent=1 // pred_fallthru
      _
    // Predicated region
    $region6: #{multimodal_forward.1} parent=1 // pred_check
      _
    $region7: #{multimodal_forward.1} parent=1 // pred_check_branch
      %28 = sbr.rel (0) target = $region9
    $region8: #{multimodal_forward.1} parent=1 // pred_region
      _
    $region9: #{multimodal_forward.1} parent=1 // pred_fallthru
      _
    // Predicated region
    $region10: #{multimodal_forward.1} parent=1 // pred_check
      _
    $region11: #{multimodal_forward.1} parent=1 // pred_check_branch
      %30 = sbr.rel (0) target = $region13
    $region12: #{multimodal_forward.1} parent=1 // pred_region
      _
    $region13: #{multimodal_forward.1} parent=1 // pred_fallthru
      _
    // Predicated region
    $region14: #{multimodal_forward.1} parent=1 // pred_check
      _
    $region15: #{multimodal_forward.1} parent=1 // pred_check_branch
      %32 = sbr.rel (0) target = $region17
    $region16: #{multimodal_forward.1} parent=1 // pred_region
      _
    $region17: #{multimodal_forward.1} parent=1 // pred_fallthru
      _
    // Predicated region
    $region18: #{multimodal_forward.1} parent=1 // pred_check
      _
    $region19: #{multimodal_forward.1} parent=1 // pred_check_branch
      %34 = sbr.rel (0) target = $region21
    $region20: #{multimodal_forward.1} parent=1 // pred_region
      _
    $region21: #{multimodal_forward.1} parent=1 // pred_fallthru
      _
    // Predicated region
    $region22: #{multimodal_forward.1} parent=1 // pred_check
      _
    $region23: #{multimodal_forward.1} parent=1 // pred_check_branch
      %36 = sbr.rel (0) target = $region25
    $region24: #{multimodal_forward.1} parent=1 // pred_region
      _
    $region25: #{multimodal_forward.1} parent=1 // pred_fallthru
      _
    // Predicated region
    $region26: #{multimodal_forward.1} parent=1 // pred_check
      _
    $region27: #{multimodal_forward.1} parent=1 // pred_check_branch
      %38 = sbr.rel (0) target = $region29
    $region28: #{multimodal_forward.1} parent=1 // pred_region
      _
    $region29: #{multimodal_forward.1} parent=1 // pred_fallthru
      _
    // Predicated region
    $region30: #{multimodal_forward.1} parent=1 // pred_check
      _
    $region31: #{multimodal_forward.1} parent=1 // pred_check_branch
      %40 = sbr.rel (0) target = $region33
    $region32: #{multimodal_forward.1} parent=1 // pred_region
      _
    $region33: #{multimodal_forward.1} parent=1 // pred_fallthru
      _
    // Predicated region
    $region34: #{multimodal_forward.1} parent=1 // pred_check
      _
    $region35: #{multimodal_forward.1} parent=1 // pred_check_branch
      %42 = sbr.rel (0) target = $region37
    $region36: #{multimodal_forward.1} parent=1 // pred_region
      _
    $region37: #{multimodal_forward.1} parent=1 // pred_fallthru
      _
    // Predicated region
    $region38: #{multimodal_forward.1} parent=1 // pred_check
      _
    $region39: #{multimodal_forward.1} parent=1 // pred_check_branch
      %44 = sbr.rel (0) target = $region41
    $region40: #{multimodal_forward.1} parent=1 // pred_region
      _
    $region41: #{multimodal_forward.1} parent=1 // pred_fallthru
      _
    // Predicated region
    $region42: #{multimodal_forward.1} parent=1 // pred_check
      _
    $region43: #{multimodal_forward.1} parent=1 // pred_check_branch
      %46 = sbr.rel (0) target = $region45
    $region44: #{multimodal_forward.1} parent=1 // pred_region
      _
    $region45: #{multimodal_forward.1} parent=1 // pred_fallthru
      _
    // Predicated region
    $region46: #{multimodal_forward.1} parent=1 // pred_check
      _
    $region47: #{multimodal_forward.1} parent=1 // pred_check_branch
      %48 = sbr.rel (0) target = $region49
    $region48: #{multimodal_forward.1} parent=1 // pred_region
      _
    $region49: #{multimodal_forward.1} parent=1 // pred_fallthru
      _
    // Predicated region
    $region50: #{multimodal_forward.1} parent=1 // pred_check
      _
    $region51: #{multimodal_forward.1} parent=1 // pred_check_branch
      %50 = sbr.rel (0) target = $region53
    $region52: #{multimodal_forward.1} parent=1 // pred_region
      _
    $region53: #{multimodal_forward.1} parent=1 // pred_fallthru
      _
    // Predicated region
    $region54: #{multimodal_forward.1} parent=1 // pred_check
      _
    $region55: #{multimodal_forward.1} parent=1 // pred_check_branch
      %52 = sbr.rel (0) target = $region57
    $region56: #{multimodal_forward.1} parent=1 // pred_region
      _
    $region57: #{multimodal_forward.1} parent=1 // pred_fallthru
      _
    // Predicated region
    $region58: #{multimodal_forward.1} parent=1 // pred_check
      _
    $region59: #{multimodal_forward.1} parent=1 // pred_check_branch
      %54 = sbr.rel (0) target = $region61
    $region60: #{multimodal_forward.1} parent=1 // pred_region
      _
    $region61: #{multimodal_forward.1} parent=1 // pred_fallthru
      _
    // Predicated region
    $region62: #{multimodal_forward.1} parent=1 // pred_check
      _
    $region63: #{multimodal_forward.1} parent=1 // pred_check_branch
      %56 = sbr.rel (0) target = $region65
    $region64: #{multimodal_forward.1} parent=1 // pred_region
      _
    $region65: #{multimodal_forward.1} parent=1 // pred_fallthru
      _
    // Predicated region
    $region66: #{multimodal_forward.1} parent=1 // pred_check
      _
    $region67: #{multimodal_forward.1} parent=1 // pred_check_branch
      %58 = sbr.rel (0) target = $region69
    $region68: #{multimodal_forward.1} parent=1 // pred_region
      _
    $region69: #{multimodal_forward.1} parent=1 // pred_fallthru
      _
    // Predicated region
    $region70: #{multimodal_forward.1} parent=1 // pred_check
      _
    $region71: #{multimodal_forward.1} parent=1 // pred_check_branch
      %60 = sbr.rel (0) target = $region73
    $region72: #{multimodal_forward.1} parent=1 // pred_region
      _
    $region73: #{multimodal_forward.1} parent=1 // pred_fallthru
      _
    // Predicated region
    $region74: #{multimodal_forward.1} parent=1 // pred_check
      _
    $region75: #{multimodal_forward.1} parent=1 // pred_check_branch
      %62 = sbr.rel (0) target = $region77
    $region76: #{multimodal_forward.1} parent=1 // pred_region
      _
    $region77: #{multimodal_forward.1} parent=1 // pred_fallthru
      _
    %p64 = scmp.eq.s32.totalorder 0, 0
    // Predicated region
    $region78: #{multimodal_forward.1} parent=1 // pred_check
      %p65 = pneg %p64
    $region79: #{multimodal_forward.1} parent=1 // pred_check_branch
      %67 = sbr.rel (%p65) target = $region81
    $region80: #{multimodal_forward.1} parent=1 // pred_region
      %vm68 = vcmask 257024
      %69 = vst.msk [vmem:[#allocation2] sm:$0xf] %vm68, 0
      %vm70 = vcmask 253952
      %71 = vst.msk [vmem:[#allocation2 + $0x4] sm:$0x1] %vm70, 0
      %72 = vst.msk [vmem:[#allocation2 + $0x8] sm:$0xf] %vm68, 0
      %73 = vst.msk [vmem:[#allocation2 + $0xc] sm:$0x1] %vm70, 0
      %74 = vst.msk [vmem:[#allocation2 + $0x10] sm:$0xf] %vm68, 0
      %75 = vst.msk [vmem:[#allocation2 + $0x14] sm:$0x1] %vm70, 0
      %76 = vst.msk [vmem:[#allocation2 + $0x18] sm:$0xf] %vm68, 0
      %77 = vst.msk [vmem:[#allocation2 + $0x1c] sm:$0x1] %vm70, 0
      %78 = vst.msk [vmem:[#allocation2 + $0x20] sm:$0xf] %vm68, 0
      %79 = vst.msk [vmem:[#allocation2 + $0x24] sm:$0x1] %vm70, 0
      %80 = vst.msk [vmem:[#allocation2 + $0x28] sm:$0xf] %vm68, 0
      %81 = vst.msk [vmem:[#allocation2 + $0x2c] sm:$0x1] %vm70, 0
      %82 = vst.msk [vmem:[#allocation2 + $0x30] sm:$0xf] %vm68, 0
      %83 = vst.msk [vmem:[#allocation2 + $0x34] sm:$0x1] %vm70, 0
      %84 = vst.msk [vmem:[#allocation2 + $0x38] sm:$0xf] %vm68, 0
      %85 = vst.msk [vmem:[#allocation2 + $0x3c] sm:$0x1] %vm70, 0
      %86 = vst.msk [vmem:[#allocation2 + $0x40] sm:$0xf] %vm68, 0
      %87 = vst.msk [vmem:[#allocation2 + $0x44] sm:$0x1] %vm70, 0
      %88 = vst.msk [vmem:[#allocation2 + $0x48] sm:$0xf] %vm68, 0
      %89 = vst.msk [vmem:[#allocation2 + $0x4c] sm:$0x1] %vm70, 0
      %90 = vst.msk [vmem:[#allocation2 + $0x50] sm:$0xf] %vm68, 0
      %91 = vst.msk [vmem:[#allocation2 + $0x54] sm:$0x1] %vm70, 0
      %92 = vst.msk [vmem:[#allocation2 + $0x58] sm:$0xf] %vm68, 0
      %93 = vst.msk [vmem:[#allocation2 + $0x5c] sm:$0x1] %vm70, 0
      %94 = vst.msk [vmem:[#allocation2 + $0x60] sm:$0xf] %vm68, 0
      %95 = vst.msk [vmem:[#allocation2 + $0x64] sm:$0x1] %vm70, 0
      %96 = vst.msk [vmem:[#allocation2 + $0x68] sm:$0xf] %vm68, 0
      %97 = vst.msk [vmem:[#allocation2 + $0x6c] sm:$0x1] %vm70, 0
      %98 = vst.msk [vmem:[#allocation2 + $0x70] sm:$0xf] %vm68, 0
      %99 = vst.msk [vmem:[#allocation2 + $0x74] sm:$0x1] %vm70, 0
      %100 = vst.msk [vmem:[#allocation2 + $0x78] sm:$0xf] %vm68, 0
      %101 = vst.msk [vmem:[#allocation2 + $0x7c] sm:$0x1] %vm70, 0
      %102 = vst.msk [vmem:[#allocation2 + $0x80] sm:$0xf] %vm68, 0
      %103 = vst.msk [vmem:[#allocation2 + $0x84] sm:$0x1] %vm70, 0
      %104 = vst.msk [vmem:[#allocation2 + $0x88] sm:$0xf] %vm68, 0
      %105 = vst.msk [vmem:[#allocation2 + $0x8c] sm:$0x1] %vm70, 0
      %106 = vst.msk [vmem:[#allocation2 + $0x90] sm:$0xf] %vm68, 0
      %107 = vst.msk [vmem:[#allocation2 + $0x94] sm:$0x1] %vm70, 0
      %108 = vst.msk [vmem:[#allocation2 + $0x98] sm:$0xf] %vm68, 0
      %109 = vst.msk [vmem:[#allocation2 + $0x9c] sm:$0x1] %vm70, 0
    $region81: #{multimodal_forward.1} parent=1 // pred_fallthru
      _
    %v110 = vld [vmem:[%s0] sm:$0xf]
    %v111 = vld [vmem:[%s0 + $0x4] sm:$0xf]
    %v112 = vld [vmem:[%s0 + $0xc] sm:$0xf]
    %v113 = vld [vmem:[%s0 + $0x10] sm:$0xf]
    %v114 = vld [vmem:[%s0 + $0x18] sm:$0xf]
    %v115 = vld [vmem:[%s0 + $0x1c] sm:$0xf]
    %v116 = vld [vmem:[%s0 + $0x24] sm:$0xf]
    %v117 = vld [vmem:[%s0 + $0x28] sm:$0xf]
    %v118 = vld [vmem:[%s0 + $0x30] sm:$0xf]
    %v119 = vld [vmem:[%s0 + $0x34] sm:$0xf]
    %v120 = vld [vmem:[%s0 + $0x3c] sm:$0xf]
    %v121 = vld [vmem:[%s0 + $0x40] sm:$0xf]
    %v122 = vld [vmem:[%s0 + $0x48] sm:$0xf]
    %v123 = vld [vmem:[%s0 + $0x4c] sm:$0xf]
    %v124 = vld [vmem:[%s0 + $0x54] sm:$0xf]
    %v125 = vld [vmem:[%s0 + $0x58] sm:$0xf]
    %v126 = vld [vmem:[%s0 + $0x60] sm:$0xf]
    %v127 = vld [vmem:[%s0 + $0x64] sm:$0xf]
    %v128 = vld [vmem:[%s0 + $0x6c] sm:$0xf]
    %v129 = vld [vmem:[%s0 + $0x70] sm:$0xf]
    %v130 = vld [vmem:[%s0 + $0x78] sm:$0xf]
    %v131 = vld [vmem:[%s0 + $0x7c] sm:$0xf]
    %v132 = vld [vmem:[%s0 + $0x84] sm:$0xf]
    %v133 = vld [vmem:[%s0 + $0x88] sm:$0xf]
    %v134 = vld [vmem:[%s0 + $0x90] sm:$0xf]
    %v135 = vld [vmem:[%s0 + $0x94] sm:$0xf]
    %v136 = vld [vmem:[%s0 + $0x9c] sm:$0xf]
    %v137 = vld [vmem:[%s0 + $0xa0] sm:$0xf]
    %v138 = vld [vmem:[%s0 + $0xa8] sm:$0xf]
    %v139 = vld [vmem:[%s0 + $0xac] sm:$0xf]
    %v140 = vld [vmem:[%s0 + $0xb4] sm:$0xf]
    %v141 = vld [vmem:[%s0 + $0xb8] sm:$0xf]
    %v174 = vunpack.c.l.b16 %v110
    %v175 = vunpack.c.l.b16 %v111
    %v176 = vunpack.c.l.b16 %v112
    %v177 = vunpack.c.l.b16 %v113
    %v178 = vunpack.c.l.b16 %v114
    %v179 = vunpack.c.l.b16 %v115
    %v180 = vunpack.c.l.b16 %v116
    %v181 = vunpack.c.l.b16 %v117
    %v182 = vunpack.c.l.b16 %v118
    %v183 = vunpack.c.l.b16 %v119
    %v184 = vunpack.c.l.b16 %v120
    %v185 = vunpack.c.l.b16 %v121
    %v186 = vunpack.c.l.b16 %v122
    %v187 = vunpack.c.l.b16 %v123
    %v188 = vunpack.c.l.b16 %v124
    %v189 = vunpack.c.l.b16 %v125
    %v190 = vunpack.c.l.b16 %v126
    %v191 = vunpack.c.l.b16 %v127
    %v192 = vunpack.c.l.b16 %v128
    %v193 = vunpack.c.l.b16 %v129
    %v194 = vunpack.c.l.b16 %v130
    %v195 = vunpack.c.l.b16 %v131
    %v196 = vunpack.c.l.b16 %v132
    %v197 = vunpack.c.l.b16 %v133
    %v198 = vunpack.c.l.b16 %v134
    %v199 = vunpack.c.l.b16 %v135
    %v200 = vunpack.c.l.b16 %v136
    %v201 = vunpack.c.l.b16 %v137
    %v202 = vunpack.c.l.b16 %v138
    %v203 = vunpack.c.l.b16 %v139
    %v204 = vunpack.c.l.b16 %v140
    %v205 = vunpack.c.l.b16 %v141
    %v206 = vpack.c.b16 %v175, %v174
    %v207 = vpack.c.b16 %v177, %v176
    %v208 = vpack.c.b16 %v179, %v178
    %v209 = vpack.c.b16 %v181, %v180
    %v210 = vpack.c.b16 %v183, %v182
    %v211 = vpack.c.b16 %v185, %v184
    %v212 = vpack.c.b16 %v187, %v186
    %v213 = vpack.c.b16 %v189, %v188
    %v214 = vpack.c.b16 %v191, %v190
    %v215 = vpack.c.b16 %v193, %v192
    %v216 = vpack.c.b16 %v195, %v194
    %v217 = vpack.c.b16 %v197, %v196
    %v218 = vpack.c.b16 %v199, %v198
    %v219 = vpack.c.b16 %v201, %v200
    %v220 = vpack.c.b16 %v203, %v202
    %v221 = vpack.c.b16 %v205, %v204
    %vm238 = vcmask 23552
    %239 = vst.msk [vmem:[#allocation3] sm:$0xff] %vm238, %v206
    %240 = vst.msk [vmem:[#allocation3 + $0x8] sm:$0xff] %vm238, %v207
    %241 = vst.msk [vmem:[#allocation3 + $0x10] sm:$0xff] %vm238, %v208
    %242 = vst.msk [vmem:[#allocation3 + $0x18] sm:$0xff] %vm238, %v209
    %243 = vst.msk [vmem:[#allocation3 + $0x20] sm:$0xff] %vm238, %v210
    %244 = vst.msk [vmem:[#allocation3 + $0x28] sm:$0xff] %vm238, %v211
    %245 = vst.msk [vmem:[#allocation3 + $0x30] sm:$0xff] %vm238, %v212
    %246 = vst.msk [vmem:[#allocation3 + $0x38] sm:$0xff] %vm238, %v213
    %247 = vst.msk [vmem:[#allocation3 + $0x40] sm:$0xff] %vm238, %v214
    %248 = vst.msk [vmem:[#allocation3 + $0x48] sm:$0xff] %vm238, %v215
    %249 = vst.msk [vmem:[#allocation3 + $0x50] sm:$0xff] %vm238, %v216
    %250 = vst.msk [vmem:[#allocation3 + $0x58] sm:$0xff] %vm238, %v217
    %251 = vst.msk [vmem:[#allocation3 + $0x60] sm:$0xff] %vm238, %v218
    %252 = vst.msk [vmem:[#allocation3 + $0x68] sm:$0xff] %vm238, %v219
    %253 = vst.msk [vmem:[#allocation3 + $0x70] sm:$0xff] %vm238, %v220
    %254 = vst.msk [vmem:[#allocation3 + $0x78] sm:$0xff] %vm238, %v221
    %v255 = vld [vmem:[%s0] sm:$0xf]
    %v256 = vld [vmem:[%s0 + $0x4] sm:$0xf]
    %v257 = vld [vmem:[%s0 + $0x8] sm:$0x1]
    %v258 = vld [vmem:[%s0 + $0xc] sm:$0xf]
    %v259 = vld [vmem:[%s0 + $0x10] sm:$0xf]
    %v260 = vld [vmem:[%s0 + $0x14] sm:$0x1]
    %v261 = vld [vmem:[%s0 + $0x18] sm:$0xf]
    %v262 = vld [vmem:[%s0 + $0x1c] sm:$0xf]
    %v263 = vld [vmem:[%s0 + $0x20] sm:$0x1]
    %v264 = vld [vmem:[%s0 + $0x24] sm:$0xf]
    %v265 = vld [vmem:[%s0 + $0x28] sm:$0xf]
    %v266 = vld [vmem:[%s0 + $0x2c] sm:$0x1]
    %v267 = vld [vmem:[%s0 + $0x30] sm:$0xf]
    %v268 = vld [vmem:[%s0 + $0x34] sm:$0xf]
    %v269 = vld [vmem:[%s0 + $0x38] sm:$0x1]
    %v270 = vld [vmem:[%s0 + $0x3c] sm:$0xf]
    %v271 = vld [vmem:[%s0 + $0x40] sm:$0xf]
    %v272 = vld [vmem:[%s0 + $0x44] sm:$0x1]
    %v273 = vld [vmem:[%s0 + $0x48] sm:$0xf]
    %v274 = vld [vmem:[%s0 + $0x4c] sm:$0xf]
    %v275 = vld [vmem:[%s0 + $0x50] sm:$0x1]
    %v276 = vld [vmem:[%s0 + $0x54] sm:$0xf]
    %v277 = vld [vmem:[%s0 + $0x58] sm:$0xf]
    %v278 = vld [vmem:[%s0 + $0x5c] sm:$0x1]
    %v279 = vld [vmem:[%s0 + $0x60] sm:$0xf]
    %v280 = vld [vmem:[%s0 + $0x64] sm:$0xf]
    %v281 = vld [vmem:[%s0 + $0x68] sm:$0x1]
    %v282 = vld [vmem:[%s0 + $0x6c] sm:$0xf]
    %v283 = vld [vmem:[%s0 + $0x70] sm:$0xf]
    %v284 = vld [vmem:[%s0 + $0x74] sm:$0x1]
    %v285 = vld [vmem:[%s0 + $0x78] sm:$0xf]
    %v286 = vld [vmem:[%s0 + $0x7c] sm:$0xf]
    %v287 = vld [vmem:[%s0 + $0x80] sm:$0x1]
    %v288 = vld [vmem:[%s0 + $0x84] sm:$0xf]
    %v289 = vld [vmem:[%s0 + $0x88] sm:$0xf]
    %v290 = vld [vmem:[%s0 + $0x8c] sm:$0x1]
    %v291 = vld [vmem:[%s0 + $0x90] sm:$0xf]
    %v292 = vld [vmem:[%s0 + $0x94] sm:$0xf]
    %v293 = vld [vmem:[%s0 + $0x98] sm:$0x1]
    %v294 = vld [vmem:[%s0 + $0x9c] sm:$0xf]
    %v295 = vld [vmem:[%s0 + $0xa0] sm:$0xf]
    %v296 = vld [vmem:[%s0 + $0xa4] sm:$0x1]
    %v297 = vld [vmem:[%s0 + $0xa8] sm:$0xf]
    %v298 = vld [vmem:[%s0 + $0xac] sm:$0xf]
    %v299 = vld [vmem:[%s0 + $0xb0] sm:$0x1]
    %v300 = vld [vmem:[%s0 + $0xb4] sm:$0xf]
    %v301 = vld [vmem:[%s0 + $0xb8] sm:$0xf]
    %v302 = vld [vmem:[%s0 + $0xbc] sm:$0x1]
    %vm303 = vsmask.f32 3328
    %vm304 = vsmask.f32 7440
    %vm305 = vmor %vm303, %vm304
    %v307 = vshrl.u32 %v255, 16
    %v309 = vrot.slane %v307, 4
    %v310 = vshll.u32 %v255, 16
    %v312 = vrot.slane %v310, 5
    %v313 = vor.u32 %v309, %v312
    %v314 = vrot.slane %v313, 4
    %v316 = vshll.u32 %v256, 16
    %v318 = vrot.slane %v316, 5
    %v319 = vsel %vm305, %v314, %v318
    %v320 = vshrl.u32 %v256, 16
    %v322 = vrot.slane %v320, 4
    %v323 = vor.u32 %v322, %v318
    %v324 = vrot.slane %v323, 4
    %v326 = vshll.u32 %v257, 16
    %v328 = vrot.slane %v326, 5
    %v329 = vsel %vm305, %v324, %v328
    %v331 = vshrl.u32 %v258, 16
    %v333 = vrot.slane %v331, 4
    %v334 = vshll.u32 %v258, 16
    %v336 = vrot.slane %v334, 5
    %v337 = vor.u32 %v333, %v336
    %v338 = vrot.slane %v337, 4
    %v340 = vshll.u32 %v259, 16
    %v342 = vrot.slane %v340, 5
    %v343 = vsel %vm305, %v338, %v342
    %v344 = vshrl.u32 %v259, 16
    %v346 = vrot.slane %v344, 4
    %v347 = vor.u32 %v346, %v342
    %v348 = vrot.slane %v347, 4
    %v350 = vshll.u32 %v260, 16
    %v352 = vrot.slane %v350, 5
    %v353 = vsel %vm305, %v348, %v352
    %v355 = vshrl.u32 %v261, 16
    %v357 = vrot.slane %v355, 4
    %v358 = vshll.u32 %v261, 16
    %v360 = vrot.slane %v358, 5
    %v361 = vor.u32 %v357, %v360
    %v362 = vrot.slane %v361, 4
    %v364 = vshll.u32 %v262, 16
    %v366 = vrot.slane %v364, 5
    %v367 = vsel %vm305, %v362, %v366
    %v368 = vshrl.u32 %v262, 16
    %v370 = vrot.slane %v368, 4
    %v371 = vor.u32 %v370, %v366
    %v372 = vrot.slane %v371, 4
    %v374 = vshll.u32 %v263, 16
    %v376 = vrot.slane %v374, 5
    %v377 = vsel %vm305, %v372, %v376
    %v379 = vshrl.u32 %v264, 16
    %v381 = vrot.slane %v379, 4
    %v382 = vshll.u32 %v264, 16
    %v384 = vrot.slane %v382, 5
    %v385 = vor.u32 %v381, %v384
    %v386 = vrot.slane %v385, 4
    %v388 = vshll.u32 %v265, 16
    %v390 = vrot.slane %v388, 5
    %v391 = vsel %vm305, %v386, %v390
    %v392 = vshrl.u32 %v265, 16
    %v394 = vrot.slane %v392, 4
    %v395 = vor.u32 %v394, %v390
    %v396 = vrot.slane %v395, 4
    %v398 = vshll.u32 %v266, 16
    %v400 = vrot.slane %v398, 5
    %v401 = vsel %vm305, %v396, %v400
    %v403 = vshrl.u32 %v267, 16
    %v405 = vrot.slane %v403, 4
    %v406 = vshll.u32 %v267, 16
    %v408 = vrot.slane %v406, 5
    %v409 = vor.u32 %v405, %v408
    %v410 = vrot.slane %v409, 4
    %v412 = vshll.u32 %v268, 16
    %v414 = vrot.slane %v412, 5
    %v415 = vsel %vm305, %v410, %v414
    %v416 = vshrl.u32 %v268, 16
    %v418 = vrot.slane %v416, 4
    %v419 = vor.u32 %v418, %v414
    %v420 = vrot.slane %v419, 4
    %v422 = vshll.u32 %v269, 16
    %v424 = vrot.slane %v422, 5
    %v425 = vsel %vm305, %v420, %v424
    %v427 = vshrl.u32 %v270, 16
    %v429 = vrot.slane %v427, 4
    %v430 = vshll.u32 %v270, 16
    %v432 = vrot.slane %v430, 5
    %v433 = vor.u32 %v429, %v432
    %v434 = vrot.slane %v433, 4
    %v436 = vshll.u32 %v271, 16
    %v438 = vrot.slane %v436, 5
    %v439 = vsel %vm305, %v434, %v438
    %v440 = vshrl.u32 %v271, 16
    %v442 = vrot.slane %v440, 4
    %v443 = vor.u32 %v442, %v438
    %v444 = vrot.slane %v443, 4
    %v446 = vshll.u32 %v272, 16
    %v448 = vrot.slane %v446, 5
    %v449 = vsel %vm305, %v444, %v448
    %v451 = vshrl.u32 %v273, 16
    %v453 = vrot.slane %v451, 4
    %v454 = vshll.u32 %v273, 16
    %v456 = vrot.slane %v454, 5
    %v457 = vor.u32 %v453, %v456
    %v458 = vrot.slane %v457, 4
    %v460 = vshll.u32 %v274, 16
    %v462 = vrot.slane %v460, 5
    %v463 = vsel %vm305, %v458, %v462
    %v464 = vshrl.u32 %v274, 16
    %v466 = vrot.slane %v464, 4
    %v467 = vor.u32 %v466, %v462
    %v468 = vrot.slane %v467, 4
    %v470 = vshll.u32 %v275, 16
    %v472 = vrot.slane %v470, 5
    %v473 = vsel %vm305, %v468, %v472
    %v475 = vshrl.u32 %v276, 16
    %v477 = vrot.slane %v475, 4
    %v478 = vshll.u32 %v276, 16
    %v480 = vrot.slane %v478, 5
    %v481 = vor.u32 %v477, %v480
    %v482 = vrot.slane %v481, 4
    %v484 = vshll.u32 %v277, 16
    %v486 = vrot.slane %v484, 5
    %v487 = vsel %vm305, %v482, %v486
    %v488 = vshrl.u32 %v277, 16
    %v490 = vrot.slane %v488, 4
    %v491 = vor.u32 %v490, %v486
    %v492 = vrot.slane %v491, 4
    %v494 = vshll.u32 %v278, 16
    %v496 = vrot.slane %v494, 5
    %v497 = vsel %vm305, %v492, %v496
    %v499 = vshrl.u32 %v279, 16
    %v501 = vrot.slane %v499, 4
    %v502 = vshll.u32 %v279, 16
    %v504 = vrot.slane %v502, 5
    %v505 = vor.u32 %v501, %v504
    %v506 = vrot.slane %v505, 4
    %v508 = vshll.u32 %v280, 16
    %v510 = vrot.slane %v508, 5
    %v511 = vsel %vm305, %v506, %v510
    %v512 = vshrl.u32 %v280, 16
    %v514 = vrot.slane %v512, 4
    %v515 = vor.u32 %v514, %v510
    %v516 = vrot.slane %v515, 4
    %v518 = vshll.u32 %v281, 16
    %v520 = vrot.slane %v518, 5
    %v521 = vsel %vm305, %v516, %v520
    %v523 = vshrl.u32 %v282, 16
    %v525 = vrot.slane %v523, 4
    %v526 = vshll.u32 %v282, 16
    %v528 = vrot.slane %v526, 5
    %v529 = vor.u32 %v525, %v528
    %v530 = vrot.slane %v529, 4
    %v532 = vshll.u32 %v283, 16
    %v534 = vrot.slane %v532, 5
    %v535 = vsel %vm305, %v530, %v534
    %v536 = vshrl.u32 %v283, 16
    %v538 = vrot.slane %v536, 4
    %v539 = vor.u32 %v538, %v534
    %v540 = vrot.slane %v539, 4
    %v542 = vshll.u32 %v284, 16
    %v544 = vrot.slane %v542, 5
    %v545 = vsel %vm305, %v540, %v544
    %v547 = vshrl.u32 %v285, 16
    %v549 = vrot.slane %v547, 4
    %v550 = vshll.u32 %v285, 16
    %v552 = vrot.slane %v550, 5
    %v553 = vor.u32 %v549, %v552
    %v554 = vrot.slane %v553, 4
    %v556 = vshll.u32 %v286, 16
    %v558 = vrot.slane %v556, 5
    %v559 = vsel %vm305, %v554, %v558
    %v560 = vshrl.u32 %v286, 16
    %v562 = vrot.slane %v560, 4
    %v563 = vor.u32 %v562, %v558
    %v564 = vrot.slane %v563, 4
    %v566 = vshll.u32 %v287, 16
    %v568 = vrot.slane %v566, 5
    %v569 = vsel %vm305, %v564, %v568
    %v571 = vshrl.u32 %v288, 16
    %v573 = vrot.slane %v571, 4
    %v574 = vshll.u32 %v288, 16
    %v576 = vrot.slane %v574, 5
    %v577 = vor.u32 %v573, %v576
    %v578 = vrot.slane %v577, 4
    %v580 = vshll.u32 %v289, 16
    %v582 = vrot.slane %v580, 5
    %v583 = vsel %vm305, %v578, %v582
    %v584 = vshrl.u32 %v289, 16
    %v586 = vrot.slane %v584, 4
    %v587 = vor.u32 %v586, %v582
    %v588 = vrot.slane %v587, 4
    %v590 = vshll.u32 %v290, 16
    %v592 = vrot.slane %v590, 5
    %v593 = vsel %vm305, %v588, %v592
    %v595 = vshrl.u32 %v291, 16
    %v597 = vrot.slane %v595, 4
    %v598 = vshll.u32 %v291, 16
    %v600 = vrot.slane %v598, 5
    %v601 = vor.u32 %v597, %v600
    %v602 = vrot.slane %v601, 4
    %v604 = vshll.u32 %v292, 16
    %v606 = vrot.slane %v604, 5
    %v607 = vsel %vm305, %v602, %v606
    %v608 = vshrl.u32 %v292, 16
    %v610 = vrot.slane %v608, 4
    %v611 = vor.u32 %v610, %v606
    %v612 = vrot.slane %v611, 4
    %v614 = vshll.u32 %v293, 16
    %v616 = vrot.slane %v614, 5
    %v617 = vsel %vm305, %v612, %v616
    %v619 = vshrl.u32 %v294, 16
    %v621 = vrot.slane %v619, 4
    %v622 = vshll.u32 %v294, 16
    %v624 = vrot.slane %v622, 5
    %v625 = vor.u32 %v621, %v624
    %v626 = vrot.slane %v625, 4
    %v628 = vshll.u32 %v295, 16
    %v630 = vrot.slane %v628, 5
    %v631 = vsel %vm305, %v626, %v630
    %v632 = vshrl.u32 %v295, 16
    %v634 = vrot.slane %v632, 4
    %v635 = vor.u32 %v634, %v630
    %v636 = vrot.slane %v635, 4
    %v638 = vshll.u32 %v296, 16
    %v640 = vrot.slane %v638, 5
    %v641 = vsel %vm305, %v636, %v640
    %v643 = vshrl.u32 %v297, 16
    %v645 = vrot.slane %v643, 4
    %v646 = vshll.u32 %v297, 16
    %v648 = vrot.slane %v646, 5
    %v649 = vor.u32 %v645, %v648
    %v650 = vrot.slane %v649, 4
    %v652 = vshll.u32 %v298, 16
    %v654 = vrot.slane %v652, 5
    %v655 = vsel %vm305, %v650, %v654
    %v656 = vshrl.u32 %v298, 16
    %v658 = vrot.slane %v656, 4
    %v659 = vor.u32 %v658, %v654
    %v660 = vrot.slane %v659, 4
    %v662 = vshll.u32 %v299, 16
    %v664 = vrot.slane %v662, 5
    %v665 = vsel %vm305, %v660, %v664
    %v667 = vshrl.u32 %v300, 16
    %v669 = vrot.slane %v667, 4
    %v670 = vshll.u32 %v300, 16
    %v672 = vrot.slane %v670, 5
    %v673 = vor.u32 %v669, %v672
    %v674 = vrot.slane %v673, 4
    %v676 = vshll.u32 %v301, 16
    %v678 = vrot.slane %v676, 5
    %v679 = vsel %vm305, %v674, %v678
    %v680 = vshrl.u32 %v301, 16
    %v682 = vrot.slane %v680, 4
    %v683 = vor.u32 %v682, %v678
    %v684 = vrot.slane %v683, 4
    %v686 = vshll.u32 %v302, 16
    %v688 = vrot.slane %v686, 5
    %v689 = vsel %vm305, %v684, %v688
    %v690 = vunpack.c.l.b16 %v319
    %v691 = vunpack.c.l.b16 %v329
    %v692 = vunpack.c.l.b16 %v343
    %v693 = vunpack.c.l.b16 %v353
    %v694 = vunpack.c.l.b16 %v367
    %v695 = vunpack.c.l.b16 %v377
    %v696 = vunpack.c.l.b16 %v391
    %v697 = vunpack.c.l.b16 %v401
    %v698 = vunpack.c.l.b16 %v415
    %v699 = vunpack.c.l.b16 %v425
    %v700 = vunpack.c.l.b16 %v439
    %v701 = vunpack.c.l.b16 %v449
    %v702 = vunpack.c.l.b16 %v463
    %v703 = vunpack.c.l.b16 %v473
    %v704 = vunpack.c.l.b16 %v487
    %v705 = vunpack.c.l.b16 %v497
    %v706 = vunpack.c.l.b16 %v511
    %v707 = vunpack.c.l.b16 %v521
    %v708 = vunpack.c.l.b16 %v535
    %v709 = vunpack.c.l.b16 %v545
    %v710 = vunpack.c.l.b16 %v559
    %v711 = vunpack.c.l.b16 %v569
    %v712 = vunpack.c.l.b16 %v583
    %v713 = vunpack.c.l.b16 %v593
    %v714 = vunpack.c.l.b16 %v607
    %v715 = vunpack.c.l.b16 %v617
    %v716 = vunpack.c.l.b16 %v631
    %v717 = vunpack.c.l.b16 %v641
    %v718 = vunpack.c.l.b16 %v655
    %v719 = vunpack.c.l.b16 %v665
    %v720 = vunpack.c.l.b16 %v679
    %v721 = vunpack.c.l.b16 %v689
    %v722 = vpack.c.b16 %v691, %v690
    %v723 = vpack.c.b16 %v693, %v692
    %v724 = vpack.c.b16 %v695, %v694
    %v725 = vpack.c.b16 %v697, %v696
    %v726 = vpack.c.b16 %v699, %v698
    %v727 = vpack.c.b16 %v701, %v700
    %v728 = vpack.c.b16 %v703, %v702
    %v729 = vpack.c.b16 %v705, %v704
    %v730 = vpack.c.b16 %v707, %v706
    %v731 = vpack.c.b16 %v709, %v708
    %v732 = vpack.c.b16 %v711, %v710
    %v733 = vpack.c.b16 %v713, %v712
    %v734 = vpack.c.b16 %v715, %v714
    %v735 = vpack.c.b16 %v717, %v716
    %v736 = vpack.c.b16 %v719, %v718
    %v737 = vpack.c.b16 %v721, %v720
    %738 = vrot.lane.b32.xlu0 %v722, 3
    %v739 = vpop.permute.xlu0 %738
    %740 = vrot.lane.b32.xlu0 %v723, 3
    %v741 = vpop.permute.xlu0 %740
    %742 = vrot.lane.b32.xlu0 %v724, 3
    %v743 = vpop.permute.xlu0 %742
    %744 = vrot.lane.b32.xlu0 %v725, 3
    %v745 = vpop.permute.xlu0 %744
    %746 = vrot.lane.b32.xlu0 %v726, 3
    %v747 = vpop.permute.xlu0 %746
    %748 = vrot.lane.b32.xlu0 %v727, 3
    %v749 = vpop.permute.xlu0 %748
    %750 = vrot.lane.b32.xlu0 %v728, 3
    %v751 = vpop.permute.xlu0 %750
    %752 = vrot.lane.b32.xlu0 %v729, 3
    %v753 = vpop.permute.xlu0 %752
    %754 = vrot.lane.b32.xlu0 %v730, 3
    %v755 = vpop.permute.xlu0 %754
    %756 = vrot.lane.b32.xlu0 %v731, 3
    %v757 = vpop.permute.xlu0 %756
    %758 = vrot.lane.b32.xlu0 %v732, 3
    %v759 = vpop.permute.xlu0 %758
    %760 = vrot.lane.b32.xlu0 %v733, 3
    %v761 = vpop.permute.xlu0 %760
    %762 = vrot.lane.b32.xlu0 %v734, 3
    %v763 = vpop.permute.xlu0 %762
    %764 = vrot.lane.b32.xlu0 %v735, 3
    %v765 = vpop.permute.xlu0 %764
    %766 = vrot.lane.b32.xlu0 %v736, 3
    %v767 = vpop.permute.xlu0 %766
    %768 = vrot.lane.b32.xlu0 %v737, 3
    %v769 = vpop.permute.xlu0 %768
    %vm786 = vcmask 48152
    %787 = vst.msk [vmem:[#allocation3] sm:$0xff] %vm786, %v739
    %788 = vst.msk [vmem:[#allocation3 + $0x8] sm:$0xff] %vm786, %v741
    %789 = vst.msk [vmem:[#allocation3 + $0x10] sm:$0xff] %vm786, %v743
    %790 = vst.msk [vmem:[#allocation3 + $0x18] sm:$0xff] %vm786, %v745
    %791 = vst.msk [vmem:[#allocation3 + $0x20] sm:$0xff] %vm786, %v747
    %792 = vst.msk [vmem:[#allocation3 + $0x28] sm:$0xff] %vm786, %v749
    %793 = vst.msk [vmem:[#allocation3 + $0x30] sm:$0xff] %vm786, %v751
    %794 = vst.msk [vmem:[#allocation3 + $0x38] sm:$0xff] %vm786, %v753
    %795 = vst.msk [vmem:[#allocation3 + $0x40] sm:$0xff] %vm786, %v755
    %796 = vst.msk [vmem:[#allocation3 + $0x48] sm:$0xff] %vm786, %v757
    %797 = vst.msk [vmem:[#allocation3 + $0x50] sm:$0xff] %vm786, %v759
    %798 = vst.msk [vmem:[#allocation3 + $0x58] sm:$0xff] %vm786, %v761
    %799 = vst.msk [vmem:[#allocation3 + $0x60] sm:$0xff] %vm786, %v763
    %800 = vst.msk [vmem:[#allocation3 + $0x68] sm:$0xff] %vm786, %v765
    %801 = vst.msk [vmem:[#allocation3 + $0x70] sm:$0xff] %vm786, %v767
    %802 = vst.msk [vmem:[#allocation3 + $0x78] sm:$0xff] %vm786, %v769
    %v803 = vld [vmem:[%s0] sm:$0xe]
    %v804 = vld [vmem:[%s0 + $0x4] sm:$0xf]
    %v805 = vld [vmem:[%s0 + $0x8] sm:$0x1]
    %v806 = vld [vmem:[%s0 + $0xc] sm:$0xe]
    %v807 = vld [vmem:[%s0 + $0x10] sm:$0xf]
    %v808 = vld [vmem:[%s0 + $0x14] sm:$0x1]
    %v809 = vld [vmem:[%s0 + $0x18] sm:$0xe]
    %v810 = vld [vmem:[%s0 + $0x1c] sm:$0xf]
    %v811 = vld [vmem:[%s0 + $0x20] sm:$0x1]
    %v812 = vld [vmem:[%s0 + $0x24] sm:$0xe]
    %v813 = vld [vmem:[%s0 + $0x28] sm:$0xf]
    %v814 = vld [vmem:[%s0 + $0x2c] sm:$0x1]
    %v815 = vld [vmem:[%s0 + $0x30] sm:$0xe]
    %v816 = vld [vmem:[%s0 + $0x34] sm:$0xf]
    %v817 = vld [vmem:[%s0 + $0x38] sm:$0x1]
    %v818 = vld [vmem:[%s0 + $0x3c] sm:$0xe]
    %v819 = vld [vmem:[%s0 + $0x40] sm:$0xf]
    %v820 = vld [vmem:[%s0 + $0x44] sm:$0x1]
    %v821 = vld [vmem:[%s0 + $0x48] sm:$0xe]
    %v822 = vld [vmem:[%s0 + $0x4c] sm:$0xf]
    %v823 = vld [vmem:[%s0 + $0x50] sm:$0x1]
    %v824 = vld [vmem:[%s0 + $0x54] sm:$0xe]
    %v825 = vld [vmem:[%s0 + $0x58] sm:$0xf]
    %v826 = vld [vmem:[%s0 + $0x5c] sm:$0x1]
    %v827 = vld [vmem:[%s0 + $0x60] sm:$0xe]
    %v828 = vld [vmem:[%s0 + $0x64] sm:$0xf]
    %v829 = vld [vmem:[%s0 + $0x68] sm:$0x1]
    %v830 = vld [vmem:[%s0 + $0x6c] sm:$0xe]
    %v831 = vld [vmem:[%s0 + $0x70] sm:$0xf]
    %v832 = vld [vmem:[%s0 + $0x74] sm:$0x1]
    %v833 = vld [vmem:[%s0 + $0x78] sm:$0xe]
    %v834 = vld [vmem:[%s0 + $0x7c] sm:$0xf]
    %v835 = vld [vmem:[%s0 + $0x80] sm:$0x1]
    %v836 = vld [vmem:[%s0 + $0x84] sm:$0xe]
    %v837 = vld [vmem:[%s0 + $0x88] sm:$0xf]
    %v838 = vld [vmem:[%s0 + $0x8c] sm:$0x1]
    %v839 = vld [vmem:[%s0 + $0x90] sm:$0xe]
    %v840 = vld [vmem:[%s0 + $0x94] sm:$0xf]
    %v841 = vld [vmem:[%s0 + $0x98] sm:$0x1]
    %v842 = vld [vmem:[%s0 + $0x9c] sm:$0xe]
    %v843 = vld [vmem:[%s0 + $0xa0] sm:$0xf]
    %v844 = vld [vmem:[%s0 + $0xa4] sm:$0x1]
    %v845 = vld [vmem:[%s0 + $0xa8] sm:$0xe]
    %v846 = vld [vmem:[%s0 + $0xac] sm:$0xf]
    %v847 = vld [vmem:[%s0 + $0xb0] sm:$0x1]
    %v848 = vld [vmem:[%s0 + $0xb4] sm:$0xe]
    %v849 = vld [vmem:[%s0 + $0xb8] sm:$0xf]
    %v850 = vld [vmem:[%s0 + $0xbc] sm:$0x1]
    %vm899 = vcmask 1042432
    %vm900 = vcmask 1046532
    %vm901 = vmor %vm899, %vm900
    %v902 = vrot.slane %v803, 5
    %v903 = vrot.slane %v902, 4
    %v904 = vrot.slane %v804, 5
    %v905 = vsel %vm901, %v903, %v904
    %v906 = vrot.slane %v904, 4
    %v907 = vrot.slane %v805, 5
    %v908 = vsel %vm901, %v906, %v907
    %v909 = vrot.slane %v806, 5
    %v910 = vrot.slane %v909, 4
    %v911 = vrot.slane %v807, 5
    %v912 = vsel %vm901, %v910, %v911
    %v913 = vrot.slane %v911, 4
    %v914 = vrot.slane %v808, 5
    %v915 = vsel %vm901, %v913, %v914
    %v916 = vrot.slane %v809, 5
    %v917 = vrot.slane %v916, 4
    %v918 = vrot.slane %v810, 5
    %v919 = vsel %vm901, %v917, %v918
    %v920 = vrot.slane %v918, 4
    %v921 = vrot.slane %v811, 5
    %v922 = vsel %vm901, %v920, %v921
    %v923 = vrot.slane %v812, 5
    %v924 = vrot.slane %v923, 4
    %v925 = vrot.slane %v813, 5
    %v926 = vsel %vm901, %v924, %v925
    %v927 = vrot.slane %v925, 4
    %v928 = vrot.slane %v814, 5
    %v929 = vsel %vm901, %v927, %v928
    %v930 = vrot.slane %v815, 5
    %v931 = vrot.slane %v930, 4
    %v932 = vrot.slane %v816, 5
    %v933 = vsel %vm901, %v931, %v932
    %v934 = vrot.slane %v932, 4
    %v935 = vrot.slane %v817, 5
    %v936 = vsel %vm901, %v934, %v935
    %v937 = vrot.slane %v818, 5
    %v938 = vrot.slane %v937, 4
    %v939 = vrot.slane %v819, 5
    %v940 = vsel %vm901, %v938, %v939
    %v941 = vrot.slane %v939, 4
    %v942 = vrot.slane %v820, 5
    %v943 = vsel %vm901, %v941, %v942
    %v944 = vrot.slane %v821, 5
    %v945 = vrot.slane %v944, 4
    %v946 = vrot.slane %v822, 5
    %v947 = vsel %vm901, %v945, %v946
    %v948 = vrot.slane %v946, 4
    %v949 = vrot.slane %v823, 5
    %v950 = vsel %vm901, %v948, %v949
    %v951 = vrot.slane %v824, 5
    %v952 = vrot.slane %v951, 4
    %v953 = vrot.slane %v825, 5
    %v954 = vsel %vm901, %v952, %v953
    %v955 = vrot.slane %v953, 4
    %v956 = vrot.slane %v826, 5
    %v957 = vsel %vm901, %v955, %v956
    %v958 = vrot.slane %v827, 5
    %v959 = vrot.slane %v958, 4
    %v960 = vrot.slane %v828, 5
    %v961 = vsel %vm901, %v959, %v960
    %v962 = vrot.slane %v960, 4
    %v963 = vrot.slane %v829, 5
    %v964 = vsel %vm901, %v962, %v963
    %v965 = vrot.slane %v830, 5
    %v966 = vrot.slane %v965, 4
    %v967 = vrot.slane %v831, 5
    %v968 = vsel %vm901, %v966, %v967
    %v969 = vrot.slane %v967, 4
    %v970 = vrot.slane %v832, 5
    %v971 = vsel %vm901, %v969, %v970
    %v972 = vrot.slane %v833, 5
    %v973 = vrot.slane %v972, 4
    %v974 = vrot.slane %v834, 5
    %v975 = vsel %vm901, %v973, %v974
    %v976 = vrot.slane %v974, 4
    %v977 = vrot.slane %v835, 5
    %v978 = vsel %vm901, %v976, %v977
    %v979 = vrot.slane %v836, 5
    %v980 = vrot.slane %v979, 4
    %v981 = vrot.slane %v837, 5
    %v982 = vsel %vm901, %v980, %v981
    %v983 = vrot.slane %v981, 4
    %v984 = vrot.slane %v838, 5
    %v985 = vsel %vm901, %v983, %v984
    %v986 = vrot.slane %v839, 5
    %v987 = vrot.slane %v986, 4
    %v988 = vrot.slane %v840, 5
    %v989 = vsel %vm901, %v987, %v988
    %v990 = vrot.slane %v988, 4
    %v991 = vrot.slane %v841, 5
    %v992 = vsel %vm901, %v990, %v991
    %v993 = vrot.slane %v842, 5
    %v994 = vrot.slane %v993, 4
    %v995 = vrot.slane %v843, 5
    %v996 = vsel %vm901, %v994, %v995
    %v997 = vrot.slane %v995, 4
    %v998 = vrot.slane %v844, 5
    %v999 = vsel %vm901, %v997, %v998
    %v1000 = vrot.slane %v845, 5
    %v1001 = vrot.slane %v1000, 4
    %v1002 = vrot.slane %v846, 5
    %v1003 = vsel %vm901, %v1001, %v1002
    %v1004 = vrot.slane %v1002, 4
    %v1005 = vrot.slane %v847, 5
    %v1006 = vsel %vm901, %v1004, %v1005
    %v1007 = vrot.slane %v848, 5
    %v1008 = vrot.slane %v1007, 4
    %v1009 = vrot.slane %v849, 5
    %v1010 = vsel %vm901, %v1008, %v1009
    %v1011 = vrot.slane %v1009, 4
    %v1012 = vrot.slane %v850, 5
    %v1013 = vsel %vm901, %v1011, %v1012
    %v1014 = vunpack.c.l.b16 %v905
    %v1015 = vunpack.c.l.b16 %v908
    %v1016 = vunpack.c.l.b16 %v912
    %v1017 = vunpack.c.l.b16 %v915
    %v1018 = vunpack.c.l.b16 %v919
    %v1019 = vunpack.c.l.b16 %v922
    %v1020 = vunpack.c.l.b16 %v926
    %v1021 = vunpack.c.l.b16 %v929
    %v1022 = vunpack.c.l.b16 %v933
    %v1023 = vunpack.c.l.b16 %v936
    %v1024 = vunpack.c.l.b16 %v940
    %v1025 = vunpack.c.l.b16 %v943
    %v1026 = vunpack.c.l.b16 %v947
    %v1027 = vunpack.c.l.b16 %v950
    %v1028 = vunpack.c.l.b16 %v954
    %v1029 = vunpack.c.l.b16 %v957
    %v1030 = vunpack.c.l.b16 %v961
    %v1031 = vunpack.c.l.b16 %v964
    %v1032 = vunpack.c.l.b16 %v968
    %v1033 = vunpack.c.l.b16 %v971
    %v1034 = vunpack.c.l.b16 %v975
    %v1035 = vunpack.c.l.b16 %v978
    %v1036 = vunpack.c.l.b16 %v982
    %v1037 = vunpack.c.l.b16 %v985
    %v1038 = vunpack.c.l.b16 %v989
    %v1039 = vunpack.c.l.b16 %v992
    %v1040 = vunpack.c.l.b16 %v996
    %v1041 = vunpack.c.l.b16 %v999
    %v1042 = vunpack.c.l.b16 %v1003
    %v1043 = vunpack.c.l.b16 %v1006
    %v1044 = vunpack.c.l.b16 %v1010
    %v1045 = vunpack.c.l.b16 %v1013
    %v1046 = vpack.c.b16 %v1015, %v1014
    %v1047 = vpack.c.b16 %v1017, %v1016
    %v1048 = vpack.c.b16 %v1019, %v1018
    %v1049 = vpack.c.b16 %v1021, %v1020
    %v1050 = vpack.c.b16 %v1023, %v1022
    %v1051 = vpack.c.b16 %v1025, %v1024
    %v1052 = vpack.c.b16 %v1027, %v1026
    %v1053 = vpack.c.b16 %v1029, %v1028
    %v1054 = vpack.c.b16 %v1031, %v1030
    %v1055 = vpack.c.b16 %v1033, %v1032
    %v1056 = vpack.c.b16 %v1035, %v1034
    %v1057 = vpack.c.b16 %v1037, %v1036
    %v1058 = vpack.c.b16 %v1039, %v1038
    %v1059 = vpack.c.b16 %v1041, %v1040
    %v1060 = vpack.c.b16 %v1043, %v1042
    %v1061 = vpack.c.b16 %v1045, %v1044
    %1062 = vrot.lane.b32.xlu0 %v1046, 6
    %v1063 = vpop.permute.xlu0 %1062
    %1064 = vrot.lane.b32.xlu0 %v1047, 6
    %v1065 = vpop.permute.xlu0 %1064
    %1066 = vrot.lane.b32.xlu0 %v1048, 6
    %v1067 = vpop.permute.xlu0 %1066
    %1068 = vrot.lane.b32.xlu0 %v1049, 6
    %v1069 = vpop.permute.xlu0 %1068
    %1070 = vrot.lane.b32.xlu0 %v1050, 6
    %v1071 = vpop.permute.xlu0 %1070
    %1072 = vrot.lane.b32.xlu0 %v1051, 6
    %v1073 = vpop.permute.xlu0 %1072
    %1074 = vrot.lane.b32.xlu0 %v1052, 6
    %v1075 = vpop.permute.xlu0 %1074
    %1076 = vrot.lane.b32.xlu0 %v1053, 6
    %v1077 = vpop.permute.xlu0 %1076
    %1078 = vrot.lane.b32.xlu0 %v1054, 6
    %v1079 = vpop.permute.xlu0 %1078
    %1080 = vrot.lane.b32.xlu0 %v1055, 6
    %v1081 = vpop.permute.xlu0 %1080
    %1082 = vrot.lane.b32.xlu0 %v1056, 6
    %v1083 = vpop.permute.xlu0 %1082
    %1084 = vrot.lane.b32.xlu0 %v1057, 6
    %v1085 = vpop.permute.xlu0 %1084
    %1086 = vrot.lane.b32.xlu0 %v1058, 6
    %v1087 = vpop.permute.xlu0 %1086
    %1088 = vrot.lane.b32.xlu0 %v1059, 6
    %v1089 = vpop.permute.xlu0 %1088
    %1090 = vrot.lane.b32.xlu0 %v1060, 6
    %v1091 = vpop.permute.xlu0 %1090
    %1092 = vrot.lane.b32.xlu0 %v1061, 6
    %v1093 = vpop.permute.xlu0 %1092
    %vm1110 = vcmask 72752
    %1111 = vst.msk [vmem:[#allocation3] sm:$0xff] %vm1110, %v1063
    %1112 = vst.msk [vmem:[#allocation3 + $0x8] sm:$0xff] %vm1110, %v1065
    %1113 = vst.msk [vmem:[#allocation3 + $0x10] sm:$0xff] %vm1110, %v1067
    %1114 = vst.msk [vmem:[#allocation3 + $0x18] sm:$0xff] %vm1110, %v1069
    %1115 = vst.msk [vmem:[#allocation3 + $0x20] sm:$0xff] %vm1110, %v1071
    %1116 = vst.msk [vmem:[#allocation3 + $0x28] sm:$0xff] %vm1110, %v1073
    %1117 = vst.msk [vmem:[#allocation3 + $0x30] sm:$0xff] %vm1110, %v1075
    %1118 = vst.msk [vmem:[#allocation3 + $0x38] sm:$0xff] %vm1110, %v1077
    %1119 = vst.msk [vmem:[#allocation3 + $0x40] sm:$0xff] %vm1110, %v1079
    %1120 = vst.msk [vmem:[#allocation3 + $0x48] sm:$0xff] %vm1110, %v1081
    %1121 = vst.msk [vmem:[#allocation3 + $0x50] sm:$0xff] %vm1110, %v1083
    %1122 = vst.msk [vmem:[#allocation3 + $0x58] sm:$0xff] %vm1110, %v1085
    %1123 = vst.msk [vmem:[#allocation3 + $0x60] sm:$0xff] %vm1110, %v1087
    %1124 = vst.msk [vmem:[#allocation3 + $0x68] sm:$0xff] %vm1110, %v1089
    %1125 = vst.msk [vmem:[#allocation3 + $0x70] sm:$0xff] %vm1110, %v1091
    %1126 = vst.msk [vmem:[#allocation3 + $0x78] sm:$0xff] %vm1110, %v1093
    %s1127 = scalar_lea.vmem %s0, 12
    %v1128 = vld [vmem:[%s1127] sm:$0xf]
    %v1129 = vld [vmem:[%s1127 + $0x4] sm:$0xf]
    %v1130 = vld [vmem:[%s1127 + $0xc] sm:$0xf]
    %v1131 = vld [vmem:[%s1127 + $0x10] sm:$0xf]
    %v1132 = vld [vmem:[%s1127 + $0x18] sm:$0xf]
    %v1133 = vld [vmem:[%s1127 + $0x1c] sm:$0xf]
    %v1134 = vld [vmem:[%s1127 + $0x24] sm:$0xf]
    %v1135 = vld [vmem:[%s1127 + $0x28] sm:$0xf]
    %v1136 = vld [vmem:[%s1127 + $0x30] sm:$0xf]
    %v1137 = vld [vmem:[%s1127 + $0x34] sm:$0xf]
    %v1138 = vld [vmem:[%s1127 + $0x3c] sm:$0xf]
    %v1139 = vld [vmem:[%s1127 + $0x40] sm:$0xf]
    %v1140 = vld [vmem:[%s1127 + $0x48] sm:$0xf]
    %v1141 = vld [vmem:[%s1127 + $0x4c] sm:$0xf]
    %v1142 = vld [vmem:[%s1127 + $0x54] sm:$0xf]
    %v1143 = vld [vmem:[%s1127 + $0x58] sm:$0xf]
    %v1144 = vld [vmem:[%s1127 + $0x60] sm:$0xf]
    %v1145 = vld [vmem:[%s1127 + $0x64] sm:$0xf]
    %v1146 = vld [vmem:[%s1127 + $0x6c] sm:$0xf]
    %v1147 = vld [vmem:[%s1127 + $0x70] sm:$0xf]
    %v1148 = vld [vmem:[%s1127 + $0x78] sm:$0xf]
    %v1149 = vld [vmem:[%s1127 + $0x7c] sm:$0xf]
    %v1150 = vld [vmem:[%s1127 + $0x84] sm:$0xf]
    %v1151 = vld [vmem:[%s1127 + $0x88] sm:$0xf]
    %v1152 = vld [vmem:[%s1127 + $0x90] sm:$0xf]
    %v1153 = vld [vmem:[%s1127 + $0x94] sm:$0xf]
    %v1154 = vld [vmem:[%s1127 + $0x9c] sm:$0xf]
    %v1155 = vld [vmem:[%s1127 + $0xa0] sm:$0xf]
    %v1156 = vld [vmem:[%s1127 + $0xa8] sm:$0xf]
    %v1157 = vld [vmem:[%s1127 + $0xac] sm:$0xf]
    %v1158 = vld [vmem:[%s1127 + $0xb4] sm:$0xf]
    %v1159 = vld [vmem:[%s1127 + $0xb8] sm:$0xf]
    %v1192 = vunpack.c.l.b16 %v1128
    %v1193 = vunpack.c.l.b16 %v1129
    %v1194 = vunpack.c.l.b16 %v1130
    %v1195 = vunpack.c.l.b16 %v1131
    %v1196 = vunpack.c.l.b16 %v1132
    %v1197 = vunpack.c.l.b16 %v1133
    %v1198 = vunpack.c.l.b16 %v1134
    %v1199 = vunpack.c.l.b16 %v1135
    %v1200 = vunpack.c.l.b16 %v1136
    %v1201 = vunpack.c.l.b16 %v1137
    %v1202 = vunpack.c.l.b16 %v1138
    %v1203 = vunpack.c.l.b16 %v1139
    %v1204 = vunpack.c.l.b16 %v1140
    %v1205 = vunpack.c.l.b16 %v1141
    %v1206 = vunpack.c.l.b16 %v1142
    %v1207 = vunpack.c.l.b16 %v1143
    %v1208 = vunpack.c.l.b16 %v1144
    %v1209 = vunpack.c.l.b16 %v1145
    %v1210 = vunpack.c.l.b16 %v1146
    %v1211 = vunpack.c.l.b16 %v1147
    %v1212 = vunpack.c.l.b16 %v1148
    %v1213 = vunpack.c.l.b16 %v1149
    %v1214 = vunpack.c.l.b16 %v1150
    %v1215 = vunpack.c.l.b16 %v1151
    %v1216 = vunpack.c.l.b16 %v1152
    %v1217 = vunpack.c.l.b16 %v1153
    %v1218 = vunpack.c.l.b16 %v1154
    %v1219 = vunpack.c.l.b16 %v1155
    %v1220 = vunpack.c.l.b16 %v1156
    %v1221 = vunpack.c.l.b16 %v1157
    %v1222 = vunpack.c.l.b16 %v1158
    %v1223 = vunpack.c.l.b16 %v1159
    %v1224 = vpack.c.b16 %v1193, %v1192
    %v1225 = vpack.c.b16 %v1195, %v1194
    %v1226 = vpack.c.b16 %v1197, %v1196
    %v1227 = vpack.c.b16 %v1199, %v1198
    %v1228 = vpack.c.b16 %v1201, %v1200
    %v1229 = vpack.c.b16 %v1203, %v1202
    %v1230 = vpack.c.b16 %v1205, %v1204
    %v1231 = vpack.c.b16 %v1207, %v1206
    %v1232 = vpack.c.b16 %v1209, %v1208
    %v1233 = vpack.c.b16 %v1211, %v1210
    %v1234 = vpack.c.b16 %v1213, %v1212
    %v1235 = vpack.c.b16 %v1215, %v1214
    %v1236 = vpack.c.b16 %v1217, %v1216
    %v1237 = vpack.c.b16 %v1219, %v1218
    %v1238 = vpack.c.b16 %v1221, %v1220
    %v1239 = vpack.c.b16 %v1223, %v1222
    %1240 = vrot.lane.b32.xlu0 %v1224, 9
    %v1241 = vpop.permute.xlu0 %1240
    %1242 = vrot.lane.b32.xlu0 %v1225, 9
    %v1243 = vpop.permute.xlu0 %1242
    %1244 = vrot.lane.b32.xlu0 %v1226, 9
    %v1245 = vpop.permute.xlu0 %1244
    %1246 = vrot.lane.b32.xlu0 %v1227, 9
    %v1247 = vpop.permute.xlu0 %1246
    %1248 = vrot.lane.b32.xlu0 %v1228, 9
    %v1249 = vpop.permute.xlu0 %1248
    %1250 = vrot.lane.b32.xlu0 %v1229, 9
    %v1251 = vpop.permute.xlu0 %1250
    %1252 = vrot.lane.b32.xlu0 %v1230, 9
    %v1253 = vpop.permute.xlu0 %1252
    %1254 = vrot.lane.b32.xlu0 %v1231, 9
    %v1255 = vpop.permute.xlu0 %1254
    %1256 = vrot.lane.b32.xlu0 %v1232, 9
    %v1257 = vpop.permute.xlu0 %1256
    %1258 = vrot.lane.b32.xlu0 %v1233, 9
    %v1259 = vpop.permute.xlu0 %1258
    %1260 = vrot.lane.b32.xlu0 %v1234, 9
    %v1261 = vpop.permute.xlu0 %1260
    %1262 = vrot.lane.b32.xlu0 %v1235, 9
    %v1263 = vpop.permute.xlu0 %1262
    %1264 = vrot.lane.b32.xlu0 %v1236, 9
    %v1265 = vpop.permute.xlu0 %1264
    %1266 = vrot.lane.b32.xlu0 %v1237, 9
    %v1267 = vpop.permute.xlu0 %1266
    %1268 = vrot.lane.b32.xlu0 %v1238, 9
    %v1269 = vpop.permute.xlu0 %1268
    %1270 = vrot.lane.b32.xlu0 %v1239, 9
    %v1271 = vpop.permute.xlu0 %1270
    %vm1288 = vcmask 97352
    %1289 = vst.msk [vmem:[#allocation3] sm:$0xff] %vm1288, %v1241
    %1290 = vst.msk [vmem:[#allocation3 + $0x8] sm:$0xff] %vm1288, %v1243
    %1291 = vst.msk [vmem:[#allocation3 + $0x10] sm:$0xff] %vm1288, %v1245
    %1292 = vst.msk [vmem:[#allocation3 + $0x18] sm:$0xff] %vm1288, %v1247
    %1293 = vst.msk [vmem:[#allocation3 + $0x20] sm:$0xff] %vm1288, %v1249
    %1294 = vst.msk [vmem:[#allocation3 + $0x28] sm:$0xff] %vm1288, %v1251
    %1295 = vst.msk [vmem:[#allocation3 + $0x30] sm:$0xff] %vm1288, %v1253
    %1296 = vst.msk [vmem:[#allocation3 + $0x38] sm:$0xff] %vm1288, %v1255
    %1297 = vst.msk [vmem:[#allocation3 + $0x40] sm:$0xff] %vm1288, %v1257
    %1298 = vst.msk [vmem:[#allocation3 + $0x48] sm:$0xff] %vm1288, %v1259
    %1299 = vst.msk [vmem:[#allocation3 + $0x50] sm:$0xff] %vm1288, %v1261
    %1300 = vst.msk [vmem:[#allocation3 + $0x58] sm:$0xff] %vm1288, %v1263
    %1301 = vst.msk [vmem:[#allocation3 + $0x60] sm:$0xff] %vm1288, %v1265
    %1302 = vst.msk [vmem:[#allocation3 + $0x68] sm:$0xff] %vm1288, %v1267
    %1303 = vst.msk [vmem:[#allocation3 + $0x70] sm:$0xff] %vm1288, %v1269
    %1304 = vst.msk [vmem:[#allocation3 + $0x78] sm:$0xff] %vm1288, %v1271
    %v1305 = vld [vmem:[%s1127] sm:$0xf]
    %v1306 = vld [vmem:[%s1127 + $0x4] sm:$0xf]
    %v1307 = vld [vmem:[%s1127 + $0x8] sm:$0x1]
    %v1308 = vld [vmem:[%s1127 + $0xc] sm:$0xf]
    %v1309 = vld [vmem:[%s1127 + $0x10] sm:$0xf]
    %v1310 = vld [vmem:[%s1127 + $0x14] sm:$0x1]
    %v1311 = vld [vmem:[%s1127 + $0x18] sm:$0xf]
    %v1312 = vld [vmem:[%s1127 + $0x1c] sm:$0xf]
    %v1313 = vld [vmem:[%s1127 + $0x20] sm:$0x1]
    %v1314 = vld [vmem:[%s1127 + $0x24] sm:$0xf]
    %v1315 = vld [vmem:[%s1127 + $0x28] sm:$0xf]
    %v1316 = vld [vmem:[%s1127 + $0x2c] sm:$0x1]
    %v1317 = vld [vmem:[%s1127 + $0x30] sm:$0xf]
    %v1318 = vld [vmem:[%s1127 + $0x34] sm:$0xf]
    %v1319 = vld [vmem:[%s1127 + $0x38] sm:$0x1]
    %v1320 = vld [vmem:[%s1127 + $0x3c] sm:$0xf]
    %v1321 = vld [vmem:[%s1127 + $0x40] sm:$0xf]
    %v1322 = vld [vmem:[%s1127 + $0x44] sm:$0x1]
    %v1323 = vld [vmem:[%s1127 + $0x48] sm:$0xf]
    %v1324 = vld [vmem:[%s1127 + $0x4c] sm:$0xf]
    %v1325 = vld [vmem:[%s1127 + $0x50] sm:$0x1]
    %v1326 = vld [vmem:[%s1127 + $0x54] sm:$0xf]
    %v1327 = vld [vmem:[%s1127 + $0x58] sm:$0xf]
    %v1328 = vld [vmem:[%s1127 + $0x5c] sm:$0x1]
    %v1329 = vld [vmem:[%s1127 + $0x60] sm:$0xf]
    %v1330 = vld [vmem:[%s1127 + $0x64] sm:$0xf]
    %v1331 = vld [vmem:[%s1127 + $0x68] sm:$0x1]
    %v1332 = vld [vmem:[%s1127 + $0x6c] sm:$0xf]
    %v1333 = vld [vmem:[%s1127 + $0x70] sm:$0xf]
    %v1334 = vld [vmem:[%s1127 + $0x74] sm:$0x1]
    %v1335 = vld [vmem:[%s1127 + $0x78] sm:$0xf]
    %v1336 = vld [vmem:[%s1127 + $0x7c] sm:$0xf]
    %v1337 = vld [vmem:[%s1127 + $0x80] sm:$0x1]
    %v1338 = vld [vmem:[%s1127 + $0x84] sm:$0xf]
    %v1339 = vld [vmem:[%s1127 + $0x88] sm:$0xf]
    %v1340 = vld [vmem:[%s1127 + $0x8c] sm:$0x1]
    %v1341 = vld [vmem:[%s1127 + $0x90] sm:$0xf]
    %v1342 = vld [vmem:[%s1127 + $0x94] sm:$0xf]
    %v1343 = vld [vmem:[%s1127 + $0x98] sm:$0x1]
    %v1344 = vld [vmem:[%s1127 + $0x9c] sm:$0xf]
    %v1345 = vld [vmem:[%s1127 + $0xa0] sm:$0xf]
    %v1346 = vld [vmem:[%s1127 + $0xa4] sm:$0x1]
    %v1347 = vld [vmem:[%s1127 + $0xa8] sm:$0xf]
    %v1348 = vld [vmem:[%s1127 + $0xac] sm:$0xf]
    %v1349 = vld [vmem:[%s1127 + $0xb0] sm:$0x1]
    %v1350 = vld [vmem:[%s1127 + $0xb4] sm:$0xf]
    %v1351 = vld [vmem:[%s1127 + $0xb8] sm:$0xf]
    %v1352 = vld [vmem:[%s1127 + $0xbc] sm:$0x1]
    %v1354 = vshrl.u32 %v1305, 16
    %v1356 = vrot.slane %v1354, 4
    %v1357 = vshll.u32 %v1305, 16
    %v1359 = vrot.slane %v1357, 5
    %v1360 = vor.u32 %v1356, %v1359
    %v1361 = vrot.slane %v1360, 4
    %v1363 = vshll.u32 %v1306, 16
    %v1365 = vrot.slane %v1363, 5
    %v1366 = vsel %vm305, %v1361, %v1365
    %v1367 = vshrl.u32 %v1306, 16
    %v1369 = vrot.slane %v1367, 4
    %v1370 = vor.u32 %v1369, %v1365
    %v1371 = vrot.slane %v1370, 4
    %v1373 = vshll.u32 %v1307, 16
    %v1375 = vrot.slane %v1373, 5
    %v1376 = vsel %vm305, %v1371, %v1375
    %v1378 = vshrl.u32 %v1308, 16
    %v1380 = vrot.slane %v1378, 4
    %v1381 = vshll.u32 %v1308, 16
    %v1383 = vrot.slane %v1381, 5
    %v1384 = vor.u32 %v1380, %v1383
    %v1385 = vrot.slane %v1384, 4
    %v1387 = vshll.u32 %v1309, 16
    %v1389 = vrot.slane %v1387, 5
    %v1390 = vsel %vm305, %v1385, %v1389
    %v1391 = vshrl.u32 %v1309, 16
    %v1393 = vrot.slane %v1391, 4
    %v1394 = vor.u32 %v1393, %v1389
    %v1395 = vrot.slane %v1394, 4
    %v1397 = vshll.u32 %v1310, 16
    %v1399 = vrot.slane %v1397, 5
    %v1400 = vsel %vm305, %v1395, %v1399
    %v1402 = vshrl.u32 %v1311, 16
    %v1404 = vrot.slane %v1402, 4
    %v1405 = vshll.u32 %v1311, 16
    %v1407 = vrot.slane %v1405, 5
    %v1408 = vor.u32 %v1404, %v1407
    %v1409 = vrot.slane %v1408, 4
    %v1411 = vshll.u32 %v1312, 16
    %v1413 = vrot.slane %v1411, 5
    %v1414 = vsel %vm305, %v1409, %v1413
    %v1415 = vshrl.u32 %v1312, 16
    %v1417 = vrot.slane %v1415, 4
    %v1418 = vor.u32 %v1417, %v1413
    %v1419 = vrot.slane %v1418, 4
    %v1421 = vshll.u32 %v1313, 16
    %v1423 = vrot.slane %v1421, 5
    %v1424 = vsel %vm305, %v1419, %v1423
    %v1426 = vshrl.u32 %v1314, 16
    %v1428 = vrot.slane %v1426, 4
    %v1429 = vshll.u32 %v1314, 16
    %v1431 = vrot.slane %v1429, 5
    %v1432 = vor.u32 %v1428, %v1431
    %v1433 = vrot.slane %v1432, 4
    %v1435 = vshll.u32 %v1315, 16
    %v1437 = vrot.slane %v1435, 5
    %v1438 = vsel %vm305, %v1433, %v1437
    %v1439 = vshrl.u32 %v1315, 16
    %v1441 = vrot.slane %v1439, 4
    %v1442 = vor.u32 %v1441, %v1437
    %v1443 = vrot.slane %v1442, 4
    %v1445 = vshll.u32 %v1316, 16
    %v1447 = vrot.slane %v1445, 5
    %v1448 = vsel %vm305, %v1443, %v1447
    %v1450 = vshrl.u32 %v1317, 16
    %v1452 = vrot.slane %v1450, 4
    %v1453 = vshll.u32 %v1317, 16
    %v1455 = vrot.slane %v1453, 5
    %v1456 = vor.u32 %v1452, %v1455
    %v1457 = vrot.slane %v1456, 4
    %v1459 = vshll.u32 %v1318, 16
    %v1461 = vrot.slane %v1459, 5
    %v1462 = vsel %vm305, %v1457, %v1461
    %v1463 = vshrl.u32 %v1318, 16
    %v1465 = vrot.slane %v1463, 4
    %v1466 = vor.u32 %v1465, %v1461
    %v1467 = vrot.slane %v1466, 4
    %v1469 = vshll.u32 %v1319, 16
    %v1471 = vrot.slane %v1469, 5
    %v1472 = vsel %vm305, %v1467, %v1471
    %v1474 = vshrl.u32 %v1320, 16
    %v1476 = vrot.slane %v1474, 4
    %v1477 = vshll.u32 %v1320, 16
    %v1479 = vrot.slane %v1477, 5
    %v1480 = vor.u32 %v1476, %v1479
    %v1481 = vrot.slane %v1480, 4
    %v1483 = vshll.u32 %v1321, 16
    %v1485 = vrot.slane %v1483, 5
    %v1486 = vsel %vm305, %v1481, %v1485
    %v1487 = vshrl.u32 %v1321, 16
    %v1489 = vrot.slane %v1487, 4
    %v1490 = vor.u32 %v1489, %v1485
    %v1491 = vrot.slane %v1490, 4
    %v1493 = vshll.u32 %v1322, 16
    %v1495 = vrot.slane %v1493, 5
    %v1496 = vsel %vm305, %v1491, %v1495
    %v1498 = vshrl.u32 %v1323, 16
    %v1500 = vrot.slane %v1498, 4
    %v1501 = vshll.u32 %v1323, 16
    %v1503 = vrot.slane %v1501, 5
    %v1504 = vor.u32 %v1500, %v1503
    %v1505 = vrot.slane %v1504, 4
    %v1507 = vshll.u32 %v1324, 16
    %v1509 = vrot.slane %v1507, 5
    %v1510 = vsel %vm305, %v1505, %v1509
    %v1511 = vshrl.u32 %v1324, 16
    %v1513 = vrot.slane %v1511, 4
    %v1514 = vor.u32 %v1513, %v1509
    %v1515 = vrot.slane %v1514, 4
    %v1517 = vshll.u32 %v1325, 16
    %v1519 = vrot.slane %v1517, 5
    %v1520 = vsel %vm305, %v1515, %v1519
    %v1522 = vshrl.u32 %v1326, 16
    %v1524 = vrot.slane %v1522, 4
    %v1525 = vshll.u32 %v1326, 16
    %v1527 = vrot.slane %v1525, 5
    %v1528 = vor.u32 %v1524, %v1527
    %v1529 = vrot.slane %v1528, 4
    %v1531 = vshll.u32 %v1327, 16
    %v1533 = vrot.slane %v1531, 5
    %v1534 = vsel %vm305, %v1529, %v1533
    %v1535 = vshrl.u32 %v1327, 16
    %v1537 = vrot.slane %v1535, 4
    %v1538 = vor.u32 %v1537, %v1533
    %v1539 = vrot.slane %v1538, 4
    %v1541 = vshll.u32 %v1328, 16
    %v1543 = vrot.slane %v1541, 5
    %v1544 = vsel %vm305, %v1539, %v1543
    %v1546 = vshrl.u32 %v1329, 16
    %v1548 = vrot.slane %v1546, 4
    %v1549 = vshll.u32 %v1329, 16
    %v1551 = vrot.slane %v1549, 5
    %v1552 = vor.u32 %v1548, %v1551
    %v1553 = vrot.slane %v1552, 4
    %v1555 = vshll.u32 %v1330, 16
    %v1557 = vrot.slane %v1555, 5
    %v1558 = vsel %vm305, %v1553, %v1557
    %v1559 = vshrl.u32 %v1330, 16
    %v1561 = vrot.slane %v1559, 4
    %v1562 = vor.u32 %v1561, %v1557
    %v1563 = vrot.slane %v1562, 4
    %v1565 = vshll.u32 %v1331, 16
    %v1567 = vrot.slane %v1565, 5
    %v1568 = vsel %vm305, %v1563, %v1567
    %v1570 = vshrl.u32 %v1332, 16
    %v1572 = vrot.slane %v1570, 4
    %v1573 = vshll.u32 %v1332, 16
    %v1575 = vrot.slane %v1573, 5
    %v1576 = vor.u32 %v1572, %v1575
    %v1577 = vrot.slane %v1576, 4
    %v1579 = vshll.u32 %v1333, 16
    %v1581 = vrot.slane %v1579, 5
    %v1582 = vsel %vm305, %v1577, %v1581
    %v1583 = vshrl.u32 %v1333, 16
    %v1585 = vrot.slane %v1583, 4
    %v1586 = vor.u32 %v1585, %v1581
    %v1587 = vrot.slane %v1586, 4
    %v1589 = vshll.u32 %v1334, 16
    %v1591 = vrot.slane %v1589, 5
    %v1592 = vsel %vm305, %v1587, %v1591
    %v1594 = vshrl.u32 %v1335, 16
    %v1596 = vrot.slane %v1594, 4
    %v1597 = vshll.u32 %v1335, 16
    %v1599 = vrot.slane %v1597, 5
    %v1600 = vor.u32 %v1596, %v1599
    %v1601 = vrot.slane %v1600, 4
    %v1603 = vshll.u32 %v1336, 16
    %v1605 = vrot.slane %v1603, 5
    %v1606 = vsel %vm305, %v1601, %v1605
    %v1607 = vshrl.u32 %v1336, 16
    %v1609 = vrot.slane %v1607, 4
    %v1610 = vor.u32 %v1609, %v1605
    %v1611 = vrot.slane %v1610, 4
    %v1613 = vshll.u32 %v1337, 16
    %v1615 = vrot.slane %v1613, 5
    %v1616 = vsel %vm305, %v1611, %v1615
    %v1618 = vshrl.u32 %v1338, 16
    %v1620 = vrot.slane %v1618, 4
    %v1621 = vshll.u32 %v1338, 16
    %v1623 = vrot.slane %v1621, 5
    %v1624 = vor.u32 %v1620, %v1623
    %v1625 = vrot.slane %v1624, 4
    %v1627 = vshll.u32 %v1339, 16
    %v1629 = vrot.slane %v1627, 5
    %v1630 = vsel %vm305, %v1625, %v1629
    %v1631 = vshrl.u32 %v1339, 16
    %v1633 = vrot.slane %v1631, 4
    %v1634 = vor.u32 %v1633, %v1629
    %v1635 = vrot.slane %v1634, 4
    %v1637 = vshll.u32 %v1340, 16
    %v1639 = vrot.slane %v1637, 5
    %v1640 = vsel %vm305, %v1635, %v1639
    %v1642 = vshrl.u32 %v1341, 16
    %v1644 = vrot.slane %v1642, 4
    %v1645 = vshll.u32 %v1341, 16
    %v1647 = vrot.slane %v1645, 5
    %v1648 = vor.u32 %v1644, %v1647
    %v1649 = vrot.slane %v1648, 4
    %v1651 = vshll.u32 %v1342, 16
    %v1653 = vrot.slane %v1651, 5
    %v1654 = vsel %vm305, %v1649, %v1653
    %v1655 = vshrl.u32 %v1342, 16
    %v1657 = vrot.slane %v1655, 4
    %v1658 = vor.u32 %v1657, %v1653
    %v1659 = vrot.slane %v1658, 4
    %v1661 = vshll.u32 %v1343, 16
    %v1663 = vrot.slane %v1661, 5
    %v1664 = vsel %vm305, %v1659, %v1663
    %v1666 = vshrl.u32 %v1344, 16
    %v1668 = vrot.slane %v1666, 4
    %v1669 = vshll.u32 %v1344, 16
    %v1671 = vrot.slane %v1669, 5
    %v1672 = vor.u32 %v1668, %v1671
    %v1673 = vrot.slane %v1672, 4
    %v1675 = vshll.u32 %v1345, 16
    %v1677 = vrot.slane %v1675, 5
    %v1678 = vsel %vm305, %v1673, %v1677
    %v1679 = vshrl.u32 %v1345, 16
    %v1681 = vrot.slane %v1679, 4
    %v1682 = vor.u32 %v1681, %v1677
    %v1683 = vrot.slane %v1682, 4
    %v1685 = vshll.u32 %v1346, 16
    %v1687 = vrot.slane %v1685, 5
    %v1688 = vsel %vm305, %v1683, %v1687
    %v1690 = vshrl.u32 %v1347, 16
    %v1692 = vrot.slane %v1690, 4
    %v1693 = vshll.u32 %v1347, 16
    %v1695 = vrot.slane %v1693, 5
    %v1696 = vor.u32 %v1692, %v1695
    %v1697 = vrot.slane %v1696, 4
    %v1699 = vshll.u32 %v1348, 16
    %v1701 = vrot.slane %v1699, 5
    %v1702 = vsel %vm305, %v1697, %v1701
    %v1703 = vshrl.u32 %v1348, 16
    %v1705 = vrot.slane %v1703, 4
    %v1706 = vor.u32 %v1705, %v1701
    %v1707 = vrot.slane %v1706, 4
    %v1709 = vshll.u32 %v1349, 16
    %v1711 = vrot.slane %v1709, 5
    %v1712 = vsel %vm305, %v1707, %v1711
    %v1714 = vshrl.u32 %v1350, 16
    %v1716 = vrot.slane %v1714, 4
    %v1717 = vshll.u32 %v1350, 16
    %v1719 = vrot.slane %v1717, 5
    %v1720 = vor.u32 %v1716, %v1719
    %v1721 = vrot.slane %v1720, 4
    %v1723 = vshll.u32 %v1351, 16
    %v1725 = vrot.slane %v1723, 5
    %v1726 = vsel %vm305, %v1721, %v1725
    %v1727 = vshrl.u32 %v1351, 16
    %v1729 = vrot.slane %v1727, 4
    %v1730 = vor.u32 %v1729, %v1725
    %v1731 = vrot.slane %v1730, 4
    %v1733 = vshll.u32 %v1352, 16
    %v1735 = vrot.slane %v1733, 5
    %v1736 = vsel %vm305, %v1731, %v1735
    %v1737 = vunpack.c.l.b16 %v1366
    %v1738 = vunpack.c.l.b16 %v1376
    %v1739 = vunpack.c.l.b16 %v1390
    %v1740 = vunpack.c.l.b16 %v1400
    %v1741 = vunpack.c.l.b16 %v1414
    %v1742 = vunpack.c.l.b16 %v1424
    %v1743 = vunpack.c.l.b16 %v1438
    %v1744 = vunpack.c.l.b16 %v1448
    %v1745 = vunpack.c.l.b16 %v1462
    %v1746 = vunpack.c.l.b16 %v1472
    %v1747 = vunpack.c.l.b16 %v1486
    %v1748 = vunpack.c.l.b16 %v1496
    %v1749 = vunpack.c.l.b16 %v1510
    %v1750 = vunpack.c.l.b16 %v1520
    %v1751 = vunpack.c.l.b16 %v1534
    %v1752 = vunpack.c.l.b16 %v1544
    %v1753 = vunpack.c.l.b16 %v1558
    %v1754 = vunpack.c.l.b16 %v1568
    %v1755 = vunpack.c.l.b16 %v1582
    %v1756 = vunpack.c.l.b16 %v1592
    %v1757 = vunpack.c.l.b16 %v1606
    %v1758 = vunpack.c.l.b16 %v1616
    %v1759 = vunpack.c.l.b16 %v1630
    %v1760 = vunpack.c.l.b16 %v1640
    %v1761 = vunpack.c.l.b16 %v1654
    %v1762 = vunpack.c.l.b16 %v1664
    %v1763 = vunpack.c.l.b16 %v1678
    %v1764 = vunpack.c.l.b16 %v1688
    %v1765 = vunpack.c.l.b16 %v1702
    %v1766 = vunpack.c.l.b16 %v1712
    %v1767 = vunpack.c.l.b16 %v1726
    %v1768 = vunpack.c.l.b16 %v1736
    %v1769 = vpack.c.b16 %v1738, %v1737
    %v1770 = vpack.c.b16 %v1740, %v1739
    %v1771 = vpack.c.b16 %v1742, %v1741
    %v1772 = vpack.c.b16 %v1744, %v1743
    %v1773 = vpack.c.b16 %v1746, %v1745
    %v1774 = vpack.c.b16 %v1748, %v1747
    %v1775 = vpack.c.b16 %v1750, %v1749
    %v1776 = vpack.c.b16 %v1752, %v1751
    %v1777 = vpack.c.b16 %v1754, %v1753
    %v1778 = vpack.c.b16 %v1756, %v1755
    %v1779 = vpack.c.b16 %v1758, %v1757
    %v1780 = vpack.c.b16 %v1760, %v1759
    %v1781 = vpack.c.b16 %v1762, %v1761
    %v1782 = vpack.c.b16 %v1764, %v1763
    %v1783 = vpack.c.b16 %v1766, %v1765
    %v1784 = vpack.c.b16 %v1768, %v1767
    %1785 = vrot.lane.b32.xlu0 %v1769, 12
    %v1786 = vpop.permute.xlu0 %1785
    %1787 = vrot.lane.b32.xlu0 %v1770, 12
    %v1788 = vpop.permute.xlu0 %1787
    %1789 = vrot.lane.b32.xlu0 %v1771, 12
    %v1790 = vpop.permute.xlu0 %1789
    %1791 = vrot.lane.b32.xlu0 %v1772, 12
    %v1792 = vpop.permute.xlu0 %1791
    %1793 = vrot.lane.b32.xlu0 %v1773, 12
    %v1794 = vpop.permute.xlu0 %1793
    %1795 = vrot.lane.b32.xlu0 %v1774, 12
    %v1796 = vpop.permute.xlu0 %1795
    %1797 = vrot.lane.b32.xlu0 %v1775, 12
    %v1798 = vpop.permute.xlu0 %1797
    %1799 = vrot.lane.b32.xlu0 %v1776, 12
    %v1800 = vpop.permute.xlu0 %1799
    %1801 = vrot.lane.b32.xlu0 %v1777, 12
    %v1802 = vpop.permute.xlu0 %1801
    %1803 = vrot.lane.b32.xlu0 %v1778, 12
    %v1804 = vpop.permute.xlu0 %1803
    %1805 = vrot.lane.b32.xlu0 %v1779, 12
    %v1806 = vpop.permute.xlu0 %1805
    %1807 = vrot.lane.b32.xlu0 %v1780, 12
    %v1808 = vpop.permute.xlu0 %1807
    %1809 = vrot.lane.b32.xlu0 %v1781, 12
    %v1810 = vpop.permute.xlu0 %1809
    %1811 = vrot.lane.b32.xlu0 %v1782, 12
    %v1812 = vpop.permute.xlu0 %1811
    %1813 = vrot.lane.b32.xlu0 %v1783, 12
    %v1814 = vpop.permute.xlu0 %1813
    %1815 = vrot.lane.b32.xlu0 %v1784, 12
    %v1816 = vpop.permute.xlu0 %1815
    %vm1833 = vcmask 121952
    %1834 = vst.msk [vmem:[#allocation3] sm:$0xff] %vm1833, %v1786
    %1835 = vst.msk [vmem:[#allocation3 + $0x8] sm:$0xff] %vm1833, %v1788
    %1836 = vst.msk [vmem:[#allocation3 + $0x10] sm:$0xff] %vm1833, %v1790
    %1837 = vst.msk [vmem:[#allocation3 + $0x18] sm:$0xff] %vm1833, %v1792
    %1838 = vst.msk [vmem:[#allocation3 + $0x20] sm:$0xff] %vm1833, %v1794
    %1839 = vst.msk [vmem:[#allocation3 + $0x28] sm:$0xff] %vm1833, %v1796
    %1840 = vst.msk [vmem:[#allocation3 + $0x30] sm:$0xff] %vm1833, %v1798
    %1841 = vst.msk [vmem:[#allocation3 + $0x38] sm:$0xff] %vm1833, %v1800
    %1842 = vst.msk [vmem:[#allocation3 + $0x40] sm:$0xff] %vm1833, %v1802
    %1843 = vst.msk [vmem:[#allocation3 + $0x48] sm:$0xff] %vm1833, %v1804
    %1844 = vst.msk [vmem:[#allocation3 + $0x50] sm:$0xff] %vm1833, %v1806
    %1845 = vst.msk [vmem:[#allocation3 + $0x58] sm:$0xff] %vm1833, %v1808
    %1846 = vst.msk [vmem:[#allocation3 + $0x60] sm:$0xff] %vm1833, %v1810
    %1847 = vst.msk [vmem:[#allocation3 + $0x68] sm:$0xff] %vm1833, %v1812
    %1848 = vst.msk [vmem:[#allocation3 + $0x70] sm:$0xff] %vm1833, %v1814
    %1849 = vst.msk [vmem:[#allocation3 + $0x78] sm:$0xff] %vm1833, %v1816
    %v1850 = vld [vmem:[%s1127] sm:$0xe]
    %v1851 = vld [vmem:[%s1127 + $0x4] sm:$0xf]
    %v1852 = vld [vmem:[%s1127 + $0x8] sm:$0x1]
    %v1853 = vld [vmem:[%s1127 + $0xc] sm:$0xe]
    %v1854 = vld [vmem:[%s1127 + $0x10] sm:$0xf]
    %v1855 = vld [vmem:[%s1127 + $0x14] sm:$0x1]
    %v1856 = vld [vmem:[%s1127 + $0x18] sm:$0xe]
    %v1857 = vld [vmem:[%s1127 + $0x1c] sm:$0xf]
    %v1858 = vld [vmem:[%s1127 + $0x20] sm:$0x1]
    %v1859 = vld [vmem:[%s1127 + $0x24] sm:$0xe]
    %v1860 = vld [vmem:[%s1127 + $0x28] sm:$0xf]
    %v1861 = vld [vmem:[%s1127 + $0x2c] sm:$0x1]
    %v1862 = vld [vmem:[%s1127 + $0x30] sm:$0xe]
    %v1863 = vld [vmem:[%s1127 + $0x34] sm:$0xf]
    %v1864 = vld [vmem:[%s1127 + $0x38] sm:$0x1]
    %v1865 = vld [vmem:[%s1127 + $0x3c] sm:$0xe]
    %v1866 = vld [vmem:[%s1127 + $0x40] sm:$0xf]
    %v1867 = vld [vmem:[%s1127 + $0x44] sm:$0x1]
    %v1868 = vld [vmem:[%s1127 + $0x48] sm:$0xe]
    %v1869 = vld [vmem:[%s1127 + $0x4c] sm:$0xf]
    %v1870 = vld [vmem:[%s1127 + $0x50] sm:$0x1]
    %v1871 = vld [vmem:[%s1127 + $0x54] sm:$0xe]
    %v1872 = vld [vmem:[%s1127 + $0x58] sm:$0xf]
    %v1873 = vld [vmem:[%s1127 + $0x5c] sm:$0x1]
    %v1874 = vld [vmem:[%s1127 + $0x60] sm:$0xe]
    %v1875 = vld [vmem:[%s1127 + $0x64] sm:$0xf]
    %v1876 = vld [vmem:[%s1127 + $0x68] sm:$0x1]
    %v1877 = vld [vmem:[%s1127 + $0x6c] sm:$0xe]
    %v1878 = vld [vmem:[%s1127 + $0x70] sm:$0xf]
    %v1879 = vld [vmem:[%s1127 + $0x74] sm:$0x1]
    %v1880 = vld [vmem:[%s1127 + $0x78] sm:$0xe]
    %v1881 = vld [vmem:[%s1127 + $0x7c] sm:$0xf]
    %v1882 = vld [vmem:[%s1127 + $0x80] sm:$0x1]
    %v1883 = vld [vmem:[%s1127 + $0x84] sm:$0xe]
    %v1884 = vld [vmem:[%s1127 + $0x88] sm:$0xf]
    %v1885 = vld [vmem:[%s1127 + $0x8c] sm:$0x1]
    %v1886 = vld [vmem:[%s1127 + $0x90] sm:$0xe]
    %v1887 = vld [vmem:[%s1127 + $0x94] sm:$0xf]
    %v1888 = vld [vmem:[%s1127 + $0x98] sm:$0x1]
    %v1889 = vld [vmem:[%s1127 + $0x9c] sm:$0xe]
    %v1890 = vld [vmem:[%s1127 + $0xa0] sm:$0xf]
    %v1891 = vld [vmem:[%s1127 + $0xa4] sm:$0x1]
    %v1892 = vld [vmem:[%s1127 + $0xa8] sm:$0xe]
    %v1893 = vld [vmem:[%s1127 + $0xac] sm:$0xf]
    %v1894 = vld [vmem:[%s1127 + $0xb0] sm:$0x1]
    %v1895 = vld [vmem:[%s1127 + $0xb4] sm:$0xe]
    %v1896 = vld [vmem:[%s1127 + $0xb8] sm:$0xf]
    %v1897 = vld [vmem:[%s1127 + $0xbc] sm:$0x1]
    %v1946 = vrot.slane %v1850, 5
    %v1947 = vrot.slane %v1946, 4
    %v1948 = vrot.slane %v1851, 5
    %v1949 = vsel %vm901, %v1947, %v1948
    %v1950 = vrot.slane %v1948, 4
    %v1951 = vrot.slane %v1852, 5
    %v1952 = vsel %vm901, %v1950, %v1951
    %v1953 = vrot.slane %v1853, 5
    %v1954 = vrot.slane %v1953, 4
    %v1955 = vrot.slane %v1854, 5
    %v1956 = vsel %vm901, %v1954, %v1955
    %v1957 = vrot.slane %v1955, 4
    %v1958 = vrot.slane %v1855, 5
    %v1959 = vsel %vm901, %v1957, %v1958
    %v1960 = vrot.slane %v1856, 5
    %v1961 = vrot.slane %v1960, 4
    %v1962 = vrot.slane %v1857, 5
    %v1963 = vsel %vm901, %v1961, %v1962
    %v1964 = vrot.slane %v1962, 4
    %v1965 = vrot.slane %v1858, 5
    %v1966 = vsel %vm901, %v1964, %v1965
    %v1967 = vrot.slane %v1859, 5
    %v1968 = vrot.slane %v1967, 4
    %v1969 = vrot.slane %v1860, 5
    %v1970 = vsel %vm901, %v1968, %v1969
    %v1971 = vrot.slane %v1969, 4
    %v1972 = vrot.slane %v1861, 5
    %v1973 = vsel %vm901, %v1971, %v1972
    %v1974 = vrot.slane %v1862, 5
    %v1975 = vrot.slane %v1974, 4
    %v1976 = vrot.slane %v1863, 5
    %v1977 = vsel %vm901, %v1975, %v1976
    %v1978 = vrot.slane %v1976, 4
    %v1979 = vrot.slane %v1864, 5
    %v1980 = vsel %vm901, %v1978, %v1979
    %v1981 = vrot.slane %v1865, 5
    %v1982 = vrot.slane %v1981, 4
    %v1983 = vrot.slane %v1866, 5
    %v1984 = vsel %vm901, %v1982, %v1983
    %v1985 = vrot.slane %v1983, 4
    %v1986 = vrot.slane %v1867, 5
    %v1987 = vsel %vm901, %v1985, %v1986
    %v1988 = vrot.slane %v1868, 5
    %v1989 = vrot.slane %v1988, 4
    %v1990 = vrot.slane %v1869, 5
    %v1991 = vsel %vm901, %v1989, %v1990
    %v1992 = vrot.slane %v1990, 4
    %v1993 = vrot.slane %v1870, 5
    %v1994 = vsel %vm901, %v1992, %v1993
    %v1995 = vrot.slane %v1871, 5
    %v1996 = vrot.slane %v1995, 4
    %v1997 = vrot.slane %v1872, 5
    %v1998 = vsel %vm901, %v1996, %v1997
    %v1999 = vrot.slane %v1997, 4
    %v2000 = vrot.slane %v1873, 5
    %v2001 = vsel %vm901, %v1999, %v2000
    %v2002 = vrot.slane %v1874, 5
    %v2003 = vrot.slane %v2002, 4
    %v2004 = vrot.slane %v1875, 5
    %v2005 = vsel %vm901, %v2003, %v2004
    %v2006 = vrot.slane %v2004, 4
    %v2007 = vrot.slane %v1876, 5
    %v2008 = vsel %vm901, %v2006, %v2007
    %v2009 = vrot.slane %v1877, 5
    %v2010 = vrot.slane %v2009, 4
    %v2011 = vrot.slane %v1878, 5
    %v2012 = vsel %vm901, %v2010, %v2011
    %v2013 = vrot.slane %v2011, 4
    %v2014 = vrot.slane %v1879, 5
    %v2015 = vsel %vm901, %v2013, %v2014
    %v2016 = vrot.slane %v1880, 5
    %v2017 = vrot.slane %v2016, 4
    %v2018 = vrot.slane %v1881, 5
    %v2019 = vsel %vm901, %v2017, %v2018
    %v2020 = vrot.slane %v2018, 4
    %v2021 = vrot.slane %v1882, 5
    %v2022 = vsel %vm901, %v2020, %v2021
    %v2023 = vrot.slane %v1883, 5
    %v2024 = vrot.slane %v2023, 4
    %v2025 = vrot.slane %v1884, 5
    %v2026 = vsel %vm901, %v2024, %v2025
    %v2027 = vrot.slane %v2025, 4
    %v2028 = vrot.slane %v1885, 5
    %v2029 = vsel %vm901, %v2027, %v2028
    %v2030 = vrot.slane %v1886, 5
    %v2031 = vrot.slane %v2030, 4
    %v2032 = vrot.slane %v1887, 5
    %v2033 = vsel %vm901, %v2031, %v2032
    %v2034 = vrot.slane %v2032, 4
    %v2035 = vrot.slane %v1888, 5
    %v2036 = vsel %vm901, %v2034, %v2035
    %v2037 = vrot.slane %v1889, 5
    %v2038 = vrot.slane %v2037, 4
    %v2039 = vrot.slane %v1890, 5
    %v2040 = vsel %vm901, %v2038, %v2039
    %v2041 = vrot.slane %v2039, 4
    %v2042 = vrot.slane %v1891, 5
    %v2043 = vsel %vm901, %v2041, %v2042
    %v2044 = vrot.slane %v1892, 5
    %v2045 = vrot.slane %v2044, 4
    %v2046 = vrot.slane %v1893, 5
    %v2047 = vsel %vm901, %v2045, %v2046
    %v2048 = vrot.slane %v2046, 4
    %v2049 = vrot.slane %v1894, 5
    %v2050 = vsel %vm901, %v2048, %v2049
    %v2051 = vrot.slane %v1895, 5
    %v2052 = vrot.slane %v2051, 4
    %v2053 = vrot.slane %v1896, 5
    %v2054 = vsel %vm901, %v2052, %v2053
    %v2055 = vrot.slane %v2053, 4
    %v2056 = vrot.slane %v1897, 5
    %v2057 = vsel %vm901, %v2055, %v2056
    %v2058 = vunpack.c.l.b16 %v1949
    %v2059 = vunpack.c.l.b16 %v1952
    %v2060 = vunpack.c.l.b16 %v1956
    %v2061 = vunpack.c.l.b16 %v1959
    %v2062 = vunpack.c.l.b16 %v1963
    %v2063 = vunpack.c.l.b16 %v1966
    %v2064 = vunpack.c.l.b16 %v1970
    %v2065 = vunpack.c.l.b16 %v1973
    %v2066 = vunpack.c.l.b16 %v1977
    %v2067 = vunpack.c.l.b16 %v1980
    %v2068 = vunpack.c.l.b16 %v1984
    %v2069 = vunpack.c.l.b16 %v1987
    %v2070 = vunpack.c.l.b16 %v1991
    %v2071 = vunpack.c.l.b16 %v1994
    %v2072 = vunpack.c.l.b16 %v1998
    %v2073 = vunpack.c.l.b16 %v2001
    %v2074 = vunpack.c.l.b16 %v2005
    %v2075 = vunpack.c.l.b16 %v2008
    %v2076 = vunpack.c.l.b16 %v2012
    %v2077 = vunpack.c.l.b16 %v2015
    %v2078 = vunpack.c.l.b16 %v2019
    %v2079 = vunpack.c.l.b16 %v2022
    %v2080 = vunpack.c.l.b16 %v2026
    %v2081 = vunpack.c.l.b16 %v2029
    %v2082 = vunpack.c.l.b16 %v2033
    %v2083 = vunpack.c.l.b16 %v2036
    %v2084 = vunpack.c.l.b16 %v2040
    %v2085 = vunpack.c.l.b16 %v2043
    %v2086 = vunpack.c.l.b16 %v2047
    %v2087 = vunpack.c.l.b16 %v2050
    %v2088 = vunpack.c.l.b16 %v2054
    %v2089 = vunpack.c.l.b16 %v2057
    %v2090 = vpack.c.b16 %v2059, %v2058
    %v2091 = vpack.c.b16 %v2061, %v2060
    %v2092 = vpack.c.b16 %v2063, %v2062
    %v2093 = vpack.c.b16 %v2065, %v2064
    %v2094 = vpack.c.b16 %v2067, %v2066
    %v2095 = vpack.c.b16 %v2069, %v2068
    %v2096 = vpack.c.b16 %v2071, %v2070
    %v2097 = vpack.c.b16 %v2073, %v2072
    %v2098 = vpack.c.b16 %v2075, %v2074
    %v2099 = vpack.c.b16 %v2077, %v2076
    %v2100 = vpack.c.b16 %v2079, %v2078
    %v2101 = vpack.c.b16 %v2081, %v2080
    %v2102 = vpack.c.b16 %v2083, %v2082
    %v2103 = vpack.c.b16 %v2085, %v2084
    %v2104 = vpack.c.b16 %v2087, %v2086
    %v2105 = vpack.c.b16 %v2089, %v2088
    %2106 = vrot.lane.b32.xlu0 %v2090, 15
    %v2107 = vpop.permute.xlu0 %2106
    %2108 = vrot.lane.b32.xlu0 %v2091, 15
    %v2109 = vpop.permute.xlu0 %2108
    %2110 = vrot.lane.b32.xlu0 %v2092, 15
    %v2111 = vpop.permute.xlu0 %2110
    %2112 = vrot.lane.b32.xlu0 %v2093, 15
    %v2113 = vpop.permute.xlu0 %2112
    %2114 = vrot.lane.b32.xlu0 %v2094, 15
    %v2115 = vpop.permute.xlu0 %2114
    %2116 = vrot.lane.b32.xlu0 %v2095, 15
    %v2117 = vpop.permute.xlu0 %2116
    %2118 = vrot.lane.b32.xlu0 %v2096, 15
    %v2119 = vpop.permute.xlu0 %2118
    %2120 = vrot.lane.b32.xlu0 %v2097, 15
    %v2121 = vpop.permute.xlu0 %2120
    %2122 = vrot.lane.b32.xlu0 %v2098, 15
    %v2123 = vpop.permute.xlu0 %2122
    %2124 = vrot.lane.b32.xlu0 %v2099, 15
    %v2125 = vpop.permute.xlu0 %2124
    %2126 = vrot.lane.b32.xlu0 %v2100, 15
    %v2127 = vpop.permute.xlu0 %2126
    %2128 = vrot.lane.b32.xlu0 %v2101, 15
    %v2129 = vpop.permute.xlu0 %2128
    %2130 = vrot.lane.b32.xlu0 %v2102, 15
    %v2131 = vpop.permute.xlu0 %2130
    %2132 = vrot.lane.b32.xlu0 %v2103, 15
    %v2133 = vpop.permute.xlu0 %2132
    %2134 = vrot.lane.b32.xlu0 %v2104, 15
    %v2135 = vpop.permute.xlu0 %2134
    %2136 = vrot.lane.b32.xlu0 %v2105, 15
    %v2137 = vpop.permute.xlu0 %2136
    %vm2154 = vcmask 146552
    %2155 = vst.msk [vmem:[#allocation3] sm:$0xff] %vm2154, %v2107
    %2156 = vst.msk [vmem:[#allocation3 + $0x8] sm:$0xff] %vm2154, %v2109
    %2157 = vst.msk [vmem:[#allocation3 + $0x10] sm:$0xff] %vm2154, %v2111
    %2158 = vst.msk [vmem:[#allocation3 + $0x18] sm:$0xff] %vm2154, %v2113
    %2159 = vst.msk [vmem:[#allocation3 + $0x20] sm:$0xff] %vm2154, %v2115
    %2160 = vst.msk [vmem:[#allocation3 + $0x28] sm:$0xff] %vm2154, %v2117
    %2161 = vst.msk [vmem:[#allocation3 + $0x30] sm:$0xff] %vm2154, %v2119
    %2162 = vst.msk [vmem:[#allocation3 + $0x38] sm:$0xff] %vm2154, %v2121
    %2163 = vst.msk [vmem:[#allocation3 + $0x40] sm:$0xff] %vm2154, %v2123
    %2164 = vst.msk [vmem:[#allocation3 + $0x48] sm:$0xff] %vm2154, %v2125
    %2165 = vst.msk [vmem:[#allocation3 + $0x50] sm:$0xff] %vm2154, %v2127
    %2166 = vst.msk [vmem:[#allocation3 + $0x58] sm:$0xff] %vm2154, %v2129
    %2167 = vst.msk [vmem:[#allocation3 + $0x60] sm:$0xff] %vm2154, %v2131
    %2168 = vst.msk [vmem:[#allocation3 + $0x68] sm:$0xff] %vm2154, %v2133
    %2169 = vst.msk [vmem:[#allocation3 + $0x70] sm:$0xff] %vm2154, %v2135
    %2170 = vst.msk [vmem:[#allocation3 + $0x78] sm:$0xff] %vm2154, %v2137
    %s2171 = scalar_lea.vmem %s0, 24
    %v2172 = vld [vmem:[%s2171] sm:$0xf]
    %v2173 = vld [vmem:[%s2171 + $0x4] sm:$0xf]
    %v2174 = vld [vmem:[%s2171 + $0xc] sm:$0xf]
    %v2175 = vld [vmem:[%s2171 + $0x10] sm:$0xf]
    %v2176 = vld [vmem:[%s2171 + $0x18] sm:$0xf]
    %v2177 = vld [vmem:[%s2171 + $0x1c] sm:$0xf]
    %v2178 = vld [vmem:[%s2171 + $0x24] sm:$0xf]
    %v2179 = vld [vmem:[%s2171 + $0x28] sm:$0xf]
    %v2180 = vld [vmem:[%s2171 + $0x30] sm:$0xf]
    %v2181 = vld [vmem:[%s2171 + $0x34] sm:$0xf]
    %v2182 = vld [vmem:[%s2171 + $0x3c] sm:$0xf]
    %v2183 = vld [vmem:[%s2171 + $0x40] sm:$0xf]
    %v2184 = vld [vmem:[%s2171 + $0x48] sm:$0xf]
    %v2185 = vld [vmem:[%s2171 + $0x4c] sm:$0xf]
    %v2186 = vld [vmem:[%s2171 + $0x54] sm:$0xf]
    %v2187 = vld [vmem:[%s2171 + $0x58] sm:$0xf]
    %v2188 = vld [vmem:[%s2171 + $0x60] sm:$0xf]
    %v2189 = vld [vmem:[%s2171 + $0x64] sm:$0xf]
    %v2190 = vld [vmem:[%s2171 + $0x6c] sm:$0xf]
    %v2191 = vld [vmem:[%s2171 + $0x70] sm:$0xf]
    %v2192 = vld [vmem:[%s2171 + $0x78] sm:$0xf]
    %v2193 = vld [vmem:[%s2171 + $0x7c] sm:$0xf]
    %v2194 = vld [vmem:[%s2171 + $0x84] sm:$0xf]
    %v2195 = vld [vmem:[%s2171 + $0x88] sm:$0xf]
    %v2196 = vld [vmem:[%s2171 + $0x90] sm:$0xf]
    %v2197 = vld [vmem:[%s2171 + $0x94] sm:$0xf]
    %v2198 = vld [vmem:[%s2171 + $0x9c] sm:$0xf]
    %v2199 = vld [vmem:[%s2171 + $0xa0] sm:$0xf]
    %v2200 = vld [vmem:[%s2171 + $0xa8] sm:$0xf]
    %v2201 = vld [vmem:[%s2171 + $0xac] sm:$0xf]
    %v2202 = vld [vmem:[%s2171 + $0xb4] sm:$0xf]
    %v2203 = vld [vmem:[%s2171 + $0xb8] sm:$0xf]
    %v2236 = vunpack.c.l.b16 %v2172
    %v2237 = vunpack.c.l.b16 %v2173
    %v2238 = vunpack.c.l.b16 %v2174
    %v2239 = vunpack.c.l.b16 %v2175
    %v2240 = vunpack.c.l.b16 %v2176
    %v2241 = vunpack.c.l.b16 %v2177
    %v2242 = vunpack.c.l.b16 %v2178
    %v2243 = vunpack.c.l.b16 %v2179
    %v2244 = vunpack.c.l.b16 %v2180
    %v2245 = vunpack.c.l.b16 %v2181
    %v2246 = vunpack.c.l.b16 %v2182
    %v2247 = vunpack.c.l.b16 %v2183
    %v2248 = vunpack.c.l.b16 %v2184
    %v2249 = vunpack.c.l.b16 %v2185
    %v2250 = vunpack.c.l.b16 %v2186
    %v2251 = vunpack.c.l.b16 %v2187
    %v2252 = vunpack.c.l.b16 %v2188
    %v2253 = vunpack.c.l.b16 %v2189
    %v2254 = vunpack.c.l.b16 %v2190
    %v2255 = vunpack.c.l.b16 %v2191
    %v2256 = vunpack.c.l.b16 %v2192
    %v2257 = vunpack.c.l.b16 %v2193
    %v2258 = vunpack.c.l.b16 %v2194
    %v2259 = vunpack.c.l.b16 %v2195
    %v2260 = vunpack.c.l.b16 %v2196
    %v2261 = vunpack.c.l.b16 %v2197
    %v2262 = vunpack.c.l.b16 %v2198
    %v2263 = vunpack.c.l.b16 %v2199
    %v2264 = vunpack.c.l.b16 %v2200
    %v2265 = vunpack.c.l.b16 %v2201
    %v2266 = vunpack.c.l.b16 %v2202
    %v2267 = vunpack.c.l.b16 %v2203
    %v2268 = vpack.c.b16 %v2237, %v2236
    %v2269 = vpack.c.b16 %v2239, %v2238
    %v2270 = vpack.c.b16 %v2241, %v2240
    %v2271 = vpack.c.b16 %v2243, %v2242
    %v2272 = vpack.c.b16 %v2245, %v2244
    %v2273 = vpack.c.b16 %v2247, %v2246
    %v2274 = vpack.c.b16 %v2249, %v2248
    %v2275 = vpack.c.b16 %v2251, %v2250
    %v2276 = vpack.c.b16 %v2253, %v2252
    %v2277 = vpack.c.b16 %v2255, %v2254
    %v2278 = vpack.c.b16 %v2257, %v2256
    %v2279 = vpack.c.b16 %v2259, %v2258
    %v2280 = vpack.c.b16 %v2261, %v2260
    %v2281 = vpack.c.b16 %v2263, %v2262
    %v2282 = vpack.c.b16 %v2265, %v2264
    %v2283 = vpack.c.b16 %v2267, %v2266
    %2284 = vrot.lane.b32.xlu0 %v2268, 18
    %v2285 = vpop.permute.xlu0 %2284
    %2286 = vrot.lane.b32.xlu0 %v2269, 18
    %v2287 = vpop.permute.xlu0 %2286
    %2288 = vrot.lane.b32.xlu0 %v2270, 18
    %v2289 = vpop.permute.xlu0 %2288
    %2290 = vrot.lane.b32.xlu0 %v2271, 18
    %v2291 = vpop.permute.xlu0 %2290
    %2292 = vrot.lane.b32.xlu0 %v2272, 18
    %v2293 = vpop.permute.xlu0 %2292
    %2294 = vrot.lane.b32.xlu0 %v2273, 18
    %v2295 = vpop.permute.xlu0 %2294
    %2296 = vrot.lane.b32.xlu0 %v2274, 18
    %v2297 = vpop.permute.xlu0 %2296
    %2298 = vrot.lane.b32.xlu0 %v2275, 18
    %v2299 = vpop.permute.xlu0 %2298
    %2300 = vrot.lane.b32.xlu0 %v2276, 18
    %v2301 = vpop.permute.xlu0 %2300
    %2302 = vrot.lane.b32.xlu0 %v2277, 18
    %v2303 = vpop.permute.xlu0 %2302
    %2304 = vrot.lane.b32.xlu0 %v2278, 18
    %v2305 = vpop.permute.xlu0 %2304
    %2306 = vrot.lane.b32.xlu0 %v2279, 18
    %v2307 = vpop.permute.xlu0 %2306
    %2308 = vrot.lane.b32.xlu0 %v2280, 18
    %v2309 = vpop.permute.xlu0 %2308
    %2310 = vrot.lane.b32.xlu0 %v2281, 18
    %v2311 = vpop.permute.xlu0 %2310
    %2312 = vrot.lane.b32.xlu0 %v2282, 18
    %v2313 = vpop.permute.xlu0 %2312
    %2314 = vrot.lane.b32.xlu0 %v2283, 18
    %v2315 = vpop.permute.xlu0 %2314
    %vm2332 = vcmask 171152
    %2333 = vst.msk [vmem:[#allocation3] sm:$0xff] %vm2332, %v2285
    %2334 = vst.msk [vmem:[#allocation3 + $0x8] sm:$0xff] %vm2332, %v2287
    %2335 = vst.msk [vmem:[#allocation3 + $0x10] sm:$0xff] %vm2332, %v2289
    %2336 = vst.msk [vmem:[#allocation3 + $0x18] sm:$0xff] %vm2332, %v2291
    %2337 = vst.msk [vmem:[#allocation3 + $0x20] sm:$0xff] %vm2332, %v2293
    %2338 = vst.msk [vmem:[#allocation3 + $0x28] sm:$0xff] %vm2332, %v2295
    %2339 = vst.msk [vmem:[#allocation3 + $0x30] sm:$0xff] %vm2332, %v2297
    %2340 = vst.msk [vmem:[#allocation3 + $0x38] sm:$0xff] %vm2332, %v2299
    %2341 = vst.msk [vmem:[#allocation3 + $0x40] sm:$0xff] %vm2332, %v2301
    %2342 = vst.msk [vmem:[#allocation3 + $0x48] sm:$0xff] %vm2332, %v2303
    %2343 = vst.msk [vmem:[#allocation3 + $0x50] sm:$0xff] %vm2332, %v2305
    %2344 = vst.msk [vmem:[#allocation3 + $0x58] sm:$0xff] %vm2332, %v2307
    %2345 = vst.msk [vmem:[#allocation3 + $0x60] sm:$0xff] %vm2332, %v2309
    %2346 = vst.msk [vmem:[#allocation3 + $0x68] sm:$0xff] %vm2332, %v2311
    %2347 = vst.msk [vmem:[#allocation3 + $0x70] sm:$0xff] %vm2332, %v2313
    %2348 = vst.msk [vmem:[#allocation3 + $0x78] sm:$0xff] %vm2332, %v2315
    %v2349 = vld [vmem:[%s2171] sm:$0xf]
    %v2350 = vld [vmem:[%s2171 + $0x4] sm:$0xf]
    %v2351 = vld [vmem:[%s2171 + $0x8] sm:$0x1]
    %v2352 = vld [vmem:[%s2171 + $0xc] sm:$0xf]
    %v2353 = vld [vmem:[%s2171 + $0x10] sm:$0xf]
    %v2354 = vld [vmem:[%s2171 + $0x14] sm:$0x1]
    %v2355 = vld [vmem:[%s2171 + $0x18] sm:$0xf]
    %v2356 = vld [vmem:[%s2171 + $0x1c] sm:$0xf]
    %v2357 = vld [vmem:[%s2171 + $0x20] sm:$0x1]
    %v2358 = vld [vmem:[%s2171 + $0x24] sm:$0xf]
    %v2359 = vld [vmem:[%s2171 + $0x28] sm:$0xf]
    %v2360 = vld [vmem:[%s2171 + $0x2c] sm:$0x1]
    %v2361 = vld [vmem:[%s2171 + $0x30] sm:$0xf]
    %v2362 = vld [vmem:[%s2171 + $0x34] sm:$0xf]
    %v2363 = vld [vmem:[%s2171 + $0x38] sm:$0x1]
    %v2364 = vld [vmem:[%s2171 + $0x3c] sm:$0xf]
    %v2365 = vld [vmem:[%s2171 + $0x40] sm:$0xf]
    %v2366 = vld [vmem:[%s2171 + $0x44] sm:$0x1]
    %v2367 = vld [vmem:[%s2171 + $0x48] sm:$0xf]
    %v2368 = vld [vmem:[%s2171 + $0x4c] sm:$0xf]
    %v2369 = vld [vmem:[%s2171 + $0x50] sm:$0x1]
    %v2370 = vld [vmem:[%s2171 + $0x54] sm:$0xf]
    %v2371 = vld [vmem:[%s2171 + $0x58] sm:$0xf]
    %v2372 = vld [vmem:[%s2171 + $0x5c] sm:$0x1]
    %v2373 = vld [vmem:[%s2171 + $0x60] sm:$0xf]
    %v2374 = vld [vmem:[%s2171 + $0x64] sm:$0xf]
    %v2375 = vld [vmem:[%s2171 + $0x68] sm:$0x1]
    %v2376 = vld [vmem:[%s2171 + $0x6c] sm:$0xf]
    %v2377 = vld [vmem:[%s2171 + $0x70] sm:$0xf]
    %v2378 = vld [vmem:[%s2171 + $0x74] sm:$0x1]
    %v2379 = vld [vmem:[%s2171 + $0x78] sm:$0xf]
    %v2380 = vld [vmem:[%s2171 + $0x7c] sm:$0xf]
    %v2381 = vld [vmem:[%s2171 + $0x80] sm:$0x1]
    %v2382 = vld [vmem:[%s2171 + $0x84] sm:$0xf]
    %v2383 = vld [vmem:[%s2171 + $0x88] sm:$0xf]
    %v2384 = vld [vmem:[%s2171 + $0x8c] sm:$0x1]
    %v2385 = vld [vmem:[%s2171 + $0x90] sm:$0xf]
    %v2386 = vld [vmem:[%s2171 + $0x94] sm:$0xf]
    %v2387 = vld [vmem:[%s2171 + $0x98] sm:$0x1]
    %v2388 = vld [vmem:[%s2171 + $0x9c] sm:$0xf]
    %v2389 = vld [vmem:[%s2171 + $0xa0] sm:$0xf]
    %v2390 = vld [vmem:[%s2171 + $0xa4] sm:$0x1]
    %v2391 = vld [vmem:[%s2171 + $0xa8] sm:$0xf]
    %v2392 = vld [vmem:[%s2171 + $0xac] sm:$0xf]
    %v2393 = vld [vmem:[%s2171 + $0xb0] sm:$0x1]
    %v2394 = vld [vmem:[%s2171 + $0xb4] sm:$0xf]
    %v2395 = vld [vmem:[%s2171 + $0xb8] sm:$0xf]
    %v2396 = vld [vmem:[%s2171 + $0xbc] sm:$0x1]
    %v2398 = vshrl.u32 %v2349, 16
    %v2400 = vrot.slane %v2398, 4
    %v2401 = vshll.u32 %v2349, 16
    %v2403 = vrot.slane %v2401, 5
    %v2404 = vor.u32 %v2400, %v2403
    %v2405 = vrot.slane %v2404, 4
    %v2407 = vshll.u32 %v2350, 16
    %v2409 = vrot.slane %v2407, 5
    %v2410 = vsel %vm305, %v2405, %v2409
    %v2411 = vshrl.u32 %v2350, 16
    %v2413 = vrot.slane %v2411, 4
    %v2414 = vor.u32 %v2413, %v2409
    %v2415 = vrot.slane %v2414, 4
    %v2417 = vshll.u32 %v2351, 16
    %v2419 = vrot.slane %v2417, 5
    %v2420 = vsel %vm305, %v2415, %v2419
    %v2422 = vshrl.u32 %v2352, 16
    %v2424 = vrot.slane %v2422, 4
    %v2425 = vshll.u32 %v2352, 16
    %v2427 = vrot.slane %v2425, 5
    %v2428 = vor.u32 %v2424, %v2427
    %v2429 = vrot.slane %v2428, 4
    %v2431 = vshll.u32 %v2353, 16
    %v2433 = vrot.slane %v2431, 5
    %v2434 = vsel %vm305, %v2429, %v2433
    %v2435 = vshrl.u32 %v2353, 16
    %v2437 = vrot.slane %v2435, 4
    %v2438 = vor.u32 %v2437, %v2433
    %v2439 = vrot.slane %v2438, 4
    %v2441 = vshll.u32 %v2354, 16
    %v2443 = vrot.slane %v2441, 5
    %v2444 = vsel %vm305, %v2439, %v2443
    %v2446 = vshrl.u32 %v2355, 16
    %v2448 = vrot.slane %v2446, 4
    %v2449 = vshll.u32 %v2355, 16
    %v2451 = vrot.slane %v2449, 5
    %v2452 = vor.u32 %v2448, %v2451
    %v2453 = vrot.slane %v2452, 4
    %v2455 = vshll.u32 %v2356, 16
    %v2457 = vrot.slane %v2455, 5
    %v2458 = vsel %vm305, %v2453, %v2457
    %v2459 = vshrl.u32 %v2356, 16
    %v2461 = vrot.slane %v2459, 4
    %v2462 = vor.u32 %v2461, %v2457
    %v2463 = vrot.slane %v2462, 4
    %v2465 = vshll.u32 %v2357, 16
    %v2467 = vrot.slane %v2465, 5
    %v2468 = vsel %vm305, %v2463, %v2467
    %v2470 = vshrl.u32 %v2358, 16
    %v2472 = vrot.slane %v2470, 4
    %v2473 = vshll.u32 %v2358, 16
    %v2475 = vrot.slane %v2473, 5
    %v2476 = vor.u32 %v2472, %v2475
    %v2477 = vrot.slane %v2476, 4
    %v2479 = vshll.u32 %v2359, 16
    %v2481 = vrot.slane %v2479, 5
    %v2482 = vsel %vm305, %v2477, %v2481
    %v2483 = vshrl.u32 %v2359, 16
    %v2485 = vrot.slane %v2483, 4
    %v2486 = vor.u32 %v2485, %v2481
    %v2487 = vrot.slane %v2486, 4
    %v2489 = vshll.u32 %v2360, 16
    %v2491 = vrot.slane %v2489, 5
    %v2492 = vsel %vm305, %v2487, %v2491
    %v2494 = vshrl.u32 %v2361, 16
    %v2496 = vrot.slane %v2494, 4
    %v2497 = vshll.u32 %v2361, 16
    %v2499 = vrot.slane %v2497, 5
    %v2500 = vor.u32 %v2496, %v2499
    %v2501 = vrot.slane %v2500, 4
    %v2503 = vshll.u32 %v2362, 16
    %v2505 = vrot.slane %v2503, 5
    %v2506 = vsel %vm305, %v2501, %v2505
    %v2507 = vshrl.u32 %v2362, 16
    %v2509 = vrot.slane %v2507, 4
    %v2510 = vor.u32 %v2509, %v2505
    %v2511 = vrot.slane %v2510, 4
    %v2513 = vshll.u32 %v2363, 16
    %v2515 = vrot.slane %v2513, 5
    %v2516 = vsel %vm305, %v2511, %v2515
    %v2518 = vshrl.u32 %v2364, 16
    %v2520 = vrot.slane %v2518, 4
    %v2521 = vshll.u32 %v2364, 16
    %v2523 = vrot.slane %v2521, 5
    %v2524 = vor.u32 %v2520, %v2523
    %v2525 = vrot.slane %v2524, 4
    %v2527 = vshll.u32 %v2365, 16
    %v2529 = vrot.slane %v2527, 5
    %v2530 = vsel %vm305, %v2525, %v2529
    %v2531 = vshrl.u32 %v2365, 16
    %v2533 = vrot.slane %v2531, 4
    %v2534 = vor.u32 %v2533, %v2529
    %v2535 = vrot.slane %v2534, 4
    %v2537 = vshll.u32 %v2366, 16
    %v2539 = vrot.slane %v2537, 5
    %v2540 = vsel %vm305, %v2535, %v2539
    %v2542 = vshrl.u32 %v2367, 16
    %v2544 = vrot.slane %v2542, 4
    %v2545 = vshll.u32 %v2367, 16
    %v2547 = vrot.slane %v2545, 5
    %v2548 = vor.u32 %v2544, %v2547
    %v2549 = vrot.slane %v2548, 4
    %v2551 = vshll.u32 %v2368, 16
    %v2553 = vrot.slane %v2551, 5
    %v2554 = vsel %vm305, %v2549, %v2553
    %v2555 = vshrl.u32 %v2368, 16
    %v2557 = vrot.slane %v2555, 4
    %v2558 = vor.u32 %v2557, %v2553
    %v2559 = vrot.slane %v2558, 4
    %v2561 = vshll.u32 %v2369, 16
    %v2563 = vrot.slane %v2561, 5
    %v2564 = vsel %vm305, %v2559, %v2563
    %v2566 = vshrl.u32 %v2370, 16
    %v2568 = vrot.slane %v2566, 4
    %v2569 = vshll.u32 %v2370, 16
    %v2571 = vrot.slane %v2569, 5
    %v2572 = vor.u32 %v2568, %v2571
    %v2573 = vrot.slane %v2572, 4
    %v2575 = vshll.u32 %v2371, 16
    %v2577 = vrot.slane %v2575, 5
    %v2578 = vsel %vm305, %v2573, %v2577
    %v2579 = vshrl.u32 %v2371, 16
    %v2581 = vrot.slane %v2579, 4
    %v2582 = vor.u32 %v2581, %v2577
    %v2583 = vrot.slane %v2582, 4
    %v2585 = vshll.u32 %v2372, 16
    %v2587 = vrot.slane %v2585, 5
    %v2588 = vsel %vm305, %v2583, %v2587
    %v2590 = vshrl.u32 %v2373, 16
    %v2592 = vrot.slane %v2590, 4
    %v2593 = vshll.u32 %v2373, 16
    %v2595 = vrot.slane %v2593, 5
    %v2596 = vor.u32 %v2592, %v2595
    %v2597 = vrot.slane %v2596, 4
    %v2599 = vshll.u32 %v2374, 16
    %v2601 = vrot.slane %v2599, 5
    %v2602 = vsel %vm305, %v2597, %v2601
    %v2603 = vshrl.u32 %v2374, 16
    %v2605 = vrot.slane %v2603, 4
    %v2606 = vor.u32 %v2605, %v2601
    %v2607 = vrot.slane %v2606, 4
    %v2609 = vshll.u32 %v2375, 16
    %v2611 = vrot.slane %v2609, 5
    %v2612 = vsel %vm305, %v2607, %v2611
    %v2614 = vshrl.u32 %v2376, 16
    %v2616 = vrot.slane %v2614, 4
    %v2617 = vshll.u32 %v2376, 16
    %v2619 = vrot.slane %v2617, 5
    %v2620 = vor.u32 %v2616, %v2619
    %v2621 = vrot.slane %v2620, 4
    %v2623 = vshll.u32 %v2377, 16
    %v2625 = vrot.slane %v2623, 5
    %v2626 = vsel %vm305, %v2621, %v2625
    %v2627 = vshrl.u32 %v2377, 16
    %v2629 = vrot.slane %v2627, 4
    %v2630 = vor.u32 %v2629, %v2625
    %v2631 = vrot.slane %v2630, 4
    %v2633 = vshll.u32 %v2378, 16
    %v2635 = vrot.slane %v2633, 5
    %v2636 = vsel %vm305, %v2631, %v2635
    %v2638 = vshrl.u32 %v2379, 16
    %v2640 = vrot.slane %v2638, 4
    %v2641 = vshll.u32 %v2379, 16
    %v2643 = vrot.slane %v2641, 5
    %v2644 = vor.u32 %v2640, %v2643
    %v2645 = vrot.slane %v2644, 4
    %v2647 = vshll.u32 %v2380, 16
    %v2649 = vrot.slane %v2647, 5
    %v2650 = vsel %vm305, %v2645, %v2649
    %v2651 = vshrl.u32 %v2380, 16
    %v2653 = vrot.slane %v2651, 4
    %v2654 = vor.u32 %v2653, %v2649
    %v2655 = vrot.slane %v2654, 4
    %v2657 = vshll.u32 %v2381, 16
    %v2659 = vrot.slane %v2657, 5
    %v2660 = vsel %vm305, %v2655, %v2659
    %v2662 = vshrl.u32 %v2382, 16
    %v2664 = vrot.slane %v2662, 4
    %v2665 = vshll.u32 %v2382, 16
    %v2667 = vrot.slane %v2665, 5
    %v2668 = vor.u32 %v2664, %v2667
    %v2669 = vrot.slane %v2668, 4
    %v2671 = vshll.u32 %v2383, 16
    %v2673 = vrot.slane %v2671, 5
    %v2674 = vsel %vm305, %v2669, %v2673
    %v2675 = vshrl.u32 %v2383, 16
    %v2677 = vrot.slane %v2675, 4
    %v2678 = vor.u32 %v2677, %v2673
    %v2679 = vrot.slane %v2678, 4
    %v2681 = vshll.u32 %v2384, 16
    %v2683 = vrot.slane %v2681, 5
    %v2684 = vsel %vm305, %v2679, %v2683
    %v2686 = vshrl.u32 %v2385, 16
    %v2688 = vrot.slane %v2686, 4
    %v2689 = vshll.u32 %v2385, 16
    %v2691 = vrot.slane %v2689, 5
    %v2692 = vor.u32 %v2688, %v2691
    %v2693 = vrot.slane %v2692, 4
    %v2695 = vshll.u32 %v2386, 16
    %v2697 = vrot.slane %v2695, 5
    %v2698 = vsel %vm305, %v2693, %v2697
    %v2699 = vshrl.u32 %v2386, 16
    %v2701 = vrot.slane %v2699, 4
    %v2702 = vor.u32 %v2701, %v2697
    %v2703 = vrot.slane %v2702, 4
    %v2705 = vshll.u32 %v2387, 16
    %v2707 = vrot.slane %v2705, 5
    %v2708 = vsel %vm305, %v2703, %v2707
    %v2710 = vshrl.u32 %v2388, 16
    %v2712 = vrot.slane %v2710, 4
    %v2713 = vshll.u32 %v2388, 16
    %v2715 = vrot.slane %v2713, 5
    %v2716 = vor.u32 %v2712, %v2715
    %v2717 = vrot.slane %v2716, 4
    %v2719 = vshll.u32 %v2389, 16
    %v2721 = vrot.slane %v2719, 5
    %v2722 = vsel %vm305, %v2717, %v2721
    %v2723 = vshrl.u32 %v2389, 16
    %v2725 = vrot.slane %v2723, 4
    %v2726 = vor.u32 %v2725, %v2721
    %v2727 = vrot.slane %v2726, 4
    %v2729 = vshll.u32 %v2390, 16
    %v2731 = vrot.slane %v2729, 5
    %v2732 = vsel %vm305, %v2727, %v2731
    %v2734 = vshrl.u32 %v2391, 16
    %v2736 = vrot.slane %v2734, 4
    %v2737 = vshll.u32 %v2391, 16
    %v2739 = vrot.slane %v2737, 5
    %v2740 = vor.u32 %v2736, %v2739
    %v2741 = vrot.slane %v2740, 4
    %v2743 = vshll.u32 %v2392, 16
    %v2745 = vrot.slane %v2743, 5
    %v2746 = vsel %vm305, %v2741, %v2745
    %v2747 = vshrl.u32 %v2392, 16
    %v2749 = vrot.slane %v2747, 4
    %v2750 = vor.u32 %v2749, %v2745
    %v2751 = vrot.slane %v2750, 4
    %v2753 = vshll.u32 %v2393, 16
    %v2755 = vrot.slane %v2753, 5
    %v2756 = vsel %vm305, %v2751, %v2755
    %v2758 = vshrl.u32 %v2394, 16
    %v2760 = vrot.slane %v2758, 4
    %v2761 = vshll.u32 %v2394, 16
    %v2763 = vrot.slane %v2761, 5
    %v2764 = vor.u32 %v2760, %v2763
    %v2765 = vrot.slane %v2764, 4
    %v2767 = vshll.u32 %v2395, 16
    %v2769 = vrot.slane %v2767, 5
    %v2770 = vsel %vm305, %v2765, %v2769
    %v2771 = vshrl.u32 %v2395, 16
    %v2773 = vrot.slane %v2771, 4
    %v2774 = vor.u32 %v2773, %v2769
    %v2775 = vrot.slane %v2774, 4
    %v2777 = vshll.u32 %v2396, 16
    %v2779 = vrot.slane %v2777, 5
    %v2780 = vsel %vm305, %v2775, %v2779
    %v2781 = vunpack.c.l.b16 %v2410
    %v2782 = vunpack.c.l.b16 %v2420
    %v2783 = vunpack.c.l.b16 %v2434
    %v2784 = vunpack.c.l.b16 %v2444
    %v2785 = vunpack.c.l.b16 %v2458
    %v2786 = vunpack.c.l.b16 %v2468
    %v2787 = vunpack.c.l.b16 %v2482
    %v2788 = vunpack.c.l.b16 %v2492
    %v2789 = vunpack.c.l.b16 %v2506
    %v2790 = vunpack.c.l.b16 %v2516
    %v2791 = vunpack.c.l.b16 %v2530
    %v2792 = vunpack.c.l.b16 %v2540
    %v2793 = vunpack.c.l.b16 %v2554
    %v2794 = vunpack.c.l.b16 %v2564
    %v2795 = vunpack.c.l.b16 %v2578
    %v2796 = vunpack.c.l.b16 %v2588
    %v2797 = vunpack.c.l.b16 %v2602
    %v2798 = vunpack.c.l.b16 %v2612
    %v2799 = vunpack.c.l.b16 %v2626
    %v2800 = vunpack.c.l.b16 %v2636
    %v2801 = vunpack.c.l.b16 %v2650
    %v2802 = vunpack.c.l.b16 %v2660
    %v2803 = vunpack.c.l.b16 %v2674
    %v2804 = vunpack.c.l.b16 %v2684
    %v2805 = vunpack.c.l.b16 %v2698
    %v2806 = vunpack.c.l.b16 %v2708
    %v2807 = vunpack.c.l.b16 %v2722
    %v2808 = vunpack.c.l.b16 %v2732
    %v2809 = vunpack.c.l.b16 %v2746
    %v2810 = vunpack.c.l.b16 %v2756
    %v2811 = vunpack.c.l.b16 %v2770
    %v2812 = vunpack.c.l.b16 %v2780
    %v2813 = vpack.c.b16 %v2782, %v2781
    %v2814 = vpack.c.b16 %v2784, %v2783
    %v2815 = vpack.c.b16 %v2786, %v2785
    %v2816 = vpack.c.b16 %v2788, %v2787
    %v2817 = vpack.c.b16 %v2790, %v2789
    %v2818 = vpack.c.b16 %v2792, %v2791
    %v2819 = vpack.c.b16 %v2794, %v2793
    %v2820 = vpack.c.b16 %v2796, %v2795
    %v2821 = vpack.c.b16 %v2798, %v2797
    %v2822 = vpack.c.b16 %v2800, %v2799
    %v2823 = vpack.c.b16 %v2802, %v2801
    %v2824 = vpack.c.b16 %v2804, %v2803
    %v2825 = vpack.c.b16 %v2806, %v2805
    %v2826 = vpack.c.b16 %v2808, %v2807
    %v2827 = vpack.c.b16 %v2810, %v2809
    %v2828 = vpack.c.b16 %v2812, %v2811
    %2829 = vrot.lane.b32.xlu0 %v2813, 21
    %v2830 = vpop.permute.xlu0 %2829
    %2831 = vrot.lane.b32.xlu0 %v2814, 21
    %v2832 = vpop.permute.xlu0 %2831
    %2833 = vrot.lane.b32.xlu0 %v2815, 21
    %v2834 = vpop.permute.xlu0 %2833
    %2835 = vrot.lane.b32.xlu0 %v2816, 21
    %v2836 = vpop.permute.xlu0 %2835
    %2837 = vrot.lane.b32.xlu0 %v2817, 21
    %v2838 = vpop.permute.xlu0 %2837
    %2839 = vrot.lane.b32.xlu0 %v2818, 21
    %v2840 = vpop.permute.xlu0 %2839
    %2841 = vrot.lane.b32.xlu0 %v2819, 21
    %v2842 = vpop.permute.xlu0 %2841
    %2843 = vrot.lane.b32.xlu0 %v2820, 21
    %v2844 = vpop.permute.xlu0 %2843
    %2845 = vrot.lane.b32.xlu0 %v2821, 21
    %v2846 = vpop.permute.xlu0 %2845
    %2847 = vrot.lane.b32.xlu0 %v2822, 21
    %v2848 = vpop.permute.xlu0 %2847
    %2849 = vrot.lane.b32.xlu0 %v2823, 21
    %v2850 = vpop.permute.xlu0 %2849
    %2851 = vrot.lane.b32.xlu0 %v2824, 21
    %v2852 = vpop.permute.xlu0 %2851
    %2853 = vrot.lane.b32.xlu0 %v2825, 21
    %v2854 = vpop.permute.xlu0 %2853
    %2855 = vrot.lane.b32.xlu0 %v2826, 21
    %v2856 = vpop.permute.xlu0 %2855
    %2857 = vrot.lane.b32.xlu0 %v2827, 21
    %v2858 = vpop.permute.xlu0 %2857
    %2859 = vrot.lane.b32.xlu0 %v2828, 21
    %v2860 = vpop.permute.xlu0 %2859
    %vm2877 = vcmask 195752
    %2878 = vst.msk [vmem:[#allocation3] sm:$0xff] %vm2877, %v2830
    %2879 = vst.msk [vmem:[#allocation3 + $0x8] sm:$0xff] %vm2877, %v2832
    %2880 = vst.msk [vmem:[#allocation3 + $0x10] sm:$0xff] %vm2877, %v2834
    %2881 = vst.msk [vmem:[#allocation3 + $0x18] sm:$0xff] %vm2877, %v2836
    %2882 = vst.msk [vmem:[#allocation3 + $0x20] sm:$0xff] %vm2877, %v2838
    %2883 = vst.msk [vmem:[#allocation3 + $0x28] sm:$0xff] %vm2877, %v2840
    %2884 = vst.msk [vmem:[#allocation3 + $0x30] sm:$0xff] %vm2877, %v2842
    %2885 = vst.msk [vmem:[#allocation3 + $0x38] sm:$0xff] %vm2877, %v2844
    %2886 = vst.msk [vmem:[#allocation3 + $0x40] sm:$0xff] %vm2877, %v2846
    %2887 = vst.msk [vmem:[#allocation3 + $0x48] sm:$0xff] %vm2877, %v2848
    %2888 = vst.msk [vmem:[#allocation3 + $0x50] sm:$0xff] %vm2877, %v2850
    %2889 = vst.msk [vmem:[#allocation3 + $0x58] sm:$0xff] %vm2877, %v2852
    %2890 = vst.msk [vmem:[#allocation3 + $0x60] sm:$0xff] %vm2877, %v2854
    %2891 = vst.msk [vmem:[#allocation3 + $0x68] sm:$0xff] %vm2877, %v2856
    %2892 = vst.msk [vmem:[#allocation3 + $0x70] sm:$0xff] %vm2877, %v2858
    %2893 = vst.msk [vmem:[#allocation3 + $0x78] sm:$0xff] %vm2877, %v2860
    %v2894 = vld [vmem:[%s2171] sm:$0xe]
    %v2895 = vld [vmem:[%s2171 + $0x4] sm:$0xf]
    %v2896 = vld [vmem:[%s2171 + $0x8] sm:$0x1]
    %v2897 = vld [vmem:[%s2171 + $0xc] sm:$0xe]
    %v2898 = vld [vmem:[%s2171 + $0x10] sm:$0xf]
    %v2899 = vld [vmem:[%s2171 + $0x14] sm:$0x1]
    %v2900 = vld [vmem:[%s2171 + $0x18] sm:$0xe]
    %v2901 = vld [vmem:[%s2171 + $0x1c] sm:$0xf]
    %v2902 = vld [vmem:[%s2171 + $0x20] sm:$0x1]
    %v2903 = vld [vmem:[%s2171 + $0x24] sm:$0xe]
    %v2904 = vld [vmem:[%s2171 + $0x28] sm:$0xf]
    %v2905 = vld [vmem:[%s2171 + $0x2c] sm:$0x1]
    %v2906 = vld [vmem:[%s2171 + $0x30] sm:$0xe]
    %v2907 = vld [vmem:[%s2171 + $0x34] sm:$0xf]
    %v2908 = vld [vmem:[%s2171 + $0x38] sm:$0x1]
    %v2909 = vld [vmem:[%s2171 + $0x3c] sm:$0xe]
    %v2910 = vld [vmem:[%s2171 + $0x40] sm:$0xf]
    %v2911 = vld [vmem:[%s2171 + $0x44] sm:$0x1]
    %v2912 = vld [vmem:[%s2171 + $0x48] sm:$0xe]
    %v2913 = vld [vmem:[%s2171 + $0x4c] sm:$0xf]
    %v2914 = vld [vmem:[%s2171 + $0x50] sm:$0x1]
    %v2915 = vld [vmem:[%s2171 + $0x54] sm:$0xe]
    %v2916 = vld [vmem:[%s2171 + $0x58] sm:$0xf]
    %v2917 = vld [vmem:[%s2171 + $0x5c] sm:$0x1]
    %v2918 = vld [vmem:[%s2171 + $0x60] sm:$0xe]
    %v2919 = vld [vmem:[%s2171 + $0x64] sm:$0xf]
    %v2920 = vld [vmem:[%s2171 + $0x68] sm:$0x1]
    %v2921 = vld [vmem:[%s2171 + $0x6c] sm:$0xe]
    %v2922 = vld [vmem:[%s2171 + $0x70] sm:$0xf]
    %v2923 = vld [vmem:[%s2171 + $0x74] sm:$0x1]
    %v2924 = vld [vmem:[%s2171 + $0x78] sm:$0xe]
    %v2925 = vld [vmem:[%s2171 + $0x7c] sm:$0xf]
    %v2926 = vld [vmem:[%s2171 + $0x80] sm:$0x1]
    %v2927 = vld [vmem:[%s2171 + $0x84] sm:$0xe]
    %v2928 = vld [vmem:[%s2171 + $0x88] sm:$0xf]
    %v2929 = vld [vmem:[%s2171 + $0x8c] sm:$0x1]
    %v2930 = vld [vmem:[%s2171 + $0x90] sm:$0xe]
    %v2931 = vld [vmem:[%s2171 + $0x94] sm:$0xf]
    %v2932 = vld [vmem:[%s2171 + $0x98] sm:$0x1]
    %v2933 = vld [vmem:[%s2171 + $0x9c] sm:$0xe]
    %v2934 = vld [vmem:[%s2171 + $0xa0] sm:$0xf]
    %v2935 = vld [vmem:[%s2171 + $0xa4] sm:$0x1]
    %v2936 = vld [vmem:[%s2171 + $0xa8] sm:$0xe]
    %v2937 = vld [vmem:[%s2171 + $0xac] sm:$0xf]
    %v2938 = vld [vmem:[%s2171 + $0xb0] sm:$0x1]
    %v2939 = vld [vmem:[%s2171 + $0xb4] sm:$0xe]
    %v2940 = vld [vmem:[%s2171 + $0xb8] sm:$0xf]
    %v2941 = vld [vmem:[%s2171 + $0xbc] sm:$0x1]
    %v2990 = vrot.slane %v2894, 5
    %v2991 = vrot.slane %v2990, 4
    %v2992 = vrot.slane %v2895, 5
    %v2993 = vsel %vm901, %v2991, %v2992
    %v2994 = vrot.slane %v2992, 4
    %v2995 = vrot.slane %v2896, 5
    %v2996 = vsel %vm901, %v2994, %v2995
    %v2997 = vrot.slane %v2897, 5
    %v2998 = vrot.slane %v2997, 4
    %v2999 = vrot.slane %v2898, 5
    %v3000 = vsel %vm901, %v2998, %v2999
    %v3001 = vrot.slane %v2999, 4
    %v3002 = vrot.slane %v2899, 5
    %v3003 = vsel %vm901, %v3001, %v3002
    %v3004 = vrot.slane %v2900, 5
    %v3005 = vrot.slane %v3004, 4
    %v3006 = vrot.slane %v2901, 5
    %v3007 = vsel %vm901, %v3005, %v3006
    %v3008 = vrot.slane %v3006, 4
    %v3009 = vrot.slane %v2902, 5
    %v3010 = vsel %vm901, %v3008, %v3009
    %v3011 = vrot.slane %v2903, 5
    %v3012 = vrot.slane %v3011, 4
    %v3013 = vrot.slane %v2904, 5
    %v3014 = vsel %vm901, %v3012, %v3013
    %v3015 = vrot.slane %v3013, 4
    %v3016 = vrot.slane %v2905, 5
    %v3017 = vsel %vm901, %v3015, %v3016
    %v3018 = vrot.slane %v2906, 5
    %v3019 = vrot.slane %v3018, 4
    %v3020 = vrot.slane %v2907, 5
    %v3021 = vsel %vm901, %v3019, %v3020
    %v3022 = vrot.slane %v3020, 4
    %v3023 = vrot.slane %v2908, 5
    %v3024 = vsel %vm901, %v3022, %v3023
    %v3025 = vrot.slane %v2909, 5
    %v3026 = vrot.slane %v3025, 4
    %v3027 = vrot.slane %v2910, 5
    %v3028 = vsel %vm901, %v3026, %v3027
    %v3029 = vrot.slane %v3027, 4
    %v3030 = vrot.slane %v2911, 5
    %v3031 = vsel %vm901, %v3029, %v3030
    %v3032 = vrot.slane %v2912, 5
    %v3033 = vrot.slane %v3032, 4
    %v3034 = vrot.slane %v2913, 5
    %v3035 = vsel %vm901, %v3033, %v3034
    %v3036 = vrot.slane %v3034, 4
    %v3037 = vrot.slane %v2914, 5
    %v3038 = vsel %vm901, %v3036, %v3037
    %v3039 = vrot.slane %v2915, 5
    %v3040 = vrot.slane %v3039, 4
    %v3041 = vrot.slane %v2916, 5
    %v3042 = vsel %vm901, %v3040, %v3041
    %v3043 = vrot.slane %v3041, 4
    %v3044 = vrot.slane %v2917, 5
    %v3045 = vsel %vm901, %v3043, %v3044
    %v3046 = vrot.slane %v2918, 5
    %v3047 = vrot.slane %v3046, 4
    %v3048 = vrot.slane %v2919, 5
    %v3049 = vsel %vm901, %v3047, %v3048
    %v3050 = vrot.slane %v3048, 4
    %v3051 = vrot.slane %v2920, 5
    %v3052 = vsel %vm901, %v3050, %v3051
    %v3053 = vrot.slane %v2921, 5
    %v3054 = vrot.slane %v3053, 4
    %v3055 = vrot.slane %v2922, 5
    %v3056 = vsel %vm901, %v3054, %v3055
    %v3057 = vrot.slane %v3055, 4
    %v3058 = vrot.slane %v2923, 5
    %v3059 = vsel %vm901, %v3057, %v3058
    %v3060 = vrot.slane %v2924, 5
    %v3061 = vrot.slane %v3060, 4
    %v3062 = vrot.slane %v2925, 5
    %v3063 = vsel %vm901, %v3061, %v3062
    %v3064 = vrot.slane %v3062, 4
    %v3065 = vrot.slane %v2926, 5
    %v3066 = vsel %vm901, %v3064, %v3065
    %v3067 = vrot.slane %v2927, 5
    %v3068 = vrot.slane %v3067, 4
    %v3069 = vrot.slane %v2928, 5
    %v3070 = vsel %vm901, %v3068, %v3069
    %v3071 = vrot.slane %v3069, 4
    %v3072 = vrot.slane %v2929, 5
    %v3073 = vsel %vm901, %v3071, %v3072
    %v3074 = vrot.slane %v2930, 5
    %v3075 = vrot.slane %v3074, 4
    %v3076 = vrot.slane %v2931, 5
    %v3077 = vsel %vm901, %v3075, %v3076
    %v3078 = vrot.slane %v3076, 4
    %v3079 = vrot.slane %v2932, 5
    %v3080 = vsel %vm901, %v3078, %v3079
    %v3081 = vrot.slane %v2933, 5
    %v3082 = vrot.slane %v3081, 4
    %v3083 = vrot.slane %v2934, 5
    %v3084 = vsel %vm901, %v3082, %v3083
    %v3085 = vrot.slane %v3083, 4
    %v3086 = vrot.slane %v2935, 5
    %v3087 = vsel %vm901, %v3085, %v3086
    %v3088 = vrot.slane %v2936, 5
    %v3089 = vrot.slane %v3088, 4
    %v3090 = vrot.slane %v2937, 5
    %v3091 = vsel %vm901, %v3089, %v3090
    %v3092 = vrot.slane %v3090, 4
    %v3093 = vrot.slane %v2938, 5
    %v3094 = vsel %vm901, %v3092, %v3093
    %v3095 = vrot.slane %v2939, 5
    %v3096 = vrot.slane %v3095, 4
    %v3097 = vrot.slane %v2940, 5
    %v3098 = vsel %vm901, %v3096, %v3097
    %v3099 = vrot.slane %v3097, 4
    %v3100 = vrot.slane %v2941, 5
    %v3101 = vsel %vm901, %v3099, %v3100
    %v3102 = vunpack.c.l.b16 %v2993
    %v3103 = vunpack.c.l.b16 %v2996
    %v3104 = vunpack.c.l.b16 %v3000
    %v3105 = vunpack.c.l.b16 %v3003
    %v3106 = vunpack.c.l.b16 %v3007
    %v3107 = vunpack.c.l.b16 %v3010
    %v3108 = vunpack.c.l.b16 %v3014
    %v3109 = vunpack.c.l.b16 %v3017
    %v3110 = vunpack.c.l.b16 %v3021
    %v3111 = vunpack.c.l.b16 %v3024
    %v3112 = vunpack.c.l.b16 %v3028
    %v3113 = vunpack.c.l.b16 %v3031
    %v3114 = vunpack.c.l.b16 %v3035
    %v3115 = vunpack.c.l.b16 %v3038
    %v3116 = vunpack.c.l.b16 %v3042
    %v3117 = vunpack.c.l.b16 %v3045
    %v3118 = vunpack.c.l.b16 %v3049
    %v3119 = vunpack.c.l.b16 %v3052
    %v3120 = vunpack.c.l.b16 %v3056
    %v3121 = vunpack.c.l.b16 %v3059
    %v3122 = vunpack.c.l.b16 %v3063
    %v3123 = vunpack.c.l.b16 %v3066
    %v3124 = vunpack.c.l.b16 %v3070
    %v3125 = vunpack.c.l.b16 %v3073
    %v3126 = vunpack.c.l.b16 %v3077
    %v3127 = vunpack.c.l.b16 %v3080
    %v3128 = vunpack.c.l.b16 %v3084
    %v3129 = vunpack.c.l.b16 %v3087
    %v3130 = vunpack.c.l.b16 %v3091
    %v3131 = vunpack.c.l.b16 %v3094
    %v3132 = vunpack.c.l.b16 %v3098
    %v3133 = vunpack.c.l.b16 %v3101
    %v3134 = vpack.c.b16 %v3103, %v3102
    %v3135 = vpack.c.b16 %v3105, %v3104
    %v3136 = vpack.c.b16 %v3107, %v3106
    %v3137 = vpack.c.b16 %v3109, %v3108
    %v3138 = vpack.c.b16 %v3111, %v3110
    %v3139 = vpack.c.b16 %v3113, %v3112
    %v3140 = vpack.c.b16 %v3115, %v3114
    %v3141 = vpack.c.b16 %v3117, %v3116
    %v3142 = vpack.c.b16 %v3119, %v3118
    %v3143 = vpack.c.b16 %v3121, %v3120
    %v3144 = vpack.c.b16 %v3123, %v3122
    %v3145 = vpack.c.b16 %v3125, %v3124
    %v3146 = vpack.c.b16 %v3127, %v3126
    %v3147 = vpack.c.b16 %v3129, %v3128
    %v3148 = vpack.c.b16 %v3131, %v3130
    %v3149 = vpack.c.b16 %v3133, %v3132
    %3150 = vrot.lane.b32.xlu0 %v3134, 24
    %v3151 = vpop.permute.xlu0 %3150
    %3152 = vrot.lane.b32.xlu0 %v3135, 24
    %v3153 = vpop.permute.xlu0 %3152
    %3154 = vrot.lane.b32.xlu0 %v3136, 24
    %v3155 = vpop.permute.xlu0 %3154
    %3156 = vrot.lane.b32.xlu0 %v3137, 24
    %v3157 = vpop.permute.xlu0 %3156
    %3158 = vrot.lane.b32.xlu0 %v3138, 24
    %v3159 = vpop.permute.xlu0 %3158
    %3160 = vrot.lane.b32.xlu0 %v3139, 24
    %v3161 = vpop.permute.xlu0 %3160
    %3162 = vrot.lane.b32.xlu0 %v3140, 24
    %v3163 = vpop.permute.xlu0 %3162
    %3164 = vrot.lane.b32.xlu0 %v3141, 24
    %v3165 = vpop.permute.xlu0 %3164
    %3166 = vrot.lane.b32.xlu0 %v3142, 24
    %v3167 = vpop.permute.xlu0 %3166
    %3168 = vrot.lane.b32.xlu0 %v3143, 24
    %v3169 = vpop.permute.xlu0 %3168
    %3170 = vrot.lane.b32.xlu0 %v3144, 24
    %v3171 = vpop.permute.xlu0 %3170
    %3172 = vrot.lane.b32.xlu0 %v3145, 24
    %v3173 = vpop.permute.xlu0 %3172
    %3174 = vrot.lane.b32.xlu0 %v3146, 24
    %v3175 = vpop.permute.xlu0 %3174
    %3176 = vrot.lane.b32.xlu0 %v3147, 24
    %v3177 = vpop.permute.xlu0 %3176
    %3178 = vrot.lane.b32.xlu0 %v3148, 24
    %v3179 = vpop.permute.xlu0 %3178
    %3180 = vrot.lane.b32.xlu0 %v3149, 24
    %v3181 = vpop.permute.xlu0 %3180
    %vm3198 = vcmask 220352
    %3199 = vst.msk [vmem:[#allocation3] sm:$0xff] %vm3198, %v3151
    %3200 = vst.msk [vmem:[#allocation3 + $0x8] sm:$0xff] %vm3198, %v3153
    %3201 = vst.msk [vmem:[#allocation3 + $0x10] sm:$0xff] %vm3198, %v3155
    %3202 = vst.msk [vmem:[#allocation3 + $0x18] sm:$0xff] %vm3198, %v3157
    %3203 = vst.msk [vmem:[#allocation3 + $0x20] sm:$0xff] %vm3198, %v3159
    %3204 = vst.msk [vmem:[#allocation3 + $0x28] sm:$0xff] %vm3198, %v3161
    %3205 = vst.msk [vmem:[#allocation3 + $0x30] sm:$0xff] %vm3198, %v3163
    %3206 = vst.msk [vmem:[#allocation3 + $0x38] sm:$0xff] %vm3198, %v3165
    %3207 = vst.msk [vmem:[#allocation3 + $0x40] sm:$0xff] %vm3198, %v3167
    %3208 = vst.msk [vmem:[#allocation3 + $0x48] sm:$0xff] %vm3198, %v3169
    %3209 = vst.msk [vmem:[#allocation3 + $0x50] sm:$0xff] %vm3198, %v3171
    %3210 = vst.msk [vmem:[#allocation3 + $0x58] sm:$0xff] %vm3198, %v3173
    %3211 = vst.msk [vmem:[#allocation3 + $0x60] sm:$0xff] %vm3198, %v3175
    %3212 = vst.msk [vmem:[#allocation3 + $0x68] sm:$0xff] %vm3198, %v3177
    %3213 = vst.msk [vmem:[#allocation3 + $0x70] sm:$0xff] %vm3198, %v3179
    %3214 = vst.msk [vmem:[#allocation3 + $0x78] sm:$0xff] %vm3198, %v3181
    %v3215 = vld [vmem:[#allocation3] sm:$0xff]
    %v3216 = vld [vmem:[#allocation3 + $0x8] sm:$0xff]
    %v3217 = vld [vmem:[#allocation3 + $0x10] sm:$0xff]
    %v3218 = vld [vmem:[#allocation3 + $0x18] sm:$0xff]
    %v3219 = vld [vmem:[#allocation3 + $0x20] sm:$0xff]
    %v3220 = vld [vmem:[#allocation3 + $0x28] sm:$0xff]
    %v3221 = vld [vmem:[#allocation3 + $0x30] sm:$0xff]
    %v3222 = vld [vmem:[#allocation3 + $0x38] sm:$0xff]
    %v3223 = vld [vmem:[#allocation3 + $0x40] sm:$0xff]
    %v3224 = vld [vmem:[#allocation3 + $0x48] sm:$0xff]
    %v3225 = vld [vmem:[#allocation3 + $0x50] sm:$0xff]
    %v3226 = vld [vmem:[#allocation3 + $0x58] sm:$0xff]
    %v3227 = vld [vmem:[#allocation3 + $0x60] sm:$0xff]
    %v3228 = vld [vmem:[#allocation3 + $0x68] sm:$0xff]
    %v3229 = vld [vmem:[#allocation3 + $0x70] sm:$0xff]
    %v3230 = vld [vmem:[#allocation3 + $0x78] sm:$0xff]
    %v3231 = vld [vmem:[%s2] sm:$0xf]
    %v3232 = vld [vmem:[%s2 + $0x4] sm:$0xf]
    %v3233 = vld [vmem:[%s2 + $0x8] sm:$0xf]
    %v3234 = vld [vmem:[%s2 + $0xc] sm:$0x3]
    %v3235 = vld [vmem:[%s3] sm:$0x1]
    %v3237 = vlaneseq
    %v3238 = vshrl.u32 %v3237, 7
    %v3239 = vsub.s32 0, %v3238
    %v3240 = vrot.slane %v3235, %v3239
    %v3246 = vunpack.c.l.b16 %v3231
    %v3247 = vunpack.c.l.b16 %v3232
    %v3248 = vunpack.c.l.b16 %v3233
    %v3249 = vunpack.c.l.b16 %v3234
    %v3250 = vpack.c.b16 %v3247, %v3246
    %v3251 = vpack.c.b16 %v3249, %v3248
    %vm3253 = vcmask 220160
    %v3255 = vsel %vm3253, %v3215, 0
    %v3258 = vsel %vm3253, %v3216, 0
    %v3261 = vsel %vm3253, %v3217, 0
    %v3264 = vsel %vm3253, %v3218, 0
    %v3267 = vsel %vm3253, %v3219, 0
    %v3270 = vsel %vm3253, %v3220, 0
    %v3273 = vsel %vm3253, %v3221, 0
    %v3276 = vsel %vm3253, %v3222, 0
    %v3279 = vsel %vm3253, %v3223, 0
    %v3282 = vsel %vm3253, %v3224, 0
    %v3285 = vsel %vm3253, %v3225, 0
    %v3288 = vsel %vm3253, %v3226, 0
    %v3291 = vsel %vm3253, %v3227, 0
    %v3294 = vsel %vm3253, %v3228, 0
    %v3297 = vsel %vm3253, %v3229, 0
    %v3300 = vsel %vm3253, %v3230, 0
    %vm3302 = vcmask 1044480
    %vm3303 = vcmask 1045504
    %v3304 = vsel %vm3302, 4294967295, 65535
    %v3305 = vsel %vm3303, %v3304, 0
    %v3307 = vand.u32 %v3251, %v3305
    %3309 = vmatprep.subr.bf16.mxu0 0
    %3310 = vmatpush1.bf16.msra.mxu0 %v3250
    %3311 = vmatprep.subr.bf16.mxu0 0
    %3312 = vmatpush1.bf16.msra.mxu0 %v3307
    %3313 = vmatprep.subr.bf16.mxu0 0
    %3314 = vmatpush1.bf16.msra.mxu0 0
    %3315 = vmatprep.subr.bf16.mxu0 0
    %3316 = vmatpush1.bf16.msra.mxu0 0
    %3317 = vmatprep.subr.bf16.mxu0 0
    %3318 = vmatpush1.bf16.msra.mxu0 0
    %3319 = vmatprep.subr.bf16.mxu0 0
    %3320 = vmatpush1.bf16.msra.mxu0 0
    %3321 = vmatprep.subr.bf16.mxu0 0
    %3322 = vmatpush1.bf16.msra.mxu0 0
    %3323 = vmatprep.subr.bf16.mxu0 0
    %3324 = vmatpush1.bf16.msra.mxu0 0
    %3325 = vmatprep.subr.bf16.mxu0 0
    %3326 = vmatpush1.bf16.msra.mxu0 0
    %3327 = vmatprep.subr.bf16.mxu0 0
    %3328 = vmatpush1.bf16.msra.mxu0 0
    %3329 = vmatprep.subr.bf16.mxu0 0
    %3330 = vmatpush1.bf16.msra.mxu0 0
    %3331 = vmatprep.subr.bf16.mxu0 0
    %3332 = vmatpush1.bf16.msra.mxu0 0
    %3333 = vmatprep.subr.bf16.mxu0 0
    %3334 = vmatpush1.bf16.msra.mxu0 0
    %3335 = vmatprep.subr.bf16.mxu0 0
    %3336 = vmatpush1.bf16.msra.mxu0 0
    %3337 = vmatprep.subr.bf16.mxu0 0
    %3338 = vmatpush1.bf16.msra.mxu0 0
    %3339 = vmatprep.subr.bf16.mxu0 0
    %3340 = vmatpush1.bf16.msra.mxu0 0
    %3341 = vmatprep.mubr.bf16.mxu0 0
    %3342 = vmatmul.mubr.bf16.gmra.mrb[0].mxu0 %v3255
    %v3343 = vpop.f32.mrb[0].mxu0
    %v3344 = vadd.f32 %v3240, %v3343
    %v3345 = vpop.f32.mrb[0].mxu0
    %v3346 = vpop.f32.mrb[0].mxu0
    %v3347 = vadd.f32 %v3240, %v3346
    %v3348 = vpop.f32.mrb[0].mxu0
    %3349 = vmatprep.mubr.bf16.mxu0 0
    %3350 = vmatmul.mubr.bf16.gmra.mrb[0].mxu0 %v3258
    %v3351 = vpop.f32.mrb[0].mxu0
    %v3352 = vadd.f32 %v3240, %v3351
    %v3353 = vpop.f32.mrb[0].mxu0
    %v3354 = vpop.f32.mrb[0].mxu0
    %v3355 = vadd.f32 %v3240, %v3354
    %v3356 = vpop.f32.mrb[0].mxu0
    %3357 = vmatprep.mubr.bf16.mxu0 0
    %3358 = vmatmul.mubr.bf16.gmra.mrb[0].mxu0 %v3261
    %v3359 = vpop.f32.mrb[0].mxu0
    %v3360 = vadd.f32 %v3240, %v3359
    %v3361 = vpop.f32.mrb[0].mxu0
    %v3362 = vpop.f32.mrb[0].mxu0
    %v3363 = vadd.f32 %v3240, %v3362
    %v3364 = vpop.f32.mrb[0].mxu0
    %3365 = vmatprep.mubr.bf16.mxu0 0
    %3366 = vmatmul.mubr.bf16.gmra.mrb[0].mxu0 %v3264
    %v3367 = vpop.f32.mrb[0].mxu0
    %v3368 = vadd.f32 %v3240, %v3367
    %v3369 = vpop.f32.mrb[0].mxu0
    %v3370 = vpop.f32.mrb[0].mxu0
    %v3371 = vadd.f32 %v3240, %v3370
    %v3372 = vpop.f32.mrb[0].mxu0
    %3373 = vmatprep.mubr.bf16.mxu0 0
    %3374 = vmatmul.mubr.bf16.gmra.mrb[0].mxu0 %v3267
    %v3375 = vpop.f32.mrb[0].mxu0
    %v3376 = vadd.f32 %v3240, %v3375
    %v3377 = vpop.f32.mrb[0].mxu0
    %v3378 = vpop.f32.mrb[0].mxu0
    %v3379 = vadd.f32 %v3240, %v3378
    %v3380 = vpop.f32.mrb[0].mxu0
    %3381 = vmatprep.mubr.bf16.mxu0 0
    %3382 = vmatmul.mubr.bf16.gmra.mrb[0].mxu0 %v3270
    %v3383 = vpop.f32.mrb[0].mxu0
    %v3384 = vadd.f32 %v3240, %v3383
    %v3385 = vpop.f32.mrb[0].mxu0
    %v3386 = vpop.f32.mrb[0].mxu0
    %v3387 = vadd.f32 %v3240, %v3386
    %v3388 = vpop.f32.mrb[0].mxu0
    %3389 = vmatprep.mubr.bf16.mxu0 0
    %3390 = vmatmul.mubr.bf16.gmra.mrb[0].mxu0 %v3273
    %v3391 = vpop.f32.mrb[0].mxu0
    %v3392 = vadd.f32 %v3240, %v3391
    %v3393 = vpop.f32.mrb[0].mxu0
    %v3394 = vpop.f32.mrb[0].mxu0
    %v3395 = vadd.f32 %v3240, %v3394
    %v3396 = vpop.f32.mrb[0].mxu0
    %3397 = vmatprep.mubr.bf16.mxu0 0
    %3398 = vmatmul.mubr.bf16.gmra.mrb[0].mxu0 %v3276
    %v3399 = vpop.f32.mrb[0].mxu0
    %v3400 = vadd.f32 %v3240, %v3399
    %v3401 = vpop.f32.mrb[0].mxu0
    %v3402 = vpop.f32.mrb[0].mxu0
    %v3403 = vadd.f32 %v3240, %v3402
    %v3404 = vpop.f32.mrb[0].mxu0
    %3405 = vmatprep.mubr.bf16.mxu0 0
    %3406 = vmatmul.mubr.bf16.gmra.mrb[0].mxu0 %v3279
    %v3407 = vpop.f32.mrb[0].mxu0
    %v3408 = vadd.f32 %v3240, %v3407
    %v3409 = vpop.f32.mrb[0].mxu0
    %v3410 = vpop.f32.mrb[0].mxu0
    %v3411 = vadd.f32 %v3240, %v3410
    %v3412 = vpop.f32.mrb[0].mxu0
    %3413 = vmatprep.mubr.bf16.mxu0 0
    %3414 = vmatmul.mubr.bf16.gmra.mrb[0].mxu0 %v3282
    %v3415 = vpop.f32.mrb[0].mxu0
    %v3416 = vadd.f32 %v3240, %v3415
    %v3417 = vpop.f32.mrb[0].mxu0
    %v3418 = vpop.f32.mrb[0].mxu0
    %v3419 = vadd.f32 %v3240, %v3418
    %v3420 = vpop.f32.mrb[0].mxu0
    %3421 = vmatprep.mubr.bf16.mxu0 0
    %3422 = vmatmul.mubr.bf16.gmra.mrb[0].mxu0 %v3285
    %v3423 = vpop.f32.mrb[0].mxu0
    %v3424 = vadd.f32 %v3240, %v3423
    %v3425 = vpop.f32.mrb[0].mxu0
    %v3426 = vpop.f32.mrb[0].mxu0
    %v3427 = vadd.f32 %v3240, %v3426
    %v3428 = vpop.f32.mrb[0].mxu0
    %3429 = vmatprep.mubr.bf16.mxu0 0
    %3430 = vmatmul.mubr.bf16.gmra.mrb[0].mxu0 %v3288
    %v3431 = vpop.f32.mrb[0].mxu0
    %v3432 = vadd.f32 %v3240, %v3431
    %v3433 = vpop.f32.mrb[0].mxu0
    %v3434 = vpop.f32.mrb[0].mxu0
    %v3435 = vadd.f32 %v3240, %v3434
    %v3436 = vpop.f32.mrb[0].mxu0
    %3437 = vmatprep.mubr.bf16.mxu0 0
    %3438 = vmatmul.mubr.bf16.gmra.mrb[0].mxu0 %v3291
    %v3439 = vpop.f32.mrb[0].mxu0
    %v3440 = vadd.f32 %v3240, %v3439
    %v3441 = vpop.f32.mrb[0].mxu0
    %v3442 = vpop.f32.mrb[0].mxu0
    %v3443 = vadd.f32 %v3240, %v3442
    %v3444 = vpop.f32.mrb[0].mxu0
    %3445 = vmatprep.mubr.bf16.mxu0 0
    %3446 = vmatmul.mubr.bf16.gmra.mrb[0].mxu0 %v3294
    %v3447 = vpop.f32.mrb[0].mxu0
    %v3448 = vadd.f32 %v3240, %v3447
    %v3449 = vpop.f32.mrb[0].mxu0
    %v3450 = vpop.f32.mrb[0].mxu0
    %v3451 = vadd.f32 %v3240, %v3450
    %v3452 = vpop.f32.mrb[0].mxu0
    %3453 = vmatprep.mubr.bf16.mxu0 0
    %3454 = vmatmul.mubr.bf16.gmra.mrb[0].mxu0 %v3297
    %v3455 = vpop.f32.mrb[0].mxu0
    %v3456 = vadd.f32 %v3240, %v3455
    %v3457 = vpop.f32.mrb[0].mxu0
    %v3458 = vpop.f32.mrb[0].mxu0
    %v3459 = vadd.f32 %v3240, %v3458
    %v3460 = vpop.f32.mrb[0].mxu0
    %3461 = vmatprep.mubr.bf16.mxu0 0
    %3462 = vmatmul.mubr.bf16.gmra.mrb[0].mxu0 %v3300
    %v3463 = vpop.f32.mrb[0].mxu0
    %v3464 = vadd.f32 %v3240, %v3463
    %v3465 = vpop.f32.mrb[0].mxu0
    %v3466 = vpop.f32.mrb[0].mxu0
    %v3467 = vadd.f32 %v3240, %v3466
    %v3468 = vpop.f32.mrb[0].mxu0
    %3469 = vdwg.mxu0
    %v3470 = vmax.f32 %v3344, 0.0
    %v3471 = vmax.f32 %v3347, 0.0
    %v3472 = vmax.f32 %v3352, 0.0
    %v3473 = vmax.f32 %v3355, 0.0
    %v3474 = vmax.f32 %v3360, 0.0
    %v3475 = vmax.f32 %v3363, 0.0
    %v3476 = vmax.f32 %v3368, 0.0
    %v3477 = vmax.f32 %v3371, 0.0
    %v3478 = vmax.f32 %v3376, 0.0
    %v3479 = vmax.f32 %v3379, 0.0
    %v3480 = vmax.f32 %v3384, 0.0
    %v3481 = vmax.f32 %v3387, 0.0
    %v3482 = vmax.f32 %v3392, 0.0
    %v3483 = vmax.f32 %v3395, 0.0
    %v3484 = vmax.f32 %v3400, 0.0
    %v3485 = vmax.f32 %v3403, 0.0
    %v3486 = vmax.f32 %v3408, 0.0
    %v3487 = vmax.f32 %v3411, 0.0
    %v3488 = vmax.f32 %v3416, 0.0
    %v3489 = vmax.f32 %v3419, 0.0
    %v3490 = vmax.f32 %v3424, 0.0
    %v3491 = vmax.f32 %v3427, 0.0
    %v3492 = vmax.f32 %v3432, 0.0
    %v3493 = vmax.f32 %v3435, 0.0
    %v3494 = vmax.f32 %v3440, 0.0
    %v3495 = vmax.f32 %v3443, 0.0
    %v3496 = vmax.f32 %v3448, 0.0
    %v3497 = vmax.f32 %v3451, 0.0
    %v3498 = vmax.f32 %v3456, 0.0
    %v3499 = vmax.f32 %v3459, 0.0
    %v3500 = vmax.f32 %v3464, 0.0
    %v3501 = vmax.f32 %v3467, 0.0
    %v3502 = vmax.f32 %v3470, %v3472
    %v3503 = vmax.f32 %v3471, %v3473
    %v3504 = vmax.f32 %v3474, %v3476
    %v3505 = vmax.f32 %v3475, %v3477
    %v3506 = vmax.f32 %v3478, %v3480
    %v3507 = vmax.f32 %v3479, %v3481
    %v3508 = vmax.f32 %v3482, %v3484
    %v3509 = vmax.f32 %v3483, %v3485
    %v3510 = vmax.f32 %v3486, %v3488
    %v3511 = vmax.f32 %v3487, %v3489
    %v3512 = vmax.f32 %v3490, %v3492
    %v3513 = vmax.f32 %v3491, %v3493
    %v3514 = vmax.f32 %v3494, %v3496
    %v3515 = vmax.f32 %v3495, %v3497
    %v3516 = vmax.f32 %v3498, %v3500
    %v3517 = vmax.f32 %v3499, %v3501
    %v3518 = vpack.c.bf16 %v3503, %v3502
    %v3519 = vpack.c.bf16 %v3505, %v3504
    %v3520 = vpack.c.bf16 %v3507, %v3506
    %v3521 = vpack.c.bf16 %v3509, %v3508
    %v3522 = vpack.c.bf16 %v3511, %v3510
    %v3523 = vpack.c.bf16 %v3513, %v3512
    %v3524 = vpack.c.bf16 %v3515, %v3514
    %v3525 = vpack.c.bf16 %v3517, %v3516
    %v3526 = vld [vmem:[%s15] sm:$0xf]
    %v3527 = vld [vmem:[%s15 + $0x4] sm:$0xf]
    %v3528 = vld [vmem:[%s15 + $0x8] sm:$0xf]
    %v3529 = vld [vmem:[%s15 + $0xc] sm:$0xf]
    %v3530 = vld [vmem:[%s15 + $0x10] sm:$0xf]
    %v3531 = vld [vmem:[%s15 + $0x14] sm:$0xf]
    %v3532 = vld [vmem:[%s15 + $0x18] sm:$0xf]
    %v3533 = vld [vmem:[%s15 + $0x1c] sm:$0xf]
    %v3542 = vunpack.c.l.b16 %v3526
    %v3543 = vunpack.c.l.b16 %v3527
    %v3544 = vunpack.c.l.b16 %v3528
    %v3545 = vunpack.c.l.b16 %v3529
    %v3546 = vunpack.c.l.b16 %v3530
    %v3547 = vunpack.c.l.b16 %v3531
    %v3548 = vunpack.c.l.b16 %v3532
    %v3549 = vunpack.c.l.b16 %v3533
    %v3550 = vpack.c.b16 %v3543, %v3542
    %v3551 = vpack.c.b16 %v3545, %v3544
    %v3552 = vpack.c.b16 %v3547, %v3546
    %v3553 = vpack.c.b16 %v3549, %v3548
    %3558 = vmatprep.subr.bf16.mxu0 0
    %3559 = vmatpush1.bf16.msra.mxu0 %v3518
    %3560 = vmatprep.subr.bf16.mxu0 0
    %3561 = vmatpush1.bf16.msra.mxu0 %v3519
    %3562 = vmatprep.subr.bf16.mxu0 0
    %3563 = vmatpush1.bf16.msra.mxu0 %v3520
    %3564 = vmatprep.subr.bf16.mxu0 0
    %3565 = vmatpush1.bf16.msra.mxu0 %v3521
    %3566 = vmatprep.subr.bf16.mxu0 0
    %3567 = vmatpush1.bf16.msra.mxu0 %v3522
    %3568 = vmatprep.subr.bf16.mxu0 0
    %3569 = vmatpush1.bf16.msra.mxu0 %v3523
    %3570 = vmatprep.subr.bf16.mxu0 0
    %3571 = vmatpush1.bf16.msra.mxu0 %v3524
    %3572 = vmatprep.subr.bf16.mxu0 0
    %3573 = vmatpush1.bf16.msra.mxu0 %v3525
    %3574 = vmatprep.subr.bf16.mxu0 0
    %3575 = vmatpush1.bf16.msra.mxu0 0
    %3576 = vmatprep.subr.bf16.mxu0 0
    %3577 = vmatpush1.bf16.msra.mxu0 0
    %3578 = vmatprep.subr.bf16.mxu0 0
    %3579 = vmatpush1.bf16.msra.mxu0 0
    %3580 = vmatprep.subr.bf16.mxu0 0
    %3581 = vmatpush1.bf16.msra.mxu0 0
    %3582 = vmatprep.subr.bf16.mxu0 0
    %3583 = vmatpush1.bf16.msra.mxu0 0
    %3584 = vmatprep.subr.bf16.mxu0 0
    %3585 = vmatpush1.bf16.msra.mxu0 0
    %3586 = vmatprep.subr.bf16.mxu0 0
    %3587 = vmatpush1.bf16.msra.mxu0 0
    %3588 = vmatprep.subr.bf16.mxu0 0
    %3589 = vmatpush1.bf16.msra.mxu0 0
    %3590 = vmatprep.mubr.bf16.mxu0 0
    %3591 = vmatmul.mubr.bf16.gmra.mrb[0].mxu0 %v3550
    %v3592 = vpop.f32.mrb[0].mxu0
    %v3593 = vadd.f32 0.0, %v3592
    %v3594 = vpop.f32.mrb[0].mxu0
    %v3595 = vpop.f32.mrb[0].mxu0
    %v3596 = vadd.f32 0.0, %v3595
    %v3597 = vpop.f32.mrb[0].mxu0
    %3598 = vmatprep.mubr.bf16.mxu0 0
    %3599 = vmatmul.mubr.bf16.gmra.mrb[0].mxu0 %v3551
    %v3600 = vpop.f32.mrb[0].mxu0
    %v3601 = vadd.f32 0.0, %v3600
    %v3602 = vpop.f32.mrb[0].mxu0
    %v3603 = vpop.f32.mrb[0].mxu0
    %v3604 = vadd.f32 0.0, %v3603
    %v3605 = vpop.f32.mrb[0].mxu0
    %3606 = vmatprep.mubr.bf16.mxu0 0
    %3607 = vmatmul.mubr.bf16.gmra.mrb[0].mxu0 %v3552
    %v3608 = vpop.f32.mrb[0].mxu0
    %v3609 = vadd.f32 0.0, %v3608
    %v3610 = vpop.f32.mrb[0].mxu0
    %v3611 = vpop.f32.mrb[0].mxu0
    %v3612 = vadd.f32 0.0, %v3611
    %v3613 = vpop.f32.mrb[0].mxu0
    %3614 = vmatprep.mubr.bf16.mxu0 0
    %3615 = vmatmul.mubr.bf16.gmra.mrb[0].mxu0 %v3553
    %v3616 = vpop.f32.mrb[0].mxu0
    %v3617 = vadd.f32 0.0, %v3616
    %v3618 = vpop.f32.mrb[0].mxu0
    %v3619 = vpop.f32.mrb[0].mxu0
    %v3620 = vadd.f32 0.0, %v3619
    %v3621 = vpop.f32.mrb[0].mxu0
    %3622 = vdwg.mxu0
    %v3623 = vld [vmem:[%s16] sm:$0xf]
    %v3624 = vld [vmem:[%s16 + $0x4] sm:$0xf]
    %v3625 = vld [vmem:[%s16 + $0x8] sm:$0xf]
    %v3626 = vld [vmem:[%s16 + $0xc] sm:$0xf]
    %v3627 = vld [vmem:[%s16 + $0x10] sm:$0xf]
    %v3628 = vld [vmem:[%s16 + $0x14] sm:$0xf]
    %v3629 = vld [vmem:[%s16 + $0x18] sm:$0xf]
    %v3630 = vld [vmem:[%s16 + $0x1c] sm:$0xf]
    %v3639 = vunpack.c.l.b16 %v3623
    %v3640 = vunpack.c.l.b16 %v3624
    %v3641 = vunpack.c.l.b16 %v3625
    %v3642 = vunpack.c.l.b16 %v3626
    %v3643 = vunpack.c.l.b16 %v3627
    %v3644 = vunpack.c.l.b16 %v3628
    %v3645 = vunpack.c.l.b16 %v3629
    %v3646 = vunpack.c.l.b16 %v3630
    %v3647 = vpack.c.b16 %v3640, %v3639
    %v3648 = vpack.c.b16 %v3642, %v3641
    %v3649 = vpack.c.b16 %v3644, %v3643
    %v3650 = vpack.c.b16 %v3646, %v3645
    %3655 = vmatprep.subr.bf16.mxu0 0
    %3656 = vmatpush1.bf16.msra.mxu0 %v3518
    %3657 = vmatprep.subr.bf16.mxu0 0
    %3658 = vmatpush1.bf16.msra.mxu0 %v3519
    %3659 = vmatprep.subr.bf16.mxu0 0
    %3660 = vmatpush1.bf16.msra.mxu0 %v3520
    %3661 = vmatprep.subr.bf16.mxu0 0
    %3662 = vmatpush1.bf16.msra.mxu0 %v3521
    %3663 = vmatprep.subr.bf16.mxu0 0
    %3664 = vmatpush1.bf16.msra.mxu0 %v3522
    %3665 = vmatprep.subr.bf16.mxu0 0
    %3666 = vmatpush1.bf16.msra.mxu0 %v3523
    %3667 = vmatprep.subr.bf16.mxu0 0
    %3668 = vmatpush1.bf16.msra.mxu0 %v3524
    %3669 = vmatprep.subr.bf16.mxu0 0
    %3670 = vmatpush1.bf16.msra.mxu0 %v3525
    %3671 = vmatprep.subr.bf16.mxu0 0
    %3672 = vmatpush1.bf16.msra.mxu0 0
    %3673 = vmatprep.subr.bf16.mxu0 0
    %3674 = vmatpush1.bf16.msra.mxu0 0
    %3675 = vmatprep.subr.bf16.mxu0 0
    %3676 = vmatpush1.bf16.msra.mxu0 0
    %3677 = vmatprep.subr.bf16.mxu0 0
    %3678 = vmatpush1.bf16.msra.mxu0 0
    %3679 = vmatprep.subr.bf16.mxu0 0
    %3680 = vmatpush1.bf16.msra.mxu0 0
    %3681 = vmatprep.subr.bf16.mxu0 0
    %3682 = vmatpush1.bf16.msra.mxu0 0
    %3683 = vmatprep.subr.bf16.mxu0 0
    %3684 = vmatpush1.bf16.msra.mxu0 0
    %3685 = vmatprep.subr.bf16.mxu0 0
    %3686 = vmatpush1.bf16.msra.mxu0 0
    %3687 = vmatprep.mubr.bf16.mxu0 0
    %3688 = vmatmul.mubr.bf16.gmra.mrb[0].mxu0 %v3647
    %v3689 = vpop.f32.mrb[0].mxu0
    %v3690 = vadd.f32 0.0, %v3689
    %v3691 = vpop.f32.mrb[0].mxu0
    %v3692 = vpop.f32.mrb[0].mxu0
    %v3693 = vadd.f32 0.0, %v3692
    %v3694 = vpop.f32.mrb[0].mxu0
    %3695 = vmatprep.mubr.bf16.mxu0 0
    %3696 = vmatmul.mubr.bf16.gmra.mrb[0].mxu0 %v3648
    %v3697 = vpop.f32.mrb[0].mxu0
    %v3698 = vadd.f32 0.0, %v3697
    %v3699 = vpop.f32.mrb[0].mxu0
    %v3700 = vpop.f32.mrb[0].mxu0
    %v3701 = vadd.f32 0.0, %v3700
    %v3702 = vpop.f32.mrb[0].mxu0
    %3703 = vmatprep.mubr.bf16.mxu0 0
    %3704 = vmatmul.mubr.bf16.gmra.mrb[0].mxu0 %v3649
    %v3705 = vpop.f32.mrb[0].mxu0
    %v3706 = vadd.f32 0.0, %v3705
    %v3707 = vpop.f32.mrb[0].mxu0
    %v3708 = vpop.f32.mrb[0].mxu0
    %v3709 = vadd.f32 0.0, %v3708
    %v3710 = vpop.f32.mrb[0].mxu0
    %3711 = vmatprep.mubr.bf16.mxu0 0
    %3712 = vmatmul.mubr.bf16.gmra.mrb[0].mxu0 %v3650
    %v3713 = vpop.f32.mrb[0].mxu0
    %v3714 = vadd.f32 0.0, %v3713
    %v3715 = vpop.f32.mrb[0].mxu0
    %v3716 = vpop.f32.mrb[0].mxu0
    %v3717 = vadd.f32 0.0, %v3716
    %v3718 = vpop.f32.mrb[0].mxu0
    %3719 = vdwg.mxu0
    %v3720 = vmax.f32 %v3593, %v3690
    %v3721 = vmax.f32 %v3596, %v3693
    %v3722 = vmax.f32 %v3601, %v3698
    %v3723 = vmax.f32 %v3604, %v3701
    %v3724 = vmax.f32 %v3609, %v3706
    %v3725 = vmax.f32 %v3612, %v3709
    %v3726 = vmax.f32 %v3617, %v3714
    %v3727 = vmax.f32 %v3620, %v3717
    %v3728 = vpack.c.bf16 %v3721, %v3720
    %v3729 = vpack.c.bf16 %v3723, %v3722
    %v3730 = vpack.c.bf16 %v3725, %v3724
    %v3731 = vpack.c.bf16 %v3727, %v3726
    %v3736 = vunpack.c.l.b16 %v3728
    %v3737 = vunpack.c.h.b16 %v3728
    %v3738 = vunpack.c.l.b16 %v3729
    %v3739 = vunpack.c.h.b16 %v3729
    %v3740 = vunpack.c.l.b16 %v3730
    %v3741 = vunpack.c.h.b16 %v3730
    %v3742 = vunpack.c.l.b16 %v3731
    %v3743 = vunpack.c.h.b16 %v3731
    %v3744 = vpack.c.b16 %v3736, %v3736
    %v3745 = vpack.c.b16 %v3737, %v3737
    %v3746 = vpack.c.b16 %v3738, %v3738
    %v3747 = vpack.c.b16 %v3739, %v3739
    %v3748 = vpack.c.b16 %v3740, %v3740
    %v3749 = vpack.c.b16 %v3741, %v3741
    %v3750 = vpack.c.b16 %v3742, %v3742
    %v3751 = vpack.c.b16 %v3743, %v3743
    %v3753 = vshrl.u32 %v3744, 16
    %v3755 = vrot.slane %v3753, 7
    %v3756 = vshll.u32 %v3744, 16
    %v3758 = vor.u32 %v3755, %v3756
    %v3759 = vrot.slane %v3755, 4
    %v3761 = vshrl.u32 %v3745, 16
    %v3763 = vrot.slane %v3761, 7
    %v3764 = vshll.u32 %v3745, 16
    %v3766 = vor.u32 %v3763, %v3764
    %v3767 = vrot.slane %v3763, 4
    %v3769 = vshrl.u32 %v3746, 16
    %v3771 = vrot.slane %v3769, 7
    %v3772 = vshll.u32 %v3746, 16
    %v3774 = vor.u32 %v3771, %v3772
    %v3775 = vrot.slane %v3771, 4
    %v3777 = vshrl.u32 %v3747, 16
    %v3779 = vrot.slane %v3777, 7
    %v3780 = vshll.u32 %v3747, 16
    %v3782 = vor.u32 %v3779, %v3780
    %v3783 = vrot.slane %v3779, 4
    %v3785 = vshrl.u32 %v3748, 16
    %v3787 = vrot.slane %v3785, 7
    %v3788 = vshll.u32 %v3748, 16
    %v3790 = vor.u32 %v3787, %v3788
    %v3791 = vrot.slane %v3787, 4
    %v3793 = vshrl.u32 %v3749, 16
    %v3795 = vrot.slane %v3793, 7
    %v3796 = vshll.u32 %v3749, 16
    %v3798 = vor.u32 %v3795, %v3796
    %v3799 = vrot.slane %v3795, 4
    %v3801 = vshrl.u32 %v3750, 16
    %v3803 = vrot.slane %v3801, 7
    %v3804 = vshll.u32 %v3750, 16
    %v3806 = vor.u32 %v3803, %v3804
    %v3807 = vrot.slane %v3803, 4
    %v3809 = vshrl.u32 %v3751, 16
    %v3811 = vrot.slane %v3809, 7
    %v3812 = vshll.u32 %v3751, 16
    %v3814 = vor.u32 %v3811, %v3812
    %v3815 = vrot.slane %v3811, 4
    %s3832 = scalar_lea.vmem [#allocation2], 8
    %vm3833 = vcmask 257024
    %vm3834 = vsmask.f32 7938
    %vm3835 = vmand %vm3833, %vm3834
    %v3836 = vld [vmem:[%s3832] sm:$0xf]
    %v3837 = vsel %vm3835, %v3758, %v3836
    %3838 = vst [vmem:[%s3832] sm:$0xf] %v3837
    %vm3839 = vcmask 253952
    %vm3840 = vsmask.f32 256
    %vm3841 = vmand %vm3839, %vm3840
    %v3842 = vld [vmem:[%s3832 + $0x4] sm:$0x1]
    %v3843 = vsel %vm3841, %v3759, %v3842
    %3844 = vst [vmem:[%s3832 + $0x4] sm:$0x1] %v3843
    %v3845 = vld [vmem:[%s3832 + $0x8] sm:$0xf]
    %v3846 = vsel %vm3835, %v3766, %v3845
    %3847 = vst [vmem:[%s3832 + $0x8] sm:$0xf] %v3846
    %v3848 = vld [vmem:[%s3832 + $0xc] sm:$0x1]
    %v3849 = vsel %vm3841, %v3767, %v3848
    %3850 = vst [vmem:[%s3832 + $0xc] sm:$0x1] %v3849
    %v3851 = vld [vmem:[%s3832 + $0x10] sm:$0xf]
    %v3852 = vsel %vm3835, %v3774, %v3851
    %3853 = vst [vmem:[%s3832 + $0x10] sm:$0xf] %v3852
    %v3854 = vld [vmem:[%s3832 + $0x14] sm:$0x1]
    %v3855 = vsel %vm3841, %v3775, %v3854
    %3856 = vst [vmem:[%s3832 + $0x14] sm:$0x1] %v3855
    %v3857 = vld [vmem:[%s3832 + $0x18] sm:$0xf]
    %v3858 = vsel %vm3835, %v3782, %v3857
    %3859 = vst [vmem:[%s3832 + $0x18] sm:$0xf] %v3858
    %v3860 = vld [vmem:[%s3832 + $0x1c] sm:$0x1]
    %v3861 = vsel %vm3841, %v3783, %v3860
    %3862 = vst [vmem:[%s3832 + $0x1c] sm:$0x1] %v3861
    %v3863 = vld [vmem:[%s3832 + $0x20] sm:$0xf]
    %v3864 = vsel %vm3835, %v3790, %v3863
    %3865 = vst [vmem:[%s3832 + $0x20] sm:$0xf] %v3864
    %v3866 = vld [vmem:[%s3832 + $0x24] sm:$0x1]
    %v3867 = vsel %vm3841, %v3791, %v3866
    %3868 = vst [vmem:[%s3832 + $0x24] sm:$0x1] %v3867
    %v3869 = vld [vmem:[%s3832 + $0x28] sm:$0xf]
    %v3870 = vsel %vm3835, %v3798, %v3869
    %3871 = vst [vmem:[%s3832 + $0x28] sm:$0xf] %v3870
    %v3872 = vld [vmem:[%s3832 + $0x2c] sm:$0x1]
    %v3873 = vsel %vm3841, %v3799, %v3872
    %3874 = vst [vmem:[%s3832 + $0x2c] sm:$0x1] %v3873
    %v3875 = vld [vmem:[%s3832 + $0x30] sm:$0xf]
    %v3876 = vsel %vm3835, %v3806, %v3875
    %3877 = vst [vmem:[%s3832 + $0x30] sm:$0xf] %v3876
    %v3878 = vld [vmem:[%s3832 + $0x34] sm:$0x1]
    %v3879 = vsel %vm3841, %v3807, %v3878
    %3880 = vst [vmem:[%s3832 + $0x34] sm:$0x1] %v3879
    %v3881 = vld [vmem:[%s3832 + $0x38] sm:$0xf]
    %v3882 = vsel %vm3835, %v3814, %v3881
    %3883 = vst [vmem:[%s3832 + $0x38] sm:$0xf] %v3882
    %v3884 = vld [vmem:[%s3832 + $0x3c] sm:$0x1]
    %v3885 = vsel %vm3841, %v3815, %v3884
    %3886 = vst [vmem:[%s3832 + $0x3c] sm:$0x1] %v3885
    %v3887 = vld [vmem:[#allocation2] sm:$0xf]
    %v3888 = vld [vmem:[#allocation2 + $0x8] sm:$0xf]
    %v3889 = vld [vmem:[#allocation2 + $0x10] sm:$0xf]
    %v3890 = vld [vmem:[#allocation2 + $0x18] sm:$0xf]
    %v3891 = vld [vmem:[#allocation2 + $0x20] sm:$0xf]
    %v3892 = vld [vmem:[#allocation2 + $0x28] sm:$0xf]
    %v3893 = vld [vmem:[#allocation2 + $0x30] sm:$0xf]
    %v3894 = vld [vmem:[#allocation2 + $0x38] sm:$0xf]
    %v3903 = vunpack.c.l.b16 %v3887
    %v3904 = vunpack.c.l.b16 %v3888
    %v3905 = vunpack.c.l.b16 %v3889
    %v3906 = vunpack.c.l.b16 %v3890
    %v3907 = vunpack.c.l.b16 %v3891
    %v3908 = vunpack.c.l.b16 %v3892
    %v3909 = vunpack.c.l.b16 %v3893
    %v3910 = vunpack.c.l.b16 %v3894
    %v3911 = vpack.c.b16 %v3904, %v3903
    %v3912 = vpack.c.b16 %v3906, %v3905
    %v3913 = vpack.c.b16 %v3908, %v3907
    %v3914 = vpack.c.b16 %v3910, %v3909
    %vm3919 = vcmask 261120
    %3920 = vst.msk [vmem:[#allocation4] sm:$0xff] %vm3919, %v3911
    %3921 = vst.msk [vmem:[#allocation4 + $0x18] sm:$0xff] %vm3919, %v3912
    %3922 = vst.msk [vmem:[#allocation4 + $0x30] sm:$0xff] %vm3919, %v3913
    %3923 = vst.msk [vmem:[#allocation4 + $0x48] sm:$0xff] %vm3919, %v3914
    %v3924 = vld [vmem:[#allocation2] sm:$0xf]
    %v3925 = vld [vmem:[#allocation2 + $0x4] sm:$0x1]
    %v3926 = vld [vmem:[#allocation2 + $0x8] sm:$0xf]
    %v3927 = vld [vmem:[#allocation2 + $0xc] sm:$0x1]
    %v3928 = vld [vmem:[#allocation2 + $0x10] sm:$0xf]
    %v3929 = vld [vmem:[#allocation2 + $0x14] sm:$0x1]
    %v3930 = vld [vmem:[#allocation2 + $0x18] sm:$0xf]
    %v3931 = vld [vmem:[#allocation2 + $0x1c] sm:$0x1]
    %v3932 = vld [vmem:[#allocation2 + $0x20] sm:$0xf]
    %v3933 = vld [vmem:[#allocation2 + $0x24] sm:$0x1]
    %v3934 = vld [vmem:[#allocation2 + $0x28] sm:$0xf]
    %v3935 = vld [vmem:[#allocation2 + $0x2c] sm:$0x1]
    %v3936 = vld [vmem:[#allocation2 + $0x30] sm:$0xf]
    %v3937 = vld [vmem:[#allocation2 + $0x34] sm:$0x1]
    %v3938 = vld [vmem:[#allocation2 + $0x38] sm:$0xf]
    %v3939 = vld [vmem:[#allocation2 + $0x3c] sm:$0x1]
    %v3941 = vshrl.u32 %v3924, 16
    %v3943 = vrot.slane %v3941, 4
    %v3944 = vshll.u32 %v3924, 16
    %v3946 = vrot.slane %v3944, 5
    %v3947 = vor.u32 %v3943, %v3946
    %v3948 = vrot.slane %v3947, 4
    %v3950 = vshll.u32 %v3925, 16
    %v3952 = vrot.slane %v3950, 5
    %v3953 = vsel %vm305, %v3948, %v3952
    %v3955 = vshrl.u32 %v3926, 16
    %v3957 = vrot.slane %v3955, 4
    %v3958 = vshll.u32 %v3926, 16
    %v3960 = vrot.slane %v3958, 5
    %v3961 = vor.u32 %v3957, %v3960
    %v3962 = vrot.slane %v3961, 4
    %v3964 = vshll.u32 %v3927, 16
    %v3966 = vrot.slane %v3964, 5
    %v3967 = vsel %vm305, %v3962, %v3966
    %v3969 = vshrl.u32 %v3928, 16
    %v3971 = vrot.slane %v3969, 4
    %v3972 = vshll.u32 %v3928, 16
    %v3974 = vrot.slane %v3972, 5
    %v3975 = vor.u32 %v3971, %v3974
    %v3976 = vrot.slane %v3975, 4
    %v3978 = vshll.u32 %v3929, 16
    %v3980 = vrot.slane %v3978, 5
    %v3981 = vsel %vm305, %v3976, %v3980
    %v3983 = vshrl.u32 %v3930, 16
    %v3985 = vrot.slane %v3983, 4
    %v3986 = vshll.u32 %v3930, 16
    %v3988 = vrot.slane %v3986, 5
    %v3989 = vor.u32 %v3985, %v3988
    %v3990 = vrot.slane %v3989, 4
    %v3992 = vshll.u32 %v3931, 16
    %v3994 = vrot.slane %v3992, 5
    %v3995 = vsel %vm305, %v3990, %v3994
    %v3997 = vshrl.u32 %v3932, 16
    %v3999 = vrot.slane %v3997, 4
    %v4000 = vshll.u32 %v3932, 16
    %v4002 = vrot.slane %v4000, 5
    %v4003 = vor.u32 %v3999, %v4002
    %v4004 = vrot.slane %v4003, 4
    %v4006 = vshll.u32 %v3933, 16
    %v4008 = vrot.slane %v4006, 5
    %v4009 = vsel %vm305, %v4004, %v4008
    %v4011 = vshrl.u32 %v3934, 16
    %v4013 = vrot.slane %v4011, 4
    %v4014 = vshll.u32 %v3934, 16
    %v4016 = vrot.slane %v4014, 5
    %v4017 = vor.u32 %v4013, %v4016
    %v4018 = vrot.slane %v4017, 4
    %v4020 = vshll.u32 %v3935, 16
    %v4022 = vrot.slane %v4020, 5
    %v4023 = vsel %vm305, %v4018, %v4022
    %v4025 = vshrl.u32 %v3936, 16
    %v4027 = vrot.slane %v4025, 4
    %v4028 = vshll.u32 %v3936, 16
    %v4030 = vrot.slane %v4028, 5
    %v4031 = vor.u32 %v4027, %v4030
    %v4032 = vrot.slane %v4031, 4
    %v4034 = vshll.u32 %v3937, 16
    %v4036 = vrot.slane %v4034, 5
    %v4037 = vsel %vm305, %v4032, %v4036
    %v4039 = vshrl.u32 %v3938, 16
    %v4041 = vrot.slane %v4039, 4
    %v4042 = vshll.u32 %v3938, 16
    %v4044 = vrot.slane %v4042, 5
    %v4045 = vor.u32 %v4041, %v4044
    %v4046 = vrot.slane %v4045, 4
    %v4048 = vshll.u32 %v3939, 16
    %v4050 = vrot.slane %v4048, 5
    %v4051 = vsel %vm305, %v4046, %v4050
    %v4052 = vunpack.c.l.b16 %v3953
    %v4053 = vunpack.c.l.b16 %v3967
    %v4054 = vunpack.c.l.b16 %v3981
    %v4055 = vunpack.c.l.b16 %v3995
    %v4056 = vunpack.c.l.b16 %v4009
    %v4057 = vunpack.c.l.b16 %v4023
    %v4058 = vunpack.c.l.b16 %v4037
    %v4059 = vunpack.c.l.b16 %v4051
    %v4060 = vpack.c.b16 %v4053, %v4052
    %v4061 = vpack.c.b16 %v4055, %v4054
    %v4062 = vpack.c.b16 %v4057, %v4056
    %v4063 = vpack.c.b16 %v4059, %v4058
    %4064 = vrot.lane.b32.xlu0 %v4060, 32
    %v4065 = vpop.permute.xlu0 %4064
    %4066 = vrot.lane.b32.xlu0 %v4061, 32
    %v4067 = vpop.permute.xlu0 %4066
    %4068 = vrot.lane.b32.xlu0 %v4062, 32
    %v4069 = vpop.permute.xlu0 %4068
    %4070 = vrot.lane.b32.xlu0 %v4063, 32
    %v4071 = vpop.permute.xlu0 %4070
    %vm4076 = vcmask 523520
    %4077 = vst.msk [vmem:[#allocation4] sm:$0xff] %vm4076, %v4065
    %4078 = vst.msk [vmem:[#allocation4 + $0x18] sm:$0xff] %vm4076, %v4067
    %4079 = vst.msk [vmem:[#allocation4 + $0x30] sm:$0xff] %vm4076, %v4069
    %4080 = vst.msk [vmem:[#allocation4 + $0x48] sm:$0xff] %vm4076, %v4071
    %v4081 = vld [vmem:[#allocation2] sm:$0xe]
    %v4082 = vld [vmem:[#allocation2 + $0x4] sm:$0x1]
    %v4083 = vld [vmem:[#allocation2 + $0x8] sm:$0xe]
    %v4084 = vld [vmem:[#allocation2 + $0xc] sm:$0x1]
    %v4085 = vld [vmem:[#allocation2 + $0x10] sm:$0xe]
    %v4086 = vld [vmem:[#allocation2 + $0x14] sm:$0x1]
    %v4087 = vld [vmem:[#allocation2 + $0x18] sm:$0xe]
    %v4088 = vld [vmem:[#allocation2 + $0x1c] sm:$0x1]
    %v4089 = vld [vmem:[#allocation2 + $0x20] sm:$0xe]
    %v4090 = vld [vmem:[#allocation2 + $0x24] sm:$0x1]
    %v4091 = vld [vmem:[#allocation2 + $0x28] sm:$0xe]
    %v4092 = vld [vmem:[#allocation2 + $0x2c] sm:$0x1]
    %v4093 = vld [vmem:[#allocation2 + $0x30] sm:$0xe]
    %v4094 = vld [vmem:[#allocation2 + $0x34] sm:$0x1]
    %v4095 = vld [vmem:[#allocation2 + $0x38] sm:$0xe]
    %v4096 = vld [vmem:[#allocation2 + $0x3c] sm:$0x1]
    %v4113 = vrot.slane %v4081, 5
    %v4114 = vrot.slane %v4113, 4
    %v4115 = vrot.slane %v4082, 5
    %v4116 = vsel %vm901, %v4114, %v4115
    %v4117 = vrot.slane %v4083, 5
    %v4118 = vrot.slane %v4117, 4
    %v4119 = vrot.slane %v4084, 5
    %v4120 = vsel %vm901, %v4118, %v4119
    %v4121 = vrot.slane %v4085, 5
    %v4122 = vrot.slane %v4121, 4
    %v4123 = vrot.slane %v4086, 5
    %v4124 = vsel %vm901, %v4122, %v4123
    %v4125 = vrot.slane %v4087, 5
    %v4126 = vrot.slane %v4125, 4
    %v4127 = vrot.slane %v4088, 5
    %v4128 = vsel %vm901, %v4126, %v4127
    %v4129 = vrot.slane %v4089, 5
    %v4130 = vrot.slane %v4129, 4
    %v4131 = vrot.slane %v4090, 5
    %v4132 = vsel %vm901, %v4130, %v4131
    %v4133 = vrot.slane %v4091, 5
    %v4134 = vrot.slane %v4133, 4
    %v4135 = vrot.slane %v4092, 5
    %v4136 = vsel %vm901, %v4134, %v4135
    %v4137 = vrot.slane %v4093, 5
    %v4138 = vrot.slane %v4137, 4
    %v4139 = vrot.slane %v4094, 5
    %v4140 = vsel %vm901, %v4138, %v4139
    %v4141 = vrot.slane %v4095, 5
    %v4142 = vrot.slane %v4141, 4
    %v4143 = vrot.slane %v4096, 5
    %v4144 = vsel %vm901, %v4142, %v4143
    %v4145 = vunpack.c.l.b16 %v4116
    %v4146 = vunpack.c.l.b16 %v4120
    %v4147 = vunpack.c.l.b16 %v4124
    %v4148 = vunpack.c.l.b16 %v4128
    %v4149 = vunpack.c.l.b16 %v4132
    %v4150 = vunpack.c.l.b16 %v4136
    %v4151 = vunpack.c.l.b16 %v4140
    %v4152 = vunpack.c.l.b16 %v4144
    %v4153 = vpack.c.b16 %v4146, %v4145
    %v4154 = vpack.c.b16 %v4148, %v4147
    %v4155 = vpack.c.b16 %v4150, %v4149
    %v4156 = vpack.c.b16 %v4152, %v4151
    %4157 = vrot.lane.b32.xlu0 %v4153, 64
    %v4158 = vpop.permute.xlu0 %4157
    %4159 = vrot.lane.b32.xlu0 %v4154, 64
    %v4160 = vpop.permute.xlu0 %4159
    %4161 = vrot.lane.b32.xlu0 %v4155, 64
    %v4162 = vpop.permute.xlu0 %4161
    %4163 = vrot.lane.b32.xlu0 %v4156, 64
    %v4164 = vpop.permute.xlu0 %4163
    %vm4169 = vcmask 785920
    %4170 = vst.msk [vmem:[#allocation4] sm:$0xff] %vm4169, %v4158
    %4171 = vst.msk [vmem:[#allocation4 + $0x18] sm:$0xff] %vm4169, %v4160
    %4172 = vst.msk [vmem:[#allocation4 + $0x30] sm:$0xff] %vm4169, %v4162
    %4173 = vst.msk [vmem:[#allocation4 + $0x48] sm:$0xff] %vm4169, %v4164
    %v4174 = vld [vmem:[%s3832] sm:$0xf]
    %v4175 = vld [vmem:[%s3832 + $0x8] sm:$0xf]
    %v4176 = vld [vmem:[%s3832 + $0x10] sm:$0xf]
    %v4177 = vld [vmem:[%s3832 + $0x18] sm:$0xf]
    %v4178 = vld [vmem:[%s3832 + $0x20] sm:$0xf]
    %v4179 = vld [vmem:[%s3832 + $0x28] sm:$0xf]
    %v4180 = vld [vmem:[%s3832 + $0x30] sm:$0xf]
    %v4181 = vld [vmem:[%s3832 + $0x38] sm:$0xf]
    %v4190 = vunpack.c.l.b16 %v4174
    %v4191 = vunpack.c.l.b16 %v4175
    %v4192 = vunpack.c.l.b16 %v4176
    %v4193 = vunpack.c.l.b16 %v4177
    %v4194 = vunpack.c.l.b16 %v4178
    %v4195 = vunpack.c.l.b16 %v4179
    %v4196 = vunpack.c.l.b16 %v4180
    %v4197 = vunpack.c.l.b16 %v4181
    %v4198 = vpack.c.b16 %v4191, %v4190
    %v4199 = vpack.c.b16 %v4193, %v4192
    %v4200 = vpack.c.b16 %v4195, %v4194
    %v4201 = vpack.c.b16 %v4197, %v4196
    %4202 = vrot.lane.b32.xlu0 %v4198, 96
    %v4203 = vpop.permute.xlu0 %4202
    %4204 = vrot.lane.b32.xlu0 %v4199, 96
    %v4205 = vpop.permute.xlu0 %4204
    %4206 = vrot.lane.b32.xlu0 %v4200, 96
    %v4207 = vpop.permute.xlu0 %4206
    %4208 = vrot.lane.b32.xlu0 %v4201, 96
    %v4209 = vpop.permute.xlu0 %4208
    %vm4214 = vcmask 1048320
    %4215 = vst.msk [vmem:[#allocation4] sm:$0xff] %vm4214, %v4203
    %4216 = vst.msk [vmem:[#allocation4 + $0x18] sm:$0xff] %vm4214, %v4205
    %4217 = vst.msk [vmem:[#allocation4 + $0x30] sm:$0xff] %vm4214, %v4207
    %4218 = vst.msk [vmem:[#allocation4 + $0x48] sm:$0xff] %vm4214, %v4209
    %v4219 = vld [vmem:[%s3832] sm:$0xf]
    %v4220 = vld [vmem:[%s3832 + $0x4] sm:$0x1]
    %v4221 = vld [vmem:[%s3832 + $0x8] sm:$0xf]
    %v4222 = vld [vmem:[%s3832 + $0xc] sm:$0x1]
    %v4223 = vld [vmem:[%s3832 + $0x10] sm:$0xf]
    %v4224 = vld [vmem:[%s3832 + $0x14] sm:$0x1]
    %v4225 = vld [vmem:[%s3832 + $0x18] sm:$0xf]
    %v4226 = vld [vmem:[%s3832 + $0x1c] sm:$0x1]
    %v4227 = vld [vmem:[%s3832 + $0x20] sm:$0xf]
    %v4228 = vld [vmem:[%s3832 + $0x24] sm:$0x1]
    %v4229 = vld [vmem:[%s3832 + $0x28] sm:$0xf]
    %v4230 = vld [vmem:[%s3832 + $0x2c] sm:$0x1]
    %v4231 = vld [vmem:[%s3832 + $0x30] sm:$0xf]
    %v4232 = vld [vmem:[%s3832 + $0x34] sm:$0x1]
    %v4233 = vld [vmem:[%s3832 + $0x38] sm:$0xf]
    %v4234 = vld [vmem:[%s3832 + $0x3c] sm:$0x1]
    %v4236 = vshrl.u32 %v4219, 16
    %v4238 = vrot.slane %v4236, 4
    %v4239 = vshll.u32 %v4219, 16
    %v4241 = vrot.slane %v4239, 5
    %v4242 = vor.u32 %v4238, %v4241
    %v4243 = vrot.slane %v4242, 4
    %v4245 = vshll.u32 %v4220, 16
    %v4247 = vrot.slane %v4245, 5
    %v4248 = vsel %vm305, %v4243, %v4247
    %v4250 = vshrl.u32 %v4221, 16
    %v4252 = vrot.slane %v4250, 4
    %v4253 = vshll.u32 %v4221, 16
    %v4255 = vrot.slane %v4253, 5
    %v4256 = vor.u32 %v4252, %v4255
    %v4257 = vrot.slane %v4256, 4
    %v4259 = vshll.u32 %v4222, 16
    %v4261 = vrot.slane %v4259, 5
    %v4262 = vsel %vm305, %v4257, %v4261
    %v4264 = vshrl.u32 %v4223, 16
    %v4266 = vrot.slane %v4264, 4
    %v4267 = vshll.u32 %v4223, 16
    %v4269 = vrot.slane %v4267, 5
    %v4270 = vor.u32 %v4266, %v4269
    %v4271 = vrot.slane %v4270, 4
    %v4273 = vshll.u32 %v4224, 16
    %v4275 = vrot.slane %v4273, 5
    %v4276 = vsel %vm305, %v4271, %v4275
    %v4278 = vshrl.u32 %v4225, 16
    %v4280 = vrot.slane %v4278, 4
    %v4281 = vshll.u32 %v4225, 16
    %v4283 = vrot.slane %v4281, 5
    %v4284 = vor.u32 %v4280, %v4283
    %v4285 = vrot.slane %v4284, 4
    %v4287 = vshll.u32 %v4226, 16
    %v4289 = vrot.slane %v4287, 5
    %v4290 = vsel %vm305, %v4285, %v4289
    %v4292 = vshrl.u32 %v4227, 16
    %v4294 = vrot.slane %v4292, 4
    %v4295 = vshll.u32 %v4227, 16
    %v4297 = vrot.slane %v4295, 5
    %v4298 = vor.u32 %v4294, %v4297
    %v4299 = vrot.slane %v4298, 4
    %v4301 = vshll.u32 %v4228, 16
    %v4303 = vrot.slane %v4301, 5
    %v4304 = vsel %vm305, %v4299, %v4303
    %v4306 = vshrl.u32 %v4229, 16
    %v4308 = vrot.slane %v4306, 4
    %v4309 = vshll.u32 %v4229, 16
    %v4311 = vrot.slane %v4309, 5
    %v4312 = vor.u32 %v4308, %v4311
    %v4313 = vrot.slane %v4312, 4
    %v4315 = vshll.u32 %v4230, 16
    %v4317 = vrot.slane %v4315, 5
    %v4318 = vsel %vm305, %v4313, %v4317
    %v4320 = vshrl.u32 %v4231, 16
    %v4322 = vrot.slane %v4320, 4
    %v4323 = vshll.u32 %v4231, 16
    %v4325 = vrot.slane %v4323, 5
    %v4326 = vor.u32 %v4322, %v4325
    %v4327 = vrot.slane %v4326, 4
    %v4329 = vshll.u32 %v4232, 16
    %v4331 = vrot.slane %v4329, 5
    %v4332 = vsel %vm305, %v4327, %v4331
    %v4334 = vshrl.u32 %v4233, 16
    %v4336 = vrot.slane %v4334, 4
    %v4337 = vshll.u32 %v4233, 16
    %v4339 = vrot.slane %v4337, 5
    %v4340 = vor.u32 %v4336, %v4339
    %v4341 = vrot.slane %v4340, 4
    %v4343 = vshll.u32 %v4234, 16
    %v4345 = vrot.slane %v4343, 5
    %v4346 = vsel %vm305, %v4341, %v4345
    %v4347 = vunpack.c.l.b16 %v4248
    %v4348 = vunpack.c.l.b16 %v4262
    %v4349 = vunpack.c.l.b16 %v4276
    %v4350 = vunpack.c.l.b16 %v4290
    %v4351 = vunpack.c.l.b16 %v4304
    %v4352 = vunpack.c.l.b16 %v4318
    %v4353 = vunpack.c.l.b16 %v4332
    %v4354 = vunpack.c.l.b16 %v4346
    %v4355 = vpack.c.b16 %v4348, %v4347
    %v4356 = vpack.c.b16 %v4350, %v4349
    %v4357 = vpack.c.b16 %v4352, %v4351
    %v4358 = vpack.c.b16 %v4354, %v4353
    %4363 = vst.msk [vmem:[#allocation4 + $0x8] sm:$0xff] %vm3919, %v4355
    %4364 = vst.msk [vmem:[#allocation4 + $0x20] sm:$0xff] %vm3919, %v4356
    %4365 = vst.msk [vmem:[#allocation4 + $0x38] sm:$0xff] %vm3919, %v4357
    %4366 = vst.msk [vmem:[#allocation4 + $0x50] sm:$0xff] %vm3919, %v4358
    %v4367 = vld [vmem:[%s3832] sm:$0xe]
    %v4368 = vld [vmem:[%s3832 + $0x4] sm:$0x1]
    %v4369 = vld [vmem:[%s3832 + $0x8] sm:$0xe]
    %v4370 = vld [vmem:[%s3832 + $0xc] sm:$0x1]
    %v4371 = vld [vmem:[%s3832 + $0x10] sm:$0xe]
    %v4372 = vld [vmem:[%s3832 + $0x14] sm:$0x1]
    %v4373 = vld [vmem:[%s3832 + $0x18] sm:$0xe]
    %v4374 = vld [vmem:[%s3832 + $0x1c] sm:$0x1]
    %v4375 = vld [vmem:[%s3832 + $0x20] sm:$0xe]
    %v4376 = vld [vmem:[%s3832 + $0x24] sm:$0x1]
    %v4377 = vld [vmem:[%s3832 + $0x28] sm:$0xe]
    %v4378 = vld [vmem:[%s3832 + $0x2c] sm:$0x1]
    %v4379 = vld [vmem:[%s3832 + $0x30] sm:$0xe]
    %v4380 = vld [vmem:[%s3832 + $0x34] sm:$0x1]
    %v4381 = vld [vmem:[%s3832 + $0x38] sm:$0xe]
    %v4382 = vld [vmem:[%s3832 + $0x3c] sm:$0x1]
    %v4399 = vrot.slane %v4367, 5
    %v4400 = vrot.slane %v4399, 4
    %v4401 = vrot.slane %v4368, 5
    %v4402 = vsel %vm901, %v4400, %v4401
    %v4403 = vrot.slane %v4369, 5
    %v4404 = vrot.slane %v4403, 4
    %v4405 = vrot.slane %v4370, 5
    %v4406 = vsel %vm901, %v4404, %v4405
    %v4407 = vrot.slane %v4371, 5
    %v4408 = vrot.slane %v4407, 4
    %v4409 = vrot.slane %v4372, 5
    %v4410 = vsel %vm901, %v4408, %v4409
    %v4411 = vrot.slane %v4373, 5
    %v4412 = vrot.slane %v4411, 4
    %v4413 = vrot.slane %v4374, 5
    %v4414 = vsel %vm901, %v4412, %v4413
    %v4415 = vrot.slane %v4375, 5
    %v4416 = vrot.slane %v4415, 4
    %v4417 = vrot.slane %v4376, 5
    %v4418 = vsel %vm901, %v4416, %v4417
    %v4419 = vrot.slane %v4377, 5
    %v4420 = vrot.slane %v4419, 4
    %v4421 = vrot.slane %v4378, 5
    %v4422 = vsel %vm901, %v4420, %v4421
    %v4423 = vrot.slane %v4379, 5
    %v4424 = vrot.slane %v4423, 4
    %v4425 = vrot.slane %v4380, 5
    %v4426 = vsel %vm901, %v4424, %v4425
    %v4427 = vrot.slane %v4381, 5
    %v4428 = vrot.slane %v4427, 4
    %v4429 = vrot.slane %v4382, 5
    %v4430 = vsel %vm901, %v4428, %v4429
    %v4431 = vunpack.c.l.b16 %v4402
    %v4432 = vunpack.c.l.b16 %v4406
    %v4433 = vunpack.c.l.b16 %v4410
    %v4434 = vunpack.c.l.b16 %v4414
    %v4435 = vunpack.c.l.b16 %v4418
    %v4436 = vunpack.c.l.b16 %v4422
    %v4437 = vunpack.c.l.b16 %v4426
    %v4438 = vunpack.c.l.b16 %v4430
    %v4439 = vpack.c.b16 %v4432, %v4431
    %v4440 = vpack.c.b16 %v4434, %v4433
    %v4441 = vpack.c.b16 %v4436, %v4435
    %v4442 = vpack.c.b16 %v4438, %v4437
    %4443 = vrot.lane.b32.xlu0 %v4439, 32
    %v4444 = vpop.permute.xlu0 %4443
    %4445 = vrot.lane.b32.xlu0 %v4440, 32
    %v4446 = vpop.permute.xlu0 %4445
    %4447 = vrot.lane.b32.xlu0 %v4441, 32
    %v4448 = vpop.permute.xlu0 %4447
    %4449 = vrot.lane.b32.xlu0 %v4442, 32
    %v4450 = vpop.permute.xlu0 %4449
    %4455 = vst.msk [vmem:[#allocation4 + $0x8] sm:$0xff] %vm4076, %v4444
    %4456 = vst.msk [vmem:[#allocation4 + $0x20] sm:$0xff] %vm4076, %v4446
    %4457 = vst.msk [vmem:[#allocation4 + $0x38] sm:$0xff] %vm4076, %v4448
    %4458 = vst.msk [vmem:[#allocation4 + $0x50] sm:$0xff] %vm4076, %v4450
    %s4459 = scalar_lea.vmem [#allocation2], 16
    %v4460 = vld [vmem:[%s4459] sm:$0xf]
    %v4461 = vld [vmem:[%s4459 + $0x8] sm:$0xf]
    %v4462 = vld [vmem:[%s4459 + $0x10] sm:$0xf]
    %v4463 = vld [vmem:[%s4459 + $0x18] sm:$0xf]
    %v4464 = vld [vmem:[%s4459 + $0x20] sm:$0xf]
    %v4465 = vld [vmem:[%s4459 + $0x28] sm:$0xf]
    %v4466 = vld [vmem:[%s4459 + $0x30] sm:$0xf]
    %v4467 = vld [vmem:[%s4459 + $0x38] sm:$0xf]
    %v4476 = vunpack.c.l.b16 %v4460
    %v4477 = vunpack.c.l.b16 %v4461
    %v4478 = vunpack.c.l.b16 %v4462
    %v4479 = vunpack.c.l.b16 %v4463
    %v4480 = vunpack.c.l.b16 %v4464
    %v4481 = vunpack.c.l.b16 %v4465
    %v4482 = vunpack.c.l.b16 %v4466
    %v4483 = vunpack.c.l.b16 %v4467
    %v4484 = vpack.c.b16 %v4477, %v4476
    %v4485 = vpack.c.b16 %v4479, %v4478
    %v4486 = vpack.c.b16 %v4481, %v4480
    %v4487 = vpack.c.b16 %v4483, %v4482
    %4488 = vrot.lane.b32.xlu0 %v4484, 64
    %v4489 = vpop.permute.xlu0 %4488
    %4490 = vrot.lane.b32.xlu0 %v4485, 64
    %v4491 = vpop.permute.xlu0 %4490
    %4492 = vrot.lane.b32.xlu0 %v4486, 64
    %v4493 = vpop.permute.xlu0 %4492
    %4494 = vrot.lane.b32.xlu0 %v4487, 64
    %v4495 = vpop.permute.xlu0 %4494
    %4500 = vst.msk [vmem:[#allocation4 + $0x8] sm:$0xff] %vm4169, %v4489
    %4501 = vst.msk [vmem:[#allocation4 + $0x20] sm:$0xff] %vm4169, %v4491
    %4502 = vst.msk [vmem:[#allocation4 + $0x38] sm:$0xff] %vm4169, %v4493
    %4503 = vst.msk [vmem:[#allocation4 + $0x50] sm:$0xff] %vm4169, %v4495
    %v4504 = vld [vmem:[%s4459] sm:$0xf]
    %v4505 = vld [vmem:[%s4459 + $0x4] sm:$0x1]
    %v4506 = vld [vmem:[%s4459 + $0x8] sm:$0xf]
    %v4507 = vld [vmem:[%s4459 + $0xc] sm:$0x1]
    %v4508 = vld [vmem:[%s4459 + $0x10] sm:$0xf]
    %v4509 = vld [vmem:[%s4459 + $0x14] sm:$0x1]
    %v4510 = vld [vmem:[%s4459 + $0x18] sm:$0xf]
    %v4511 = vld [vmem:[%s4459 + $0x1c] sm:$0x1]
    %v4512 = vld [vmem:[%s4459 + $0x20] sm:$0xf]
    %v4513 = vld [vmem:[%s4459 + $0x24] sm:$0x1]
    %v4514 = vld [vmem:[%s4459 + $0x28] sm:$0xf]
    %v4515 = vld [vmem:[%s4459 + $0x2c] sm:$0x1]
    %v4516 = vld [vmem:[%s4459 + $0x30] sm:$0xf]
    %v4517 = vld [vmem:[%s4459 + $0x34] sm:$0x1]
    %v4518 = vld [vmem:[%s4459 + $0x38] sm:$0xf]
    %v4519 = vld [vmem:[%s4459 + $0x3c] sm:$0x1]
    %v4521 = vshrl.u32 %v4504, 16
    %v4523 = vrot.slane %v4521, 4
    %v4524 = vshll.u32 %v4504, 16
    %v4526 = vrot.slane %v4524, 5
    %v4527 = vor.u32 %v4523, %v4526
    %v4528 = vrot.slane %v4527, 4
    %v4530 = vshll.u32 %v4505, 16
    %v4532 = vrot.slane %v4530, 5
    %v4533 = vsel %vm305, %v4528, %v4532
    %v4535 = vshrl.u32 %v4506, 16
    %v4537 = vrot.slane %v4535, 4
    %v4538 = vshll.u32 %v4506, 16
    %v4540 = vrot.slane %v4538, 5
    %v4541 = vor.u32 %v4537, %v4540
    %v4542 = vrot.slane %v4541, 4
    %v4544 = vshll.u32 %v4507, 16
    %v4546 = vrot.slane %v4544, 5
    %v4547 = vsel %vm305, %v4542, %v4546
    %v4549 = vshrl.u32 %v4508, 16
    %v4551 = vrot.slane %v4549, 4
    %v4552 = vshll.u32 %v4508, 16
    %v4554 = vrot.slane %v4552, 5
    %v4555 = vor.u32 %v4551, %v4554
    %v4556 = vrot.slane %v4555, 4
    %v4558 = vshll.u32 %v4509, 16
    %v4560 = vrot.slane %v4558, 5
    %v4561 = vsel %vm305, %v4556, %v4560
    %v4563 = vshrl.u32 %v4510, 16
    %v4565 = vrot.slane %v4563, 4
    %v4566 = vshll.u32 %v4510, 16
    %v4568 = vrot.slane %v4566, 5
    %v4569 = vor.u32 %v4565, %v4568
    %v4570 = vrot.slane %v4569, 4
    %v4572 = vshll.u32 %v4511, 16
    %v4574 = vrot.slane %v4572, 5
    %v4575 = vsel %vm305, %v4570, %v4574
    %v4577 = vshrl.u32 %v4512, 16
    %v4579 = vrot.slane %v4577, 4
    %v4580 = vshll.u32 %v4512, 16
    %v4582 = vrot.slane %v4580, 5
    %v4583 = vor.u32 %v4579, %v4582
    %v4584 = vrot.slane %v4583, 4
    %v4586 = vshll.u32 %v4513, 16
    %v4588 = vrot.slane %v4586, 5
    %v4589 = vsel %vm305, %v4584, %v4588
    %v4591 = vshrl.u32 %v4514, 16
    %v4593 = vrot.slane %v4591, 4
    %v4594 = vshll.u32 %v4514, 16
    %v4596 = vrot.slane %v4594, 5
    %v4597 = vor.u32 %v4593, %v4596
    %v4598 = vrot.slane %v4597, 4
    %v4600 = vshll.u32 %v4515, 16
    %v4602 = vrot.slane %v4600, 5
    %v4603 = vsel %vm305, %v4598, %v4602
    %v4605 = vshrl.u32 %v4516, 16
    %v4607 = vrot.slane %v4605, 4
    %v4608 = vshll.u32 %v4516, 16
    %v4610 = vrot.slane %v4608, 5
    %v4611 = vor.u32 %v4607, %v4610
    %v4612 = vrot.slane %v4611, 4
    %v4614 = vshll.u32 %v4517, 16
    %v4616 = vrot.slane %v4614, 5
    %v4617 = vsel %vm305, %v4612, %v4616
    %v4619 = vshrl.u32 %v4518, 16
    %v4621 = vrot.slane %v4619, 4
    %v4622 = vshll.u32 %v4518, 16
    %v4624 = vrot.slane %v4622, 5
    %v4625 = vor.u32 %v4621, %v4624
    %v4626 = vrot.slane %v4625, 4
    %v4628 = vshll.u32 %v4519, 16
    %v4630 = vrot.slane %v4628, 5
    %v4631 = vsel %vm305, %v4626, %v4630
    %v4632 = vunpack.c.l.b16 %v4533
    %v4633 = vunpack.c.l.b16 %v4547
    %v4634 = vunpack.c.l.b16 %v4561
    %v4635 = vunpack.c.l.b16 %v4575
    %v4636 = vunpack.c.l.b16 %v4589
    %v4637 = vunpack.c.l.b16 %v4603
    %v4638 = vunpack.c.l.b16 %v4617
    %v4639 = vunpack.c.l.b16 %v4631
    %v4640 = vpack.c.b16 %v4633, %v4632
    %v4641 = vpack.c.b16 %v4635, %v4634
    %v4642 = vpack.c.b16 %v4637, %v4636
    %v4643 = vpack.c.b16 %v4639, %v4638
    %4644 = vrot.lane.b32.xlu0 %v4640, 96
    %v4645 = vpop.permute.xlu0 %4644
    %4646 = vrot.lane.b32.xlu0 %v4641, 96
    %v4647 = vpop.permute.xlu0 %4646
    %4648 = vrot.lane.b32.xlu0 %v4642, 96
    %v4649 = vpop.permute.xlu0 %4648
    %4650 = vrot.lane.b32.xlu0 %v4643, 96
    %v4651 = vpop.permute.xlu0 %4650
    %4656 = vst.msk [vmem:[#allocation4 + $0x8] sm:$0xff] %vm4214, %v4645
    %4657 = vst.msk [vmem:[#allocation4 + $0x20] sm:$0xff] %vm4214, %v4647
    %4658 = vst.msk [vmem:[#allocation4 + $0x38] sm:$0xff] %vm4214, %v4649
    %4659 = vst.msk [vmem:[#allocation4 + $0x50] sm:$0xff] %vm4214, %v4651
    %v4660 = vld [vmem:[%s4459] sm:$0xe]
    %v4661 = vld [vmem:[%s4459 + $0x4] sm:$0x1]
    %v4662 = vld [vmem:[%s4459 + $0x8] sm:$0xe]
    %v4663 = vld [vmem:[%s4459 + $0xc] sm:$0x1]
    %v4664 = vld [vmem:[%s4459 + $0x10] sm:$0xe]
    %v4665 = vld [vmem:[%s4459 + $0x14] sm:$0x1]
    %v4666 = vld [vmem:[%s4459 + $0x18] sm:$0xe]
    %v4667 = vld [vmem:[%s4459 + $0x1c] sm:$0x1]
    %v4668 = vld [vmem:[%s4459 + $0x20] sm:$0xe]
    %v4669 = vld [vmem:[%s4459 + $0x24] sm:$0x1]
    %v4670 = vld [vmem:[%s4459 + $0x28] sm:$0xe]
    %v4671 = vld [vmem:[%s4459 + $0x2c] sm:$0x1]
    %v4672 = vld [vmem:[%s4459 + $0x30] sm:$0xe]
    %v4673 = vld [vmem:[%s4459 + $0x34] sm:$0x1]
    %v4674 = vld [vmem:[%s4459 + $0x38] sm:$0xe]
    %v4675 = vld [vmem:[%s4459 + $0x3c] sm:$0x1]
    %v4692 = vrot.slane %v4660, 5
    %v4693 = vrot.slane %v4692, 4
    %v4694 = vrot.slane %v4661, 5
    %v4695 = vsel %vm901, %v4693, %v4694
    %v4696 = vrot.slane %v4662, 5
    %v4697 = vrot.slane %v4696, 4
    %v4698 = vrot.slane %v4663, 5
    %v4699 = vsel %vm901, %v4697, %v4698
    %v4700 = vrot.slane %v4664, 5
    %v4701 = vrot.slane %v4700, 4
    %v4702 = vrot.slane %v4665, 5
    %v4703 = vsel %vm901, %v4701, %v4702
    %v4704 = vrot.slane %v4666, 5
    %v4705 = vrot.slane %v4704, 4
    %v4706 = vrot.slane %v4667, 5
    %v4707 = vsel %vm901, %v4705, %v4706
    %v4708 = vrot.slane %v4668, 5
    %v4709 = vrot.slane %v4708, 4
    %v4710 = vrot.slane %v4669, 5
    %v4711 = vsel %vm901, %v4709, %v4710
    %v4712 = vrot.slane %v4670, 5
    %v4713 = vrot.slane %v4712, 4
    %v4714 = vrot.slane %v4671, 5
    %v4715 = vsel %vm901, %v4713, %v4714
    %v4716 = vrot.slane %v4672, 5
    %v4717 = vrot.slane %v4716, 4
    %v4718 = vrot.slane %v4673, 5
    %v4719 = vsel %vm901, %v4717, %v4718
    %v4720 = vrot.slane %v4674, 5
    %v4721 = vrot.slane %v4720, 4
    %v4722 = vrot.slane %v4675, 5
    %v4723 = vsel %vm901, %v4721, %v4722
    %v4724 = vunpack.c.l.b16 %v4695
    %v4725 = vunpack.c.l.b16 %v4699
    %v4726 = vunpack.c.l.b16 %v4703
    %v4727 = vunpack.c.l.b16 %v4707
    %v4728 = vunpack.c.l.b16 %v4711
    %v4729 = vunpack.c.l.b16 %v4715
    %v4730 = vunpack.c.l.b16 %v4719
    %v4731 = vunpack.c.l.b16 %v4723
    %v4732 = vpack.c.b16 %v4725, %v4724
    %v4733 = vpack.c.b16 %v4727, %v4726
    %v4734 = vpack.c.b16 %v4729, %v4728
    %v4735 = vpack.c.b16 %v4731, %v4730
    %4740 = vst.msk [vmem:[#allocation4 + $0x10] sm:$0xff] %vm3919, %v4732
    %4741 = vst.msk [vmem:[#allocation4 + $0x28] sm:$0xff] %vm3919, %v4733
    %4742 = vst.msk [vmem:[#allocation4 + $0x40] sm:$0xff] %vm3919, %v4734
    %4743 = vst.msk [vmem:[#allocation4 + $0x58] sm:$0xff] %vm3919, %v4735
    %v4744 = vld [vmem:[#allocation4] sm:$0xff]
    %v4745 = vld [vmem:[#allocation4 + $0x8] sm:$0xff]
    %v4746 = vld [vmem:[#allocation4 + $0x10] sm:$0xff]
    %v4747 = vld [vmem:[#allocation4 + $0x18] sm:$0xff]
    %v4748 = vld [vmem:[#allocation4 + $0x20] sm:$0xff]
    %v4749 = vld [vmem:[#allocation4 + $0x28] sm:$0xff]
    %v4750 = vld [vmem:[#allocation4 + $0x30] sm:$0xff]
    %v4751 = vld [vmem:[#allocation4 + $0x38] sm:$0xff]
    %v4752 = vld [vmem:[#allocation4 + $0x40] sm:$0xff]
    %v4753 = vld [vmem:[#allocation4 + $0x48] sm:$0xff]
    %v4754 = vld [vmem:[#allocation4 + $0x50] sm:$0xff]
    %v4755 = vld [vmem:[#allocation4 + $0x58] sm:$0xff]
    %v4756 = vld [vmem:[%s4] sm:$0xf]
    %v4757 = vld [vmem:[%s4 + $0x4] sm:$0xf]
    %v4758 = vld [vmem:[%s4 + $0x8] sm:$0xf]
    %v4759 = vld [vmem:[%s4 + $0xc] sm:$0xf]
    %v4760 = vld [vmem:[%s4 + $0x10] sm:$0xf]
    %v4761 = vld [vmem:[%s4 + $0x14] sm:$0xf]
    %v4762 = vld [vmem:[%s4 + $0x18] sm:$0xf]
    %v4763 = vld [vmem:[%s4 + $0x1c] sm:$0xf]
    %v4764 = vld [vmem:[%s4 + $0x20] sm:$0xf]
    %v4765 = vld [vmem:[%s4 + $0x24] sm:$0xf]
    %v4766 = vld [vmem:[%s4 + $0x28] sm:$0xf]
    %v4767 = vld [vmem:[%s4 + $0x2c] sm:$0xf]
    %v4768 = vld [vmem:[%s4 + $0x30] sm:$0xf]
    %v4769 = vld [vmem:[%s4 + $0x34] sm:$0xf]
    %v4770 = vld [vmem:[%s4 + $0x38] sm:$0xf]
    %v4771 = vld [vmem:[%s4 + $0x3c] sm:$0xf]
    %v4772 = vld [vmem:[%s4 + $0x40] sm:$0xf]
    %v4773 = vld [vmem:[%s4 + $0x44] sm:$0xf]
    %v4774 = vld [vmem:[%s4 + $0x48] sm:$0xf]
    %v4775 = vld [vmem:[%s4 + $0x4c] sm:$0xf]
    %v4776 = vld [vmem:[%s4 + $0x50] sm:$0xf]
    %v4777 = vld [vmem:[%s4 + $0x54] sm:$0xf]
    %v4778 = vld [vmem:[%s4 + $0x58] sm:$0xf]
    %v4779 = vld [vmem:[%s4 + $0x5c] sm:$0xf]
    %v4780 = vld [vmem:[%s4 + $0x60] sm:$0xf]
    %v4781 = vld [vmem:[%s4 + $0x64] sm:$0xf]
    %v4782 = vld [vmem:[%s4 + $0x68] sm:$0xf]
    %v4783 = vld [vmem:[%s4 + $0x6c] sm:$0xf]
    %v4784 = vld [vmem:[%s4 + $0x70] sm:$0xf]
    %v4785 = vld [vmem:[%s4 + $0x74] sm:$0xf]
    %v4786 = vld [vmem:[%s4 + $0x78] sm:$0xf]
    %v4787 = vld [vmem:[%s4 + $0x7c] sm:$0xf]
    %v4788 = vld [vmem:[%s4 + $0x80] sm:$0xf]
    %v4789 = vld [vmem:[%s4 + $0x84] sm:$0xf]
    %v4790 = vld [vmem:[%s4 + $0x88] sm:$0xf]
    %v4791 = vld [vmem:[%s4 + $0x8c] sm:$0xf]
    %v4792 = vld [vmem:[%s5] sm:$0x1]
    %v4794 = vlaneseq
    %v4795 = vshrl.u32 %v4794, 7
    %v4796 = vsub.s32 0, %v4795
    %v4797 = vrot.slane %v4792, %v4796
    %v4835 = vunpack.c.l.b16 %v4756
    %v4836 = vunpack.c.l.b16 %v4757
    %v4837 = vunpack.c.l.b16 %v4758
    %v4838 = vunpack.c.l.b16 %v4759
    %v4839 = vunpack.c.l.b16 %v4760
    %v4840 = vunpack.c.l.b16 %v4761
    %v4841 = vunpack.c.l.b16 %v4762
    %v4842 = vunpack.c.l.b16 %v4763
    %v4843 = vunpack.c.l.b16 %v4764
    %v4844 = vunpack.c.l.b16 %v4765
    %v4845 = vunpack.c.l.b16 %v4766
    %v4846 = vunpack.c.l.b16 %v4767
    %v4847 = vunpack.c.l.b16 %v4768
    %v4848 = vunpack.c.l.b16 %v4769
    %v4849 = vunpack.c.l.b16 %v4770
    %v4850 = vunpack.c.l.b16 %v4771
    %v4851 = vunpack.c.l.b16 %v4772
    %v4852 = vunpack.c.l.b16 %v4773
    %v4853 = vunpack.c.l.b16 %v4774
    %v4854 = vunpack.c.l.b16 %v4775
    %v4855 = vunpack.c.l.b16 %v4776
    %v4856 = vunpack.c.l.b16 %v4777
    %v4857 = vunpack.c.l.b16 %v4778
    %v4858 = vunpack.c.l.b16 %v4779
    %v4859 = vunpack.c.l.b16 %v4780
    %v4860 = vunpack.c.l.b16 %v4781
    %v4861 = vunpack.c.l.b16 %v4782
    %v4862 = vunpack.c.l.b16 %v4783
    %v4863 = vunpack.c.l.b16 %v4784
    %v4864 = vunpack.c.l.b16 %v4785
    %v4865 = vunpack.c.l.b16 %v4786
    %v4866 = vunpack.c.l.b16 %v4787
    %v4867 = vunpack.c.l.b16 %v4788
    %v4868 = vunpack.c.l.b16 %v4789
    %v4869 = vunpack.c.l.b16 %v4790
    %v4870 = vunpack.c.l.b16 %v4791
    %v4871 = vpack.c.b16 %v4836, %v4835
    %v4872 = vpack.c.b16 %v4838, %v4837
    %v4873 = vpack.c.b16 %v4840, %v4839
    %v4874 = vpack.c.b16 %v4842, %v4841
    %v4875 = vpack.c.b16 %v4844, %v4843
    %v4876 = vpack.c.b16 %v4846, %v4845
    %v4877 = vpack.c.b16 %v4848, %v4847
    %v4878 = vpack.c.b16 %v4850, %v4849
    %v4879 = vpack.c.b16 %v4852, %v4851
    %v4880 = vpack.c.b16 %v4854, %v4853
    %v4881 = vpack.c.b16 %v4856, %v4855
    %v4882 = vpack.c.b16 %v4858, %v4857
    %v4883 = vpack.c.b16 %v4860, %v4859
    %v4884 = vpack.c.b16 %v4862, %v4861
    %v4885 = vpack.c.b16 %v4864, %v4863
    %v4886 = vpack.c.b16 %v4866, %v4865
    %v4887 = vpack.c.b16 %v4868, %v4867
    %v4888 = vpack.c.b16 %v4870, %v4869
    %v4908 = vsel %vm3919, %v4746, 0
    %v4911 = vsel %vm3919, %v4749, 0
    %v4914 = vsel %vm3919, %v4752, 0
    %v4917 = vsel %vm3919, %v4755, 0
    %4919 = vmatprep.subr.bf16.mxu0 0
    %4920 = vmatpush1.bf16.msra.mxu0 %v4871
    %4921 = vmatprep.subr.bf16.mxu0 0
    %4922 = vmatpush1.bf16.msra.mxu0 %v4872
    %4923 = vmatprep.subr.bf16.mxu0 0
    %4924 = vmatpush1.bf16.msra.mxu0 %v4873
    %4925 = vmatprep.subr.bf16.mxu0 0
    %4926 = vmatpush1.bf16.msra.mxu0 %v4874
    %4927 = vmatprep.subr.bf16.mxu0 0
    %4928 = vmatpush1.bf16.msra.mxu0 %v4875
    %4929 = vmatprep.subr.bf16.mxu0 0
    %4930 = vmatpush1.bf16.msra.mxu0 %v4876
    %4931 = vmatprep.subr.bf16.mxu0 0
    %4932 = vmatpush1.bf16.msra.mxu0 %v4877
    %4933 = vmatprep.subr.bf16.mxu0 0
    %4934 = vmatpush1.bf16.msra.mxu0 %v4878
    %4935 = vmatprep.subr.bf16.mxu0 0
    %4936 = vmatpush1.bf16.msra.mxu0 %v4879
    %4937 = vmatprep.subr.bf16.mxu0 0
    %4938 = vmatpush1.bf16.msra.mxu0 %v4880
    %4939 = vmatprep.subr.bf16.mxu0 0
    %4940 = vmatpush1.bf16.msra.mxu0 %v4881
    %4941 = vmatprep.subr.bf16.mxu0 0
    %4942 = vmatpush1.bf16.msra.mxu0 %v4882
    %4943 = vmatprep.subr.bf16.mxu0 0
    %4944 = vmatpush1.bf16.msra.mxu0 %v4883
    %4945 = vmatprep.subr.bf16.mxu0 0
    %4946 = vmatpush1.bf16.msra.mxu0 %v4884
    %4947 = vmatprep.subr.bf16.mxu0 0
    %4948 = vmatpush1.bf16.msra.mxu0 %v4885
    %4949 = vmatprep.subr.bf16.mxu0 0
    %4950 = vmatpush1.bf16.msra.mxu0 %v4886
    %4951 = vmatprep.mubr.bf16.mxu0 %v4745
    %4952 = vmatmul.mubr.bf16.gmra.mrb[0].mxu0 %v4744
    %v4953 = vpop.f32.mrb[0].mxu0
    %v4954 = vadd.f32 %v4797, %v4953
    %v4955 = vpop.f32.mrb[0].mxu0
    %v4956 = vpop.f32.mrb[0].mxu0
    %v4957 = vadd.f32 %v4797, %v4956
    %v4958 = vpop.f32.mrb[0].mxu0
    %4959 = vmatprep.mubr.bf16.mxu0 %v4748
    %4960 = vmatmul.mubr.bf16.gmra.mrb[0].mxu0 %v4747
    %v4961 = vpop.f32.mrb[0].mxu0
    %v4962 = vadd.f32 %v4797, %v4961
    %v4963 = vpop.f32.mrb[0].mxu0
    %v4964 = vpop.f32.mrb[0].mxu0
    %v4965 = vadd.f32 %v4797, %v4964
    %v4966 = vpop.f32.mrb[0].mxu0
    %4967 = vmatprep.mubr.bf16.mxu0 %v4751
    %4968 = vmatmul.mubr.bf16.gmra.mrb[0].mxu0 %v4750
    %v4969 = vpop.f32.mrb[0].mxu0
    %v4970 = vadd.f32 %v4797, %v4969
    %v4971 = vpop.f32.mrb[0].mxu0
    %v4972 = vpop.f32.mrb[0].mxu0
    %v4973 = vadd.f32 %v4797, %v4972
    %v4974 = vpop.f32.mrb[0].mxu0
    %4975 = vmatprep.mubr.bf16.mxu0 %v4754
    %4976 = vmatmul.mubr.bf16.gmra.mrb[0].mxu0 %v4753
    %v4977 = vpop.f32.mrb[0].mxu0
    %v4978 = vadd.f32 %v4797, %v4977
    %v4979 = vpop.f32.mrb[0].mxu0
    %v4980 = vpop.f32.mrb[0].mxu0
    %v4981 = vadd.f32 %v4797, %v4980
    %v4982 = vpop.f32.mrb[0].mxu0
    %4983 = vdwg.mxu0
    %4984 = vmatprep.subr.bf16.mxu0 0
    %4985 = vmatpush1.bf16.msra.mxu0 %v4887
    %4986 = vmatprep.subr.bf16.mxu0 0
    %4987 = vmatpush1.bf16.msra.mxu0 %v4888
    %4988 = vmatprep.subr.bf16.mxu0 0
    %4989 = vmatpush1.bf16.msra.mxu0 0
    %4990 = vmatprep.subr.bf16.mxu0 0
    %4991 = vmatpush1.bf16.msra.mxu0 0
    %4992 = vmatprep.subr.bf16.mxu0 0
    %4993 = vmatpush1.bf16.msra.mxu0 0
    %4994 = vmatprep.subr.bf16.mxu0 0
    %4995 = vmatpush1.bf16.msra.mxu0 0
    %4996 = vmatprep.subr.bf16.mxu0 0
    %4997 = vmatpush1.bf16.msra.mxu0 0
    %4998 = vmatprep.subr.bf16.mxu0 0
    %4999 = vmatpush1.bf16.msra.mxu0 0
    %5000 = vmatprep.subr.bf16.mxu0 0
    %5001 = vmatpush1.bf16.msra.mxu0 0
    %5002 = vmatprep.subr.bf16.mxu0 0
    %5003 = vmatpush1.bf16.msra.mxu0 0
    %5004 = vmatprep.subr.bf16.mxu0 0
    %5005 = vmatpush1.bf16.msra.mxu0 0
    %5006 = vmatprep.subr.bf16.mxu0 0
    %5007 = vmatpush1.bf16.msra.mxu0 0
    %5008 = vmatprep.subr.bf16.mxu0 0
    %5009 = vmatpush1.bf16.msra.mxu0 0
    %5010 = vmatprep.subr.bf16.mxu0 0
    %5011 = vmatpush1.bf16.msra.mxu0 0
    %5012 = vmatprep.subr.bf16.mxu0 0
    %5013 = vmatpush1.bf16.msra.mxu0 0
    %5014 = vmatprep.subr.bf16.mxu0 0
    %5015 = vmatpush1.bf16.msra.mxu0 0
    %5016 = vmatprep.mubr.bf16.mxu0 0
    %5017 = vmatmul.mubr.bf16.gmra.mrb[0].mxu0 %v4908
    %v5018 = vpop.f32.mrb[0].mxu0
    %v5019 = vadd.f32 %v4954, %v5018
    %v5020 = vpop.f32.mrb[0].mxu0
    %v5021 = vpop.f32.mrb[0].mxu0
    %v5022 = vadd.f32 %v4957, %v5021
    %v5023 = vpop.f32.mrb[0].mxu0
    %5024 = vmatprep.mubr.bf16.mxu0 0
    %5025 = vmatmul.mubr.bf16.gmra.mrb[0].mxu0 %v4911
    %v5026 = vpop.f32.mrb[0].mxu0
    %v5027 = vadd.f32 %v4962, %v5026
    %v5028 = vpop.f32.mrb[0].mxu0
    %v5029 = vpop.f32.mrb[0].mxu0
    %v5030 = vadd.f32 %v4965, %v5029
    %v5031 = vpop.f32.mrb[0].mxu0
    %5032 = vmatprep.mubr.bf16.mxu0 0
    %5033 = vmatmul.mubr.bf16.gmra.mrb[0].mxu0 %v4914
    %v5034 = vpop.f32.mrb[0].mxu0
    %v5035 = vadd.f32 %v4970, %v5034
    %v5036 = vpop.f32.mrb[0].mxu0
    %v5037 = vpop.f32.mrb[0].mxu0
    %v5038 = vadd.f32 %v4973, %v5037
    %v5039 = vpop.f32.mrb[0].mxu0
    %5040 = vmatprep.mubr.bf16.mxu0 0
    %5041 = vmatmul.mubr.bf16.gmra.mrb[0].mxu0 %v4917
    %v5042 = vpop.f32.mrb[0].mxu0
    %v5043 = vadd.f32 %v4978, %v5042
    %v5044 = vpop.f32.mrb[0].mxu0
    %v5045 = vpop.f32.mrb[0].mxu0
    %v5046 = vadd.f32 %v4981, %v5045
    %v5047 = vpop.f32.mrb[0].mxu0
    %5048 = vdwg.mxu0
    %v5049 = vmax.f32 %v5019, 0.0
    %v5050 = vmax.f32 %v5022, 0.0
    %v5051 = vmax.f32 %v5027, 0.0
    %v5052 = vmax.f32 %v5030, 0.0
    %v5053 = vmax.f32 %v5035, 0.0
    %v5054 = vmax.f32 %v5038, 0.0
    %v5055 = vmax.f32 %v5043, 0.0
    %v5056 = vmax.f32 %v5046, 0.0
    %v5057 = vmax.f32 %v5049, %v5050
    %v5058 = vmax.f32 %v5051, %v5052
    %v5059 = vmax.f32 %v5053, %v5054
    %v5060 = vmax.f32 %v5055, %v5056
    %v5061 = vpack.c.bf16 %v5058, %v5057
    %v5062 = vpack.c.bf16 %v5060, %v5059
    %v5063 = vld [vmem:[%s17] sm:$0xf]
    %v5064 = vld [vmem:[%s17 + $0x4] sm:$0xf]
    %v5067 = vunpack.c.l.b16 %v5063
    %v5068 = vunpack.c.l.b16 %v5064
    %v5069 = vpack.c.b16 %v5068, %v5067
    %v5071 = vsel %vm3919, %v5069, 0
    %5073 = vmatprep.subr.bf16.mxu0 0
    %5074 = vmatpush1.bf16.msra.mxu0 %v5061
    %5075 = vmatprep.subr.bf16.mxu0 0
    %5076 = vmatpush1.bf16.msra.mxu0 %v5062
    %5077 = vmatprep.subr.bf16.mxu0 0
    %5078 = vmatpush1.bf16.msra.mxu0 0
    %5079 = vmatprep.subr.bf16.mxu0 0
    %5080 = vmatpush1.bf16.msra.mxu0 0
    %5081 = vmatprep.subr.bf16.mxu0 0
    %5082 = vmatpush1.bf16.msra.mxu0 0
    %5083 = vmatprep.subr.bf16.mxu0 0
    %5084 = vmatpush1.bf16.msra.mxu0 0
    %5085 = vmatprep.subr.bf16.mxu0 0
    %5086 = vmatpush1.bf16.msra.mxu0 0
    %5087 = vmatprep.subr.bf16.mxu0 0
    %5088 = vmatpush1.bf16.msra.mxu0 0
    %5089 = vmatprep.subr.bf16.mxu0 0
    %5090 = vmatpush1.bf16.msra.mxu0 0
    %5091 = vmatprep.subr.bf16.mxu0 0
    %5092 = vmatpush1.bf16.msra.mxu0 0
    %5093 = vmatprep.subr.bf16.mxu0 0
    %5094 = vmatpush1.bf16.msra.mxu0 0
    %5095 = vmatprep.subr.bf16.mxu0 0
    %5096 = vmatpush1.bf16.msra.mxu0 0
    %5097 = vmatprep.subr.bf16.mxu0 0
    %5098 = vmatpush1.bf16.msra.mxu0 0
    %5099 = vmatprep.subr.bf16.mxu0 0
    %5100 = vmatpush1.bf16.msra.mxu0 0
    %5101 = vmatprep.subr.bf16.mxu0 0
    %5102 = vmatpush1.bf16.msra.mxu0 0
    %5103 = vmatprep.subr.bf16.mxu0 0
    %5104 = vmatpush1.bf16.msra.mxu0 0
    %5105 = vmatprep.mubr.bf16.mxu0 0
    %5106 = vmatmul.mubr.bf16.gmra.mrb[0].mxu0 %v5071
    %v5107 = vpop.f32.mrb[0].mxu0
    %v5108 = vadd.f32 0.0, %v5107
    %v5109 = vpop.f32.mrb[0].mxu0
    %v5110 = vpop.f32.mrb[0].mxu0
    %v5111 = vadd.f32 0.0, %v5110
    %v5112 = vpop.f32.mrb[0].mxu0
    %5113 = vdwg.mxu0
    %v5114 = vld [vmem:[%s18] sm:$0xf]
    %v5115 = vld [vmem:[%s18 + $0x4] sm:$0xf]
    %v5118 = vunpack.c.l.b16 %v5114
    %v5119 = vunpack.c.l.b16 %v5115
    %v5120 = vpack.c.b16 %v5119, %v5118
    %v5122 = vsel %vm3919, %v5120, 0
    %5124 = vmatprep.subr.bf16.mxu0 0
    %5125 = vmatpush1.bf16.msra.mxu0 %v5061
    %5126 = vmatprep.subr.bf16.mxu0 0
    %5127 = vmatpush1.bf16.msra.mxu0 %v5062
    %5128 = vmatprep.subr.bf16.mxu0 0
    %5129 = vmatpush1.bf16.msra.mxu0 0
    %5130 = vmatprep.subr.bf16.mxu0 0
    %5131 = vmatpush1.bf16.msra.mxu0 0
    %5132 = vmatprep.subr.bf16.mxu0 0
    %5133 = vmatpush1.bf16.msra.mxu0 0
    %5134 = vmatprep.subr.bf16.mxu0 0
    %5135 = vmatpush1.bf16.msra.mxu0 0
    %5136 = vmatprep.subr.bf16.mxu0 0
    %5137 = vmatpush1.bf16.msra.mxu0 0
    %5138 = vmatprep.subr.bf16.mxu0 0
    %5139 = vmatpush1.bf16.msra.mxu0 0
    %5140 = vmatprep.subr.bf16.mxu0 0
    %5141 = vmatpush1.bf16.msra.mxu0 0
    %5142 = vmatprep.subr.bf16.mxu0 0
    %5143 = vmatpush1.bf16.msra.mxu0 0
    %5144 = vmatprep.subr.bf16.mxu0 0
    %5145 = vmatpush1.bf16.msra.mxu0 0
    %5146 = vmatprep.subr.bf16.mxu0 0
    %5147 = vmatpush1.bf16.msra.mxu0 0
    %5148 = vmatprep.subr.bf16.mxu0 0
    %5149 = vmatpush1.bf16.msra.mxu0 0
    %5150 = vmatprep.subr.bf16.mxu0 0
    %5151 = vmatpush1.bf16.msra.mxu0 0
    %5152 = vmatprep.subr.bf16.mxu0 0
    %5153 = vmatpush1.bf16.msra.mxu0 0
    %5154 = vmatprep.subr.bf16.mxu0 0
    %5155 = vmatpush1.bf16.msra.mxu0 0
    %5156 = vmatprep.mubr.bf16.mxu0 0
    %5157 = vmatmul.mubr.bf16.gmra.mrb[0].mxu0 %v5122
    %v5158 = vpop.f32.mrb[0].mxu0
    %v5159 = vadd.f32 0.0, %v5158
    %v5160 = vpop.f32.mrb[0].mxu0
    %v5161 = vpop.f32.mrb[0].mxu0
    %v5162 = vadd.f32 0.0, %v5161
    %v5163 = vpop.f32.mrb[0].mxu0
    %5164 = vdwg.mxu0
    %v5165 = vmax.f32 %v5108, %v5159
    %v5166 = vmax.f32 %v5111, %v5162
    %v5167 = vpack.c.bf16 %v5166, %v5165
    %vm5168 = vcmask 516096
    %vm5169 = vmand %vm5168, %vm3840
    %v5170 = vld [vmem:[#allocation5] sm:$0x1]
    %v5171 = vsel %vm5169, %v5167, %v5170
    %5172 = vst [vmem:[#allocation5] sm:$0x1] %v5171
    %v5175 = vunpack.c.l.s4 1966171168
    %v5176 = vunpack.c.0.s8 %v5175
    %v5177 = vlaneseq
    %v5178 = vshrl.u32 %v5177, 7
    %v5179 = vsub.s32 %v5176, %v5178
    %v5180 = vrot.slane %v5167, %v5179
    %v5182 = vunpack.c.l.s4 1966171168
    %v5183 = vunpack.c.0.s8 %v5182
    %v5184 = vlaneseq
    %v5185 = vshrl.u32 %v5184, 7
    %v5186 = vsub.s32 %v5183, %v5185
    %v5187 = vrot.slane %v5180, %v5186
    %v5189 = vshrl.u32 %v5187, 16
    %v5191 = vrot.slane %v5189, 7
    %v5192 = vrot.slane %v5191, 1
    %5193 = vrot.lane.b32.xlu0 %v5192, 64
    %v5194 = vpop.permute.xlu0 %5193
    %vm5196 = vcmask 1040896
    %vm5197 = vmand %vm5196, %vm3840
    %v5198 = vld [vmem:[#allocation5] sm:$0x1]
    %v5199 = vsel %vm5197, %v5194, %v5198
    %5200 = vst [vmem:[#allocation5] sm:$0x1] %v5199
    %v5201 = vcombine.high %v5180, %v5180
    %v5203 = vunpack.c.l.s4 1966171168
    %v5204 = vunpack.c.0.s8 %v5203
    %v5205 = vlaneseq
    %v5206 = vshrl.u32 %v5205, 7
    %v5207 = vsub.s32 %v5204, %v5206
    %v5208 = vrot.slane %v5201, %v5207
    %v5210 = vld [vmem:[#allocation5 + $0x1] sm:$0x1]
    %v5211 = vsel %vm5169, %v5208, %v5210
    %5212 = vst [vmem:[#allocation5 + $0x1] sm:$0x1] %v5211
    %v5214 = vshrl.u32 %v5208, 16
    %v5216 = vrot.slane %v5214, 7
    %v5217 = vrot.slane %v5216, 1
    %5218 = vrot.lane.b32.xlu0 %v5217, 64
    %v5219 = vpop.permute.xlu0 %5218
    %v5221 = vld [vmem:[#allocation5 + $0x1] sm:$0x1]
    %v5222 = vsel %vm5197, %v5219, %v5221
    %5223 = vst [vmem:[#allocation5 + $0x1] sm:$0x1] %v5222
    %v5224 = vcombine.high %v5187, %v5187
    %v5226 = vld [vmem:[#allocation5 + $0x2] sm:$0x1]
    %v5227 = vsel %vm5169, %v5224, %v5226
    %5228 = vst [vmem:[#allocation5 + $0x2] sm:$0x1] %v5227
    %v5230 = vshrl.u32 %v5224, 16
    %v5232 = vrot.slane %v5230, 7
    %v5233 = vrot.slane %v5232, 1
    %5234 = vrot.lane.b32.xlu0 %v5233, 64
    %v5235 = vpop.permute.xlu0 %5234
    %v5237 = vld [vmem:[#allocation5 + $0x2] sm:$0x1]
    %v5238 = vsel %vm5197, %v5235, %v5237
    %5239 = vst [vmem:[#allocation5 + $0x2] sm:$0x1] %v5238
    %v5240 = vcombine.high %v5208, %v5208
    %v5242 = vld [vmem:[#allocation5 + $0x3] sm:$0x1]
    %v5243 = vsel %vm5169, %v5240, %v5242
    %5244 = vst [vmem:[#allocation5 + $0x3] sm:$0x1] %v5243
    %v5246 = vshrl.u32 %v5240, 16
    %v5248 = vrot.slane %v5246, 7
    %v5249 = vrot.slane %v5248, 1
    %5250 = vrot.lane.b32.xlu0 %v5249, 64
    %v5251 = vpop.permute.xlu0 %5250
    %v5253 = vld [vmem:[#allocation5 + $0x3] sm:$0x1]
    %v5254 = vsel %vm5197, %v5251, %v5253
    %5255 = vst [vmem:[#allocation5 + $0x3] sm:$0x1] %v5254
    %v5256 = vcombine.high %v5167, %v5167
    %v5258 = vunpack.c.l.s4 1966171168
    %v5259 = vunpack.c.0.s8 %v5258
    %v5260 = vlaneseq
    %v5261 = vshrl.u32 %v5260, 7
    %v5262 = vsub.s32 %v5259, %v5261
    %v5263 = vrot.slane %v5256, %v5262
    %v5265 = vunpack.c.l.s4 1966171168
    %v5266 = vunpack.c.0.s8 %v5265
    %v5267 = vlaneseq
    %v5268 = vshrl.u32 %v5267, 7
    %v5269 = vsub.s32 %v5266, %v5268
    %v5270 = vrot.slane %v5263, %v5269
    %v5272 = vld [vmem:[#allocation5 + $0x4] sm:$0x1]
    %v5273 = vsel %vm5169, %v5270, %v5272
    %5274 = vst [vmem:[#allocation5 + $0x4] sm:$0x1] %v5273
    %v5276 = vshrl.u32 %v5270, 16
    %v5278 = vrot.slane %v5276, 7
    %v5279 = vrot.slane %v5278, 1
    %5280 = vrot.lane.b32.xlu0 %v5279, 64
    %v5281 = vpop.permute.xlu0 %5280
    %v5283 = vld [vmem:[#allocation5 + $0x4] sm:$0x1]
    %v5284 = vsel %vm5197, %v5281, %v5283
    %5285 = vst [vmem:[#allocation5 + $0x4] sm:$0x1] %v5284
    %v5286 = vcombine.high %v5263, %v5263
    %v5288 = vunpack.c.l.s4 1966171168
    %v5289 = vunpack.c.0.s8 %v5288
    %v5290 = vlaneseq
    %v5291 = vshrl.u32 %v5290, 7
    %v5292 = vsub.s32 %v5289, %v5291
    %v5293 = vrot.slane %v5286, %v5292
    %v5295 = vld [vmem:[#allocation5 + $0x5] sm:$0x1]
    %v5296 = vsel %vm5169, %v5293, %v5295
    %5297 = vst [vmem:[#allocation5 + $0x5] sm:$0x1] %v5296
    %v5299 = vshrl.u32 %v5293, 16
    %v5301 = vrot.slane %v5299, 7
    %v5302 = vrot.slane %v5301, 1
    %5303 = vrot.lane.b32.xlu0 %v5302, 64
    %v5304 = vpop.permute.xlu0 %5303
    %v5306 = vld [vmem:[#allocation5 + $0x5] sm:$0x1]
    %v5307 = vsel %vm5197, %v5304, %v5306
    %5308 = vst [vmem:[#allocation5 + $0x5] sm:$0x1] %v5307
    %v5309 = vcombine.high %v5270, %v5270
    %v5311 = vld [vmem:[#allocation5 + $0x6] sm:$0x1]
    %v5312 = vsel %vm5169, %v5309, %v5311
    %5313 = vst [vmem:[#allocation5 + $0x6] sm:$0x1] %v5312
    %v5315 = vshrl.u32 %v5309, 16
    %v5317 = vrot.slane %v5315, 7
    %v5318 = vrot.slane %v5317, 1
    %5319 = vrot.lane.b32.xlu0 %v5318, 64
    %v5320 = vpop.permute.xlu0 %5319
    %v5322 = vld [vmem:[#allocation5 + $0x6] sm:$0x1]
    %v5323 = vsel %vm5197, %v5320, %v5322
    %5324 = vst [vmem:[#allocation5 + $0x6] sm:$0x1] %v5323
    %v5325 = vcombine.high %v5293, %v5293
    %v5327 = vld [vmem:[#allocation5 + $0x7] sm:$0x1]
    %v5328 = vsel %vm5169, %v5325, %v5327
    %5329 = vst [vmem:[#allocation5 + $0x7] sm:$0x1] %v5328
    %v5331 = vshrl.u32 %v5325, 16
    %v5333 = vrot.slane %v5331, 7
    %v5334 = vrot.slane %v5333, 1
    %5335 = vrot.lane.b32.xlu0 %v5334, 64
    %v5336 = vpop.permute.xlu0 %5335
    %v5338 = vld [vmem:[#allocation5 + $0x7] sm:$0x1]
    %v5339 = vsel %vm5197, %v5336, %v5338
    %5340 = vst [vmem:[#allocation5 + $0x7] sm:$0x1] %v5339
    %s5341 = scalar_lea.vmem %s0, 216
    %v5342 = vld [vmem:[%s5341] sm:$0xf]
    %v5343 = vld [vmem:[%s5341 + $0x4] sm:$0xf]
    %v5344 = vld [vmem:[%s5341 + $0xc] sm:$0xf]
    %v5345 = vld [vmem:[%s5341 + $0x10] sm:$0xf]
    %v5346 = vld [vmem:[%s5341 + $0x18] sm:$0xf]
    %v5347 = vld [vmem:[%s5341 + $0x1c] sm:$0xf]
    %v5348 = vld [vmem:[%s5341 + $0x24] sm:$0xf]
    %v5349 = vld [vmem:[%s5341 + $0x28] sm:$0xf]
    %v5350 = vld [vmem:[%s5341 + $0x30] sm:$0xf]
    %v5351 = vld [vmem:[%s5341 + $0x34] sm:$0xf]
    %v5352 = vld [vmem:[%s5341 + $0x3c] sm:$0xf]
    %v5353 = vld [vmem:[%s5341 + $0x40] sm:$0xf]
    %v5354 = vld [vmem:[%s5341 + $0x48] sm:$0xf]
    %v5355 = vld [vmem:[%s5341 + $0x4c] sm:$0xf]
    %v5356 = vld [vmem:[%s5341 + $0x54] sm:$0xf]
    %v5357 = vld [vmem:[%s5341 + $0x58] sm:$0xf]
    %v5358 = vld [vmem:[%s5341 + $0x60] sm:$0xf]
    %v5359 = vld [vmem:[%s5341 + $0x64] sm:$0xf]
    %v5360 = vld [vmem:[%s5341 + $0x6c] sm:$0xf]
    %v5361 = vld [vmem:[%s5341 + $0x70] sm:$0xf]
    %v5362 = vld [vmem:[%s5341 + $0x78] sm:$0xf]
    %v5363 = vld [vmem:[%s5341 + $0x7c] sm:$0xf]
    %v5364 = vld [vmem:[%s5341 + $0x84] sm:$0xf]
    %v5365 = vld [vmem:[%s5341 + $0x88] sm:$0xf]
    %v5366 = vld [vmem:[%s5341 + $0x90] sm:$0xf]
    %v5367 = vld [vmem:[%s5341 + $0x94] sm:$0xf]
    %v5368 = vld [vmem:[%s5341 + $0x9c] sm:$0xf]
    %v5369 = vld [vmem:[%s5341 + $0xa0] sm:$0xf]
    %v5370 = vld [vmem:[%s5341 + $0xa8] sm:$0xf]
    %v5371 = vld [vmem:[%s5341 + $0xac] sm:$0xf]
    %v5372 = vld [vmem:[%s5341 + $0xb4] sm:$0xf]
    %v5373 = vld [vmem:[%s5341 + $0xb8] sm:$0xf]
    %v5406 = vunpack.c.l.b16 %v5342
    %v5407 = vunpack.c.l.b16 %v5343
    %v5408 = vunpack.c.l.b16 %v5344
    %v5409 = vunpack.c.l.b16 %v5345
    %v5410 = vunpack.c.l.b16 %v5346
    %v5411 = vunpack.c.l.b16 %v5347
    %v5412 = vunpack.c.l.b16 %v5348
    %v5413 = vunpack.c.l.b16 %v5349
    %v5414 = vunpack.c.l.b16 %v5350
    %v5415 = vunpack.c.l.b16 %v5351
    %v5416 = vunpack.c.l.b16 %v5352
    %v5417 = vunpack.c.l.b16 %v5353
    %v5418 = vunpack.c.l.b16 %v5354
    %v5419 = vunpack.c.l.b16 %v5355
    %v5420 = vunpack.c.l.b16 %v5356
    %v5421 = vunpack.c.l.b16 %v5357
    %v5422 = vunpack.c.l.b16 %v5358
    %v5423 = vunpack.c.l.b16 %v5359
    %v5424 = vunpack.c.l.b16 %v5360
    %v5425 = vunpack.c.l.b16 %v5361
    %v5426 = vunpack.c.l.b16 %v5362
    %v5427 = vunpack.c.l.b16 %v5363
    %v5428 = vunpack.c.l.b16 %v5364
    %v5429 = vunpack.c.l.b16 %v5365
    %v5430 = vunpack.c.l.b16 %v5366
    %v5431 = vunpack.c.l.b16 %v5367
    %v5432 = vunpack.c.l.b16 %v5368
    %v5433 = vunpack.c.l.b16 %v5369
    %v5434 = vunpack.c.l.b16 %v5370
    %v5435 = vunpack.c.l.b16 %v5371
    %v5436 = vunpack.c.l.b16 %v5372
    %v5437 = vunpack.c.l.b16 %v5373
    %v5438 = vpack.c.b16 %v5407, %v5406
    %v5439 = vpack.c.b16 %v5409, %v5408
    %v5440 = vpack.c.b16 %v5411, %v5410
    %v5441 = vpack.c.b16 %v5413, %v5412
    %v5442 = vpack.c.b16 %v5415, %v5414
    %v5443 = vpack.c.b16 %v5417, %v5416
    %v5444 = vpack.c.b16 %v5419, %v5418
    %v5445 = vpack.c.b16 %v5421, %v5420
    %v5446 = vpack.c.b16 %v5423, %v5422
    %v5447 = vpack.c.b16 %v5425, %v5424
    %v5448 = vpack.c.b16 %v5427, %v5426
    %v5449 = vpack.c.b16 %v5429, %v5428
    %v5450 = vpack.c.b16 %v5431, %v5430
    %v5451 = vpack.c.b16 %v5433, %v5432
    %v5452 = vpack.c.b16 %v5435, %v5434
    %v5453 = vpack.c.b16 %v5437, %v5436
    %5470 = vst.msk [vmem:[#allocation3] sm:$0xff] %vm238, %v5438
    %5471 = vst.msk [vmem:[#allocation3 + $0x8] sm:$0xff] %vm238, %v5439
    %5472 = vst.msk [vmem:[#allocation3 + $0x10] sm:$0xff] %vm238, %v5440
    %5473 = vst.msk [vmem:[#allocation3 + $0x18] sm:$0xff] %vm238, %v5441
    %5474 = vst.msk [vmem:[#allocation3 + $0x20] sm:$0xff] %vm238, %v5442
    %5475 = vst.msk [vmem:[#allocation3 + $0x28] sm:$0xff] %vm238, %v5443
    %5476 = vst.msk [vmem:[#allocation3 + $0x30] sm:$0xff] %vm238, %v5444
    %5477 = vst.msk [vmem:[#allocation3 + $0x38] sm:$0xff] %vm238, %v5445
    %5478 = vst.msk [vmem:[#allocation3 + $0x40] sm:$0xff] %vm238, %v5446
    %5479 = vst.msk [vmem:[#allocation3 + $0x48] sm:$0xff] %vm238, %v5447
    %5480 = vst.msk [vmem:[#allocation3 + $0x50] sm:$0xff] %vm238, %v5448
    %5481 = vst.msk [vmem:[#allocation3 + $0x58] sm:$0xff] %vm238, %v5449
    %5482 = vst.msk [vmem:[#allocation3 + $0x60] sm:$0xff] %vm238, %v5450
    %5483 = vst.msk [vmem:[#allocation3 + $0x68] sm:$0xff] %vm238, %v5451
    %5484 = vst.msk [vmem:[#allocation3 + $0x70] sm:$0xff] %vm238, %v5452
    %5485 = vst.msk [vmem:[#allocation3 + $0x78] sm:$0xff] %vm238, %v5453
    %v5486 = vld [vmem:[%s5341] sm:$0xf]
    %v5487 = vld [vmem:[%s5341 + $0x4] sm:$0xf]
    %v5488 = vld [vmem:[%s5341 + $0x8] sm:$0x1]
    %v5489 = vld [vmem:[%s5341 + $0xc] sm:$0xf]
    %v5490 = vld [vmem:[%s5341 + $0x10] sm:$0xf]
    %v5491 = vld [vmem:[%s5341 + $0x14] sm:$0x1]
    %v5492 = vld [vmem:[%s5341 + $0x18] sm:$0xf]
    %v5493 = vld [vmem:[%s5341 + $0x1c] sm:$0xf]
    %v5494 = vld [vmem:[%s5341 + $0x20] sm:$0x1]
    %v5495 = vld [vmem:[%s5341 + $0x24] sm:$0xf]
    %v5496 = vld [vmem:[%s5341 + $0x28] sm:$0xf]
    %v5497 = vld [vmem:[%s5341 + $0x2c] sm:$0x1]
    %v5498 = vld [vmem:[%s5341 + $0x30] sm:$0xf]
    %v5499 = vld [vmem:[%s5341 + $0x34] sm:$0xf]
    %v5500 = vld [vmem:[%s5341 + $0x38] sm:$0x1]
    %v5501 = vld [vmem:[%s5341 + $0x3c] sm:$0xf]
    %v5502 = vld [vmem:[%s5341 + $0x40] sm:$0xf]
    %v5503 = vld [vmem:[%s5341 + $0x44] sm:$0x1]
    %v5504 = vld [vmem:[%s5341 + $0x48] sm:$0xf]
    %v5505 = vld [vmem:[%s5341 + $0x4c] sm:$0xf]
    %v5506 = vld [vmem:[%s5341 + $0x50] sm:$0x1]
    %v5507 = vld [vmem:[%s5341 + $0x54] sm:$0xf]
    %v5508 = vld [vmem:[%s5341 + $0x58] sm:$0xf]
    %v5509 = vld [vmem:[%s5341 + $0x5c] sm:$0x1]
    %v5510 = vld [vmem:[%s5341 + $0x60] sm:$0xf]
    %v5511 = vld [vmem:[%s5341 + $0x64] sm:$0xf]
    %v5512 = vld [vmem:[%s5341 + $0x68] sm:$0x1]
    %v5513 = vld [vmem:[%s5341 + $0x6c] sm:$0xf]
    %v5514 = vld [vmem:[%s5341 + $0x70] sm:$0xf]
    %v5515 = vld [vmem:[%s5341 + $0x74] sm:$0x1]
    %v5516 = vld [vmem:[%s5341 + $0x78] sm:$0xf]
    %v5517 = vld [vmem:[%s5341 + $0x7c] sm:$0xf]
    %v5518 = vld [vmem:[%s5341 + $0x80] sm:$0x1]
    %v5519 = vld [vmem:[%s5341 + $0x84] sm:$0xf]
    %v5520 = vld [vmem:[%s5341 + $0x88] sm:$0xf]
    %v5521 = vld [vmem:[%s5341 + $0x8c] sm:$0x1]
    %v5522 = vld [vmem:[%s5341 + $0x90] sm:$0xf]
    %v5523 = vld [vmem:[%s5341 + $0x94] sm:$0xf]
    %v5524 = vld [vmem:[%s5341 + $0x98] sm:$0x1]
    %v5525 = vld [vmem:[%s5341 + $0x9c] sm:$0xf]
    %v5526 = vld [vmem:[%s5341 + $0xa0] sm:$0xf]
    %v5527 = vld [vmem:[%s5341 + $0xa4] sm:$0x1]
    %v5528 = vld [vmem:[%s5341 + $0xa8] sm:$0xf]
    %v5529 = vld [vmem:[%s5341 + $0xac] sm:$0xf]
    %v5530 = vld [vmem:[%s5341 + $0xb0] sm:$0x1]
    %v5531 = vld [vmem:[%s5341 + $0xb4] sm:$0xf]
    %v5532 = vld [vmem:[%s5341 + $0xb8] sm:$0xf]
    %v5533 = vld [vmem:[%s5341 + $0xbc] sm:$0x1]
    %v5535 = vshrl.u32 %v5486, 16
    %v5537 = vrot.slane %v5535, 4
    %v5538 = vshll.u32 %v5486, 16
    %v5540 = vrot.slane %v5538, 5
    %v5541 = vor.u32 %v5537, %v5540
    %v5542 = vrot.slane %v5541, 4
    %v5544 = vshll.u32 %v5487, 16
    %v5546 = vrot.slane %v5544, 5
    %v5547 = vsel %vm305, %v5542, %v5546
    %v5548 = vshrl.u32 %v5487, 16
    %v5550 = vrot.slane %v5548, 4
    %v5551 = vor.u32 %v5550, %v5546
    %v5552 = vrot.slane %v5551, 4
    %v5554 = vshll.u32 %v5488, 16
    %v5556 = vrot.slane %v5554, 5
    %v5557 = vsel %vm305, %v5552, %v5556
    %v5559 = vshrl.u32 %v5489, 16
    %v5561 = vrot.slane %v5559, 4
    %v5562 = vshll.u32 %v5489, 16
    %v5564 = vrot.slane %v5562, 5
    %v5565 = vor.u32 %v5561, %v5564
    %v5566 = vrot.slane %v5565, 4
    %v5568 = vshll.u32 %v5490, 16
    %v5570 = vrot.slane %v5568, 5
    %v5571 = vsel %vm305, %v5566, %v5570
    %v5572 = vshrl.u32 %v5490, 16
    %v5574 = vrot.slane %v5572, 4
    %v5575 = vor.u32 %v5574, %v5570
    %v5576 = vrot.slane %v5575, 4
    %v5578 = vshll.u32 %v5491, 16
    %v5580 = vrot.slane %v5578, 5
    %v5581 = vsel %vm305, %v5576, %v5580
    %v5583 = vshrl.u32 %v5492, 16
    %v5585 = vrot.slane %v5583, 4
    %v5586 = vshll.u32 %v5492, 16
    %v5588 = vrot.slane %v5586, 5
    %v5589 = vor.u32 %v5585, %v5588
    %v5590 = vrot.slane %v5589, 4
    %v5592 = vshll.u32 %v5493, 16
    %v5594 = vrot.slane %v5592, 5
    %v5595 = vsel %vm305, %v5590, %v5594
    %v5596 = vshrl.u32 %v5493, 16
    %v5598 = vrot.slane %v5596, 4
    %v5599 = vor.u32 %v5598, %v5594
    %v5600 = vrot.slane %v5599, 4
    %v5602 = vshll.u32 %v5494, 16
    %v5604 = vrot.slane %v5602, 5
    %v5605 = vsel %vm305, %v5600, %v5604
    %v5607 = vshrl.u32 %v5495, 16
    %v5609 = vrot.slane %v5607, 4
    %v5610 = vshll.u32 %v5495, 16
    %v5612 = vrot.slane %v5610, 5
    %v5613 = vor.u32 %v5609, %v5612
    %v5614 = vrot.slane %v5613, 4
    %v5616 = vshll.u32 %v5496, 16
    %v5618 = vrot.slane %v5616, 5
    %v5619 = vsel %vm305, %v5614, %v5618
    %v5620 = vshrl.u32 %v5496, 16
    %v5622 = vrot.slane %v5620, 4
    %v5623 = vor.u32 %v5622, %v5618
    %v5624 = vrot.slane %v5623, 4
    %v5626 = vshll.u32 %v5497, 16
    %v5628 = vrot.slane %v5626, 5
    %v5629 = vsel %vm305, %v5624, %v5628
    %v5631 = vshrl.u32 %v5498, 16
    %v5633 = vrot.slane %v5631, 4
    %v5634 = vshll.u32 %v5498, 16
    %v5636 = vrot.slane %v5634, 5
    %v5637 = vor.u32 %v5633, %v5636
    %v5638 = vrot.slane %v5637, 4
    %v5640 = vshll.u32 %v5499, 16
    %v5642 = vrot.slane %v5640, 5
    %v5643 = vsel %vm305, %v5638, %v5642
    %v5644 = vshrl.u32 %v5499, 16
    %v5646 = vrot.slane %v5644, 4
    %v5647 = vor.u32 %v5646, %v5642
    %v5648 = vrot.slane %v5647, 4
    %v5650 = vshll.u32 %v5500, 16
    %v5652 = vrot.slane %v5650, 5
    %v5653 = vsel %vm305, %v5648, %v5652
    %v5655 = vshrl.u32 %v5501, 16
    %v5657 = vrot.slane %v5655, 4
    %v5658 = vshll.u32 %v5501, 16
    %v5660 = vrot.slane %v5658, 5
    %v5661 = vor.u32 %v5657, %v5660
    %v5662 = vrot.slane %v5661, 4
    %v5664 = vshll.u32 %v5502, 16
    %v5666 = vrot.slane %v5664, 5
    %v5667 = vsel %vm305, %v5662, %v5666
    %v5668 = vshrl.u32 %v5502, 16
    %v5670 = vrot.slane %v5668, 4
    %v5671 = vor.u32 %v5670, %v5666
    %v5672 = vrot.slane %v5671, 4
    %v5674 = vshll.u32 %v5503, 16
    %v5676 = vrot.slane %v5674, 5
    %v5677 = vsel %vm305, %v5672, %v5676
    %v5679 = vshrl.u32 %v5504, 16
    %v5681 = vrot.slane %v5679, 4
    %v5682 = vshll.u32 %v5504, 16
    %v5684 = vrot.slane %v5682, 5
    %v5685 = vor.u32 %v5681, %v5684
    %v5686 = vrot.slane %v5685, 4
    %v5688 = vshll.u32 %v5505, 16
    %v5690 = vrot.slane %v5688, 5
    %v5691 = vsel %vm305, %v5686, %v5690
    %v5692 = vshrl.u32 %v5505, 16
    %v5694 = vrot.slane %v5692, 4
    %v5695 = vor.u32 %v5694, %v5690
    %v5696 = vrot.slane %v5695, 4
    %v5698 = vshll.u32 %v5506, 16
    %v5700 = vrot.slane %v5698, 5
    %v5701 = vsel %vm305, %v5696, %v5700
    %v5703 = vshrl.u32 %v5507, 16
    %v5705 = vrot.slane %v5703, 4
    %v5706 = vshll.u32 %v5507, 16
    %v5708 = vrot.slane %v5706, 5
    %v5709 = vor.u32 %v5705, %v5708
    %v5710 = vrot.slane %v5709, 4
    %v5712 = vshll.u32 %v5508, 16
    %v5714 = vrot.slane %v5712, 5
    %v5715 = vsel %vm305, %v5710, %v5714
    %v5716 = vshrl.u32 %v5508, 16
    %v5718 = vrot.slane %v5716, 4
    %v5719 = vor.u32 %v5718, %v5714
    %v5720 = vrot.slane %v5719, 4
    %v5722 = vshll.u32 %v5509, 16
    %v5724 = vrot.slane %v5722, 5
    %v5725 = vsel %vm305, %v5720, %v5724
    %v5727 = vshrl.u32 %v5510, 16
    %v5729 = vrot.slane %v5727, 4
    %v5730 = vshll.u32 %v5510, 16
    %v5732 = vrot.slane %v5730, 5
    %v5733 = vor.u32 %v5729, %v5732
    %v5734 = vrot.slane %v5733, 4
    %v5736 = vshll.u32 %v5511, 16
    %v5738 = vrot.slane %v5736, 5
    %v5739 = vsel %vm305, %v5734, %v5738
    %v5740 = vshrl.u32 %v5511, 16
    %v5742 = vrot.slane %v5740, 4
    %v5743 = vor.u32 %v5742, %v5738
    %v5744 = vrot.slane %v5743, 4
    %v5746 = vshll.u32 %v5512, 16
    %v5748 = vrot.slane %v5746, 5
    %v5749 = vsel %vm305, %v5744, %v5748
    %v5751 = vshrl.u32 %v5513, 16
    %v5753 = vrot.slane %v5751, 4
    %v5754 = vshll.u32 %v5513, 16
    %v5756 = vrot.slane %v5754, 5
    %v5757 = vor.u32 %v5753, %v5756
    %v5758 = vrot.slane %v5757, 4
    %v5760 = vshll.u32 %v5514, 16
    %v5762 = vrot.slane %v5760, 5
    %v5763 = vsel %vm305, %v5758, %v5762
    %v5764 = vshrl.u32 %v5514, 16
    %v5766 = vrot.slane %v5764, 4
    %v5767 = vor.u32 %v5766, %v5762
    %v5768 = vrot.slane %v5767, 4
    %v5770 = vshll.u32 %v5515, 16
    %v5772 = vrot.slane %v5770, 5
    %v5773 = vsel %vm305, %v5768, %v5772
    %v5775 = vshrl.u32 %v5516, 16
    %v5777 = vrot.slane %v5775, 4
    %v5778 = vshll.u32 %v5516, 16
    %v5780 = vrot.slane %v5778, 5
    %v5781 = vor.u32 %v5777, %v5780
    %v5782 = vrot.slane %v5781, 4
    %v5784 = vshll.u32 %v5517, 16
    %v5786 = vrot.slane %v5784, 5
    %v5787 = vsel %vm305, %v5782, %v5786
    %v5788 = vshrl.u32 %v5517, 16
    %v5790 = vrot.slane %v5788, 4
    %v5791 = vor.u32 %v5790, %v5786
    %v5792 = vrot.slane %v5791, 4
    %v5794 = vshll.u32 %v5518, 16
    %v5796 = vrot.slane %v5794, 5
    %v5797 = vsel %vm305, %v5792, %v5796
    %v5799 = vshrl.u32 %v5519, 16
    %v5801 = vrot.slane %v5799, 4
    %v5802 = vshll.u32 %v5519, 16
    %v5804 = vrot.slane %v5802, 5
    %v5805 = vor.u32 %v5801, %v5804
    %v5806 = vrot.slane %v5805, 4
    %v5808 = vshll.u32 %v5520, 16
    %v5810 = vrot.slane %v5808, 5
    %v5811 = vsel %vm305, %v5806, %v5810
    %v5812 = vshrl.u32 %v5520, 16
    %v5814 = vrot.slane %v5812, 4
    %v5815 = vor.u32 %v5814, %v5810
    %v5816 = vrot.slane %v5815, 4
    %v5818 = vshll.u32 %v5521, 16
    %v5820 = vrot.slane %v5818, 5
    %v5821 = vsel %vm305, %v5816, %v5820
    %v5823 = vshrl.u32 %v5522, 16
    %v5825 = vrot.slane %v5823, 4
    %v5826 = vshll.u32 %v5522, 16
    %v5828 = vrot.slane %v5826, 5
    %v5829 = vor.u32 %v5825, %v5828
    %v5830 = vrot.slane %v5829, 4
    %v5832 = vshll.u32 %v5523, 16
    %v5834 = vrot.slane %v5832, 5
    %v5835 = vsel %vm305, %v5830, %v5834
    %v5836 = vshrl.u32 %v5523, 16
    %v5838 = vrot.slane %v5836, 4
    %v5839 = vor.u32 %v5838, %v5834
    %v5840 = vrot.slane %v5839, 4
    %v5842 = vshll.u32 %v5524, 16
    %v5844 = vrot.slane %v5842, 5
    %v5845 = vsel %vm305, %v5840, %v5844
    %v5847 = vshrl.u32 %v5525, 16
    %v5849 = vrot.slane %v5847, 4
    %v5850 = vshll.u32 %v5525, 16
    %v5852 = vrot.slane %v5850, 5
    %v5853 = vor.u32 %v5849, %v5852
    %v5854 = vrot.slane %v5853, 4
    %v5856 = vshll.u32 %v5526, 16
    %v5858 = vrot.slane %v5856, 5
    %v5859 = vsel %vm305, %v5854, %v5858
    %v5860 = vshrl.u32 %v5526, 16
    %v5862 = vrot.slane %v5860, 4
    %v5863 = vor.u32 %v5862, %v5858
    %v5864 = vrot.slane %v5863, 4
    %v5866 = vshll.u32 %v5527, 16
    %v5868 = vrot.slane %v5866, 5
    %v5869 = vsel %vm305, %v5864, %v5868
    %v5871 = vshrl.u32 %v5528, 16
    %v5873 = vrot.slane %v5871, 4
    %v5874 = vshll.u32 %v5528, 16
    %v5876 = vrot.slane %v5874, 5
    %v5877 = vor.u32 %v5873, %v5876
    %v5878 = vrot.slane %v5877, 4
    %v5880 = vshll.u32 %v5529, 16
    %v5882 = vrot.slane %v5880, 5
    %v5883 = vsel %vm305, %v5878, %v5882
    %v5884 = vshrl.u32 %v5529, 16
    %v5886 = vrot.slane %v5884, 4
    %v5887 = vor.u32 %v5886, %v5882
    %v5888 = vrot.slane %v5887, 4
    %v5890 = vshll.u32 %v5530, 16
    %v5892 = vrot.slane %v5890, 5
    %v5893 = vsel %vm305, %v5888, %v5892
    %v5895 = vshrl.u32 %v5531, 16
    %v5897 = vrot.slane %v5895, 4
    %v5898 = vshll.u32 %v5531, 16
    %v5900 = vrot.slane %v5898, 5
    %v5901 = vor.u32 %v5897, %v5900
    %v5902 = vrot.slane %v5901, 4
    %v5904 = vshll.u32 %v5532, 16
    %v5906 = vrot.slane %v5904, 5
    %v5907 = vsel %vm305, %v5902, %v5906
    %v5908 = vshrl.u32 %v5532, 16
    %v5910 = vrot.slane %v5908, 4
    %v5911 = vor.u32 %v5910, %v5906
    %v5912 = vrot.slane %v5911, 4
    %v5914 = vshll.u32 %v5533, 16
    %v5916 = vrot.slane %v5914, 5
    %v5917 = vsel %vm305, %v5912, %v5916
    %v5918 = vunpack.c.l.b16 %v5547
    %v5919 = vunpack.c.l.b16 %v5557
    %v5920 = vunpack.c.l.b16 %v5571
    %v5921 = vunpack.c.l.b16 %v5581
    %v5922 = vunpack.c.l.b16 %v5595
    %v5923 = vunpack.c.l.b16 %v5605
    %v5924 = vunpack.c.l.b16 %v5619
    %v5925 = vunpack.c.l.b16 %v5629
    %v5926 = vunpack.c.l.b16 %v5643
    %v5927 = vunpack.c.l.b16 %v5653
    %v5928 = vunpack.c.l.b16 %v5667
    %v5929 = vunpack.c.l.b16 %v5677
    %v5930 = vunpack.c.l.b16 %v5691
    %v5931 = vunpack.c.l.b16 %v5701
    %v5932 = vunpack.c.l.b16 %v5715
    %v5933 = vunpack.c.l.b16 %v5725
    %v5934 = vunpack.c.l.b16 %v5739
    %v5935 = vunpack.c.l.b16 %v5749
    %v5936 = vunpack.c.l.b16 %v5763
    %v5937 = vunpack.c.l.b16 %v5773
    %v5938 = vunpack.c.l.b16 %v5787
    %v5939 = vunpack.c.l.b16 %v5797
    %v5940 = vunpack.c.l.b16 %v5811
    %v5941 = vunpack.c.l.b16 %v5821
    %v5942 = vunpack.c.l.b16 %v5835
    %v5943 = vunpack.c.l.b16 %v5845
    %v5944 = vunpack.c.l.b16 %v5859
    %v5945 = vunpack.c.l.b16 %v5869
    %v5946 = vunpack.c.l.b16 %v5883
    %v5947 = vunpack.c.l.b16 %v5893
    %v5948 = vunpack.c.l.b16 %v5907
    %v5949 = vunpack.c.l.b16 %v5917
    %v5950 = vpack.c.b16 %v5919, %v5918
    %v5951 = vpack.c.b16 %v5921, %v5920
    %v5952 = vpack.c.b16 %v5923, %v5922
    %v5953 = vpack.c.b16 %v5925, %v5924
    %v5954 = vpack.c.b16 %v5927, %v5926
    %v5955 = vpack.c.b16 %v5929, %v5928
    %v5956 = vpack.c.b16 %v5931, %v5930
    %v5957 = vpack.c.b16 %v5933, %v5932
    %v5958 = vpack.c.b16 %v5935, %v5934
    %v5959 = vpack.c.b16 %v5937, %v5936
    %v5960 = vpack.c.b16 %v5939, %v5938
    %v5961 = vpack.c.b16 %v5941, %v5940
    %v5962 = vpack.c.b16 %v5943, %v5942
    %v5963 = vpack.c.b16 %v5945, %v5944
    %v5964 = vpack.c.b16 %v5947, %v5946
    %v5965 = vpack.c.b16 %v5949, %v5948
    %5966 = vrot.lane.b32.xlu0 %v5950, 3
    %v5967 = vpop.permute.xlu0 %5966
    %5968 = vrot.lane.b32.xlu0 %v5951, 3
    %v5969 = vpop.permute.xlu0 %5968
    %5970 = vrot.lane.b32.xlu0 %v5952, 3
    %v5971 = vpop.permute.xlu0 %5970
    %5972 = vrot.lane.b32.xlu0 %v5953, 3
    %v5973 = vpop.permute.xlu0 %5972
    %5974 = vrot.lane.b32.xlu0 %v5954, 3
    %v5975 = vpop.permute.xlu0 %5974
    %5976 = vrot.lane.b32.xlu0 %v5955, 3
    %v5977 = vpop.permute.xlu0 %5976
    %5978 = vrot.lane.b32.xlu0 %v5956, 3
    %v5979 = vpop.permute.xlu0 %5978
    %5980 = vrot.lane.b32.xlu0 %v5957, 3
    %v5981 = vpop.permute.xlu0 %5980
    %5982 = vrot.lane.b32.xlu0 %v5958, 3
    %v5983 = vpop.permute.xlu0 %5982
    %5984 = vrot.lane.b32.xlu0 %v5959, 3
    %v5985 = vpop.permute.xlu0 %5984
    %5986 = vrot.lane.b32.xlu0 %v5960, 3
    %v5987 = vpop.permute.xlu0 %5986
    %5988 = vrot.lane.b32.xlu0 %v5961, 3
    %v5989 = vpop.permute.xlu0 %5988
    %5990 = vrot.lane.b32.xlu0 %v5962, 3
    %v5991 = vpop.permute.xlu0 %5990
    %5992 = vrot.lane.b32.xlu0 %v5963, 3
    %v5993 = vpop.permute.xlu0 %5992
    %5994 = vrot.lane.b32.xlu0 %v5964, 3
    %v5995 = vpop.permute.xlu0 %5994
    %5996 = vrot.lane.b32.xlu0 %v5965, 3
    %v5997 = vpop.permute.xlu0 %5996
    %6014 = vst.msk [vmem:[#allocation3] sm:$0xff] %vm786, %v5967
    %6015 = vst.msk [vmem:[#allocation3 + $0x8] sm:$0xff] %vm786, %v5969
    %6016 = vst.msk [vmem:[#allocation3 + $0x10] sm:$0xff] %vm786, %v5971
    %6017 = vst.msk [vmem:[#allocation3 + $0x18] sm:$0xff] %vm786, %v5973
    %6018 = vst.msk [vmem:[#allocation3 + $0x20] sm:$0xff] %vm786, %v5975
    %6019 = vst.msk [vmem:[#allocation3 + $0x28] sm:$0xff] %vm786, %v5977
    %6020 = vst.msk [vmem:[#allocation3 + $0x30] sm:$0xff] %vm786, %v5979
    %6021 = vst.msk [vmem:[#allocation3 + $0x38] sm:$0xff] %vm786, %v5981
    %6022 = vst.msk [vmem:[#allocation3 + $0x40] sm:$0xff] %vm786, %v5983
    %6023 = vst.msk [vmem:[#allocation3 + $0x48] sm:$0xff] %vm786, %v5985
    %6024 = vst.msk [vmem:[#allocation3 + $0x50] sm:$0xff] %vm786, %v5987
    %6025 = vst.msk [vmem:[#allocation3 + $0x58] sm:$0xff] %vm786, %v5989
    %6026 = vst.msk [vmem:[#allocation3 + $0x60] sm:$0xff] %vm786, %v5991
    %6027 = vst.msk [vmem:[#allocation3 + $0x68] sm:$0xff] %vm786, %v5993
    %6028 = vst.msk [vmem:[#allocation3 + $0x70] sm:$0xff] %vm786, %v5995
    %6029 = vst.msk [vmem:[#allocation3 + $0x78] sm:$0xff] %vm786, %v5997
    %v6030 = vld [vmem:[%s5341] sm:$0xe]
    %v6031 = vld [vmem:[%s5341 + $0x4] sm:$0xf]
    %v6032 = vld [vmem:[%s5341 + $0x8] sm:$0x1]
    %v6033 = vld [vmem:[%s5341 + $0xc] sm:$0xe]
    %v6034 = vld [vmem:[%s5341 + $0x10] sm:$0xf]
    %v6035 = vld [vmem:[%s5341 + $0x14] sm:$0x1]
    %v6036 = vld [vmem:[%s5341 + $0x18] sm:$0xe]
    %v6037 = vld [vmem:[%s5341 + $0x1c] sm:$0xf]
    %v6038 = vld [vmem:[%s5341 + $0x20] sm:$0x1]
    %v6039 = vld [vmem:[%s5341 + $0x24] sm:$0xe]
    %v6040 = vld [vmem:[%s5341 + $0x28] sm:$0xf]
    %v6041 = vld [vmem:[%s5341 + $0x2c] sm:$0x1]
    %v6042 = vld [vmem:[%s5341 + $0x30] sm:$0xe]
    %v6043 = vld [vmem:[%s5341 + $0x34] sm:$0xf]
    %v6044 = vld [vmem:[%s5341 + $0x38] sm:$0x1]
    %v6045 = vld [vmem:[%s5341 + $0x3c] sm:$0xe]
    %v6046 = vld [vmem:[%s5341 + $0x40] sm:$0xf]
    %v6047 = vld [vmem:[%s5341 + $0x44] sm:$0x1]
    %v6048 = vld [vmem:[%s5341 + $0x48] sm:$0xe]
    %v6049 = vld [vmem:[%s5341 + $0x4c] sm:$0xf]
    %v6050 = vld [vmem:[%s5341 + $0x50] sm:$0x1]
    %v6051 = vld [vmem:[%s5341 + $0x54] sm:$0xe]
    %v6052 = vld [vmem:[%s5341 + $0x58] sm:$0xf]
    %v6053 = vld [vmem:[%s5341 + $0x5c] sm:$0x1]
    %v6054 = vld [vmem:[%s5341 + $0x60] sm:$0xe]
    %v6055 = vld [vmem:[%s5341 + $0x64] sm:$0xf]
    %v6056 = vld [vmem:[%s5341 + $0x68] sm:$0x1]
    %v6057 = vld [vmem:[%s5341 + $0x6c] sm:$0xe]
    %v6058 = vld [vmem:[%s5341 + $0x70] sm:$0xf]
    %v6059 = vld [vmem:[%s5341 + $0x74] sm:$0x1]
    %v6060 = vld [vmem:[%s5341 + $0x78] sm:$0xe]
    %v6061 = vld [vmem:[%s5341 + $0x7c] sm:$0xf]
    %v6062 = vld [vmem:[%s5341 + $0x80] sm:$0x1]
    %v6063 = vld [vmem:[%s5341 + $0x84] sm:$0xe]
    %v6064 = vld [vmem:[%s5341 + $0x88] sm:$0xf]
    %v6065 = vld [vmem:[%s5341 + $0x8c] sm:$0x1]
    %v6066 = vld [vmem:[%s5341 + $0x90] sm:$0xe]
    %v6067 = vld [vmem:[%s5341 + $0x94] sm:$0xf]
    %v6068 = vld [vmem:[%s5341 + $0x98] sm:$0x1]
    %v6069 = vld [vmem:[%s5341 + $0x9c] sm:$0xe]
    %v6070 = vld [vmem:[%s5341 + $0xa0] sm:$0xf]
    %v6071 = vld [vmem:[%s5341 + $0xa4] sm:$0x1]
    %v6072 = vld [vmem:[%s5341 + $0xa8] sm:$0xe]
    %v6073 = vld [vmem:[%s5341 + $0xac] sm:$0xf]
    %v6074 = vld [vmem:[%s5341 + $0xb0] sm:$0x1]
    %v6075 = vld [vmem:[%s5341 + $0xb4] sm:$0xe]
    %v6076 = vld [vmem:[%s5341 + $0xb8] sm:$0xf]
    %v6077 = vld [vmem:[%s5341 + $0xbc] sm:$0x1]
    %v6126 = vrot.slane %v6030, 5
    %v6127 = vrot.slane %v6126, 4
    %v6128 = vrot.slane %v6031, 5
    %v6129 = vsel %vm901, %v6127, %v6128
    %v6130 = vrot.slane %v6128, 4
    %v6131 = vrot.slane %v6032, 5
    %v6132 = vsel %vm901, %v6130, %v6131
    %v6133 = vrot.slane %v6033, 5
    %v6134 = vrot.slane %v6133, 4
    %v6135 = vrot.slane %v6034, 5
    %v6136 = vsel %vm901, %v6134, %v6135
    %v6137 = vrot.slane %v6135, 4
    %v6138 = vrot.slane %v6035, 5
    %v6139 = vsel %vm901, %v6137, %v6138
    %v6140 = vrot.slane %v6036, 5
    %v6141 = vrot.slane %v6140, 4
    %v6142 = vrot.slane %v6037, 5
    %v6143 = vsel %vm901, %v6141, %v6142
    %v6144 = vrot.slane %v6142, 4
    %v6145 = vrot.slane %v6038, 5
    %v6146 = vsel %vm901, %v6144, %v6145
    %v6147 = vrot.slane %v6039, 5
    %v6148 = vrot.slane %v6147, 4
    %v6149 = vrot.slane %v6040, 5
    %v6150 = vsel %vm901, %v6148, %v6149
    %v6151 = vrot.slane %v6149, 4
    %v6152 = vrot.slane %v6041, 5
    %v6153 = vsel %vm901, %v6151, %v6152
    %v6154 = vrot.slane %v6042, 5
    %v6155 = vrot.slane %v6154, 4
    %v6156 = vrot.slane %v6043, 5
    %v6157 = vsel %vm901, %v6155, %v6156
    %v6158 = vrot.slane %v6156, 4
    %v6159 = vrot.slane %v6044, 5
    %v6160 = vsel %vm901, %v6158, %v6159
    %v6161 = vrot.slane %v6045, 5
    %v6162 = vrot.slane %v6161, 4
    %v6163 = vrot.slane %v6046, 5
    %v6164 = vsel %vm901, %v6162, %v6163
    %v6165 = vrot.slane %v6163, 4
    %v6166 = vrot.slane %v6047, 5
    %v6167 = vsel %vm901, %v6165, %v6166
    %v6168 = vrot.slane %v6048, 5
    %v6169 = vrot.slane %v6168, 4
    %v6170 = vrot.slane %v6049, 5
    %v6171 = vsel %vm901, %v6169, %v6170
    %v6172 = vrot.slane %v6170, 4
    %v6173 = vrot.slane %v6050, 5
    %v6174 = vsel %vm901, %v6172, %v6173
    %v6175 = vrot.slane %v6051, 5
    %v6176 = vrot.slane %v6175, 4
    %v6177 = vrot.slane %v6052, 5
    %v6178 = vsel %vm901, %v6176, %v6177
    %v6179 = vrot.slane %v6177, 4
    %v6180 = vrot.slane %v6053, 5
    %v6181 = vsel %vm901, %v6179, %v6180
    %v6182 = vrot.slane %v6054, 5
    %v6183 = vrot.slane %v6182, 4
    %v6184 = vrot.slane %v6055, 5
    %v6185 = vsel %vm901, %v6183, %v6184
    %v6186 = vrot.slane %v6184, 4
    %v6187 = vrot.slane %v6056, 5
    %v6188 = vsel %vm901, %v6186, %v6187
    %v6189 = vrot.slane %v6057, 5
    %v6190 = vrot.slane %v6189, 4
    %v6191 = vrot.slane %v6058, 5
    %v6192 = vsel %vm901, %v6190, %v6191
    %v6193 = vrot.slane %v6191, 4
    %v6194 = vrot.slane %v6059, 5
    %v6195 = vsel %vm901, %v6193, %v6194
    %v6196 = vrot.slane %v6060, 5
    %v6197 = vrot.slane %v6196, 4
    %v6198 = vrot.slane %v6061, 5
    %v6199 = vsel %vm901, %v6197, %v6198
    %v6200 = vrot.slane %v6198, 4
    %v6201 = vrot.slane %v6062, 5
    %v6202 = vsel %vm901, %v6200, %v6201
    %v6203 = vrot.slane %v6063, 5
    %v6204 = vrot.slane %v6203, 4
    %v6205 = vrot.slane %v6064, 5
    %v6206 = vsel %vm901, %v6204, %v6205
    %v6207 = vrot.slane %v6205, 4
    %v6208 = vrot.slane %v6065, 5
    %v6209 = vsel %vm901, %v6207, %v6208
    %v6210 = vrot.slane %v6066, 5
    %v6211 = vrot.slane %v6210, 4
    %v6212 = vrot.slane %v6067, 5
    %v6213 = vsel %vm901, %v6211, %v6212
    %v6214 = vrot.slane %v6212, 4
    %v6215 = vrot.slane %v6068, 5
    %v6216 = vsel %vm901, %v6214, %v6215
    %v6217 = vrot.slane %v6069, 5
    %v6218 = vrot.slane %v6217, 4
    %v6219 = vrot.slane %v6070, 5
    %v6220 = vsel %vm901, %v6218, %v6219
    %v6221 = vrot.slane %v6219, 4
    %v6222 = vrot.slane %v6071, 5
    %v6223 = vsel %vm901, %v6221, %v6222
    %v6224 = vrot.slane %v6072, 5
    %v6225 = vrot.slane %v6224, 4
    %v6226 = vrot.slane %v6073, 5
    %v6227 = vsel %vm901, %v6225, %v6226
    %v6228 = vrot.slane %v6226, 4
    %v6229 = vrot.slane %v6074, 5
    %v6230 = vsel %vm901, %v6228, %v6229
    %v6231 = vrot.slane %v6075, 5
    %v6232 = vrot.slane %v6231, 4
    %v6233 = vrot.slane %v6076, 5
    %v6234 = vsel %vm901, %v6232, %v6233
    %v6235 = vrot.slane %v6233, 4
    %v6236 = vrot.slane %v6077, 5
    %v6237 = vsel %vm901, %v6235, %v6236
    %v6238 = vunpack.c.l.b16 %v6129
    %v6239 = vunpack.c.l.b16 %v6132
    %v6240 = vunpack.c.l.b16 %v6136
    %v6241 = vunpack.c.l.b16 %v6139
    %v6242 = vunpack.c.l.b16 %v6143
    %v6243 = vunpack.c.l.b16 %v6146
    %v6244 = vunpack.c.l.b16 %v6150
    %v6245 = vunpack.c.l.b16 %v6153
    %v6246 = vunpack.c.l.b16 %v6157
    %v6247 = vunpack.c.l.b16 %v6160
    %v6248 = vunpack.c.l.b16 %v6164
    %v6249 = vunpack.c.l.b16 %v6167
    %v6250 = vunpack.c.l.b16 %v6171
    %v6251 = vunpack.c.l.b16 %v6174
    %v6252 = vunpack.c.l.b16 %v6178
    %v6253 = vunpack.c.l.b16 %v6181
    %v6254 = vunpack.c.l.b16 %v6185
    %v6255 = vunpack.c.l.b16 %v6188
    %v6256 = vunpack.c.l.b16 %v6192
    %v6257 = vunpack.c.l.b16 %v6195
    %v6258 = vunpack.c.l.b16 %v6199
    %v6259 = vunpack.c.l.b16 %v6202
    %v6260 = vunpack.c.l.b16 %v6206
    %v6261 = vunpack.c.l.b16 %v6209
    %v6262 = vunpack.c.l.b16 %v6213
    %v6263 = vunpack.c.l.b16 %v6216
    %v6264 = vunpack.c.l.b16 %v6220
    %v6265 = vunpack.c.l.b16 %v6223
    %v6266 = vunpack.c.l.b16 %v6227
    %v6267 = vunpack.c.l.b16 %v6230
    %v6268 = vunpack.c.l.b16 %v6234
    %v6269 = vunpack.c.l.b16 %v6237
    %v6270 = vpack.c.b16 %v6239, %v6238
    %v6271 = vpack.c.b16 %v6241, %v6240
    %v6272 = vpack.c.b16 %v6243, %v6242
    %v6273 = vpack.c.b16 %v6245, %v6244
    %v6274 = vpack.c.b16 %v6247, %v6246
    %v6275 = vpack.c.b16 %v6249, %v6248
    %v6276 = vpack.c.b16 %v6251, %v6250
    %v6277 = vpack.c.b16 %v6253, %v6252
    %v6278 = vpack.c.b16 %v6255, %v6254
    %v6279 = vpack.c.b16 %v6257, %v6256
    %v6280 = vpack.c.b16 %v6259, %v6258
    %v6281 = vpack.c.b16 %v6261, %v6260
    %v6282 = vpack.c.b16 %v6263, %v6262
    %v6283 = vpack.c.b16 %v6265, %v6264
    %v6284 = vpack.c.b16 %v6267, %v6266
    %v6285 = vpack.c.b16 %v6269, %v6268
    %6286 = vrot.lane.b32.xlu0 %v6270, 6
    %v6287 = vpop.permute.xlu0 %6286
    %6288 = vrot.lane.b32.xlu0 %v6271, 6
    %v6289 = vpop.permute.xlu0 %6288
    %6290 = vrot.lane.b32.xlu0 %v6272, 6
    %v6291 = vpop.permute.xlu0 %6290
    %6292 = vrot.lane.b32.xlu0 %v6273, 6
    %v6293 = vpop.permute.xlu0 %6292
    %6294 = vrot.lane.b32.xlu0 %v6274, 6
    %v6295 = vpop.permute.xlu0 %6294
    %6296 = vrot.lane.b32.xlu0 %v6275, 6
    %v6297 = vpop.permute.xlu0 %6296
    %6298 = vrot.lane.b32.xlu0 %v6276, 6
    %v6299 = vpop.permute.xlu0 %6298
    %6300 = vrot.lane.b32.xlu0 %v6277, 6
    %v6301 = vpop.permute.xlu0 %6300
    %6302 = vrot.lane.b32.xlu0 %v6278, 6
    %v6303 = vpop.permute.xlu0 %6302
    %6304 = vrot.lane.b32.xlu0 %v6279, 6
    %v6305 = vpop.permute.xlu0 %6304
    %6306 = vrot.lane.b32.xlu0 %v6280, 6
    %v6307 = vpop.permute.xlu0 %6306
    %6308 = vrot.lane.b32.xlu0 %v6281, 6
    %v6309 = vpop.permute.xlu0 %6308
    %6310 = vrot.lane.b32.xlu0 %v6282, 6
    %v6311 = vpop.permute.xlu0 %6310
    %6312 = vrot.lane.b32.xlu0 %v6283, 6
    %v6313 = vpop.permute.xlu0 %6312
    %6314 = vrot.lane.b32.xlu0 %v6284, 6
    %v6315 = vpop.permute.xlu0 %6314
    %6316 = vrot.lane.b32.xlu0 %v6285, 6
    %v6317 = vpop.permute.xlu0 %6316
    %6334 = vst.msk [vmem:[#allocation3] sm:$0xff] %vm1110, %v6287
    %6335 = vst.msk [vmem:[#allocation3 + $0x8] sm:$0xff] %vm1110, %v6289
    %6336 = vst.msk [vmem:[#allocation3 + $0x10] sm:$0xff] %vm1110, %v6291
    %6337 = vst.msk [vmem:[#allocation3 + $0x18] sm:$0xff] %vm1110, %v6293
    %6338 = vst.msk [vmem:[#allocation3 + $0x20] sm:$0xff] %vm1110, %v6295
    %6339 = vst.msk [vmem:[#allocation3 + $0x28] sm:$0xff] %vm1110, %v6297
    %6340 = vst.msk [vmem:[#allocation3 + $0x30] sm:$0xff] %vm1110, %v6299
    %6341 = vst.msk [vmem:[#allocation3 + $0x38] sm:$0xff] %vm1110, %v6301
    %6342 = vst.msk [vmem:[#allocation3 + $0x40] sm:$0xff] %vm1110, %v6303
    %6343 = vst.msk [vmem:[#allocation3 + $0x48] sm:$0xff] %vm1110, %v6305
    %6344 = vst.msk [vmem:[#allocation3 + $0x50] sm:$0xff] %vm1110, %v6307
    %6345 = vst.msk [vmem:[#allocation3 + $0x58] sm:$0xff] %vm1110, %v6309
    %6346 = vst.msk [vmem:[#allocation3 + $0x60] sm:$0xff] %vm1110, %v6311
    %6347 = vst.msk [vmem:[#allocation3 + $0x68] sm:$0xff] %vm1110, %v6313
    %6348 = vst.msk [vmem:[#allocation3 + $0x70] sm:$0xff] %vm1110, %v6315
    %6349 = vst.msk [vmem:[#allocation3 + $0x78] sm:$0xff] %vm1110, %v6317
    %s6350 = scalar_lea.vmem %s0, 228
    %v6351 = vld [vmem:[%s6350] sm:$0xf]
    %v6352 = vld [vmem:[%s6350 + $0x4] sm:$0xf]
    %v6353 = vld [vmem:[%s6350 + $0xc] sm:$0xf]
    %v6354 = vld [vmem:[%s6350 + $0x10] sm:$0xf]
    %v6355 = vld [vmem:[%s6350 + $0x18] sm:$0xf]
    %v6356 = vld [vmem:[%s6350 + $0x1c] sm:$0xf]
    %v6357 = vld [vmem:[%s6350 + $0x24] sm:$0xf]
    %v6358 = vld [vmem:[%s6350 + $0x28] sm:$0xf]
    %v6359 = vld [vmem:[%s6350 + $0x30] sm:$0xf]
    %v6360 = vld [vmem:[%s6350 + $0x34] sm:$0xf]
    %v6361 = vld [vmem:[%s6350 + $0x3c] sm:$0xf]
    %v6362 = vld [vmem:[%s6350 + $0x40] sm:$0xf]
    %v6363 = vld [vmem:[%s6350 + $0x48] sm:$0xf]
    %v6364 = vld [vmem:[%s6350 + $0x4c] sm:$0xf]
    %v6365 = vld [vmem:[%s6350 + $0x54] sm:$0xf]
    %v6366 = vld [vmem:[%s6350 + $0x58] sm:$0xf]
    %v6367 = vld [vmem:[%s6350 + $0x60] sm:$0xf]
    %v6368 = vld [vmem:[%s6350 + $0x64] sm:$0xf]
    %v6369 = vld [vmem:[%s6350 + $0x6c] sm:$0xf]
    %v6370 = vld [vmem:[%s6350 + $0x70] sm:$0xf]
    %v6371 = vld [vmem:[%s6350 + $0x78] sm:$0xf]
    %v6372 = vld [vmem:[%s6350 + $0x7c] sm:$0xf]
    %v6373 = vld [vmem:[%s6350 + $0x84] sm:$0xf]
    %v6374 = vld [vmem:[%s6350 + $0x88] sm:$0xf]
    %v6375 = vld [vmem:[%s6350 + $0x90] sm:$0xf]
    %v6376 = vld [vmem:[%s6350 + $0x94] sm:$0xf]
    %v6377 = vld [vmem:[%s6350 + $0x9c] sm:$0xf]
    %v6378 = vld [vmem:[%s6350 + $0xa0] sm:$0xf]
    %v6379 = vld [vmem:[%s6350 + $0xa8] sm:$0xf]
    %v6380 = vld [vmem:[%s6350 + $0xac] sm:$0xf]
    %v6381 = vld [vmem:[%s6350 + $0xb4] sm:$0xf]
    %v6382 = vld [vmem:[%s6350 + $0xb8] sm:$0xf]
    %v6415 = vunpack.c.l.b16 %v6351
    %v6416 = vunpack.c.l.b16 %v6352
    %v6417 = vunpack.c.l.b16 %v6353
    %v6418 = vunpack.c.l.b16 %v6354
    %v6419 = vunpack.c.l.b16 %v6355
    %v6420 = vunpack.c.l.b16 %v6356
    %v6421 = vunpack.c.l.b16 %v6357
    %v6422 = vunpack.c.l.b16 %v6358
    %v6423 = vunpack.c.l.b16 %v6359
    %v6424 = vunpack.c.l.b16 %v6360
    %v6425 = vunpack.c.l.b16 %v6361
    %v6426 = vunpack.c.l.b16 %v6362
    %v6427 = vunpack.c.l.b16 %v6363
    %v6428 = vunpack.c.l.b16 %v6364
    %v6429 = vunpack.c.l.b16 %v6365
    %v6430 = vunpack.c.l.b16 %v6366
    %v6431 = vunpack.c.l.b16 %v6367
    %v6432 = vunpack.c.l.b16 %v6368
    %v6433 = vunpack.c.l.b16 %v6369
    %v6434 = vunpack.c.l.b16 %v6370
    %v6435 = vunpack.c.l.b16 %v6371
    %v6436 = vunpack.c.l.b16 %v6372
    %v6437 = vunpack.c.l.b16 %v6373
    %v6438 = vunpack.c.l.b16 %v6374
    %v6439 = vunpack.c.l.b16 %v6375
    %v6440 = vunpack.c.l.b16 %v6376
    %v6441 = vunpack.c.l.b16 %v6377
    %v6442 = vunpack.c.l.b16 %v6378
    %v6443 = vunpack.c.l.b16 %v6379
    %v6444 = vunpack.c.l.b16 %v6380
    %v6445 = vunpack.c.l.b16 %v6381
    %v6446 = vunpack.c.l.b16 %v6382
    %v6447 = vpack.c.b16 %v6416, %v6415
    %v6448 = vpack.c.b16 %v6418, %v6417
    %v6449 = vpack.c.b16 %v6420, %v6419
    %v6450 = vpack.c.b16 %v6422, %v6421
    %v6451 = vpack.c.b16 %v6424, %v6423
    %v6452 = vpack.c.b16 %v6426, %v6425
    %v6453 = vpack.c.b16 %v6428, %v6427
    %v6454 = vpack.c.b16 %v6430, %v6429
    %v6455 = vpack.c.b16 %v6432, %v6431
    %v6456 = vpack.c.b16 %v6434, %v6433
    %v6457 = vpack.c.b16 %v6436, %v6435
    %v6458 = vpack.c.b16 %v6438, %v6437
    %v6459 = vpack.c.b16 %v6440, %v6439
    %v6460 = vpack.c.b16 %v6442, %v6441
    %v6461 = vpack.c.b16 %v6444, %v6443
    %v6462 = vpack.c.b16 %v6446, %v6445
    %6463 = vrot.lane.b32.xlu0 %v6447, 9
    %v6464 = vpop.permute.xlu0 %6463
    %6465 = vrot.lane.b32.xlu0 %v6448, 9
    %v6466 = vpop.permute.xlu0 %6465
    %6467 = vrot.lane.b32.xlu0 %v6449, 9
    %v6468 = vpop.permute.xlu0 %6467
    %6469 = vrot.lane.b32.xlu0 %v6450, 9
    %v6470 = vpop.permute.xlu0 %6469
    %6471 = vrot.lane.b32.xlu0 %v6451, 9
    %v6472 = vpop.permute.xlu0 %6471
    %6473 = vrot.lane.b32.xlu0 %v6452, 9
    %v6474 = vpop.permute.xlu0 %6473
    %6475 = vrot.lane.b32.xlu0 %v6453, 9
    %v6476 = vpop.permute.xlu0 %6475
    %6477 = vrot.lane.b32.xlu0 %v6454, 9
    %v6478 = vpop.permute.xlu0 %6477
    %6479 = vrot.lane.b32.xlu0 %v6455, 9
    %v6480 = vpop.permute.xlu0 %6479
    %6481 = vrot.lane.b32.xlu0 %v6456, 9
    %v6482 = vpop.permute.xlu0 %6481
    %6483 = vrot.lane.b32.xlu0 %v6457, 9
    %v6484 = vpop.permute.xlu0 %6483
    %6485 = vrot.lane.b32.xlu0 %v6458, 9
    %v6486 = vpop.permute.xlu0 %6485
    %6487 = vrot.lane.b32.xlu0 %v6459, 9
    %v6488 = vpop.permute.xlu0 %6487
    %6489 = vrot.lane.b32.xlu0 %v6460, 9
    %v6490 = vpop.permute.xlu0 %6489
    %6491 = vrot.lane.b32.xlu0 %v6461, 9
    %v6492 = vpop.permute.xlu0 %6491
    %6493 = vrot.lane.b32.xlu0 %v6462, 9
    %v6494 = vpop.permute.xlu0 %6493
    %6511 = vst.msk [vmem:[#allocation3] sm:$0xff] %vm1288, %v6464
    %6512 = vst.msk [vmem:[#allocation3 + $0x8] sm:$0xff] %vm1288, %v6466
    %6513 = vst.msk [vmem:[#allocation3 + $0x10] sm:$0xff] %vm1288, %v6468
    %6514 = vst.msk [vmem:[#allocation3 + $0x18] sm:$0xff] %vm1288, %v6470
    %6515 = vst.msk [vmem:[#allocation3 + $0x20] sm:$0xff] %vm1288, %v6472
    %6516 = vst.msk [vmem:[#allocation3 + $0x28] sm:$0xff] %vm1288, %v6474
    %6517 = vst.msk [vmem:[#allocation3 + $0x30] sm:$0xff] %vm1288, %v6476
    %6518 = vst.msk [vmem:[#allocation3 + $0x38] sm:$0xff] %vm1288, %v6478
    %6519 = vst.msk [vmem:[#allocation3 + $0x40] sm:$0xff] %vm1288, %v6480
    %6520 = vst.msk [vmem:[#allocation3 + $0x48] sm:$0xff] %vm1288, %v6482
    %6521 = vst.msk [vmem:[#allocation3 + $0x50] sm:$0xff] %vm1288, %v6484
    %6522 = vst.msk [vmem:[#allocation3 + $0x58] sm:$0xff] %vm1288, %v6486
    %6523 = vst.msk [vmem:[#allocation3 + $0x60] sm:$0xff] %vm1288, %v6488
    %6524 = vst.msk [vmem:[#allocation3 + $0x68] sm:$0xff] %vm1288, %v6490
    %6525 = vst.msk [vmem:[#allocation3 + $0x70] sm:$0xff] %vm1288, %v6492
    %6526 = vst.msk [vmem:[#allocation3 + $0x78] sm:$0xff] %vm1288, %v6494
    %v6527 = vld [vmem:[%s6350] sm:$0xf]
    %v6528 = vld [vmem:[%s6350 + $0x4] sm:$0xf]
    %v6529 = vld [vmem:[%s6350 + $0x8] sm:$0x1]
    %v6530 = vld [vmem:[%s6350 + $0xc] sm:$0xf]
    %v6531 = vld [vmem:[%s6350 + $0x10] sm:$0xf]
    %v6532 = vld [vmem:[%s6350 + $0x14] sm:$0x1]
    %v6533 = vld [vmem:[%s6350 + $0x18] sm:$0xf]
    %v6534 = vld [vmem:[%s6350 + $0x1c] sm:$0xf]
    %v6535 = vld [vmem:[%s6350 + $0x20] sm:$0x1]
    %v6536 = vld [vmem:[%s6350 + $0x24] sm:$0xf]
    %v6537 = vld [vmem:[%s6350 + $0x28] sm:$0xf]
    %v6538 = vld [vmem:[%s6350 + $0x2c] sm:$0x1]
    %v6539 = vld [vmem:[%s6350 + $0x30] sm:$0xf]
    %v6540 = vld [vmem:[%s6350 + $0x34] sm:$0xf]
    %v6541 = vld [vmem:[%s6350 + $0x38] sm:$0x1]
    %v6542 = vld [vmem:[%s6350 + $0x3c] sm:$0xf]
    %v6543 = vld [vmem:[%s6350 + $0x40] sm:$0xf]
    %v6544 = vld [vmem:[%s6350 + $0x44] sm:$0x1]
    %v6545 = vld [vmem:[%s6350 + $0x48] sm:$0xf]
    %v6546 = vld [vmem:[%s6350 + $0x4c] sm:$0xf]
    %v6547 = vld [vmem:[%s6350 + $0x50] sm:$0x1]
    %v6548 = vld [vmem:[%s6350 + $0x54] sm:$0xf]
    %v6549 = vld [vmem:[%s6350 + $0x58] sm:$0xf]
    %v6550 = vld [vmem:[%s6350 + $0x5c] sm:$0x1]
    %v6551 = vld [vmem:[%s6350 + $0x60] sm:$0xf]
    %v6552 = vld [vmem:[%s6350 + $0x64] sm:$0xf]
    %v6553 = vld [vmem:[%s6350 + $0x68] sm:$0x1]
    %v6554 = vld [vmem:[%s6350 + $0x6c] sm:$0xf]
    %v6555 = vld [vmem:[%s6350 + $0x70] sm:$0xf]
    %v6556 = vld [vmem:[%s6350 + $0x74] sm:$0x1]
    %v6557 = vld [vmem:[%s6350 + $0x78] sm:$0xf]
    %v6558 = vld [vmem:[%s6350 + $0x7c] sm:$0xf]
    %v6559 = vld [vmem:[%s6350 + $0x80] sm:$0x1]
    %v6560 = vld [vmem:[%s6350 + $0x84] sm:$0xf]
    %v6561 = vld [vmem:[%s6350 + $0x88] sm:$0xf]
    %v6562 = vld [vmem:[%s6350 + $0x8c] sm:$0x1]
    %v6563 = vld [vmem:[%s6350 + $0x90] sm:$0xf]
    %v6564 = vld [vmem:[%s6350 + $0x94] sm:$0xf]
    %v6565 = vld [vmem:[%s6350 + $0x98] sm:$0x1]
    %v6566 = vld [vmem:[%s6350 + $0x9c] sm:$0xf]
    %v6567 = vld [vmem:[%s6350 + $0xa0] sm:$0xf]
    %v6568 = vld [vmem:[%s6350 + $0xa4] sm:$0x1]
    %v6569 = vld [vmem:[%s6350 + $0xa8] sm:$0xf]
    %v6570 = vld [vmem:[%s6350 + $0xac] sm:$0xf]
    %v6571 = vld [vmem:[%s6350 + $0xb0] sm:$0x1]
    %v6572 = vld [vmem:[%s6350 + $0xb4] sm:$0xf]
    %v6573 = vld [vmem:[%s6350 + $0xb8] sm:$0xf]
    %v6574 = vld [vmem:[%s6350 + $0xbc] sm:$0x1]
    %v6576 = vshrl.u32 %v6527, 16
    %v6578 = vrot.slane %v6576, 4
    %v6579 = vshll.u32 %v6527, 16
    %v6581 = vrot.slane %v6579, 5
    %v6582 = vor.u32 %v6578, %v6581
    %v6583 = vrot.slane %v6582, 4
    %v6585 = vshll.u32 %v6528, 16
    %v6587 = vrot.slane %v6585, 5
    %v6588 = vsel %vm305, %v6583, %v6587
    %v6589 = vshrl.u32 %v6528, 16
    %v6591 = vrot.slane %v6589, 4
    %v6592 = vor.u32 %v6591, %v6587
    %v6593 = vrot.slane %v6592, 4
    %v6595 = vshll.u32 %v6529, 16
    %v6597 = vrot.slane %v6595, 5
    %v6598 = vsel %vm305, %v6593, %v6597
    %v6600 = vshrl.u32 %v6530, 16
    %v6602 = vrot.slane %v6600, 4
    %v6603 = vshll.u32 %v6530, 16
    %v6605 = vrot.slane %v6603, 5
    %v6606 = vor.u32 %v6602, %v6605
    %v6607 = vrot.slane %v6606, 4
    %v6609 = vshll.u32 %v6531, 16
    %v6611 = vrot.slane %v6609, 5
    %v6612 = vsel %vm305, %v6607, %v6611
    %v6613 = vshrl.u32 %v6531, 16
    %v6615 = vrot.slane %v6613, 4
    %v6616 = vor.u32 %v6615, %v6611
    %v6617 = vrot.slane %v6616, 4
    %v6619 = vshll.u32 %v6532, 16
    %v6621 = vrot.slane %v6619, 5
    %v6622 = vsel %vm305, %v6617, %v6621
    %v6624 = vshrl.u32 %v6533, 16
    %v6626 = vrot.slane %v6624, 4
    %v6627 = vshll.u32 %v6533, 16
    %v6629 = vrot.slane %v6627, 5
    %v6630 = vor.u32 %v6626, %v6629
    %v6631 = vrot.slane %v6630, 4
    %v6633 = vshll.u32 %v6534, 16
    %v6635 = vrot.slane %v6633, 5
    %v6636 = vsel %vm305, %v6631, %v6635
    %v6637 = vshrl.u32 %v6534, 16
    %v6639 = vrot.slane %v6637, 4
    %v6640 = vor.u32 %v6639, %v6635
    %v6641 = vrot.slane %v6640, 4
    %v6643 = vshll.u32 %v6535, 16
    %v6645 = vrot.slane %v6643, 5
    %v6646 = vsel %vm305, %v6641, %v6645
    %v6648 = vshrl.u32 %v6536, 16
    %v6650 = vrot.slane %v6648, 4
    %v6651 = vshll.u32 %v6536, 16
    %v6653 = vrot.slane %v6651, 5
    %v6654 = vor.u32 %v6650, %v6653
    %v6655 = vrot.slane %v6654, 4
    %v6657 = vshll.u32 %v6537, 16
    %v6659 = vrot.slane %v6657, 5
    %v6660 = vsel %vm305, %v6655, %v6659
    %v6661 = vshrl.u32 %v6537, 16
    %v6663 = vrot.slane %v6661, 4
    %v6664 = vor.u32 %v6663, %v6659
    %v6665 = vrot.slane %v6664, 4
    %v6667 = vshll.u32 %v6538, 16
    %v6669 = vrot.slane %v6667, 5
    %v6670 = vsel %vm305, %v6665, %v6669
    %v6672 = vshrl.u32 %v6539, 16
    %v6674 = vrot.slane %v6672, 4
    %v6675 = vshll.u32 %v6539, 16
    %v6677 = vrot.slane %v6675, 5
    %v6678 = vor.u32 %v6674, %v6677
    %v6679 = vrot.slane %v6678, 4
    %v6681 = vshll.u32 %v6540, 16
    %v6683 = vrot.slane %v6681, 5
    %v6684 = vsel %vm305, %v6679, %v6683
    %v6685 = vshrl.u32 %v6540, 16
    %v6687 = vrot.slane %v6685, 4
    %v6688 = vor.u32 %v6687, %v6683
    %v6689 = vrot.slane %v6688, 4
    %v6691 = vshll.u32 %v6541, 16
    %v6693 = vrot.slane %v6691, 5
    %v6694 = vsel %vm305, %v6689, %v6693
    %v6696 = vshrl.u32 %v6542, 16
    %v6698 = vrot.slane %v6696, 4
    %v6699 = vshll.u32 %v6542, 16
    %v6701 = vrot.slane %v6699, 5
    %v6702 = vor.u32 %v6698, %v6701
    %v6703 = vrot.slane %v6702, 4
    %v6705 = vshll.u32 %v6543, 16
    %v6707 = vrot.slane %v6705, 5
    %v6708 = vsel %vm305, %v6703, %v6707
    %v6709 = vshrl.u32 %v6543, 16
    %v6711 = vrot.slane %v6709, 4
    %v6712 = vor.u32 %v6711, %v6707
    %v6713 = vrot.slane %v6712, 4
    %v6715 = vshll.u32 %v6544, 16
    %v6717 = vrot.slane %v6715, 5
    %v6718 = vsel %vm305, %v6713, %v6717
    %v6720 = vshrl.u32 %v6545, 16
    %v6722 = vrot.slane %v6720, 4
    %v6723 = vshll.u32 %v6545, 16
    %v6725 = vrot.slane %v6723, 5
    %v6726 = vor.u32 %v6722, %v6725
    %v6727 = vrot.slane %v6726, 4
    %v6729 = vshll.u32 %v6546, 16
    %v6731 = vrot.slane %v6729, 5
    %v6732 = vsel %vm305, %v6727, %v6731
    %v6733 = vshrl.u32 %v6546, 16
    %v6735 = vrot.slane %v6733, 4
    %v6736 = vor.u32 %v6735, %v6731
    %v6737 = vrot.slane %v6736, 4
    %v6739 = vshll.u32 %v6547, 16
    %v6741 = vrot.slane %v6739, 5
    %v6742 = vsel %vm305, %v6737, %v6741
    %v6744 = vshrl.u32 %v6548, 16
    %v6746 = vrot.slane %v6744, 4
    %v6747 = vshll.u32 %v6548, 16
    %v6749 = vrot.slane %v6747, 5
    %v6750 = vor.u32 %v6746, %v6749
    %v6751 = vrot.slane %v6750, 4
    %v6753 = vshll.u32 %v6549, 16
    %v6755 = vrot.slane %v6753, 5
    %v6756 = vsel %vm305, %v6751, %v6755
    %v6757 = vshrl.u32 %v6549, 16
    %v6759 = vrot.slane %v6757, 4
    %v6760 = vor.u32 %v6759, %v6755
    %v6761 = vrot.slane %v6760, 4
    %v6763 = vshll.u32 %v6550, 16
    %v6765 = vrot.slane %v6763, 5
    %v6766 = vsel %vm305, %v6761, %v6765
    %v6768 = vshrl.u32 %v6551, 16
    %v6770 = vrot.slane %v6768, 4
    %v6771 = vshll.u32 %v6551, 16
    %v6773 = vrot.slane %v6771, 5
    %v6774 = vor.u32 %v6770, %v6773
    %v6775 = vrot.slane %v6774, 4
    %v6777 = vshll.u32 %v6552, 16
    %v6779 = vrot.slane %v6777, 5
    %v6780 = vsel %vm305, %v6775, %v6779
    %v6781 = vshrl.u32 %v6552, 16
    %v6783 = vrot.slane %v6781, 4
    %v6784 = vor.u32 %v6783, %v6779
    %v6785 = vrot.slane %v6784, 4
    %v6787 = vshll.u32 %v6553, 16
    %v6789 = vrot.slane %v6787, 5
    %v6790 = vsel %vm305, %v6785, %v6789
    %v6792 = vshrl.u32 %v6554, 16
    %v6794 = vrot.slane %v6792, 4
    %v6795 = vshll.u32 %v6554, 16
    %v6797 = vrot.slane %v6795, 5
    %v6798 = vor.u32 %v6794, %v6797
    %v6799 = vrot.slane %v6798, 4
    %v6801 = vshll.u32 %v6555, 16
    %v6803 = vrot.slane %v6801, 5
    %v6804 = vsel %vm305, %v6799, %v6803
    %v6805 = vshrl.u32 %v6555, 16
    %v6807 = vrot.slane %v6805, 4
    %v6808 = vor.u32 %v6807, %v6803
    %v6809 = vrot.slane %v6808, 4
    %v6811 = vshll.u32 %v6556, 16
    %v6813 = vrot.slane %v6811, 5
    %v6814 = vsel %vm305, %v6809, %v6813
    %v6816 = vshrl.u32 %v6557, 16
    %v6818 = vrot.slane %v6816, 4
    %v6819 = vshll.u32 %v6557, 16
    %v6821 = vrot.slane %v6819, 5
    %v6822 = vor.u32 %v6818, %v6821
    %v6823 = vrot.slane %v6822, 4
    %v6825 = vshll.u32 %v6558, 16
    %v6827 = vrot.slane %v6825, 5
    %v6828 = vsel %vm305, %v6823, %v6827
    %v6829 = vshrl.u32 %v6558, 16
    %v6831 = vrot.slane %v6829, 4
    %v6832 = vor.u32 %v6831, %v6827
    %v6833 = vrot.slane %v6832, 4
    %v6835 = vshll.u32 %v6559, 16
    %v6837 = vrot.slane %v6835, 5
    %v6838 = vsel %vm305, %v6833, %v6837
    %v6840 = vshrl.u32 %v6560, 16
    %v6842 = vrot.slane %v6840, 4
    %v6843 = vshll.u32 %v6560, 16
    %v6845 = vrot.slane %v6843, 5
    %v6846 = vor.u32 %v6842, %v6845
    %v6847 = vrot.slane %v6846, 4
    %v6849 = vshll.u32 %v6561, 16
    %v6851 = vrot.slane %v6849, 5
    %v6852 = vsel %vm305, %v6847, %v6851
    %v6853 = vshrl.u32 %v6561, 16
    %v6855 = vrot.slane %v6853, 4
    %v6856 = vor.u32 %v6855, %v6851
    %v6857 = vrot.slane %v6856, 4
    %v6859 = vshll.u32 %v6562, 16
    %v6861 = vrot.slane %v6859, 5
    %v6862 = vsel %vm305, %v6857, %v6861
    %v6864 = vshrl.u32 %v6563, 16
    %v6866 = vrot.slane %v6864, 4
    %v6867 = vshll.u32 %v6563, 16
    %v6869 = vrot.slane %v6867, 5
    %v6870 = vor.u32 %v6866, %v6869
    %v6871 = vrot.slane %v6870, 4
    %v6873 = vshll.u32 %v6564, 16
    %v6875 = vrot.slane %v6873, 5
    %v6876 = vsel %vm305, %v6871, %v6875
    %v6877 = vshrl.u32 %v6564, 16
    %v6879 = vrot.slane %v6877, 4
    %v6880 = vor.u32 %v6879, %v6875
    %v6881 = vrot.slane %v6880, 4
    %v6883 = vshll.u32 %v6565, 16
    %v6885 = vrot.slane %v6883, 5
    %v6886 = vsel %vm305, %v6881, %v6885
    %v6888 = vshrl.u32 %v6566, 16
    %v6890 = vrot.slane %v6888, 4
    %v6891 = vshll.u32 %v6566, 16
    %v6893 = vrot.slane %v6891, 5
    %v6894 = vor.u32 %v6890, %v6893
    %v6895 = vrot.slane %v6894, 4
    %v6897 = vshll.u32 %v6567, 16
    %v6899 = vrot.slane %v6897, 5
    %v6900 = vsel %vm305, %v6895, %v6899
    %v6901 = vshrl.u32 %v6567, 16
    %v6903 = vrot.slane %v6901, 4
    %v6904 = vor.u32 %v6903, %v6899
    %v6905 = vrot.slane %v6904, 4
    %v6907 = vshll.u32 %v6568, 16
    %v6909 = vrot.slane %v6907, 5
    %v6910 = vsel %vm305, %v6905, %v6909
    %v6912 = vshrl.u32 %v6569, 16
    %v6914 = vrot.slane %v6912, 4
    %v6915 = vshll.u32 %v6569, 16
    %v6917 = vrot.slane %v6915, 5
    %v6918 = vor.u32 %v6914, %v6917
    %v6919 = vrot.slane %v6918, 4
    %v6921 = vshll.u32 %v6570, 16
    %v6923 = vrot.slane %v6921, 5
    %v6924 = vsel %vm305, %v6919, %v6923
    %v6925 = vshrl.u32 %v6570, 16
    %v6927 = vrot.slane %v6925, 4
    %v6928 = vor.u32 %v6927, %v6923
    %v6929 = vrot.slane %v6928, 4
    %v6931 = vshll.u32 %v6571, 16
    %v6933 = vrot.slane %v6931, 5
    %v6934 = vsel %vm305, %v6929, %v6933
    %v6936 = vshrl.u32 %v6572, 16
    %v6938 = vrot.slane %v6936, 4
    %v6939 = vshll.u32 %v6572, 16
    %v6941 = vrot.slane %v6939, 5
    %v6942 = vor.u32 %v6938, %v6941
    %v6943 = vrot.slane %v6942, 4
    %v6945 = vshll.u32 %v6573, 16
    %v6947 = vrot.slane %v6945, 5
    %v6948 = vsel %vm305, %v6943, %v6947
    %v6949 = vshrl.u32 %v6573, 16
    %v6951 = vrot.slane %v6949, 4
    %v6952 = vor.u32 %v6951, %v6947
    %v6953 = vrot.slane %v6952, 4
    %v6955 = vshll.u32 %v6574, 16
    %v6957 = vrot.slane %v6955, 5
    %v6958 = vsel %vm305, %v6953, %v6957
    %v6959 = vunpack.c.l.b16 %v6588
    %v6960 = vunpack.c.l.b16 %v6598
    %v6961 = vunpack.c.l.b16 %v6612
    %v6962 = vunpack.c.l.b16 %v6622
    %v6963 = vunpack.c.l.b16 %v6636
    %v6964 = vunpack.c.l.b16 %v6646
    %v6965 = vunpack.c.l.b16 %v6660
    %v6966 = vunpack.c.l.b16 %v6670
    %v6967 = vunpack.c.l.b16 %v6684
    %v6968 = vunpack.c.l.b16 %v6694
    %v6969 = vunpack.c.l.b16 %v6708
    %v6970 = vunpack.c.l.b16 %v6718
    %v6971 = vunpack.c.l.b16 %v6732
    %v6972 = vunpack.c.l.b16 %v6742
    %v6973 = vunpack.c.l.b16 %v6756
    %v6974 = vunpack.c.l.b16 %v6766
    %v6975 = vunpack.c.l.b16 %v6780
    %v6976 = vunpack.c.l.b16 %v6790
    %v6977 = vunpack.c.l.b16 %v6804
    %v6978 = vunpack.c.l.b16 %v6814
    %v6979 = vunpack.c.l.b16 %v6828
    %v6980 = vunpack.c.l.b16 %v6838
    %v6981 = vunpack.c.l.b16 %v6852
    %v6982 = vunpack.c.l.b16 %v6862
    %v6983 = vunpack.c.l.b16 %v6876
    %v6984 = vunpack.c.l.b16 %v6886
    %v6985 = vunpack.c.l.b16 %v6900
    %v6986 = vunpack.c.l.b16 %v6910
    %v6987 = vunpack.c.l.b16 %v6924
    %v6988 = vunpack.c.l.b16 %v6934
    %v6989 = vunpack.c.l.b16 %v6948
    %v6990 = vunpack.c.l.b16 %v6958
    %v6991 = vpack.c.b16 %v6960, %v6959
    %v6992 = vpack.c.b16 %v6962, %v6961
    %v6993 = vpack.c.b16 %v6964, %v6963
    %v6994 = vpack.c.b16 %v6966, %v6965
    %v6995 = vpack.c.b16 %v6968, %v6967
    %v6996 = vpack.c.b16 %v6970, %v6969
    %v6997 = vpack.c.b16 %v6972, %v6971
    %v6998 = vpack.c.b16 %v6974, %v6973
    %v6999 = vpack.c.b16 %v6976, %v6975
    %v7000 = vpack.c.b16 %v6978, %v6977
    %v7001 = vpack.c.b16 %v6980, %v6979
    %v7002 = vpack.c.b16 %v6982, %v6981
    %v7003 = vpack.c.b16 %v6984, %v6983
    %v7004 = vpack.c.b16 %v6986, %v6985
    %v7005 = vpack.c.b16 %v6988, %v6987
    %v7006 = vpack.c.b16 %v6990, %v6989
    %7007 = vrot.lane.b32.xlu0 %v6991, 12
    %v7008 = vpop.permute.xlu0 %7007
    %7009 = vrot.lane.b32.xlu0 %v6992, 12
    %v7010 = vpop.permute.xlu0 %7009
    %7011 = vrot.lane.b32.xlu0 %v6993, 12
    %v7012 = vpop.permute.xlu0 %7011
    %7013 = vrot.lane.b32.xlu0 %v6994, 12
    %v7014 = vpop.permute.xlu0 %7013
    %7015 = vrot.lane.b32.xlu0 %v6995, 12
    %v7016 = vpop.permute.xlu0 %7015
    %7017 = vrot.lane.b32.xlu0 %v6996, 12
    %v7018 = vpop.permute.xlu0 %7017
    %7019 = vrot.lane.b32.xlu0 %v6997, 12
    %v7020 = vpop.permute.xlu0 %7019
    %7021 = vrot.lane.b32.xlu0 %v6998, 12
    %v7022 = vpop.permute.xlu0 %7021
    %7023 = vrot.lane.b32.xlu0 %v6999, 12
    %v7024 = vpop.permute.xlu0 %7023
    %7025 = vrot.lane.b32.xlu0 %v7000, 12
    %v7026 = vpop.permute.xlu0 %7025
    %7027 = vrot.lane.b32.xlu0 %v7001, 12
    %v7028 = vpop.permute.xlu0 %7027
    %7029 = vrot.lane.b32.xlu0 %v7002, 12
    %v7030 = vpop.permute.xlu0 %7029
    %7031 = vrot.lane.b32.xlu0 %v7003, 12
    %v7032 = vpop.permute.xlu0 %7031
    %7033 = vrot.lane.b32.xlu0 %v7004, 12
    %v7034 = vpop.permute.xlu0 %7033
    %7035 = vrot.lane.b32.xlu0 %v7005, 12
    %v7036 = vpop.permute.xlu0 %7035
    %7037 = vrot.lane.b32.xlu0 %v7006, 12
    %v7038 = vpop.permute.xlu0 %7037
    %7055 = vst.msk [vmem:[#allocation3] sm:$0xff] %vm1833, %v7008
    %7056 = vst.msk [vmem:[#allocation3 + $0x8] sm:$0xff] %vm1833, %v7010
    %7057 = vst.msk [vmem:[#allocation3 + $0x10] sm:$0xff] %vm1833, %v7012
    %7058 = vst.msk [vmem:[#allocation3 + $0x18] sm:$0xff] %vm1833, %v7014
    %7059 = vst.msk [vmem:[#allocation3 + $0x20] sm:$0xff] %vm1833, %v7016
    %7060 = vst.msk [vmem:[#allocation3 + $0x28] sm:$0xff] %vm1833, %v7018
    %7061 = vst.msk [vmem:[#allocation3 + $0x30] sm:$0xff] %vm1833, %v7020
    %7062 = vst.msk [vmem:[#allocation3 + $0x38] sm:$0xff] %vm1833, %v7022
    %7063 = vst.msk [vmem:[#allocation3 + $0x40] sm:$0xff] %vm1833, %v7024
    %7064 = vst.msk [vmem:[#allocation3 + $0x48] sm:$0xff] %vm1833, %v7026
    %7065 = vst.msk [vmem:[#allocation3 + $0x50] sm:$0xff] %vm1833, %v7028
    %7066 = vst.msk [vmem:[#allocation3 + $0x58] sm:$0xff] %vm1833, %v7030
    %7067 = vst.msk [vmem:[#allocation3 + $0x60] sm:$0xff] %vm1833, %v7032
    %7068 = vst.msk [vmem:[#allocation3 + $0x68] sm:$0xff] %vm1833, %v7034
    %7069 = vst.msk [vmem:[#allocation3 + $0x70] sm:$0xff] %vm1833, %v7036
    %7070 = vst.msk [vmem:[#allocation3 + $0x78] sm:$0xff] %vm1833, %v7038
    %v7071 = vld [vmem:[%s6350] sm:$0xe]
    %v7072 = vld [vmem:[%s6350 + $0x4] sm:$0xf]
    %v7073 = vld [vmem:[%s6350 + $0x8] sm:$0x1]
    %v7074 = vld [vmem:[%s6350 + $0xc] sm:$0xe]
    %v7075 = vld [vmem:[%s6350 + $0x10] sm:$0xf]
    %v7076 = vld [vmem:[%s6350 + $0x14] sm:$0x1]
    %v7077 = vld [vmem:[%s6350 + $0x18] sm:$0xe]
    %v7078 = vld [vmem:[%s6350 + $0x1c] sm:$0xf]
    %v7079 = vld [vmem:[%s6350 + $0x20] sm:$0x1]
    %v7080 = vld [vmem:[%s6350 + $0x24] sm:$0xe]
    %v7081 = vld [vmem:[%s6350 + $0x28] sm:$0xf]
    %v7082 = vld [vmem:[%s6350 + $0x2c] sm:$0x1]
    %v7083 = vld [vmem:[%s6350 + $0x30] sm:$0xe]
    %v7084 = vld [vmem:[%s6350 + $0x34] sm:$0xf]
    %v7085 = vld [vmem:[%s6350 + $0x38] sm:$0x1]
    %v7086 = vld [vmem:[%s6350 + $0x3c] sm:$0xe]
    %v7087 = vld [vmem:[%s6350 + $0x40] sm:$0xf]
    %v7088 = vld [vmem:[%s6350 + $0x44] sm:$0x1]
    %v7089 = vld [vmem:[%s6350 + $0x48] sm:$0xe]
    %v7090 = vld [vmem:[%s6350 + $0x4c] sm:$0xf]
    %v7091 = vld [vmem:[%s6350 + $0x50] sm:$0x1]
    %v7092 = vld [vmem:[%s6350 + $0x54] sm:$0xe]
    %v7093 = vld [vmem:[%s6350 + $0x58] sm:$0xf]
    %v7094 = vld [vmem:[%s6350 + $0x5c] sm:$0x1]
    %v7095 = vld [vmem:[%s6350 + $0x60] sm:$0xe]
    %v7096 = vld [vmem:[%s6350 + $0x64] sm:$0xf]
    %v7097 = vld [vmem:[%s6350 + $0x68] sm:$0x1]
    %v7098 = vld [vmem:[%s6350 + $0x6c] sm:$0xe]
    %v7099 = vld [vmem:[%s6350 + $0x70] sm:$0xf]
    %v7100 = vld [vmem:[%s6350 + $0x74] sm:$0x1]
    %v7101 = vld [vmem:[%s6350 + $0x78] sm:$0xe]
    %v7102 = vld [vmem:[%s6350 + $0x7c] sm:$0xf]
    %v7103 = vld [vmem:[%s6350 + $0x80] sm:$0x1]
    %v7104 = vld [vmem:[%s6350 + $0x84] sm:$0xe]
    %v7105 = vld [vmem:[%s6350 + $0x88] sm:$0xf]
    %v7106 = vld [vmem:[%s6350 + $0x8c] sm:$0x1]
    %v7107 = vld [vmem:[%s6350 + $0x90] sm:$0xe]
    %v7108 = vld [vmem:[%s6350 + $0x94] sm:$0xf]
    %v7109 = vld [vmem:[%s6350 + $0x98] sm:$0x1]
    %v7110 = vld [vmem:[%s6350 + $0x9c] sm:$0xe]
    %v7111 = vld [vmem:[%s6350 + $0xa0] sm:$0xf]
    %v7112 = vld [vmem:[%s6350 + $0xa4] sm:$0x1]
    %v7113 = vld [vmem:[%s6350 + $0xa8] sm:$0xe]
    %v7114 = vld [vmem:[%s6350 + $0xac] sm:$0xf]
    %v7115 = vld [vmem:[%s6350 + $0xb0] sm:$0x1]
    %v7116 = vld [vmem:[%s6350 + $0xb4] sm:$0xe]
    %v7117 = vld [vmem:[%s6350 + $0xb8] sm:$0xf]
    %v7118 = vld [vmem:[%s6350 + $0xbc] sm:$0x1]
    %v7167 = vrot.slane %v7071, 5
    %v7168 = vrot.slane %v7167, 4
    %v7169 = vrot.slane %v7072, 5
    %v7170 = vsel %vm901, %v7168, %v7169
    %v7171 = vrot.slane %v7169, 4
    %v7172 = vrot.slane %v7073, 5
    %v7173 = vsel %vm901, %v7171, %v7172
    %v7174 = vrot.slane %v7074, 5
    %v7175 = vrot.slane %v7174, 4
    %v7176 = vrot.slane %v7075, 5
    %v7177 = vsel %vm901, %v7175, %v7176
    %v7178 = vrot.slane %v7176, 4
    %v7179 = vrot.slane %v7076, 5
    %v7180 = vsel %vm901, %v7178, %v7179
    %v7181 = vrot.slane %v7077, 5
    %v7182 = vrot.slane %v7181, 4
    %v7183 = vrot.slane %v7078, 5
    %v7184 = vsel %vm901, %v7182, %v7183
    %v7185 = vrot.slane %v7183, 4
    %v7186 = vrot.slane %v7079, 5
    %v7187 = vsel %vm901, %v7185, %v7186
    %v7188 = vrot.slane %v7080, 5
    %v7189 = vrot.slane %v7188, 4
    %v7190 = vrot.slane %v7081, 5
    %v7191 = vsel %vm901, %v7189, %v7190
    %v7192 = vrot.slane %v7190, 4
    %v7193 = vrot.slane %v7082, 5
    %v7194 = vsel %vm901, %v7192, %v7193
    %v7195 = vrot.slane %v7083, 5
    %v7196 = vrot.slane %v7195, 4
    %v7197 = vrot.slane %v7084, 5
    %v7198 = vsel %vm901, %v7196, %v7197
    %v7199 = vrot.slane %v7197, 4
    %v7200 = vrot.slane %v7085, 5
    %v7201 = vsel %vm901, %v7199, %v7200
    %v7202 = vrot.slane %v7086, 5
    %v7203 = vrot.slane %v7202, 4
    %v7204 = vrot.slane %v7087, 5
    %v7205 = vsel %vm901, %v7203, %v7204
    %v7206 = vrot.slane %v7204, 4
    %v7207 = vrot.slane %v7088, 5
    %v7208 = vsel %vm901, %v7206, %v7207
    %v7209 = vrot.slane %v7089, 5
    %v7210 = vrot.slane %v7209, 4
    %v7211 = vrot.slane %v7090, 5
    %v7212 = vsel %vm901, %v7210, %v7211
    %v7213 = vrot.slane %v7211, 4
    %v7214 = vrot.slane %v7091, 5
    %v7215 = vsel %vm901, %v7213, %v7214
    %v7216 = vrot.slane %v7092, 5
    %v7217 = vrot.slane %v7216, 4
    %v7218 = vrot.slane %v7093, 5
    %v7219 = vsel %vm901, %v7217, %v7218
    %v7220 = vrot.slane %v7218, 4
    %v7221 = vrot.slane %v7094, 5
    %v7222 = vsel %vm901, %v7220, %v7221
    %v7223 = vrot.slane %v7095, 5
    %v7224 = vrot.slane %v7223, 4
    %v7225 = vrot.slane %v7096, 5
    %v7226 = vsel %vm901, %v7224, %v7225
    %v7227 = vrot.slane %v7225, 4
    %v7228 = vrot.slane %v7097, 5
    %v7229 = vsel %vm901, %v7227, %v7228
    %v7230 = vrot.slane %v7098, 5
    %v7231 = vrot.slane %v7230, 4
    %v7232 = vrot.slane %v7099, 5
    %v7233 = vsel %vm901, %v7231, %v7232
    %v7234 = vrot.slane %v7232, 4
    %v7235 = vrot.slane %v7100, 5
    %v7236 = vsel %vm901, %v7234, %v7235
    %v7237 = vrot.slane %v7101, 5
    %v7238 = vrot.slane %v7237, 4
    %v7239 = vrot.slane %v7102, 5
    %v7240 = vsel %vm901, %v7238, %v7239
    %v7241 = vrot.slane %v7239, 4
    %v7242 = vrot.slane %v7103, 5
    %v7243 = vsel %vm901, %v7241, %v7242
    %v7244 = vrot.slane %v7104, 5
    %v7245 = vrot.slane %v7244, 4
    %v7246 = vrot.slane %v7105, 5
    %v7247 = vsel %vm901, %v7245, %v7246
    %v7248 = vrot.slane %v7246, 4
    %v7249 = vrot.slane %v7106, 5
    %v7250 = vsel %vm901, %v7248, %v7249
    %v7251 = vrot.slane %v7107, 5
    %v7252 = vrot.slane %v7251, 4
    %v7253 = vrot.slane %v7108, 5
    %v7254 = vsel %vm901, %v7252, %v7253
    %v7255 = vrot.slane %v7253, 4
    %v7256 = vrot.slane %v7109, 5
    %v7257 = vsel %vm901, %v7255, %v7256
    %v7258 = vrot.slane %v7110, 5
    %v7259 = vrot.slane %v7258, 4
    %v7260 = vrot.slane %v7111, 5
    %v7261 = vsel %vm901, %v7259, %v7260
    %v7262 = vrot.slane %v7260, 4
    %v7263 = vrot.slane %v7112, 5
    %v7264 = vsel %vm901, %v7262, %v7263
    %v7265 = vrot.slane %v7113, 5
    %v7266 = vrot.slane %v7265, 4
    %v7267 = vrot.slane %v7114, 5
    %v7268 = vsel %vm901, %v7266, %v7267
    %v7269 = vrot.slane %v7267, 4
    %v7270 = vrot.slane %v7115, 5
    %v7271 = vsel %vm901, %v7269, %v7270
    %v7272 = vrot.slane %v7116, 5
    %v7273 = vrot.slane %v7272, 4
    %v7274 = vrot.slane %v7117, 5
    %v7275 = vsel %vm901, %v7273, %v7274
    %v7276 = vrot.slane %v7274, 4
    %v7277 = vrot.slane %v7118, 5
    %v7278 = vsel %vm901, %v7276, %v7277
    %v7279 = vunpack.c.l.b16 %v7170
    %v7280 = vunpack.c.l.b16 %v7173
    %v7281 = vunpack.c.l.b16 %v7177
    %v7282 = vunpack.c.l.b16 %v7180
    %v7283 = vunpack.c.l.b16 %v7184
    %v7284 = vunpack.c.l.b16 %v7187
    %v7285 = vunpack.c.l.b16 %v7191
    %v7286 = vunpack.c.l.b16 %v7194
    %v7287 = vunpack.c.l.b16 %v7198
    %v7288 = vunpack.c.l.b16 %v7201
    %v7289 = vunpack.c.l.b16 %v7205
    %v7290 = vunpack.c.l.b16 %v7208
    %v7291 = vunpack.c.l.b16 %v7212
    %v7292 = vunpack.c.l.b16 %v7215
    %v7293 = vunpack.c.l.b16 %v7219
    %v7294 = vunpack.c.l.b16 %v7222
    %v7295 = vunpack.c.l.b16 %v7226
    %v7296 = vunpack.c.l.b16 %v7229
    %v7297 = vunpack.c.l.b16 %v7233
    %v7298 = vunpack.c.l.b16 %v7236
    %v7299 = vunpack.c.l.b16 %v7240
    %v7300 = vunpack.c.l.b16 %v7243
    %v7301 = vunpack.c.l.b16 %v7247
    %v7302 = vunpack.c.l.b16 %v7250
    %v7303 = vunpack.c.l.b16 %v7254
    %v7304 = vunpack.c.l.b16 %v7257
    %v7305 = vunpack.c.l.b16 %v7261
    %v7306 = vunpack.c.l.b16 %v7264
    %v7307 = vunpack.c.l.b16 %v7268
    %v7308 = vunpack.c.l.b16 %v7271
    %v7309 = vunpack.c.l.b16 %v7275
    %v7310 = vunpack.c.l.b16 %v7278
    %v7311 = vpack.c.b16 %v7280, %v7279
    %v7312 = vpack.c.b16 %v7282, %v7281
    %v7313 = vpack.c.b16 %v7284, %v7283
    %v7314 = vpack.c.b16 %v7286, %v7285
    %v7315 = vpack.c.b16 %v7288, %v7287
    %v7316 = vpack.c.b16 %v7290, %v7289
    %v7317 = vpack.c.b16 %v7292, %v7291
    %v7318 = vpack.c.b16 %v7294, %v7293
    %v7319 = vpack.c.b16 %v7296, %v7295
    %v7320 = vpack.c.b16 %v7298, %v7297
    %v7321 = vpack.c.b16 %v7300, %v7299
    %v7322 = vpack.c.b16 %v7302, %v7301
    %v7323 = vpack.c.b16 %v7304, %v7303
    %v7324 = vpack.c.b16 %v7306, %v7305
    %v7325 = vpack.c.b16 %v7308, %v7307
    %v7326 = vpack.c.b16 %v7310, %v7309
    %7327 = vrot.lane.b32.xlu0 %v7311, 15
    %v7328 = vpop.permute.xlu0 %7327
    %7329 = vrot.lane.b32.xlu0 %v7312, 15
    %v7330 = vpop.permute.xlu0 %7329
    %7331 = vrot.lane.b32.xlu0 %v7313, 15
    %v7332 = vpop.permute.xlu0 %7331
    %7333 = vrot.lane.b32.xlu0 %v7314, 15
    %v7334 = vpop.permute.xlu0 %7333
    %7335 = vrot.lane.b32.xlu0 %v7315, 15
    %v7336 = vpop.permute.xlu0 %7335
    %7337 = vrot.lane.b32.xlu0 %v7316, 15
    %v7338 = vpop.permute.xlu0 %7337
    %7339 = vrot.lane.b32.xlu0 %v7317, 15
    %v7340 = vpop.permute.xlu0 %7339
    %7341 = vrot.lane.b32.xlu0 %v7318, 15
    %v7342 = vpop.permute.xlu0 %7341
    %7343 = vrot.lane.b32.xlu0 %v7319, 15
    %v7344 = vpop.permute.xlu0 %7343
    %7345 = vrot.lane.b32.xlu0 %v7320, 15
    %v7346 = vpop.permute.xlu0 %7345
    %7347 = vrot.lane.b32.xlu0 %v7321, 15
    %v7348 = vpop.permute.xlu0 %7347
    %7349 = vrot.lane.b32.xlu0 %v7322, 15
    %v7350 = vpop.permute.xlu0 %7349
    %7351 = vrot.lane.b32.xlu0 %v7323, 15
    %v7352 = vpop.permute.xlu0 %7351
    %7353 = vrot.lane.b32.xlu0 %v7324, 15
    %v7354 = vpop.permute.xlu0 %7353
    %7355 = vrot.lane.b32.xlu0 %v7325, 15
    %v7356 = vpop.permute.xlu0 %7355
    %7357 = vrot.lane.b32.xlu0 %v7326, 15
    %v7358 = vpop.permute.xlu0 %7357
    %7375 = vst.msk [vmem:[#allocation3] sm:$0xff] %vm2154, %v7328
    %7376 = vst.msk [vmem:[#allocation3 + $0x8] sm:$0xff] %vm2154, %v7330
    %7377 = vst.msk [vmem:[#allocation3 + $0x10] sm:$0xff] %vm2154, %v7332
    %7378 = vst.msk [vmem:[#allocation3 + $0x18] sm:$0xff] %vm2154, %v7334
    %7379 = vst.msk [vmem:[#allocation3 + $0x20] sm:$0xff] %vm2154, %v7336
    %7380 = vst.msk [vmem:[#allocation3 + $0x28] sm:$0xff] %vm2154, %v7338
    %7381 = vst.msk [vmem:[#allocation3 + $0x30] sm:$0xff] %vm2154, %v7340
    %7382 = vst.msk [vmem:[#allocation3 + $0x38] sm:$0xff] %vm2154, %v7342
    %7383 = vst.msk [vmem:[#allocation3 + $0x40] sm:$0xff] %vm2154, %v7344
    %7384 = vst.msk [vmem:[#allocation3 + $0x48] sm:$0xff] %vm2154, %v7346
    %7385 = vst.msk [vmem:[#allocation3 + $0x50] sm:$0xff] %vm2154, %v7348
    %7386 = vst.msk [vmem:[#allocation3 + $0x58] sm:$0xff] %vm2154, %v7350
    %7387 = vst.msk [vmem:[#allocation3 + $0x60] sm:$0xff] %vm2154, %v7352
    %7388 = vst.msk [vmem:[#allocation3 + $0x68] sm:$0xff] %vm2154, %v7354
    %7389 = vst.msk [vmem:[#allocation3 + $0x70] sm:$0xff] %vm2154, %v7356
    %7390 = vst.msk [vmem:[#allocation3 + $0x78] sm:$0xff] %vm2154, %v7358
    %s7391 = scalar_lea.vmem %s0, 240
    %v7392 = vld [vmem:[%s7391] sm:$0xf]
    %v7393 = vld [vmem:[%s7391 + $0x4] sm:$0xf]
    %v7394 = vld [vmem:[%s7391 + $0xc] sm:$0xf]
    %v7395 = vld [vmem:[%s7391 + $0x10] sm:$0xf]
    %v7396 = vld [vmem:[%s7391 + $0x18] sm:$0xf]
    %v7397 = vld [vmem:[%s7391 + $0x1c] sm:$0xf]
    %v7398 = vld [vmem:[%s7391 + $0x24] sm:$0xf]
    %v7399 = vld [vmem:[%s7391 + $0x28] sm:$0xf]
    %v7400 = vld [vmem:[%s7391 + $0x30] sm:$0xf]
    %v7401 = vld [vmem:[%s7391 + $0x34] sm:$0xf]
    %v7402 = vld [vmem:[%s7391 + $0x3c] sm:$0xf]
    %v7403 = vld [vmem:[%s7391 + $0x40] sm:$0xf]
    %v7404 = vld [vmem:[%s7391 + $0x48] sm:$0xf]
    %v7405 = vld [vmem:[%s7391 + $0x4c] sm:$0xf]
    %v7406 = vld [vmem:[%s7391 + $0x54] sm:$0xf]
    %v7407 = vld [vmem:[%s7391 + $0x58] sm:$0xf]
    %v7408 = vld [vmem:[%s7391 + $0x60] sm:$0xf]
    %v7409 = vld [vmem:[%s7391 + $0x64] sm:$0xf]
    %v7410 = vld [vmem:[%s7391 + $0x6c] sm:$0xf]
    %v7411 = vld [vmem:[%s7391 + $0x70] sm:$0xf]
    %v7412 = vld [vmem:[%s7391 + $0x78] sm:$0xf]
    %v7413 = vld [vmem:[%s7391 + $0x7c] sm:$0xf]
    %v7414 = vld [vmem:[%s7391 + $0x84] sm:$0xf]
    %v7415 = vld [vmem:[%s7391 + $0x88] sm:$0xf]
    %v7416 = vld [vmem:[%s7391 + $0x90] sm:$0xf]
    %v7417 = vld [vmem:[%s7391 + $0x94] sm:$0xf]
    %v7418 = vld [vmem:[%s7391 + $0x9c] sm:$0xf]
    %v7419 = vld [vmem:[%s7391 + $0xa0] sm:$0xf]
    %v7420 = vld [vmem:[%s7391 + $0xa8] sm:$0xf]
    %v7421 = vld [vmem:[%s7391 + $0xac] sm:$0xf]
    %v7422 = vld [vmem:[%s7391 + $0xb4] sm:$0xf]
    %v7423 = vld [vmem:[%s7391 + $0xb8] sm:$0xf]
    %v7456 = vunpack.c.l.b16 %v7392
    %v7457 = vunpack.c.l.b16 %v7393
    %v7458 = vunpack.c.l.b16 %v7394
    %v7459 = vunpack.c.l.b16 %v7395
    %v7460 = vunpack.c.l.b16 %v7396
    %v7461 = vunpack.c.l.b16 %v7397
    %v7462 = vunpack.c.l.b16 %v7398
    %v7463 = vunpack.c.l.b16 %v7399
    %v7464 = vunpack.c.l.b16 %v7400
    %v7465 = vunpack.c.l.b16 %v7401
    %v7466 = vunpack.c.l.b16 %v7402
    %v7467 = vunpack.c.l.b16 %v7403
    %v7468 = vunpack.c.l.b16 %v7404
    %v7469 = vunpack.c.l.b16 %v7405
    %v7470 = vunpack.c.l.b16 %v7406
    %v7471 = vunpack.c.l.b16 %v7407
    %v7472 = vunpack.c.l.b16 %v7408
    %v7473 = vunpack.c.l.b16 %v7409
    %v7474 = vunpack.c.l.b16 %v7410
    %v7475 = vunpack.c.l.b16 %v7411
    %v7476 = vunpack.c.l.b16 %v7412
    %v7477 = vunpack.c.l.b16 %v7413
    %v7478 = vunpack.c.l.b16 %v7414
    %v7479 = vunpack.c.l.b16 %v7415
    %v7480 = vunpack.c.l.b16 %v7416
    %v7481 = vunpack.c.l.b16 %v7417
    %v7482 = vunpack.c.l.b16 %v7418
    %v7483 = vunpack.c.l.b16 %v7419
    %v7484 = vunpack.c.l.b16 %v7420
    %v7485 = vunpack.c.l.b16 %v7421
    %v7486 = vunpack.c.l.b16 %v7422
    %v7487 = vunpack.c.l.b16 %v7423
    %v7488 = vpack.c.b16 %v7457, %v7456
    %v7489 = vpack.c.b16 %v7459, %v7458
    %v7490 = vpack.c.b16 %v7461, %v7460
    %v7491 = vpack.c.b16 %v7463, %v7462
    %v7492 = vpack.c.b16 %v7465, %v7464
    %v7493 = vpack.c.b16 %v7467, %v7466
    %v7494 = vpack.c.b16 %v7469, %v7468
    %v7495 = vpack.c.b16 %v7471, %v7470
    %v7496 = vpack.c.b16 %v7473, %v7472
    %v7497 = vpack.c.b16 %v7475, %v7474
    %v7498 = vpack.c.b16 %v7477, %v7476
    %v7499 = vpack.c.b16 %v7479, %v7478
    %v7500 = vpack.c.b16 %v7481, %v7480
    %v7501 = vpack.c.b16 %v7483, %v7482
    %v7502 = vpack.c.b16 %v7485, %v7484
    %v7503 = vpack.c.b16 %v7487, %v7486
    %7504 = vrot.lane.b32.xlu0 %v7488, 18
    %v7505 = vpop.permute.xlu0 %7504
    %7506 = vrot.lane.b32.xlu0 %v7489, 18
    %v7507 = vpop.permute.xlu0 %7506
    %7508 = vrot.lane.b32.xlu0 %v7490, 18
    %v7509 = vpop.permute.xlu0 %7508
    %7510 = vrot.lane.b32.xlu0 %v7491, 18
    %v7511 = vpop.permute.xlu0 %7510
    %7512 = vrot.lane.b32.xlu0 %v7492, 18
    %v7513 = vpop.permute.xlu0 %7512
    %7514 = vrot.lane.b32.xlu0 %v7493, 18
    %v7515 = vpop.permute.xlu0 %7514
    %7516 = vrot.lane.b32.xlu0 %v7494, 18
    %v7517 = vpop.permute.xlu0 %7516
    %7518 = vrot.lane.b32.xlu0 %v7495, 18
    %v7519 = vpop.permute.xlu0 %7518
    %7520 = vrot.lane.b32.xlu0 %v7496, 18
    %v7521 = vpop.permute.xlu0 %7520
    %7522 = vrot.lane.b32.xlu0 %v7497, 18
    %v7523 = vpop.permute.xlu0 %7522
    %7524 = vrot.lane.b32.xlu0 %v7498, 18
    %v7525 = vpop.permute.xlu0 %7524
    %7526 = vrot.lane.b32.xlu0 %v7499, 18
    %v7527 = vpop.permute.xlu0 %7526
    %7528 = vrot.lane.b32.xlu0 %v7500, 18
    %v7529 = vpop.permute.xlu0 %7528
    %7530 = vrot.lane.b32.xlu0 %v7501, 18
    %v7531 = vpop.permute.xlu0 %7530
    %7532 = vrot.lane.b32.xlu0 %v7502, 18
    %v7533 = vpop.permute.xlu0 %7532
    %7534 = vrot.lane.b32.xlu0 %v7503, 18
    %v7535 = vpop.permute.xlu0 %7534
    %7552 = vst.msk [vmem:[#allocation3] sm:$0xff] %vm2332, %v7505
    %7553 = vst.msk [vmem:[#allocation3 + $0x8] sm:$0xff] %vm2332, %v7507
    %7554 = vst.msk [vmem:[#allocation3 + $0x10] sm:$0xff] %vm2332, %v7509
    %7555 = vst.msk [vmem:[#allocation3 + $0x18] sm:$0xff] %vm2332, %v7511
    %7556 = vst.msk [vmem:[#allocation3 + $0x20] sm:$0xff] %vm2332, %v7513
    %7557 = vst.msk [vmem:[#allocation3 + $0x28] sm:$0xff] %vm2332, %v7515
    %7558 = vst.msk [vmem:[#allocation3 + $0x30] sm:$0xff] %vm2332, %v7517
    %7559 = vst.msk [vmem:[#allocation3 + $0x38] sm:$0xff] %vm2332, %v7519
    %7560 = vst.msk [vmem:[#allocation3 + $0x40] sm:$0xff] %vm2332, %v7521
    %7561 = vst.msk [vmem:[#allocation3 + $0x48] sm:$0xff] %vm2332, %v7523
    %7562 = vst.msk [vmem:[#allocation3 + $0x50] sm:$0xff] %vm2332, %v7525
    %7563 = vst.msk [vmem:[#allocation3 + $0x58] sm:$0xff] %vm2332, %v7527
    %7564 = vst.msk [vmem:[#allocation3 + $0x60] sm:$0xff] %vm2332, %v7529
    %7565 = vst.msk [vmem:[#allocation3 + $0x68] sm:$0xff] %vm2332, %v7531
    %7566 = vst.msk [vmem:[#allocation3 + $0x70] sm:$0xff] %vm2332, %v7533
    %7567 = vst.msk [vmem:[#allocation3 + $0x78] sm:$0xff] %vm2332, %v7535
    %v7568 = vld [vmem:[%s7391] sm:$0xf]
    %v7569 = vld [vmem:[%s7391 + $0x4] sm:$0xf]
    %v7570 = vld [vmem:[%s7391 + $0x8] sm:$0x1]
    %v7571 = vld [vmem:[%s7391 + $0xc] sm:$0xf]
    %v7572 = vld [vmem:[%s7391 + $0x10] sm:$0xf]
    %v7573 = vld [vmem:[%s7391 + $0x14] sm:$0x1]
    %v7574 = vld [vmem:[%s7391 + $0x18] sm:$0xf]
    %v7575 = vld [vmem:[%s7391 + $0x1c] sm:$0xf]
    %v7576 = vld [vmem:[%s7391 + $0x20] sm:$0x1]
    %v7577 = vld [vmem:[%s7391 + $0x24] sm:$0xf]
    %v7578 = vld [vmem:[%s7391 + $0x28] sm:$0xf]
    %v7579 = vld [vmem:[%s7391 + $0x2c] sm:$0x1]
    %v7580 = vld [vmem:[%s7391 + $0x30] sm:$0xf]
    %v7581 = vld [vmem:[%s7391 + $0x34] sm:$0xf]
    %v7582 = vld [vmem:[%s7391 + $0x38] sm:$0x1]
    %v7583 = vld [vmem:[%s7391 + $0x3c] sm:$0xf]
    %v7584 = vld [vmem:[%s7391 + $0x40] sm:$0xf]
    %v7585 = vld [vmem:[%s7391 + $0x44] sm:$0x1]
    %v7586 = vld [vmem:[%s7391 + $0x48] sm:$0xf]
    %v7587 = vld [vmem:[%s7391 + $0x4c] sm:$0xf]
    %v7588 = vld [vmem:[%s7391 + $0x50] sm:$0x1]
    %v7589 = vld [vmem:[%s7391 + $0x54] sm:$0xf]
    %v7590 = vld [vmem:[%s7391 + $0x58] sm:$0xf]
    %v7591 = vld [vmem:[%s7391 + $0x5c] sm:$0x1]
    %v7592 = vld [vmem:[%s7391 + $0x60] sm:$0xf]
    %v7593 = vld [vmem:[%s7391 + $0x64] sm:$0xf]
    %v7594 = vld [vmem:[%s7391 + $0x68] sm:$0x1]
    %v7595 = vld [vmem:[%s7391 + $0x6c] sm:$0xf]
    %v7596 = vld [vmem:[%s7391 + $0x70] sm:$0xf]
    %v7597 = vld [vmem:[%s7391 + $0x74] sm:$0x1]
    %v7598 = vld [vmem:[%s7391 + $0x78] sm:$0xf]
    %v7599 = vld [vmem:[%s7391 + $0x7c] sm:$0xf]
    %v7600 = vld [vmem:[%s7391 + $0x80] sm:$0x1]
    %v7601 = vld [vmem:[%s7391 + $0x84] sm:$0xf]
    %v7602 = vld [vmem:[%s7391 + $0x88] sm:$0xf]
    %v7603 = vld [vmem:[%s7391 + $0x8c] sm:$0x1]
    %v7604 = vld [vmem:[%s7391 + $0x90] sm:$0xf]
    %v7605 = vld [vmem:[%s7391 + $0x94] sm:$0xf]
    %v7606 = vld [vmem:[%s7391 + $0x98] sm:$0x1]
    %v7607 = vld [vmem:[%s7391 + $0x9c] sm:$0xf]
    %v7608 = vld [vmem:[%s7391 + $0xa0] sm:$0xf]
    %v7609 = vld [vmem:[%s7391 + $0xa4] sm:$0x1]
    %v7610 = vld [vmem:[%s7391 + $0xa8] sm:$0xf]
    %v7611 = vld [vmem:[%s7391 + $0xac] sm:$0xf]
    %v7612 = vld [vmem:[%s7391 + $0xb0] sm:$0x1]
    %v7613 = vld [vmem:[%s7391 + $0xb4] sm:$0xf]
    %v7614 = vld [vmem:[%s7391 + $0xb8] sm:$0xf]
    %v7615 = vld [vmem:[%s7391 + $0xbc] sm:$0x1]
    %v7617 = vshrl.u32 %v7568, 16
    %v7619 = vrot.slane %v7617, 4
    %v7620 = vshll.u32 %v7568, 16
    %v7622 = vrot.slane %v7620, 5
    %v7623 = vor.u32 %v7619, %v7622
    %v7624 = vrot.slane %v7623, 4
    %v7626 = vshll.u32 %v7569, 16
    %v7628 = vrot.slane %v7626, 5
    %v7629 = vsel %vm305, %v7624, %v7628
    %v7630 = vshrl.u32 %v7569, 16
    %v7632 = vrot.slane %v7630, 4
    %v7633 = vor.u32 %v7632, %v7628
    %v7634 = vrot.slane %v7633, 4
    %v7636 = vshll.u32 %v7570, 16
    %v7638 = vrot.slane %v7636, 5
    %v7639 = vsel %vm305, %v7634, %v7638
    %v7641 = vshrl.u32 %v7571, 16
    %v7643 = vrot.slane %v7641, 4
    %v7644 = vshll.u32 %v7571, 16
    %v7646 = vrot.slane %v7644, 5
    %v7647 = vor.u32 %v7643, %v7646
    %v7648 = vrot.slane %v7647, 4
    %v7650 = vshll.u32 %v7572, 16
    %v7652 = vrot.slane %v7650, 5
    %v7653 = vsel %vm305, %v7648, %v7652
    %v7654 = vshrl.u32 %v7572, 16
    %v7656 = vrot.slane %v7654, 4
    %v7657 = vor.u32 %v7656, %v7652
    %v7658 = vrot.slane %v7657, 4
    %v7660 = vshll.u32 %v7573, 16
    %v7662 = vrot.slane %v7660, 5
    %v7663 = vsel %vm305, %v7658, %v7662
    %v7665 = vshrl.u32 %v7574, 16
    %v7667 = vrot.slane %v7665, 4
    %v7668 = vshll.u32 %v7574, 16
    %v7670 = vrot.slane %v7668, 5
    %v7671 = vor.u32 %v7667, %v7670
    %v7672 = vrot.slane %v7671, 4
    %v7674 = vshll.u32 %v7575, 16
    %v7676 = vrot.slane %v7674, 5
    %v7677 = vsel %vm305, %v7672, %v7676
    %v7678 = vshrl.u32 %v7575, 16
    %v7680 = vrot.slane %v7678, 4
    %v7681 = vor.u32 %v7680, %v7676
    %v7682 = vrot.slane %v7681, 4
    %v7684 = vshll.u32 %v7576, 16
    %v7686 = vrot.slane %v7684, 5
    %v7687 = vsel %vm305, %v7682, %v7686
    %v7689 = vshrl.u32 %v7577, 16
    %v7691 = vrot.slane %v7689, 4
    %v7692 = vshll.u32 %v7577, 16
    %v7694 = vrot.slane %v7692, 5
    %v7695 = vor.u32 %v7691, %v7694
    %v7696 = vrot.slane %v7695, 4
    %v7698 = vshll.u32 %v7578, 16
    %v7700 = vrot.slane %v7698, 5
    %v7701 = vsel %vm305, %v7696, %v7700
    %v7702 = vshrl.u32 %v7578, 16
    %v7704 = vrot.slane %v7702, 4
    %v7705 = vor.u32 %v7704, %v7700
    %v7706 = vrot.slane %v7705, 4
    %v7708 = vshll.u32 %v7579, 16
    %v7710 = vrot.slane %v7708, 5
    %v7711 = vsel %vm305, %v7706, %v7710
    %v7713 = vshrl.u32 %v7580, 16
    %v7715 = vrot.slane %v7713, 4
    %v7716 = vshll.u32 %v7580, 16
    %v7718 = vrot.slane %v7716, 5
    %v7719 = vor.u32 %v7715, %v7718
    %v7720 = vrot.slane %v7719, 4
    %v7722 = vshll.u32 %v7581, 16
    %v7724 = vrot.slane %v7722, 5
    %v7725 = vsel %vm305, %v7720, %v7724
    %v7726 = vshrl.u32 %v7581, 16
    %v7728 = vrot.slane %v7726, 4
    %v7729 = vor.u32 %v7728, %v7724
    %v7730 = vrot.slane %v7729, 4
    %v7732 = vshll.u32 %v7582, 16
    %v7734 = vrot.slane %v7732, 5
    %v7735 = vsel %vm305, %v7730, %v7734
    %v7737 = vshrl.u32 %v7583, 16
    %v7739 = vrot.slane %v7737, 4
    %v7740 = vshll.u32 %v7583, 16
    %v7742 = vrot.slane %v7740, 5
    %v7743 = vor.u32 %v7739, %v7742
    %v7744 = vrot.slane %v7743, 4
    %v7746 = vshll.u32 %v7584, 16
    %v7748 = vrot.slane %v7746, 5
    %v7749 = vsel %vm305, %v7744, %v7748
    %v7750 = vshrl.u32 %v7584, 16
    %v7752 = vrot.slane %v7750, 4
    %v7753 = vor.u32 %v7752, %v7748
    %v7754 = vrot.slane %v7753, 4
    %v7756 = vshll.u32 %v7585, 16
    %v7758 = vrot.slane %v7756, 5
    %v7759 = vsel %vm305, %v7754, %v7758
    %v7761 = vshrl.u32 %v7586, 16
    %v7763 = vrot.slane %v7761, 4
    %v7764 = vshll.u32 %v7586, 16
    %v7766 = vrot.slane %v7764, 5
    %v7767 = vor.u32 %v7763, %v7766
    %v7768 = vrot.slane %v7767, 4
    %v7770 = vshll.u32 %v7587, 16
    %v7772 = vrot.slane %v7770, 5
    %v7773 = vsel %vm305, %v7768, %v7772
    %v7774 = vshrl.u32 %v7587, 16
    %v7776 = vrot.slane %v7774, 4
    %v7777 = vor.u32 %v7776, %v7772
    %v7778 = vrot.slane %v7777, 4
    %v7780 = vshll.u32 %v7588, 16
    %v7782 = vrot.slane %v7780, 5
    %v7783 = vsel %vm305, %v7778, %v7782
    %v7785 = vshrl.u32 %v7589, 16
    %v7787 = vrot.slane %v7785, 4
    %v7788 = vshll.u32 %v7589, 16
    %v7790 = vrot.slane %v7788, 5
    %v7791 = vor.u32 %v7787, %v7790
    %v7792 = vrot.slane %v7791, 4
    %v7794 = vshll.u32 %v7590, 16
    %v7796 = vrot.slane %v7794, 5
    %v7797 = vsel %vm305, %v7792, %v7796
    %v7798 = vshrl.u32 %v7590, 16
    %v7800 = vrot.slane %v7798, 4
    %v7801 = vor.u32 %v7800, %v7796
    %v7802 = vrot.slane %v7801, 4
    %v7804 = vshll.u32 %v7591, 16
    %v7806 = vrot.slane %v7804, 5
    %v7807 = vsel %vm305, %v7802, %v7806
    %v7809 = vshrl.u32 %v7592, 16
    %v7811 = vrot.slane %v7809, 4
    %v7812 = vshll.u32 %v7592, 16
    %v7814 = vrot.slane %v7812, 5
    %v7815 = vor.u32 %v7811, %v7814
    %v7816 = vrot.slane %v7815, 4
    %v7818 = vshll.u32 %v7593, 16
    %v7820 = vrot.slane %v7818, 5
    %v7821 = vsel %vm305, %v7816, %v7820
    %v7822 = vshrl.u32 %v7593, 16
    %v7824 = vrot.slane %v7822, 4
    %v7825 = vor.u32 %v7824, %v7820
    %v7826 = vrot.slane %v7825, 4
    %v7828 = vshll.u32 %v7594, 16
    %v7830 = vrot.slane %v7828, 5
    %v7831 = vsel %vm305, %v7826, %v7830
    %v7833 = vshrl.u32 %v7595, 16
    %v7835 = vrot.slane %v7833, 4
    %v7836 = vshll.u32 %v7595, 16
    %v7838 = vrot.slane %v7836, 5
    %v7839 = vor.u32 %v7835, %v7838
    %v7840 = vrot.slane %v7839, 4
    %v7842 = vshll.u32 %v7596, 16
    %v7844 = vrot.slane %v7842, 5
    %v7845 = vsel %vm305, %v7840, %v7844
    %v7846 = vshrl.u32 %v7596, 16
    %v7848 = vrot.slane %v7846, 4
    %v7849 = vor.u32 %v7848, %v7844
    %v7850 = vrot.slane %v7849, 4
    %v7852 = vshll.u32 %v7597, 16
    %v7854 = vrot.slane %v7852, 5
    %v7855 = vsel %vm305, %v7850, %v7854
    %v7857 = vshrl.u32 %v7598, 16
    %v7859 = vrot.slane %v7857, 4
    %v7860 = vshll.u32 %v7598, 16
    %v7862 = vrot.slane %v7860, 5
    %v7863 = vor.u32 %v7859, %v7862
    %v7864 = vrot.slane %v7863, 4
    %v7866 = vshll.u32 %v7599, 16
    %v7868 = vrot.slane %v7866, 5
    %v7869 = vsel %vm305, %v7864, %v7868
    %v7870 = vshrl.u32 %v7599, 16
    %v7872 = vrot.slane %v7870, 4
    %v7873 = vor.u32 %v7872, %v7868
    %v7874 = vrot.slane %v7873, 4
    %v7876 = vshll.u32 %v7600, 16
    %v7878 = vrot.slane %v7876, 5
    %v7879 = vsel %vm305, %v7874, %v7878
    %v7881 = vshrl.u32 %v7601, 16
    %v7883 = vrot.slane %v7881, 4
    %v7884 = vshll.u32 %v7601, 16
    %v7886 = vrot.slane %v7884, 5
    %v7887 = vor.u32 %v7883, %v7886
    %v7888 = vrot.slane %v7887, 4
    %v7890 = vshll.u32 %v7602, 16
    %v7892 = vrot.slane %v7890, 5
    %v7893 = vsel %vm305, %v7888, %v7892
    %v7894 = vshrl.u32 %v7602, 16
    %v7896 = vrot.slane %v7894, 4
    %v7897 = vor.u32 %v7896, %v7892
    %v7898 = vrot.slane %v7897, 4
    %v7900 = vshll.u32 %v7603, 16
    %v7902 = vrot.slane %v7900, 5
    %v7903 = vsel %vm305, %v7898, %v7902
    %v7905 = vshrl.u32 %v7604, 16
    %v7907 = vrot.slane %v7905, 4
    %v7908 = vshll.u32 %v7604, 16
    %v7910 = vrot.slane %v7908, 5
    %v7911 = vor.u32 %v7907, %v7910
    %v7912 = vrot.slane %v7911, 4
    %v7914 = vshll.u32 %v7605, 16
    %v7916 = vrot.slane %v7914, 5
    %v7917 = vsel %vm305, %v7912, %v7916
    %v7918 = vshrl.u32 %v7605, 16
    %v7920 = vrot.slane %v7918, 4
    %v7921 = vor.u32 %v7920, %v7916
    %v7922 = vrot.slane %v7921, 4
    %v7924 = vshll.u32 %v7606, 16
    %v7926 = vrot.slane %v7924, 5
    %v7927 = vsel %vm305, %v7922, %v7926
    %v7929 = vshrl.u32 %v7607, 16
    %v7931 = vrot.slane %v7929, 4
    %v7932 = vshll.u32 %v7607, 16
    %v7934 = vrot.slane %v7932, 5
    %v7935 = vor.u32 %v7931, %v7934
    %v7936 = vrot.slane %v7935, 4
    %v7938 = vshll.u32 %v7608, 16
    %v7940 = vrot.slane %v7938, 5
    %v7941 = vsel %vm305, %v7936, %v7940
    %v7942 = vshrl.u32 %v7608, 16
    %v7944 = vrot.slane %v7942, 4
    %v7945 = vor.u32 %v7944, %v7940
    %v7946 = vrot.slane %v7945, 4
    %v7948 = vshll.u32 %v7609, 16
    %v7950 = vrot.slane %v7948, 5
    %v7951 = vsel %vm305, %v7946, %v7950
    %v7953 = vshrl.u32 %v7610, 16
    %v7955 = vrot.slane %v7953, 4
    %v7956 = vshll.u32 %v7610, 16
    %v7958 = vrot.slane %v7956, 5
    %v7959 = vor.u32 %v7955, %v7958
    %v7960 = vrot.slane %v7959, 4
    %v7962 = vshll.u32 %v7611, 16
    %v7964 = vrot.slane %v7962, 5
    %v7965 = vsel %vm305, %v7960, %v7964
    %v7966 = vshrl.u32 %v7611, 16
    %v7968 = vrot.slane %v7966, 4
    %v7969 = vor.u32 %v7968, %v7964
    %v7970 = vrot.slane %v7969, 4
    %v7972 = vshll.u32 %v7612, 16
    %v7974 = vrot.slane %v7972, 5
    %v7975 = vsel %vm305, %v7970, %v7974
    %v7977 = vshrl.u32 %v7613, 16
    %v7979 = vrot.slane %v7977, 4
    %v7980 = vshll.u32 %v7613, 16
    %v7982 = vrot.slane %v7980, 5
    %v7983 = vor.u32 %v7979, %v7982
    %v7984 = vrot.slane %v7983, 4
    %v7986 = vshll.u32 %v7614, 16
    %v7988 = vrot.slane %v7986, 5
    %v7989 = vsel %vm305, %v7984, %v7988
    %v7990 = vshrl.u32 %v7614, 16
    %v7992 = vrot.slane %v7990, 4
    %v7993 = vor.u32 %v7992, %v7988
    %v7994 = vrot.slane %v7993, 4
    %v7996 = vshll.u32 %v7615, 16
    %v7998 = vrot.slane %v7996, 5
    %v7999 = vsel %vm305, %v7994, %v7998
    %v8000 = vunpack.c.l.b16 %v7629
    %v8001 = vunpack.c.l.b16 %v7639
    %v8002 = vunpack.c.l.b16 %v7653
    %v8003 = vunpack.c.l.b16 %v7663
    %v8004 = vunpack.c.l.b16 %v7677
    %v8005 = vunpack.c.l.b16 %v7687
    %v8006 = vunpack.c.l.b16 %v7701
    %v8007 = vunpack.c.l.b16 %v7711
    %v8008 = vunpack.c.l.b16 %v7725
    %v8009 = vunpack.c.l.b16 %v7735
    %v8010 = vunpack.c.l.b16 %v7749
    %v8011 = vunpack.c.l.b16 %v7759
    %v8012 = vunpack.c.l.b16 %v7773
    %v8013 = vunpack.c.l.b16 %v7783
    %v8014 = vunpack.c.l.b16 %v7797
    %v8015 = vunpack.c.l.b16 %v7807
    %v8016 = vunpack.c.l.b16 %v7821
    %v8017 = vunpack.c.l.b16 %v7831
    %v8018 = vunpack.c.l.b16 %v7845
    %v8019 = vunpack.c.l.b16 %v7855
    %v8020 = vunpack.c.l.b16 %v7869
    %v8021 = vunpack.c.l.b16 %v7879
    %v8022 = vunpack.c.l.b16 %v7893
    %v8023 = vunpack.c.l.b16 %v7903
    %v8024 = vunpack.c.l.b16 %v7917
    %v8025 = vunpack.c.l.b16 %v7927
    %v8026 = vunpack.c.l.b16 %v7941
    %v8027 = vunpack.c.l.b16 %v7951
    %v8028 = vunpack.c.l.b16 %v7965
    %v8029 = vunpack.c.l.b16 %v7975
    %v8030 = vunpack.c.l.b16 %v7989
    %v8031 = vunpack.c.l.b16 %v7999
    %v8032 = vpack.c.b16 %v8001, %v8000
    %v8033 = vpack.c.b16 %v8003, %v8002
    %v8034 = vpack.c.b16 %v8005, %v8004
    %v8035 = vpack.c.b16 %v8007, %v8006
    %v8036 = vpack.c.b16 %v8009, %v8008
    %v8037 = vpack.c.b16 %v8011, %v8010
    %v8038 = vpack.c.b16 %v8013, %v8012
    %v8039 = vpack.c.b16 %v8015, %v8014
    %v8040 = vpack.c.b16 %v8017, %v8016
    %v8041 = vpack.c.b16 %v8019, %v8018
    %v8042 = vpack.c.b16 %v8021, %v8020
    %v8043 = vpack.c.b16 %v8023, %v8022
    %v8044 = vpack.c.b16 %v8025, %v8024
    %v8045 = vpack.c.b16 %v8027, %v8026
    %v8046 = vpack.c.b16 %v8029, %v8028
    %v8047 = vpack.c.b16 %v8031, %v8030
    %8048 = vrot.lane.b32.xlu0 %v8032, 21
    %v8049 = vpop.permute.xlu0 %8048
    %8050 = vrot.lane.b32.xlu0 %v8033, 21
    %v8051 = vpop.permute.xlu0 %8050
    %8052 = vrot.lane.b32.xlu0 %v8034, 21
    %v8053 = vpop.permute.xlu0 %8052
    %8054 = vrot.lane.b32.xlu0 %v8035, 21
    %v8055 = vpop.permute.xlu0 %8054
    %8056 = vrot.lane.b32.xlu0 %v8036, 21
    %v8057 = vpop.permute.xlu0 %8056
    %8058 = vrot.lane.b32.xlu0 %v8037, 21
    %v8059 = vpop.permute.xlu0 %8058
    %8060 = vrot.lane.b32.xlu0 %v8038, 21
    %v8061 = vpop.permute.xlu0 %8060
    %8062 = vrot.lane.b32.xlu0 %v8039, 21
    %v8063 = vpop.permute.xlu0 %8062
    %8064 = vrot.lane.b32.xlu0 %v8040, 21
    %v8065 = vpop.permute.xlu0 %8064
    %8066 = vrot.lane.b32.xlu0 %v8041, 21
    %v8067 = vpop.permute.xlu0 %8066
    %8068 = vrot.lane.b32.xlu0 %v8042, 21
    %v8069 = vpop.permute.xlu0 %8068
    %8070 = vrot.lane.b32.xlu0 %v8043, 21
    %v8071 = vpop.permute.xlu0 %8070
    %8072 = vrot.lane.b32.xlu0 %v8044, 21
    %v8073 = vpop.permute.xlu0 %8072
    %8074 = vrot.lane.b32.xlu0 %v8045, 21
    %v8075 = vpop.permute.xlu0 %8074
    %8076 = vrot.lane.b32.xlu0 %v8046, 21
    %v8077 = vpop.permute.xlu0 %8076
    %8078 = vrot.lane.b32.xlu0 %v8047, 21
    %v8079 = vpop.permute.xlu0 %8078
    %8096 = vst.msk [vmem:[#allocation3] sm:$0xff] %vm2877, %v8049
    %8097 = vst.msk [vmem:[#allocation3 + $0x8] sm:$0xff] %vm2877, %v8051
    %8098 = vst.msk [vmem:[#allocation3 + $0x10] sm:$0xff] %vm2877, %v8053
    %8099 = vst.msk [vmem:[#allocation3 + $0x18] sm:$0xff] %vm2877, %v8055
    %8100 = vst.msk [vmem:[#allocation3 + $0x20] sm:$0xff] %vm2877, %v8057
    %8101 = vst.msk [vmem:[#allocation3 + $0x28] sm:$0xff] %vm2877, %v8059
    %8102 = vst.msk [vmem:[#allocation3 + $0x30] sm:$0xff] %vm2877, %v8061
    %8103 = vst.msk [vmem:[#allocation3 + $0x38] sm:$0xff] %vm2877, %v8063
    %8104 = vst.msk [vmem:[#allocation3 + $0x40] sm:$0xff] %vm2877, %v8065
    %8105 = vst.msk [vmem:[#allocation3 + $0x48] sm:$0xff] %vm2877, %v8067
    %8106 = vst.msk [vmem:[#allocation3 + $0x50] sm:$0xff] %vm2877, %v8069
    %8107 = vst.msk [vmem:[#allocation3 + $0x58] sm:$0xff] %vm2877, %v8071
    %8108 = vst.msk [vmem:[#allocation3 + $0x60] sm:$0xff] %vm2877, %v8073
    %8109 = vst.msk [vmem:[#allocation3 + $0x68] sm:$0xff] %vm2877, %v8075
    %8110 = vst.msk [vmem:[#allocation3 + $0x70] sm:$0xff] %vm2877, %v8077
    %8111 = vst.msk [vmem:[#allocation3 + $0x78] sm:$0xff] %vm2877, %v8079
    %v8112 = vld [vmem:[%s7391] sm:$0xe]
    %v8113 = vld [vmem:[%s7391 + $0x4] sm:$0xf]
    %v8114 = vld [vmem:[%s7391 + $0x8] sm:$0x1]
    %v8115 = vld [vmem:[%s7391 + $0xc] sm:$0xe]
    %v8116 = vld [vmem:[%s7391 + $0x10] sm:$0xf]
    %v8117 = vld [vmem:[%s7391 + $0x14] sm:$0x1]
    %v8118 = vld [vmem:[%s7391 + $0x18] sm:$0xe]
    %v8119 = vld [vmem:[%s7391 + $0x1c] sm:$0xf]
    %v8120 = vld [vmem:[%s7391 + $0x20] sm:$0x1]
    %v8121 = vld [vmem:[%s7391 + $0x24] sm:$0xe]
    %v8122 = vld [vmem:[%s7391 + $0x28] sm:$0xf]
    %v8123 = vld [vmem:[%s7391 + $0x2c] sm:$0x1]
    %v8124 = vld [vmem:[%s7391 + $0x30] sm:$0xe]
    %v8125 = vld [vmem:[%s7391 + $0x34] sm:$0xf]
    %v8126 = vld [vmem:[%s7391 + $0x38] sm:$0x1]
    %v8127 = vld [vmem:[%s7391 + $0x3c] sm:$0xe]
    %v8128 = vld [vmem:[%s7391 + $0x40] sm:$0xf]
    %v8129 = vld [vmem:[%s7391 + $0x44] sm:$0x1]
    %v8130 = vld [vmem:[%s7391 + $0x48] sm:$0xe]
    %v8131 = vld [vmem:[%s7391 + $0x4c] sm:$0xf]
    %v8132 = vld [vmem:[%s7391 + $0x50] sm:$0x1]
    %v8133 = vld [vmem:[%s7391 + $0x54] sm:$0xe]
    %v8134 = vld [vmem:[%s7391 + $0x58] sm:$0xf]
    %v8135 = vld [vmem:[%s7391 + $0x5c] sm:$0x1]
    %v8136 = vld [vmem:[%s7391 + $0x60] sm:$0xe]
    %v8137 = vld [vmem:[%s7391 + $0x64] sm:$0xf]
    %v8138 = vld [vmem:[%s7391 + $0x68] sm:$0x1]
    %v8139 = vld [vmem:[%s7391 + $0x6c] sm:$0xe]
    %v8140 = vld [vmem:[%s7391 + $0x70] sm:$0xf]
    %v8141 = vld [vmem:[%s7391 + $0x74] sm:$0x1]
    %v8142 = vld [vmem:[%s7391 + $0x78] sm:$0xe]
    %v8143 = vld [vmem:[%s7391 + $0x7c] sm:$0xf]
    %v8144 = vld [vmem:[%s7391 + $0x80] sm:$0x1]
    %v8145 = vld [vmem:[%s7391 + $0x84] sm:$0xe]
    %v8146 = vld [vmem:[%s7391 + $0x88] sm:$0xf]
    %v8147 = vld [vmem:[%s7391 + $0x8c] sm:$0x1]
    %v8148 = vld [vmem:[%s7391 + $0x90] sm:$0xe]
    %v8149 = vld [vmem:[%s7391 + $0x94] sm:$0xf]
    %v8150 = vld [vmem:[%s7391 + $0x98] sm:$0x1]
    %v8151 = vld [vmem:[%s7391 + $0x9c] sm:$0xe]
    %v8152 = vld [vmem:[%s7391 + $0xa0] sm:$0xf]
    %v8153 = vld [vmem:[%s7391 + $0xa4] sm:$0x1]
    %v8154 = vld [vmem:[%s7391 + $0xa8] sm:$0xe]
    %v8155 = vld [vmem:[%s7391 + $0xac] sm:$0xf]
    %v8156 = vld [vmem:[%s7391 + $0xb0] sm:$0x1]
    %v8157 = vld [vmem:[%s7391 + $0xb4] sm:$0xe]
    %v8158 = vld [vmem:[%s7391 + $0xb8] sm:$0xf]
    %v8159 = vld [vmem:[%s7391 + $0xbc] sm:$0x1]
    %v8208 = vrot.slane %v8112, 5
    %v8209 = vrot.slane %v8208, 4
    %v8210 = vrot.slane %v8113, 5
    %v8211 = vsel %vm901, %v8209, %v8210
    %v8212 = vrot.slane %v8210, 4
    %v8213 = vrot.slane %v8114, 5
    %v8214 = vsel %vm901, %v8212, %v8213
    %v8215 = vrot.slane %v8115, 5
    %v8216 = vrot.slane %v8215, 4
    %v8217 = vrot.slane %v8116, 5
    %v8218 = vsel %vm901, %v8216, %v8217
    %v8219 = vrot.slane %v8217, 4
    %v8220 = vrot.slane %v8117, 5
    %v8221 = vsel %vm901, %v8219, %v8220
    %v8222 = vrot.slane %v8118, 5
    %v8223 = vrot.slane %v8222, 4
    %v8224 = vrot.slane %v8119, 5
    %v8225 = vsel %vm901, %v8223, %v8224
    %v8226 = vrot.slane %v8224, 4
    %v8227 = vrot.slane %v8120, 5
    %v8228 = vsel %vm901, %v8226, %v8227
    %v8229 = vrot.slane %v8121, 5
    %v8230 = vrot.slane %v8229, 4
    %v8231 = vrot.slane %v8122, 5
    %v8232 = vsel %vm901, %v8230, %v8231
    %v8233 = vrot.slane %v8231, 4
    %v8234 = vrot.slane %v8123, 5
    %v8235 = vsel %vm901, %v8233, %v8234
    %v8236 = vrot.slane %v8124, 5
    %v8237 = vrot.slane %v8236, 4
    %v8238 = vrot.slane %v8125, 5
    %v8239 = vsel %vm901, %v8237, %v8238
    %v8240 = vrot.slane %v8238, 4
    %v8241 = vrot.slane %v8126, 5
    %v8242 = vsel %vm901, %v8240, %v8241
    %v8243 = vrot.slane %v8127, 5
    %v8244 = vrot.slane %v8243, 4
    %v8245 = vrot.slane %v8128, 5
    %v8246 = vsel %vm901, %v8244, %v8245
    %v8247 = vrot.slane %v8245, 4
    %v8248 = vrot.slane %v8129, 5
    %v8249 = vsel %vm901, %v8247, %v8248
    %v8250 = vrot.slane %v8130, 5
    %v8251 = vrot.slane %v8250, 4
    %v8252 = vrot.slane %v8131, 5
    %v8253 = vsel %vm901, %v8251, %v8252
    %v8254 = vrot.slane %v8252, 4
    %v8255 = vrot.slane %v8132, 5
    %v8256 = vsel %vm901, %v8254, %v8255
    %v8257 = vrot.slane %v8133, 5
    %v8258 = vrot.slane %v8257, 4
    %v8259 = vrot.slane %v8134, 5
    %v8260 = vsel %vm901, %v8258, %v8259
    %v8261 = vrot.slane %v8259, 4
    %v8262 = vrot.slane %v8135, 5
    %v8263 = vsel %vm901, %v8261, %v8262
    %v8264 = vrot.slane %v8136, 5
    %v8265 = vrot.slane %v8264, 4
    %v8266 = vrot.slane %v8137, 5
    %v8267 = vsel %vm901, %v8265, %v8266
    %v8268 = vrot.slane %v8266, 4
    %v8269 = vrot.slane %v8138, 5
    %v8270 = vsel %vm901, %v8268, %v8269
    %v8271 = vrot.slane %v8139, 5
    %v8272 = vrot.slane %v8271, 4
    %v8273 = vrot.slane %v8140, 5
    %v8274 = vsel %vm901, %v8272, %v8273
    %v8275 = vrot.slane %v8273, 4
    %v8276 = vrot.slane %v8141, 5
    %v8277 = vsel %vm901, %v8275, %v8276
    %v8278 = vrot.slane %v8142, 5
    %v8279 = vrot.slane %v8278, 4
    %v8280 = vrot.slane %v8143, 5
    %v8281 = vsel %vm901, %v8279, %v8280
    %v8282 = vrot.slane %v8280, 4
    %v8283 = vrot.slane %v8144, 5
    %v8284 = vsel %vm901, %v8282, %v8283
    %v8285 = vrot.slane %v8145, 5
    %v8286 = vrot.slane %v8285, 4
    %v8287 = vrot.slane %v8146, 5
    %v8288 = vsel %vm901, %v8286, %v8287
    %v8289 = vrot.slane %v8287, 4
    %v8290 = vrot.slane %v8147, 5
    %v8291 = vsel %vm901, %v8289, %v8290
    %v8292 = vrot.slane %v8148, 5
    %v8293 = vrot.slane %v8292, 4
    %v8294 = vrot.slane %v8149, 5
    %v8295 = vsel %vm901, %v8293, %v8294
    %v8296 = vrot.slane %v8294, 4
    %v8297 = vrot.slane %v8150, 5
    %v8298 = vsel %vm901, %v8296, %v8297
    %v8299 = vrot.slane %v8151, 5
    %v8300 = vrot.slane %v8299, 4
    %v8301 = vrot.slane %v8152, 5
    %v8302 = vsel %vm901, %v8300, %v8301
    %v8303 = vrot.slane %v8301, 4
    %v8304 = vrot.slane %v8153, 5
    %v8305 = vsel %vm901, %v8303, %v8304
    %v8306 = vrot.slane %v8154, 5
    %v8307 = vrot.slane %v8306, 4
    %v8308 = vrot.slane %v8155, 5
    %v8309 = vsel %vm901, %v8307, %v8308
    %v8310 = vrot.slane %v8308, 4
    %v8311 = vrot.slane %v8156, 5
    %v8312 = vsel %vm901, %v8310, %v8311
    %v8313 = vrot.slane %v8157, 5
    %v8314 = vrot.slane %v8313, 4
    %v8315 = vrot.slane %v8158, 5
    %v8316 = vsel %vm901, %v8314, %v8315
    %v8317 = vrot.slane %v8315, 4
    %v8318 = vrot.slane %v8159, 5
    %v8319 = vsel %vm901, %v8317, %v8318
    %v8320 = vunpack.c.l.b16 %v8211
    %v8321 = vunpack.c.l.b16 %v8214
    %v8322 = vunpack.c.l.b16 %v8218
    %v8323 = vunpack.c.l.b16 %v8221
    %v8324 = vunpack.c.l.b16 %v8225
    %v8325 = vunpack.c.l.b16 %v8228
    %v8326 = vunpack.c.l.b16 %v8232
    %v8327 = vunpack.c.l.b16 %v8235
    %v8328 = vunpack.c.l.b16 %v8239
    %v8329 = vunpack.c.l.b16 %v8242
    %v8330 = vunpack.c.l.b16 %v8246
    %v8331 = vunpack.c.l.b16 %v8249
    %v8332 = vunpack.c.l.b16 %v8253
    %v8333 = vunpack.c.l.b16 %v8256
    %v8334 = vunpack.c.l.b16 %v8260
    %v8335 = vunpack.c.l.b16 %v8263
    %v8336 = vunpack.c.l.b16 %v8267
    %v8337 = vunpack.c.l.b16 %v8270
    %v8338 = vunpack.c.l.b16 %v8274
    %v8339 = vunpack.c.l.b16 %v8277
    %v8340 = vunpack.c.l.b16 %v8281
    %v8341 = vunpack.c.l.b16 %v8284
    %v8342 = vunpack.c.l.b16 %v8288
    %v8343 = vunpack.c.l.b16 %v8291
    %v8344 = vunpack.c.l.b16 %v8295
    %v8345 = vunpack.c.l.b16 %v8298
    %v8346 = vunpack.c.l.b16 %v8302
    %v8347 = vunpack.c.l.b16 %v8305
    %v8348 = vunpack.c.l.b16 %v8309
    %v8349 = vunpack.c.l.b16 %v8312
    %v8350 = vunpack.c.l.b16 %v8316
    %v8351 = vunpack.c.l.b16 %v8319
    %v8352 = vpack.c.b16 %v8321, %v8320
    %v8353 = vpack.c.b16 %v8323, %v8322
    %v8354 = vpack.c.b16 %v8325, %v8324
    %v8355 = vpack.c.b16 %v8327, %v8326
    %v8356 = vpack.c.b16 %v8329, %v8328
    %v8357 = vpack.c.b16 %v8331, %v8330
    %v8358 = vpack.c.b16 %v8333, %v8332
    %v8359 = vpack.c.b16 %v8335, %v8334
    %v8360 = vpack.c.b16 %v8337, %v8336
    %v8361 = vpack.c.b16 %v8339, %v8338
    %v8362 = vpack.c.b16 %v8341, %v8340
    %v8363 = vpack.c.b16 %v8343, %v8342
    %v8364 = vpack.c.b16 %v8345, %v8344
    %v8365 = vpack.c.b16 %v8347, %v8346
    %v8366 = vpack.c.b16 %v8349, %v8348
    %v8367 = vpack.c.b16 %v8351, %v8350
    %8368 = vrot.lane.b32.xlu0 %v8352, 24
    %v8369 = vpop.permute.xlu0 %8368
    %8370 = vrot.lane.b32.xlu0 %v8353, 24
    %v8371 = vpop.permute.xlu0 %8370
    %8372 = vrot.lane.b32.xlu0 %v8354, 24
    %v8373 = vpop.permute.xlu0 %8372
    %8374 = vrot.lane.b32.xlu0 %v8355, 24
    %v8375 = vpop.permute.xlu0 %8374
    %8376 = vrot.lane.b32.xlu0 %v8356, 24
    %v8377 = vpop.permute.xlu0 %8376
    %8378 = vrot.lane.b32.xlu0 %v8357, 24
    %v8379 = vpop.permute.xlu0 %8378
    %8380 = vrot.lane.b32.xlu0 %v8358, 24
    %v8381 = vpop.permute.xlu0 %8380
    %8382 = vrot.lane.b32.xlu0 %v8359, 24
    %v8383 = vpop.permute.xlu0 %8382
    %8384 = vrot.lane.b32.xlu0 %v8360, 24
    %v8385 = vpop.permute.xlu0 %8384
    %8386 = vrot.lane.b32.xlu0 %v8361, 24
    %v8387 = vpop.permute.xlu0 %8386
    %8388 = vrot.lane.b32.xlu0 %v8362, 24
    %v8389 = vpop.permute.xlu0 %8388
    %8390 = vrot.lane.b32.xlu0 %v8363, 24
    %v8391 = vpop.permute.xlu0 %8390
    %8392 = vrot.lane.b32.xlu0 %v8364, 24
    %v8393 = vpop.permute.xlu0 %8392
    %8394 = vrot.lane.b32.xlu0 %v8365, 24
    %v8395 = vpop.permute.xlu0 %8394
    %8396 = vrot.lane.b32.xlu0 %v8366, 24
    %v8397 = vpop.permute.xlu0 %8396
    %8398 = vrot.lane.b32.xlu0 %v8367, 24
    %v8399 = vpop.permute.xlu0 %8398
    %8416 = vst.msk [vmem:[#allocation3] sm:$0xff] %vm3198, %v8369
    %8417 = vst.msk [vmem:[#allocation3 + $0x8] sm:$0xff] %vm3198, %v8371
    %8418 = vst.msk [vmem:[#allocation3 + $0x10] sm:$0xff] %vm3198, %v8373
    %8419 = vst.msk [vmem:[#allocation3 + $0x18] sm:$0xff] %vm3198, %v8375
    %8420 = vst.msk [vmem:[#allocation3 + $0x20] sm:$0xff] %vm3198, %v8377
    %8421 = vst.msk [vmem:[#allocation3 + $0x28] sm:$0xff] %vm3198, %v8379
    %8422 = vst.msk [vmem:[#allocation3 + $0x30] sm:$0xff] %vm3198, %v8381
    %8423 = vst.msk [vmem:[#allocation3 + $0x38] sm:$0xff] %vm3198, %v8383
    %8424 = vst.msk [vmem:[#allocation3 + $0x40] sm:$0xff] %vm3198, %v8385
    %8425 = vst.msk [vmem:[#allocation3 + $0x48] sm:$0xff] %vm3198, %v8387
    %8426 = vst.msk [vmem:[#allocation3 + $0x50] sm:$0xff] %vm3198, %v8389
    %8427 = vst.msk [vmem:[#allocation3 + $0x58] sm:$0xff] %vm3198, %v8391
    %8428 = vst.msk [vmem:[#allocation3 + $0x60] sm:$0xff] %vm3198, %v8393
    %8429 = vst.msk [vmem:[#allocation3 + $0x68] sm:$0xff] %vm3198, %v8395
    %8430 = vst.msk [vmem:[#allocation3 + $0x70] sm:$0xff] %vm3198, %v8397
    %8431 = vst.msk [vmem:[#allocation3 + $0x78] sm:$0xff] %vm3198, %v8399
    %v8432 = vld [vmem:[#allocation3] sm:$0xff]
    %v8433 = vld [vmem:[#allocation3 + $0x8] sm:$0xff]
    %v8434 = vld [vmem:[#allocation3 + $0x10] sm:$0xff]
    %v8435 = vld [vmem:[#allocation3 + $0x18] sm:$0xff]
    %v8436 = vld [vmem:[#allocation3 + $0x20] sm:$0xff]
    %v8437 = vld [vmem:[#allocation3 + $0x28] sm:$0xff]
    %v8438 = vld [vmem:[#allocation3 + $0x30] sm:$0xff]
    %v8439 = vld [vmem:[#allocation3 + $0x38] sm:$0xff]
    %v8440 = vld [vmem:[#allocation3 + $0x40] sm:$0xff]
    %v8441 = vld [vmem:[#allocation3 + $0x48] sm:$0xff]
    %v8442 = vld [vmem:[#allocation3 + $0x50] sm:$0xff]
    %v8443 = vld [vmem:[#allocation3 + $0x58] sm:$0xff]
    %v8444 = vld [vmem:[#allocation3 + $0x60] sm:$0xff]
    %v8445 = vld [vmem:[#allocation3 + $0x68] sm:$0xff]
    %v8446 = vld [vmem:[#allocation3 + $0x70] sm:$0xff]
    %v8447 = vld [vmem:[#allocation3 + $0x78] sm:$0xff]
    %v8448 = vld [vmem:[%s2] sm:$0xf]
    %v8449 = vld [vmem:[%s2 + $0x4] sm:$0xf]
    %v8450 = vld [vmem:[%s2 + $0x8] sm:$0xf]
    %v8451 = vld [vmem:[%s2 + $0xc] sm:$0x3]
    %v8452 = vld [vmem:[%s3] sm:$0x1]
    %v8454 = vlaneseq
    %v8455 = vshrl.u32 %v8454, 7
    %v8456 = vsub.s32 0, %v8455
    %v8457 = vrot.slane %v8452, %v8456
    %v8463 = vunpack.c.l.b16 %v8448
    %v8464 = vunpack.c.l.b16 %v8449
    %v8465 = vunpack.c.l.b16 %v8450
    %v8466 = vunpack.c.l.b16 %v8451
    %v8467 = vpack.c.b16 %v8464, %v8463
    %v8468 = vpack.c.b16 %v8466, %v8465
    %v8471 = vsel %vm3253, %v8432, 0
    %v8474 = vsel %vm3253, %v8433, 0
    %v8477 = vsel %vm3253, %v8434, 0
    %v8480 = vsel %vm3253, %v8435, 0
    %v8483 = vsel %vm3253, %v8436, 0
    %v8486 = vsel %vm3253, %v8437, 0
    %v8489 = vsel %vm3253, %v8438, 0
    %v8492 = vsel %vm3253, %v8439, 0
    %v8495 = vsel %vm3253, %v8440, 0
    %v8498 = vsel %vm3253, %v8441, 0
    %v8501 = vsel %vm3253, %v8442, 0
    %v8504 = vsel %vm3253, %v8443, 0
    %v8507 = vsel %vm3253, %v8444, 0
    %v8510 = vsel %vm3253, %v8445, 0
    %v8513 = vsel %vm3253, %v8446, 0
    %v8516 = vsel %vm3253, %v8447, 0
    %v8519 = vand.u32 %v8468, %v3305
    %8521 = vmatprep.subr.bf16.mxu0 0
    %8522 = vmatpush1.bf16.msra.mxu0 %v8467
    %8523 = vmatprep.subr.bf16.mxu0 0
    %8524 = vmatpush1.bf16.msra.mxu0 %v8519
    %8525 = vmatprep.subr.bf16.mxu0 0
    %8526 = vmatpush1.bf16.msra.mxu0 0
    %8527 = vmatprep.subr.bf16.mxu0 0
    %8528 = vmatpush1.bf16.msra.mxu0 0
    %8529 = vmatprep.subr.bf16.mxu0 0
    %8530 = vmatpush1.bf16.msra.mxu0 0
    %8531 = vmatprep.subr.bf16.mxu0 0
    %8532 = vmatpush1.bf16.msra.mxu0 0
    %8533 = vmatprep.subr.bf16.mxu0 0
    %8534 = vmatpush1.bf16.msra.mxu0 0
    %8535 = vmatprep.subr.bf16.mxu0 0
    %8536 = vmatpush1.bf16.msra.mxu0 0
    %8537 = vmatprep.subr.bf16.mxu0 0
    %8538 = vmatpush1.bf16.msra.mxu0 0
    %8539 = vmatprep.subr.bf16.mxu0 0
    %8540 = vmatpush1.bf16.msra.mxu0 0
    %8541 = vmatprep.subr.bf16.mxu0 0
    %8542 = vmatpush1.bf16.msra.mxu0 0
    %8543 = vmatprep.subr.bf16.mxu0 0
    %8544 = vmatpush1.bf16.msra.mxu0 0
    %8545 = vmatprep.subr.bf16.mxu0 0
    %8546 = vmatpush1.bf16.msra.mxu0 0
    %8547 = vmatprep.subr.bf16.mxu0 0
    %8548 = vmatpush1.bf16.msra.mxu0 0
    %8549 = vmatprep.subr.bf16.mxu0 0
    %8550 = vmatpush1.bf16.msra.mxu0 0
    %8551 = vmatprep.subr.bf16.mxu0 0
    %8552 = vmatpush1.bf16.msra.mxu0 0
    %8553 = vmatprep.mubr.bf16.mxu0 0
    %8554 = vmatmul.mubr.bf16.gmra.mrb[0].mxu0 %v8471
    %v8555 = vpop.f32.mrb[0].mxu0
    %v8556 = vadd.f32 %v8457, %v8555
    %v8557 = vpop.f32.mrb[0].mxu0
    %v8558 = vpop.f32.mrb[0].mxu0
    %v8559 = vadd.f32 %v8457, %v8558
    %v8560 = vpop.f32.mrb[0].mxu0
    %8561 = vmatprep.mubr.bf16.mxu0 0
    %8562 = vmatmul.mubr.bf16.gmra.mrb[0].mxu0 %v8474
    %v8563 = vpop.f32.mrb[0].mxu0
    %v8564 = vadd.f32 %v8457, %v8563
    %v8565 = vpop.f32.mrb[0].mxu0
    %v8566 = vpop.f32.mrb[0].mxu0
    %v8567 = vadd.f32 %v8457, %v8566
    %v8568 = vpop.f32.mrb[0].mxu0
    %8569 = vmatprep.mubr.bf16.mxu0 0
    %8570 = vmatmul.mubr.bf16.gmra.mrb[0].mxu0 %v8477
    %v8571 = vpop.f32.mrb[0].mxu0
    %v8572 = vadd.f32 %v8457, %v8571
    %v8573 = vpop.f32.mrb[0].mxu0
    %v8574 = vpop.f32.mrb[0].mxu0
    %v8575 = vadd.f32 %v8457, %v8574
    %v8576 = vpop.f32.mrb[0].mxu0
    %8577 = vmatprep.mubr.bf16.mxu0 0
    %8578 = vmatmul.mubr.bf16.gmra.mrb[0].mxu0 %v8480
    %v8579 = vpop.f32.mrb[0].mxu0
    %v8580 = vadd.f32 %v8457, %v8579
    %v8581 = vpop.f32.mrb[0].mxu0
    %v8582 = vpop.f32.mrb[0].mxu0
    %v8583 = vadd.f32 %v8457, %v8582
    %v8584 = vpop.f32.mrb[0].mxu0
    %8585 = vmatprep.mubr.bf16.mxu0 0
    %8586 = vmatmul.mubr.bf16.gmra.mrb[0].mxu0 %v8483
    %v8587 = vpop.f32.mrb[0].mxu0
    %v8588 = vadd.f32 %v8457, %v8587
    %v8589 = vpop.f32.mrb[0].mxu0
    %v8590 = vpop.f32.mrb[0].mxu0
    %v8591 = vadd.f32 %v8457, %v8590
    %v8592 = vpop.f32.mrb[0].mxu0
    %8593 = vmatprep.mubr.bf16.mxu0 0
    %8594 = vmatmul.mubr.bf16.gmra.mrb[0].mxu0 %v8486
    %v8595 = vpop.f32.mrb[0].mxu0
    %v8596 = vadd.f32 %v8457, %v8595
    %v8597 = vpop.f32.mrb[0].mxu0
    %v8598 = vpop.f32.mrb[0].mxu0
    %v8599 = vadd.f32 %v8457, %v8598
    %v8600 = vpop.f32.mrb[0].mxu0
    %8601 = vmatprep.mubr.bf16.mxu0 0
    %8602 = vmatmul.mubr.bf16.gmra.mrb[0].mxu0 %v8489
    %v8603 = vpop.f32.mrb[0].mxu0
    %v8604 = vadd.f32 %v8457, %v8603
    %v8605 = vpop.f32.mrb[0].mxu0
    %v8606 = vpop.f32.mrb[0].mxu0
    %v8607 = vadd.f32 %v8457, %v8606
    %v8608 = vpop.f32.mrb[0].mxu0
    %8609 = vmatprep.mubr.bf16.mxu0 0
    %8610 = vmatmul.mubr.bf16.gmra.mrb[0].mxu0 %v8492
    %v8611 = vpop.f32.mrb[0].mxu0
    %v8612 = vadd.f32 %v8457, %v8611
    %v8613 = vpop.f32.mrb[0].mxu0
    %v8614 = vpop.f32.mrb[0].mxu0
    %v8615 = vadd.f32 %v8457, %v8614
    %v8616 = vpop.f32.mrb[0].mxu0
    %8617 = vmatprep.mubr.bf16.mxu0 0
    %8618 = vmatmul.mubr.bf16.gmra.mrb[0].mxu0 %v8495
    %v8619 = vpop.f32.mrb[0].mxu0
    %v8620 = vadd.f32 %v8457, %v8619
    %v8621 = vpop.f32.mrb[0].mxu0
    %v8622 = vpop.f32.mrb[0].mxu0
    %v8623 = vadd.f32 %v8457, %v8622
    %v8624 = vpop.f32.mrb[0].mxu0
    %8625 = vmatprep.mubr.bf16.mxu0 0
    %8626 = vmatmul.mubr.bf16.gmra.mrb[0].mxu0 %v8498
    %v8627 = vpop.f32.mrb[0].mxu0
    %v8628 = vadd.f32 %v8457, %v8627
    %v8629 = vpop.f32.mrb[0].mxu0
    %v8630 = vpop.f32.mrb[0].mxu0
    %v8631 = vadd.f32 %v8457, %v8630
    %v8632 = vpop.f32.mrb[0].mxu0
    %8633 = vmatprep.mubr.bf16.mxu0 0
    %8634 = vmatmul.mubr.bf16.gmra.mrb[0].mxu0 %v8501
    %v8635 = vpop.f32.mrb[0].mxu0
    %v8636 = vadd.f32 %v8457, %v8635
    %v8637 = vpop.f32.mrb[0].mxu0
    %v8638 = vpop.f32.mrb[0].mxu0
    %v8639 = vadd.f32 %v8457, %v8638
    %v8640 = vpop.f32.mrb[0].mxu0
    %8641 = vmatprep.mubr.bf16.mxu0 0
    %8642 = vmatmul.mubr.bf16.gmra.mrb[0].mxu0 %v8504
    %v8643 = vpop.f32.mrb[0].mxu0
    %v8644 = vadd.f32 %v8457, %v8643
    %v8645 = vpop.f32.mrb[0].mxu0
    %v8646 = vpop.f32.mrb[0].mxu0
    %v8647 = vadd.f32 %v8457, %v8646
    %v8648 = vpop.f32.mrb[0].mxu0
    %8649 = vmatprep.mubr.bf16.mxu0 0
    %8650 = vmatmul.mubr.bf16.gmra.mrb[0].mxu0 %v8507
    %v8651 = vpop.f32.mrb[0].mxu0
    %v8652 = vadd.f32 %v8457, %v8651
    %v8653 = vpop.f32.mrb[0].mxu0
    %v8654 = vpop.f32.mrb[0].mxu0
    %v8655 = vadd.f32 %v8457, %v8654
    %v8656 = vpop.f32.mrb[0].mxu0
    %8657 = vmatprep.mubr.bf16.mxu0 0
    %8658 = vmatmul.mubr.bf16.gmra.mrb[0].mxu0 %v8510
    %v8659 = vpop.f32.mrb[0].mxu0
    %v8660 = vadd.f32 %v8457, %v8659
    %v8661 = vpop.f32.mrb[0].mxu0
    %v8662 = vpop.f32.mrb[0].mxu0
    %v8663 = vadd.f32 %v8457, %v8662
    %v8664 = vpop.f32.mrb[0].mxu0
    %8665 = vmatprep.mubr.bf16.mxu0 0
    %8666 = vmatmul.mubr.bf16.gmra.mrb[0].mxu0 %v8513
    %v8667 = vpop.f32.mrb[0].mxu0
    %v8668 = vadd.f32 %v8457, %v8667
    %v8669 = vpop.f32.mrb[0].mxu0
    %v8670 = vpop.f32.mrb[0].mxu0
    %v8671 = vadd.f32 %v8457, %v8670
    %v8672 = vpop.f32.mrb[0].mxu0
    %8673 = vmatprep.mubr.bf16.mxu0 0
    %8674 = vmatmul.mubr.bf16.gmra.mrb[0].mxu0 %v8516
    %v8675 = vpop.f32.mrb[0].mxu0
    %v8676 = vadd.f32 %v8457, %v8675
    %v8677 = vpop.f32.mrb[0].mxu0
    %v8678 = vpop.f32.mrb[0].mxu0
    %v8679 = vadd.f32 %v8457, %v8678
    %v8680 = vpop.f32.mrb[0].mxu0
    %8681 = vdwg.mxu0
    %v8682 = vmax.f32 %v8556, 0.0
    %v8683 = vmax.f32 %v8559, 0.0
    %v8684 = vmax.f32 %v8564, 0.0
    %v8685 = vmax.f32 %v8567, 0.0
    %v8686 = vmax.f32 %v8572, 0.0
    %v8687 = vmax.f32 %v8575, 0.0
    %v8688 = vmax.f32 %v8580, 0.0
    %v8689 = vmax.f32 %v8583, 0.0
    %v8690 = vmax.f32 %v8588, 0.0
    %v8691 = vmax.f32 %v8591, 0.0
    %v8692 = vmax.f32 %v8596, 0.0
    %v8693 = vmax.f32 %v8599, 0.0
    %v8694 = vmax.f32 %v8604, 0.0
    %v8695 = vmax.f32 %v8607, 0.0
    %v8696 = vmax.f32 %v8612, 0.0
    %v8697 = vmax.f32 %v8615, 0.0
    %v8698 = vmax.f32 %v8620, 0.0
    %v8699 = vmax.f32 %v8623, 0.0
    %v8700 = vmax.f32 %v8628, 0.0
    %v8701 = vmax.f32 %v8631, 0.0
    %v8702 = vmax.f32 %v8636, 0.0
    %v8703 = vmax.f32 %v8639, 0.0
    %v8704 = vmax.f32 %v8644, 0.0
    %v8705 = vmax.f32 %v8647, 0.0
    %v8706 = vmax.f32 %v8652, 0.0
    %v8707 = vmax.f32 %v8655, 0.0
    %v8708 = vmax.f32 %v8660, 0.0
    %v8709 = vmax.f32 %v8663, 0.0
    %v8710 = vmax.f32 %v8668, 0.0
    %v8711 = vmax.f32 %v8671, 0.0
    %v8712 = vmax.f32 %v8676, 0.0
    %v8713 = vmax.f32 %v8679, 0.0
    %v8714 = vmax.f32 %v8682, %v8684
    %v8715 = vmax.f32 %v8683, %v8685
    %v8716 = vmax.f32 %v8686, %v8688
    %v8717 = vmax.f32 %v8687, %v8689
    %v8718 = vmax.f32 %v8690, %v8692
    %v8719 = vmax.f32 %v8691, %v8693
    %v8720 = vmax.f32 %v8694, %v8696
    %v8721 = vmax.f32 %v8695, %v8697
    %v8722 = vmax.f32 %v8698, %v8700
    %v8723 = vmax.f32 %v8699, %v8701
    %v8724 = vmax.f32 %v8702, %v8704
    %v8725 = vmax.f32 %v8703, %v8705
    %v8726 = vmax.f32 %v8706, %v8708
    %v8727 = vmax.f32 %v8707, %v8709
    %v8728 = vmax.f32 %v8710, %v8712
    %v8729 = vmax.f32 %v8711, %v8713
    %v8730 = vpack.c.bf16 %v8715, %v8714
    %v8731 = vpack.c.bf16 %v8717, %v8716
    %v8732 = vpack.c.bf16 %v8719, %v8718
    %v8733 = vpack.c.bf16 %v8721, %v8720
    %v8734 = vpack.c.bf16 %v8723, %v8722
    %v8735 = vpack.c.bf16 %v8725, %v8724
    %v8736 = vpack.c.bf16 %v8727, %v8726
    %v8737 = vpack.c.bf16 %v8729, %v8728
    %v8738 = vld [vmem:[%s15] sm:$0xf]
    %v8739 = vld [vmem:[%s15 + $0x4] sm:$0xf]
    %v8740 = vld [vmem:[%s15 + $0x8] sm:$0xf]
    %v8741 = vld [vmem:[%s15 + $0xc] sm:$0xf]
    %v8742 = vld [vmem:[%s15 + $0x10] sm:$0xf]
    %v8743 = vld [vmem:[%s15 + $0x14] sm:$0xf]
    %v8744 = vld [vmem:[%s15 + $0x18] sm:$0xf]
    %v8745 = vld [vmem:[%s15 + $0x1c] sm:$0xf]
    %v8754 = vunpack.c.l.b16 %v8738
    %v8755 = vunpack.c.l.b16 %v8739
    %v8756 = vunpack.c.l.b16 %v8740
    %v8757 = vunpack.c.l.b16 %v8741
    %v8758 = vunpack.c.l.b16 %v8742
    %v8759 = vunpack.c.l.b16 %v8743
    %v8760 = vunpack.c.l.b16 %v8744
    %v8761 = vunpack.c.l.b16 %v8745
    %v8762 = vpack.c.b16 %v8755, %v8754
    %v8763 = vpack.c.b16 %v8757, %v8756
    %v8764 = vpack.c.b16 %v8759, %v8758
    %v8765 = vpack.c.b16 %v8761, %v8760
    %8770 = vmatprep.subr.bf16.mxu0 0
    %8771 = vmatpush1.bf16.msra.mxu0 %v8730
    %8772 = vmatprep.subr.bf16.mxu0 0
    %8773 = vmatpush1.bf16.msra.mxu0 %v8731
    %8774 = vmatprep.subr.bf16.mxu0 0
    %8775 = vmatpush1.bf16.msra.mxu0 %v8732
    %8776 = vmatprep.subr.bf16.mxu0 0
    %8777 = vmatpush1.bf16.msra.mxu0 %v8733
    %8778 = vmatprep.subr.bf16.mxu0 0
    %8779 = vmatpush1.bf16.msra.mxu0 %v8734
    %8780 = vmatprep.subr.bf16.mxu0 0
    %8781 = vmatpush1.bf16.msra.mxu0 %v8735
    %8782 = vmatprep.subr.bf16.mxu0 0
    %8783 = vmatpush1.bf16.msra.mxu0 %v8736
    %8784 = vmatprep.subr.bf16.mxu0 0
    %8785 = vmatpush1.bf16.msra.mxu0 %v8737
    %8786 = vmatprep.subr.bf16.mxu0 0
    %8787 = vmatpush1.bf16.msra.mxu0 0
    %8788 = vmatprep.subr.bf16.mxu0 0
    %8789 = vmatpush1.bf16.msra.mxu0 0
    %8790 = vmatprep.subr.bf16.mxu0 0
    %8791 = vmatpush1.bf16.msra.mxu0 0
    %8792 = vmatprep.subr.bf16.mxu0 0
    %8793 = vmatpush1.bf16.msra.mxu0 0
    %8794 = vmatprep.subr.bf16.mxu0 0
    %8795 = vmatpush1.bf16.msra.mxu0 0
    %8796 = vmatprep.subr.bf16.mxu0 0
    %8797 = vmatpush1.bf16.msra.mxu0 0
    %8798 = vmatprep.subr.bf16.mxu0 0
    %8799 = vmatpush1.bf16.msra.mxu0 0
    %8800 = vmatprep.subr.bf16.mxu0 0
    %8801 = vmatpush1.bf16.msra.mxu0 0
    %8802 = vmatprep.mubr.bf16.mxu0 0
    %8803 = vmatmul.mubr.bf16.gmra.mrb[0].mxu0 %v8762
    %v8804 = vpop.f32.mrb[0].mxu0
    %v8805 = vadd.f32 0.0, %v8804
    %v8806 = vpop.f32.mrb[0].mxu0
    %v8807 = vpop.f32.mrb[0].mxu0
    %v8808 = vadd.f32 0.0, %v8807
    %v8809 = vpop.f32.mrb[0].mxu0
    %8810 = vmatprep.mubr.bf16.mxu0 0
    %8811 = vmatmul.mubr.bf16.gmra.mrb[0].mxu0 %v8763
    %v8812 = vpop.f32.mrb[0].mxu0
    %v8813 = vadd.f32 0.0, %v8812
    %v8814 = vpop.f32.mrb[0].mxu0
    %v8815 = vpop.f32.mrb[0].mxu0
    %v8816 = vadd.f32 0.0, %v8815
    %v8817 = vpop.f32.mrb[0].mxu0
    %8818 = vmatprep.mubr.bf16.mxu0 0
    %8819 = vmatmul.mubr.bf16.gmra.mrb[0].mxu0 %v8764
    %v8820 = vpop.f32.mrb[0].mxu0
    %v8821 = vadd.f32 0.0, %v8820
    %v8822 = vpop.f32.mrb[0].mxu0
    %v8823 = vpop.f32.mrb[0].mxu0
    %v8824 = vadd.f32 0.0, %v8823
    %v8825 = vpop.f32.mrb[0].mxu0
    %8826 = vmatprep.mubr.bf16.mxu0 0
    %8827 = vmatmul.mubr.bf16.gmra.mrb[0].mxu0 %v8765
    %v8828 = vpop.f32.mrb[0].mxu0
    %v8829 = vadd.f32 0.0, %v8828
    %v8830 = vpop.f32.mrb[0].mxu0
    %v8831 = vpop.f32.mrb[0].mxu0
    %v8832 = vadd.f32 0.0, %v8831
    %v8833 = vpop.f32.mrb[0].mxu0
    %8834 = vdwg.mxu0
    %v8835 = vld [vmem:[%s16] sm:$0xf]
    %v8836 = vld [vmem:[%s16 + $0x4] sm:$0xf]
    %v8837 = vld [vmem:[%s16 + $0x8] sm:$0xf]
    %v8838 = vld [vmem:[%s16 + $0xc] sm:$0xf]
    %v8839 = vld [vmem:[%s16 + $0x10] sm:$0xf]
    %v8840 = vld [vmem:[%s16 + $0x14] sm:$0xf]
    %v8841 = vld [vmem:[%s16 + $0x18] sm:$0xf]
    %v8842 = vld [vmem:[%s16 + $0x1c] sm:$0xf]
    %v8851 = vunpack.c.l.b16 %v8835
    %v8852 = vunpack.c.l.b16 %v8836
    %v8853 = vunpack.c.l.b16 %v8837
    %v8854 = vunpack.c.l.b16 %v8838
    %v8855 = vunpack.c.l.b16 %v8839
    %v8856 = vunpack.c.l.b16 %v8840
    %v8857 = vunpack.c.l.b16 %v8841
    %v8858 = vunpack.c.l.b16 %v8842
    %v8859 = vpack.c.b16 %v8852, %v8851
    %v8860 = vpack.c.b16 %v8854, %v8853
    %v8861 = vpack.c.b16 %v8856, %v8855
    %v8862 = vpack.c.b16 %v8858, %v8857
    %8867 = vmatprep.subr.bf16.mxu0 0
    %8868 = vmatpush1.bf16.msra.mxu0 %v8730
    %8869 = vmatprep.subr.bf16.mxu0 0
    %8870 = vmatpush1.bf16.msra.mxu0 %v8731
    %8871 = vmatprep.subr.bf16.mxu0 0
    %8872 = vmatpush1.bf16.msra.mxu0 %v8732
    %8873 = vmatprep.subr.bf16.mxu0 0
    %8874 = vmatpush1.bf16.msra.mxu0 %v8733
    %8875 = vmatprep.subr.bf16.mxu0 0
    %8876 = vmatpush1.bf16.msra.mxu0 %v8734
    %8877 = vmatprep.subr.bf16.mxu0 0
    %8878 = vmatpush1.bf16.msra.mxu0 %v8735
    %8879 = vmatprep.subr.bf16.mxu0 0
    %8880 = vmatpush1.bf16.msra.mxu0 %v8736
    %8881 = vmatprep.subr.bf16.mxu0 0
    %8882 = vmatpush1.bf16.msra.mxu0 %v8737
    %8883 = vmatprep.subr.bf16.mxu0 0
    %8884 = vmatpush1.bf16.msra.mxu0 0
    %8885 = vmatprep.subr.bf16.mxu0 0
    %8886 = vmatpush1.bf16.msra.mxu0 0
    %8887 = vmatprep.subr.bf16.mxu0 0
    %8888 = vmatpush1.bf16.msra.mxu0 0
    %8889 = vmatprep.subr.bf16.mxu0 0
    %8890 = vmatpush1.bf16.msra.mxu0 0
    %8891 = vmatprep.subr.bf16.mxu0 0
    %8892 = vmatpush1.bf16.msra.mxu0 0
    %8893 = vmatprep.subr.bf16.mxu0 0
    %8894 = vmatpush1.bf16.msra.mxu0 0
    %8895 = vmatprep.subr.bf16.mxu0 0
    %8896 = vmatpush1.bf16.msra.mxu0 0
    %8897 = vmatprep.subr.bf16.mxu0 0
    %8898 = vmatpush1.bf16.msra.mxu0 0
    %8899 = vmatprep.mubr.bf16.mxu0 0
    %8900 = vmatmul.mubr.bf16.gmra.mrb[0].mxu0 %v8859
    %v8901 = vpop.f32.mrb[0].mxu0
    %v8902 = vadd.f32 0.0, %v8901
    %v8903 = vpop.f32.mrb[0].mxu0
    %v8904 = vpop.f32.mrb[0].mxu0
    %v8905 = vadd.f32 0.0, %v8904
    %v8906 = vpop.f32.mrb[0].mxu0
    %8907 = vmatprep.mubr.bf16.mxu0 0
    %8908 = vmatmul.mubr.bf16.gmra.mrb[0].mxu0 %v8860
    %v8909 = vpop.f32.mrb[0].mxu0
    %v8910 = vadd.f32 0.0, %v8909
    %v8911 = vpop.f32.mrb[0].mxu0
    %v8912 = vpop.f32.mrb[0].mxu0
    %v8913 = vadd.f32 0.0, %v8912
    %v8914 = vpop.f32.mrb[0].mxu0
    %8915 = vmatprep.mubr.bf16.mxu0 0
    %8916 = vmatmul.mubr.bf16.gmra.mrb[0].mxu0 %v8861
    %v8917 = vpop.f32.mrb[0].mxu0
    %v8918 = vadd.f32 0.0, %v8917
    %v8919 = vpop.f32.mrb[0].mxu0
    %v8920 = vpop.f32.mrb[0].mxu0
    %v8921 = vadd.f32 0.0, %v8920
    %v8922 = vpop.f32.mrb[0].mxu0
    %8923 = vmatprep.mubr.bf16.mxu0 0
    %8924 = vmatmul.mubr.bf16.gmra.mrb[0].mxu0 %v8862
    %v8925 = vpop.f32.mrb[0].mxu0
    %v8926 = vadd.f32 0.0, %v8925
    %v8927 = vpop.f32.mrb[0].mxu0
    %v8928 = vpop.f32.mrb[0].mxu0
    %v8929 = vadd.f32 0.0, %v8928
    %v8930 = vpop.f32.mrb[0].mxu0
    %8931 = vdwg.mxu0
    %v8932 = vmax.f32 %v8805, %v8902
    %v8933 = vmax.f32 %v8808, %v8905
    %v8934 = vmax.f32 %v8813, %v8910
    %v8935 = vmax.f32 %v8816, %v8913
    %v8936 = vmax.f32 %v8821, %v8918
    %v8937 = vmax.f32 %v8824, %v8921
    %v8938 = vmax.f32 %v8829, %v8926
    %v8939 = vmax.f32 %v8832, %v8929
    %v8940 = vpack.c.bf16 %v8933, %v8932
    %v8941 = vpack.c.bf16 %v8935, %v8934
    %v8942 = vpack.c.bf16 %v8937, %v8936
    %v8943 = vpack.c.bf16 %v8939, %v8938
    %v8948 = vunpack.c.l.b16 %v8940
    %v8949 = vunpack.c.h.b16 %v8940
    %v8950 = vunpack.c.l.b16 %v8941
    %v8951 = vunpack.c.h.b16 %v8941
    %v8952 = vunpack.c.l.b16 %v8942
    %v8953 = vunpack.c.h.b16 %v8942
    %v8954 = vunpack.c.l.b16 %v8943
    %v8955 = vunpack.c.h.b16 %v8943
    %v8956 = vpack.c.b16 %v8948, %v8948
    %v8957 = vpack.c.b16 %v8949, %v8949
    %v8958 = vpack.c.b16 %v8950, %v8950
    %v8959 = vpack.c.b16 %v8951, %v8951
    %v8960 = vpack.c.b16 %v8952, %v8952
    %v8961 = vpack.c.b16 %v8953, %v8953
    %v8962 = vpack.c.b16 %v8954, %v8954
    %v8963 = vpack.c.b16 %v8955, %v8955
    %v8965 = vshrl.u32 %v8956, 16
    %v8967 = vrot.slane %v8965, 7
    %v8968 = vshll.u32 %v8956, 16
    %v8970 = vor.u32 %v8967, %v8968
    %v8971 = vrot.slane %v8967, 4
    %v8973 = vshrl.u32 %v8957, 16
    %v8975 = vrot.slane %v8973, 7
    %v8976 = vshll.u32 %v8957, 16
    %v8978 = vor.u32 %v8975, %v8976
    %v8979 = vrot.slane %v8975, 4
    %v8981 = vshrl.u32 %v8958, 16
    %v8983 = vrot.slane %v8981, 7
    %v8984 = vshll.u32 %v8958, 16
    %v8986 = vor.u32 %v8983, %v8984
    %v8987 = vrot.slane %v8983, 4
    %v8989 = vshrl.u32 %v8959, 16
    %v8991 = vrot.slane %v8989, 7
    %v8992 = vshll.u32 %v8959, 16
    %v8994 = vor.u32 %v8991, %v8992
    %v8995 = vrot.slane %v8991, 4
    %v8997 = vshrl.u32 %v8960, 16
    %v8999 = vrot.slane %v8997, 7
    %v9000 = vshll.u32 %v8960, 16
    %v9002 = vor.u32 %v8999, %v9000
    %v9003 = vrot.slane %v8999, 4
    %v9005 = vshrl.u32 %v8961, 16
    %v9007 = vrot.slane %v9005, 7
    %v9008 = vshll.u32 %v8961, 16
    %v9010 = vor.u32 %v9007, %v9008
    %v9011 = vrot.slane %v9007, 4
    %v9013 = vshrl.u32 %v8962, 16
    %v9015 = vrot.slane %v9013, 7
    %v9016 = vshll.u32 %v8962, 16
    %v9018 = vor.u32 %v9015, %v9016
    %v9019 = vrot.slane %v9015, 4
    %v9021 = vshrl.u32 %v8963, 16
    %v9023 = vrot.slane %v9021, 7
    %v9024 = vshll.u32 %v8963, 16
    %v9026 = vor.u32 %v9023, %v9024
    %v9027 = vrot.slane %v9023, 4
    %s9044 = scalar_lea.vmem [#allocation2], 88
    %v9045 = vld [vmem:[%s9044] sm:$0xf]
    %v9046 = vsel %vm3835, %v8970, %v9045
    %9047 = vst [vmem:[%s9044] sm:$0xf] %v9046
    %v9048 = vld [vmem:[%s9044 + $0x4] sm:$0x1]
    %v9049 = vsel %vm3841, %v8971, %v9048
    %9050 = vst [vmem:[%s9044 + $0x4] sm:$0x1] %v9049
    %v9051 = vld [vmem:[%s9044 + $0x8] sm:$0xf]
    %v9052 = vsel %vm3835, %v8978, %v9051
    %9053 = vst [vmem:[%s9044 + $0x8] sm:$0xf] %v9052
    %v9054 = vld [vmem:[%s9044 + $0xc] sm:$0x1]
    %v9055 = vsel %vm3841, %v8979, %v9054
    %9056 = vst [vmem:[%s9044 + $0xc] sm:$0x1] %v9055
    %v9057 = vld [vmem:[%s9044 + $0x10] sm:$0xf]
    %v9058 = vsel %vm3835, %v8986, %v9057
    %9059 = vst [vmem:[%s9044 + $0x10] sm:$0xf] %v9058
    %v9060 = vld [vmem:[%s9044 + $0x14] sm:$0x1]
    %v9061 = vsel %vm3841, %v8987, %v9060
    %9062 = vst [vmem:[%s9044 + $0x14] sm:$0x1] %v9061
    %v9063 = vld [vmem:[%s9044 + $0x18] sm:$0xf]
    %v9064 = vsel %vm3835, %v8994, %v9063
    %9065 = vst [vmem:[%s9044 + $0x18] sm:$0xf] %v9064
    %v9066 = vld [vmem:[%s9044 + $0x1c] sm:$0x1]
    %v9067 = vsel %vm3841, %v8995, %v9066
    %9068 = vst [vmem:[%s9044 + $0x1c] sm:$0x1] %v9067
    %v9069 = vld [vmem:[%s9044 + $0x20] sm:$0xf]
    %v9070 = vsel %vm3835, %v9002, %v9069
    %9071 = vst [vmem:[%s9044 + $0x20] sm:$0xf] %v9070
    %v9072 = vld [vmem:[%s9044 + $0x24] sm:$0x1]
    %v9073 = vsel %vm3841, %v9003, %v9072
    %9074 = vst [vmem:[%s9044 + $0x24] sm:$0x1] %v9073
    %v9075 = vld [vmem:[%s9044 + $0x28] sm:$0xf]
    %v9076 = vsel %vm3835, %v9010, %v9075
    %9077 = vst [vmem:[%s9044 + $0x28] sm:$0xf] %v9076
    %v9078 = vld [vmem:[%s9044 + $0x2c] sm:$0x1]
    %v9079 = vsel %vm3841, %v9011, %v9078
    %9080 = vst [vmem:[%s9044 + $0x2c] sm:$0x1] %v9079
    %v9081 = vld [vmem:[%s9044 + $0x30] sm:$0xf]
    %v9082 = vsel %vm3835, %v9018, %v9081
    %9083 = vst [vmem:[%s9044 + $0x30] sm:$0xf] %v9082
    %v9084 = vld [vmem:[%s9044 + $0x34] sm:$0x1]
    %v9085 = vsel %vm3841, %v9019, %v9084
    %9086 = vst [vmem:[%s9044 + $0x34] sm:$0x1] %v9085
    %v9087 = vld [vmem:[%s9044 + $0x38] sm:$0xf]
    %v9088 = vsel %vm3835, %v9026, %v9087
    %9089 = vst [vmem:[%s9044 + $0x38] sm:$0xf] %v9088
    %v9090 = vld [vmem:[%s9044 + $0x3c] sm:$0x1]
    %v9091 = vsel %vm3841, %v9027, %v9090
    %9092 = vst [vmem:[%s9044 + $0x3c] sm:$0x1] %v9091
    %s9093 = scalar_lea.vmem [#allocation2], 80
    %v9094 = vld [vmem:[%s9093] sm:$0xf]
    %v9095 = vld [vmem:[%s9093 + $0x8] sm:$0xf]
    %v9096 = vld [vmem:[%s9093 + $0x10] sm:$0xf]
    %v9097 = vld [vmem:[%s9093 + $0x18] sm:$0xf]
    %v9098 = vld [vmem:[%s9093 + $0x20] sm:$0xf]
    %v9099 = vld [vmem:[%s9093 + $0x28] sm:$0xf]
    %v9100 = vld [vmem:[%s9093 + $0x30] sm:$0xf]
    %v9101 = vld [vmem:[%s9093 + $0x38] sm:$0xf]
    %v9110 = vunpack.c.l.b16 %v9094
    %v9111 = vunpack.c.l.b16 %v9095
    %v9112 = vunpack.c.l.b16 %v9096
    %v9113 = vunpack.c.l.b16 %v9097
    %v9114 = vunpack.c.l.b16 %v9098
    %v9115 = vunpack.c.l.b16 %v9099
    %v9116 = vunpack.c.l.b16 %v9100
    %v9117 = vunpack.c.l.b16 %v9101
    %v9118 = vpack.c.b16 %v9111, %v9110
    %v9119 = vpack.c.b16 %v9113, %v9112
    %v9120 = vpack.c.b16 %v9115, %v9114
    %v9121 = vpack.c.b16 %v9117, %v9116
    %9126 = vst.msk [vmem:[#allocation4] sm:$0xff] %vm3919, %v9118
    %9127 = vst.msk [vmem:[#allocation4 + $0x18] sm:$0xff] %vm3919, %v9119
    %9128 = vst.msk [vmem:[#allocation4 + $0x30] sm:$0xff] %vm3919, %v9120
    %9129 = vst.msk [vmem:[#allocation4 + $0x48] sm:$0xff] %vm3919, %v9121
    %v9130 = vld [vmem:[%s9093] sm:$0xf]
    %v9131 = vld [vmem:[%s9093 + $0x4] sm:$0x1]
    %v9132 = vld [vmem:[%s9093 + $0x8] sm:$0xf]
    %v9133 = vld [vmem:[%s9093 + $0xc] sm:$0x1]
    %v9134 = vld [vmem:[%s9093 + $0x10] sm:$0xf]
    %v9135 = vld [vmem:[%s9093 + $0x14] sm:$0x1]
    %v9136 = vld [vmem:[%s9093 + $0x18] sm:$0xf]
    %v9137 = vld [vmem:[%s9093 + $0x1c] sm:$0x1]
    %v9138 = vld [vmem:[%s9093 + $0x20] sm:$0xf]
    %v9139 = vld [vmem:[%s9093 + $0x24] sm:$0x1]
    %v9140 = vld [vmem:[%s9093 + $0x28] sm:$0xf]
    %v9141 = vld [vmem:[%s9093 + $0x2c] sm:$0x1]
    %v9142 = vld [vmem:[%s9093 + $0x30] sm:$0xf]
    %v9143 = vld [vmem:[%s9093 + $0x34] sm:$0x1]
    %v9144 = vld [vmem:[%s9093 + $0x38] sm:$0xf]
    %v9145 = vld [vmem:[%s9093 + $0x3c] sm:$0x1]
    %v9147 = vshrl.u32 %v9130, 16
    %v9149 = vrot.slane %v9147, 4
    %v9150 = vshll.u32 %v9130, 16
    %v9152 = vrot.slane %v9150, 5
    %v9153 = vor.u32 %v9149, %v9152
    %v9154 = vrot.slane %v9153, 4
    %v9156 = vshll.u32 %v9131, 16
    %v9158 = vrot.slane %v9156, 5
    %v9159 = vsel %vm305, %v9154, %v9158
    %v9161 = vshrl.u32 %v9132, 16
    %v9163 = vrot.slane %v9161, 4
    %v9164 = vshll.u32 %v9132, 16
    %v9166 = vrot.slane %v9164, 5
    %v9167 = vor.u32 %v9163, %v9166
    %v9168 = vrot.slane %v9167, 4
    %v9170 = vshll.u32 %v9133, 16
    %v9172 = vrot.slane %v9170, 5
    %v9173 = vsel %vm305, %v9168, %v9172
    %v9175 = vshrl.u32 %v9134, 16
    %v9177 = vrot.slane %v9175, 4
    %v9178 = vshll.u32 %v9134, 16
    %v9180 = vrot.slane %v9178, 5
    %v9181 = vor.u32 %v9177, %v9180
    %v9182 = vrot.slane %v9181, 4
    %v9184 = vshll.u32 %v9135, 16
    %v9186 = vrot.slane %v9184, 5
    %v9187 = vsel %vm305, %v9182, %v9186
    %v9189 = vshrl.u32 %v9136, 16
    %v9191 = vrot.slane %v9189, 4
    %v9192 = vshll.u32 %v9136, 16
    %v9194 = vrot.slane %v9192, 5
    %v9195 = vor.u32 %v9191, %v9194
    %v9196 = vrot.slane %v9195, 4
    %v9198 = vshll.u32 %v9137, 16
    %v9200 = vrot.slane %v9198, 5
    %v9201 = vsel %vm305, %v9196, %v9200
    %v9203 = vshrl.u32 %v9138, 16
    %v9205 = vrot.slane %v9203, 4
    %v9206 = vshll.u32 %v9138, 16
    %v9208 = vrot.slane %v9206, 5
    %v9209 = vor.u32 %v9205, %v9208
    %v9210 = vrot.slane %v9209, 4
    %v9212 = vshll.u32 %v9139, 16
    %v9214 = vrot.slane %v9212, 5
    %v9215 = vsel %vm305, %v9210, %v9214
    %v9217 = vshrl.u32 %v9140, 16
    %v9219 = vrot.slane %v9217, 4
    %v9220 = vshll.u32 %v9140, 16
    %v9222 = vrot.slane %v9220, 5
    %v9223 = vor.u32 %v9219, %v9222
    %v9224 = vrot.slane %v9223, 4
    %v9226 = vshll.u32 %v9141, 16
    %v9228 = vrot.slane %v9226, 5
    %v9229 = vsel %vm305, %v9224, %v9228
    %v9231 = vshrl.u32 %v9142, 16
    %v9233 = vrot.slane %v9231, 4
    %v9234 = vshll.u32 %v9142, 16
    %v9236 = vrot.slane %v9234, 5
    %v9237 = vor.u32 %v9233, %v9236
    %v9238 = vrot.slane %v9237, 4
    %v9240 = vshll.u32 %v9143, 16
    %v9242 = vrot.slane %v9240, 5
    %v9243 = vsel %vm305, %v9238, %v9242
    %v9245 = vshrl.u32 %v9144, 16
    %v9247 = vrot.slane %v9245, 4
    %v9248 = vshll.u32 %v9144, 16
    %v9250 = vrot.slane %v9248, 5
    %v9251 = vor.u32 %v9247, %v9250
    %v9252 = vrot.slane %v9251, 4
    %v9254 = vshll.u32 %v9145, 16
    %v9256 = vrot.slane %v9254, 5
    %v9257 = vsel %vm305, %v9252, %v9256
    %v9258 = vunpack.c.l.b16 %v9159
    %v9259 = vunpack.c.l.b16 %v9173
    %v9260 = vunpack.c.l.b16 %v9187
    %v9261 = vunpack.c.l.b16 %v9201
    %v9262 = vunpack.c.l.b16 %v9215
    %v9263 = vunpack.c.l.b16 %v9229
    %v9264 = vunpack.c.l.b16 %v9243
    %v9265 = vunpack.c.l.b16 %v9257
    %v9266 = vpack.c.b16 %v9259, %v9258
    %v9267 = vpack.c.b16 %v9261, %v9260
    %v9268 = vpack.c.b16 %v9263, %v9262
    %v9269 = vpack.c.b16 %v9265, %v9264
    %9270 = vrot.lane.b32.xlu0 %v9266, 32
    %v9271 = vpop.permute.xlu0 %9270
    %9272 = vrot.lane.b32.xlu0 %v9267, 32
    %v9273 = vpop.permute.xlu0 %9272
    %9274 = vrot.lane.b32.xlu0 %v9268, 32
    %v9275 = vpop.permute.xlu0 %9274
    %9276 = vrot.lane.b32.xlu0 %v9269, 32
    %v9277 = vpop.permute.xlu0 %9276
    %9282 = vst.msk [vmem:[#allocation4] sm:$0xff] %vm4076, %v9271
    %9283 = vst.msk [vmem:[#allocation4 + $0x18] sm:$0xff] %vm4076, %v9273
    %9284 = vst.msk [vmem:[#allocation4 + $0x30] sm:$0xff] %vm4076, %v9275
    %9285 = vst.msk [vmem:[#allocation4 + $0x48] sm:$0xff] %vm4076, %v9277
    %v9286 = vld [vmem:[%s9093] sm:$0xe]
    %v9287 = vld [vmem:[%s9093 + $0x4] sm:$0x1]
    %v9288 = vld [vmem:[%s9093 + $0x8] sm:$0xe]
    %v9289 = vld [vmem:[%s9093 + $0xc] sm:$0x1]
    %v9290 = vld [vmem:[%s9093 + $0x10] sm:$0xe]
    %v9291 = vld [vmem:[%s9093 + $0x14] sm:$0x1]
    %v9292 = vld [vmem:[%s9093 + $0x18] sm:$0xe]
    %v9293 = vld [vmem:[%s9093 + $0x1c] sm:$0x1]
    %v9294 = vld [vmem:[%s9093 + $0x20] sm:$0xe]
    %v9295 = vld [vmem:[%s9093 + $0x24] sm:$0x1]
    %v9296 = vld [vmem:[%s9093 + $0x28] sm:$0xe]
    %v9297 = vld [vmem:[%s9093 + $0x2c] sm:$0x1]
    %v9298 = vld [vmem:[%s9093 + $0x30] sm:$0xe]
    %v9299 = vld [vmem:[%s9093 + $0x34] sm:$0x1]
    %v9300 = vld [vmem:[%s9093 + $0x38] sm:$0xe]
    %v9301 = vld [vmem:[%s9093 + $0x3c] sm:$0x1]
    %v9318 = vrot.slane %v9286, 5
    %v9319 = vrot.slane %v9318, 4
    %v9320 = vrot.slane %v9287, 5
    %v9321 = vsel %vm901, %v9319, %v9320
    %v9322 = vrot.slane %v9288, 5
    %v9323 = vrot.slane %v9322, 4
    %v9324 = vrot.slane %v9289, 5
    %v9325 = vsel %vm901, %v9323, %v9324
    %v9326 = vrot.slane %v9290, 5
    %v9327 = vrot.slane %v9326, 4
    %v9328 = vrot.slane %v9291, 5
    %v9329 = vsel %vm901, %v9327, %v9328
    %v9330 = vrot.slane %v9292, 5
    %v9331 = vrot.slane %v9330, 4
    %v9332 = vrot.slane %v9293, 5
    %v9333 = vsel %vm901, %v9331, %v9332
    %v9334 = vrot.slane %v9294, 5
    %v9335 = vrot.slane %v9334, 4
    %v9336 = vrot.slane %v9295, 5
    %v9337 = vsel %vm901, %v9335, %v9336
    %v9338 = vrot.slane %v9296, 5
    %v9339 = vrot.slane %v9338, 4
    %v9340 = vrot.slane %v9297, 5
    %v9341 = vsel %vm901, %v9339, %v9340
    %v9342 = vrot.slane %v9298, 5
    %v9343 = vrot.slane %v9342, 4
    %v9344 = vrot.slane %v9299, 5
    %v9345 = vsel %vm901, %v9343, %v9344
    %v9346 = vrot.slane %v9300, 5
    %v9347 = vrot.slane %v9346, 4
    %v9348 = vrot.slane %v9301, 5
    %v9349 = vsel %vm901, %v9347, %v9348
    %v9350 = vunpack.c.l.b16 %v9321
    %v9351 = vunpack.c.l.b16 %v9325
    %v9352 = vunpack.c.l.b16 %v9329
    %v9353 = vunpack.c.l.b16 %v9333
    %v9354 = vunpack.c.l.b16 %v9337
    %v9355 = vunpack.c.l.b16 %v9341
    %v9356 = vunpack.c.l.b16 %v9345
    %v9357 = vunpack.c.l.b16 %v9349
    %v9358 = vpack.c.b16 %v9351, %v9350
    %v9359 = vpack.c.b16 %v9353, %v9352
    %v9360 = vpack.c.b16 %v9355, %v9354
    %v9361 = vpack.c.b16 %v9357, %v9356
    %9362 = vrot.lane.b32.xlu0 %v9358, 64
    %v9363 = vpop.permute.xlu0 %9362
    %9364 = vrot.lane.b32.xlu0 %v9359, 64
    %v9365 = vpop.permute.xlu0 %9364
    %9366 = vrot.lane.b32.xlu0 %v9360, 64
    %v9367 = vpop.permute.xlu0 %9366
    %9368 = vrot.lane.b32.xlu0 %v9361, 64
    %v9369 = vpop.permute.xlu0 %9368
    %9374 = vst.msk [vmem:[#allocation4] sm:$0xff] %vm4169, %v9363
    %9375 = vst.msk [vmem:[#allocation4 + $0x18] sm:$0xff] %vm4169, %v9365
    %9376 = vst.msk [vmem:[#allocation4 + $0x30] sm:$0xff] %vm4169, %v9367
    %9377 = vst.msk [vmem:[#allocation4 + $0x48] sm:$0xff] %vm4169, %v9369
    %v9378 = vld [vmem:[%s9044] sm:$0xf]
    %v9379 = vld [vmem:[%s9044 + $0x8] sm:$0xf]
    %v9380 = vld [vmem:[%s9044 + $0x10] sm:$0xf]
    %v9381 = vld [vmem:[%s9044 + $0x18] sm:$0xf]
    %v9382 = vld [vmem:[%s9044 + $0x20] sm:$0xf]
    %v9383 = vld [vmem:[%s9044 + $0x28] sm:$0xf]
    %v9384 = vld [vmem:[%s9044 + $0x30] sm:$0xf]
    %v9385 = vld [vmem:[%s9044 + $0x38] sm:$0xf]
    %v9394 = vunpack.c.l.b16 %v9378
    %v9395 = vunpack.c.l.b16 %v9379
    %v9396 = vunpack.c.l.b16 %v9380
    %v9397 = vunpack.c.l.b16 %v9381
    %v9398 = vunpack.c.l.b16 %v9382
    %v9399 = vunpack.c.l.b16 %v9383
    %v9400 = vunpack.c.l.b16 %v9384
    %v9401 = vunpack.c.l.b16 %v9385
    %v9402 = vpack.c.b16 %v9395, %v9394
    %v9403 = vpack.c.b16 %v9397, %v9396
    %v9404 = vpack.c.b16 %v9399, %v9398
    %v9405 = vpack.c.b16 %v9401, %v9400
    %9406 = vrot.lane.b32.xlu0 %v9402, 96
    %v9407 = vpop.permute.xlu0 %9406
    %9408 = vrot.lane.b32.xlu0 %v9403, 96
    %v9409 = vpop.permute.xlu0 %9408
    %9410 = vrot.lane.b32.xlu0 %v9404, 96
    %v9411 = vpop.permute.xlu0 %9410
    %9412 = vrot.lane.b32.xlu0 %v9405, 96
    %v9413 = vpop.permute.xlu0 %9412
    %9418 = vst.msk [vmem:[#allocation4] sm:$0xff] %vm4214, %v9407
    %9419 = vst.msk [vmem:[#allocation4 + $0x18] sm:$0xff] %vm4214, %v9409
    %9420 = vst.msk [vmem:[#allocation4 + $0x30] sm:$0xff] %vm4214, %v9411
    %9421 = vst.msk [vmem:[#allocation4 + $0x48] sm:$0xff] %vm4214, %v9413
    %v9422 = vld [vmem:[%s9044] sm:$0xf]
    %v9423 = vld [vmem:[%s9044 + $0x4] sm:$0x1]
    %v9424 = vld [vmem:[%s9044 + $0x8] sm:$0xf]
    %v9425 = vld [vmem:[%s9044 + $0xc] sm:$0x1]
    %v9426 = vld [vmem:[%s9044 + $0x10] sm:$0xf]
    %v9427 = vld [vmem:[%s9044 + $0x14] sm:$0x1]
    %v9428 = vld [vmem:[%s9044 + $0x18] sm:$0xf]
    %v9429 = vld [vmem:[%s9044 + $0x1c] sm:$0x1]
    %v9430 = vld [vmem:[%s9044 + $0x20] sm:$0xf]
    %v9431 = vld [vmem:[%s9044 + $0x24] sm:$0x1]
    %v9432 = vld [vmem:[%s9044 + $0x28] sm:$0xf]
    %v9433 = vld [vmem:[%s9044 + $0x2c] sm:$0x1]
    %v9434 = vld [vmem:[%s9044 + $0x30] sm:$0xf]
    %v9435 = vld [vmem:[%s9044 + $0x34] sm:$0x1]
    %v9436 = vld [vmem:[%s9044 + $0x38] sm:$0xf]
    %v9437 = vld [vmem:[%s9044 + $0x3c] sm:$0x1]
    %v9439 = vshrl.u32 %v9422, 16
    %v9441 = vrot.slane %v9439, 4
    %v9442 = vshll.u32 %v9422, 16
    %v9444 = vrot.slane %v9442, 5
    %v9445 = vor.u32 %v9441, %v9444
    %v9446 = vrot.slane %v9445, 4
    %v9448 = vshll.u32 %v9423, 16
    %v9450 = vrot.slane %v9448, 5
    %v9451 = vsel %vm305, %v9446, %v9450
    %v9453 = vshrl.u32 %v9424, 16
    %v9455 = vrot.slane %v9453, 4
    %v9456 = vshll.u32 %v9424, 16
    %v9458 = vrot.slane %v9456, 5
    %v9459 = vor.u32 %v9455, %v9458
    %v9460 = vrot.slane %v9459, 4
    %v9462 = vshll.u32 %v9425, 16
    %v9464 = vrot.slane %v9462, 5
    %v9465 = vsel %vm305, %v9460, %v9464
    %v9467 = vshrl.u32 %v9426, 16
    %v9469 = vrot.slane %v9467, 4
    %v9470 = vshll.u32 %v9426, 16
    %v9472 = vrot.slane %v9470, 5
    %v9473 = vor.u32 %v9469, %v9472
    %v9474 = vrot.slane %v9473, 4
    %v9476 = vshll.u32 %v9427, 16
    %v9478 = vrot.slane %v9476, 5
    %v9479 = vsel %vm305, %v9474, %v9478
    %v9481 = vshrl.u32 %v9428, 16
    %v9483 = vrot.slane %v9481, 4
    %v9484 = vshll.u32 %v9428, 16
    %v9486 = vrot.slane %v9484, 5
    %v9487 = vor.u32 %v9483, %v9486
    %v9488 = vrot.slane %v9487, 4
    %v9490 = vshll.u32 %v9429, 16
    %v9492 = vrot.slane %v9490, 5
    %v9493 = vsel %vm305, %v9488, %v9492
    %v9495 = vshrl.u32 %v9430, 16
    %v9497 = vrot.slane %v9495, 4
    %v9498 = vshll.u32 %v9430, 16
    %v9500 = vrot.slane %v9498, 5
    %v9501 = vor.u32 %v9497, %v9500
    %v9502 = vrot.slane %v9501, 4
    %v9504 = vshll.u32 %v9431, 16
    %v9506 = vrot.slane %v9504, 5
    %v9507 = vsel %vm305, %v9502, %v9506
    %v9509 = vshrl.u32 %v9432, 16
    %v9511 = vrot.slane %v9509, 4
    %v9512 = vshll.u32 %v9432, 16
    %v9514 = vrot.slane %v9512, 5
    %v9515 = vor.u32 %v9511, %v9514
    %v9516 = vrot.slane %v9515, 4
    %v9518 = vshll.u32 %v9433, 16
    %v9520 = vrot.slane %v9518, 5
    %v9521 = vsel %vm305, %v9516, %v9520
    %v9523 = vshrl.u32 %v9434, 16
    %v9525 = vrot.slane %v9523, 4
    %v9526 = vshll.u32 %v9434, 16
    %v9528 = vrot.slane %v9526, 5
    %v9529 = vor.u32 %v9525, %v9528
    %v9530 = vrot.slane %v9529, 4
    %v9532 = vshll.u32 %v9435, 16
    %v9534 = vrot.slane %v9532, 5
    %v9535 = vsel %vm305, %v9530, %v9534
    %v9537 = vshrl.u32 %v9436, 16
    %v9539 = vrot.slane %v9537, 4
    %v9540 = vshll.u32 %v9436, 16
    %v9542 = vrot.slane %v9540, 5
    %v9543 = vor.u32 %v9539, %v9542
    %v9544 = vrot.slane %v9543, 4
    %v9546 = vshll.u32 %v9437, 16
    %v9548 = vrot.slane %v9546, 5
    %v9549 = vsel %vm305, %v9544, %v9548
    %v9550 = vunpack.c.l.b16 %v9451
    %v9551 = vunpack.c.l.b16 %v9465
    %v9552 = vunpack.c.l.b16 %v9479
    %v9553 = vunpack.c.l.b16 %v9493
    %v9554 = vunpack.c.l.b16 %v9507
    %v9555 = vunpack.c.l.b16 %v9521
    %v9556 = vunpack.c.l.b16 %v9535
    %v9557 = vunpack.c.l.b16 %v9549
    %v9558 = vpack.c.b16 %v9551, %v9550
    %v9559 = vpack.c.b16 %v9553, %v9552
    %v9560 = vpack.c.b16 %v9555, %v9554
    %v9561 = vpack.c.b16 %v9557, %v9556
    %9566 = vst.msk [vmem:[#allocation4 + $0x8] sm:$0xff] %vm3919, %v9558
    %9567 = vst.msk [vmem:[#allocation4 + $0x20] sm:$0xff] %vm3919, %v9559
    %9568 = vst.msk [vmem:[#allocation4 + $0x38] sm:$0xff] %vm3919, %v9560
    %9569 = vst.msk [vmem:[#allocation4 + $0x50] sm:$0xff] %vm3919, %v9561
    %v9570 = vld [vmem:[%s9044] sm:$0xe]
    %v9571 = vld [vmem:[%s9044 + $0x4] sm:$0x1]
    %v9572 = vld [vmem:[%s9044 + $0x8] sm:$0xe]
    %v9573 = vld [vmem:[%s9044 + $0xc] sm:$0x1]
    %v9574 = vld [vmem:[%s9044 + $0x10] sm:$0xe]
    %v9575 = vld [vmem:[%s9044 + $0x14] sm:$0x1]
    %v9576 = vld [vmem:[%s9044 + $0x18] sm:$0xe]
    %v9577 = vld [vmem:[%s9044 + $0x1c] sm:$0x1]
    %v9578 = vld [vmem:[%s9044 + $0x20] sm:$0xe]
    %v9579 = vld [vmem:[%s9044 + $0x24] sm:$0x1]
    %v9580 = vld [vmem:[%s9044 + $0x28] sm:$0xe]
    %v9581 = vld [vmem:[%s9044 + $0x2c] sm:$0x1]
    %v9582 = vld [vmem:[%s9044 + $0x30] sm:$0xe]
    %v9583 = vld [vmem:[%s9044 + $0x34] sm:$0x1]
    %v9584 = vld [vmem:[%s9044 + $0x38] sm:$0xe]
    %v9585 = vld [vmem:[%s9044 + $0x3c] sm:$0x1]
    %v9602 = vrot.slane %v9570, 5
    %v9603 = vrot.slane %v9602, 4
    %v9604 = vrot.slane %v9571, 5
    %v9605 = vsel %vm901, %v9603, %v9604
    %v9606 = vrot.slane %v9572, 5
    %v9607 = vrot.slane %v9606, 4
    %v9608 = vrot.slane %v9573, 5
    %v9609 = vsel %vm901, %v9607, %v9608
    %v9610 = vrot.slane %v9574, 5
    %v9611 = vrot.slane %v9610, 4
    %v9612 = vrot.slane %v9575, 5
    %v9613 = vsel %vm901, %v9611, %v9612
    %v9614 = vrot.slane %v9576, 5
    %v9615 = vrot.slane %v9614, 4
    %v9616 = vrot.slane %v9577, 5
    %v9617 = vsel %vm901, %v9615, %v9616
    %v9618 = vrot.slane %v9578, 5
    %v9619 = vrot.slane %v9618, 4
    %v9620 = vrot.slane %v9579, 5
    %v9621 = vsel %vm901, %v9619, %v9620
    %v9622 = vrot.slane %v9580, 5
    %v9623 = vrot.slane %v9622, 4
    %v9624 = vrot.slane %v9581, 5
    %v9625 = vsel %vm901, %v9623, %v9624
    %v9626 = vrot.slane %v9582, 5
    %v9627 = vrot.slane %v9626, 4
    %v9628 = vrot.slane %v9583, 5
    %v9629 = vsel %vm901, %v9627, %v9628
    %v9630 = vrot.slane %v9584, 5
    %v9631 = vrot.slane %v9630, 4
    %v9632 = vrot.slane %v9585, 5
    %v9633 = vsel %vm901, %v9631, %v9632
    %v9634 = vunpack.c.l.b16 %v9605
    %v9635 = vunpack.c.l.b16 %v9609
    %v9636 = vunpack.c.l.b16 %v9613
    %v9637 = vunpack.c.l.b16 %v9617
    %v9638 = vunpack.c.l.b16 %v9621
    %v9639 = vunpack.c.l.b16 %v9625
    %v9640 = vunpack.c.l.b16 %v9629
    %v9641 = vunpack.c.l.b16 %v9633
    %v9642 = vpack.c.b16 %v9635, %v9634
    %v9643 = vpack.c.b16 %v9637, %v9636
    %v9644 = vpack.c.b16 %v9639, %v9638
    %v9645 = vpack.c.b16 %v9641, %v9640
    %9646 = vrot.lane.b32.xlu0 %v9642, 32
    %v9647 = vpop.permute.xlu0 %9646
    %9648 = vrot.lane.b32.xlu0 %v9643, 32
    %v9649 = vpop.permute.xlu0 %9648
    %9650 = vrot.lane.b32.xlu0 %v9644, 32
    %v9651 = vpop.permute.xlu0 %9650
    %9652 = vrot.lane.b32.xlu0 %v9645, 32
    %v9653 = vpop.permute.xlu0 %9652
    %9658 = vst.msk [vmem:[#allocation4 + $0x8] sm:$0xff] %vm4076, %v9647
    %9659 = vst.msk [vmem:[#allocation4 + $0x20] sm:$0xff] %vm4076, %v9649
    %9660 = vst.msk [vmem:[#allocation4 + $0x38] sm:$0xff] %vm4076, %v9651
    %9661 = vst.msk [vmem:[#allocation4 + $0x50] sm:$0xff] %vm4076, %v9653
    %s9662 = scalar_lea.vmem [#allocation2], 96
    %v9663 = vld [vmem:[%s9662] sm:$0xf]
    %v9664 = vld [vmem:[%s9662 + $0x8] sm:$0xf]
    %v9665 = vld [vmem:[%s9662 + $0x10] sm:$0xf]
    %v9666 = vld [vmem:[%s9662 + $0x18] sm:$0xf]
    %v9667 = vld [vmem:[%s9662 + $0x20] sm:$0xf]
    %v9668 = vld [vmem:[%s9662 + $0x28] sm:$0xf]
    %v9669 = vld [vmem:[%s9662 + $0x30] sm:$0xf]
    %v9670 = vld [vmem:[%s9662 + $0x38] sm:$0xf]
    %v9679 = vunpack.c.l.b16 %v9663
    %v9680 = vunpack.c.l.b16 %v9664
    %v9681 = vunpack.c.l.b16 %v9665
    %v9682 = vunpack.c.l.b16 %v9666
    %v9683 = vunpack.c.l.b16 %v9667
    %v9684 = vunpack.c.l.b16 %v9668
    %v9685 = vunpack.c.l.b16 %v9669
    %v9686 = vunpack.c.l.b16 %v9670
    %v9687 = vpack.c.b16 %v9680, %v9679
    %v9688 = vpack.c.b16 %v9682, %v9681
    %v9689 = vpack.c.b16 %v9684, %v9683
    %v9690 = vpack.c.b16 %v9686, %v9685
    %9691 = vrot.lane.b32.xlu0 %v9687, 64
    %v9692 = vpop.permute.xlu0 %9691
    %9693 = vrot.lane.b32.xlu0 %v9688, 64
    %v9694 = vpop.permute.xlu0 %9693
    %9695 = vrot.lane.b32.xlu0 %v9689, 64
    %v9696 = vpop.permute.xlu0 %9695
    %9697 = vrot.lane.b32.xlu0 %v9690, 64
    %v9698 = vpop.permute.xlu0 %9697
    %9703 = vst.msk [vmem:[#allocation4 + $0x8] sm:$0xff] %vm4169, %v9692
    %9704 = vst.msk [vmem:[#allocation4 + $0x20] sm:$0xff] %vm4169, %v9694
    %9705 = vst.msk [vmem:[#allocation4 + $0x38] sm:$0xff] %vm4169, %v9696
    %9706 = vst.msk [vmem:[#allocation4 + $0x50] sm:$0xff] %vm4169, %v9698
    %v9707 = vld [vmem:[%s9662] sm:$0xf]
    %v9708 = vld [vmem:[%s9662 + $0x4] sm:$0x1]
    %v9709 = vld [vmem:[%s9662 + $0x8] sm:$0xf]
    %v9710 = vld [vmem:[%s9662 + $0xc] sm:$0x1]
    %v9711 = vld [vmem:[%s9662 + $0x10] sm:$0xf]
    %v9712 = vld [vmem:[%s9662 + $0x14] sm:$0x1]
    %v9713 = vld [vmem:[%s9662 + $0x18] sm:$0xf]
    %v9714 = vld [vmem:[%s9662 + $0x1c] sm:$0x1]
    %v9715 = vld [vmem:[%s9662 + $0x20] sm:$0xf]
    %v9716 = vld [vmem:[%s9662 + $0x24] sm:$0x1]
    %v9717 = vld [vmem:[%s9662 + $0x28] sm:$0xf]
    %v9718 = vld [vmem:[%s9662 + $0x2c] sm:$0x1]
    %v9719 = vld [vmem:[%s9662 + $0x30] sm:$0xf]
    %v9720 = vld [vmem:[%s9662 + $0x34] sm:$0x1]
    %v9721 = vld [vmem:[%s9662 + $0x38] sm:$0xf]
    %v9722 = vld [vmem:[%s9662 + $0x3c] sm:$0x1]
    %v9724 = vshrl.u32 %v9707, 16
    %v9726 = vrot.slane %v9724, 4
    %v9727 = vshll.u32 %v9707, 16
    %v9729 = vrot.slane %v9727, 5
    %v9730 = vor.u32 %v9726, %v9729
    %v9731 = vrot.slane %v9730, 4
    %v9733 = vshll.u32 %v9708, 16
    %v9735 = vrot.slane %v9733, 5
    %v9736 = vsel %vm305, %v9731, %v9735
    %v9738 = vshrl.u32 %v9709, 16
    %v9740 = vrot.slane %v9738, 4
    %v9741 = vshll.u32 %v9709, 16
    %v9743 = vrot.slane %v9741, 5
    %v9744 = vor.u32 %v9740, %v9743
    %v9745 = vrot.slane %v9744, 4
    %v9747 = vshll.u32 %v9710, 16
    %v9749 = vrot.slane %v9747, 5
    %v9750 = vsel %vm305, %v9745, %v9749
    %v9752 = vshrl.u32 %v9711, 16
    %v9754 = vrot.slane %v9752, 4
    %v9755 = vshll.u32 %v9711, 16
    %v9757 = vrot.slane %v9755, 5
    %v9758 = vor.u32 %v9754, %v9757
    %v9759 = vrot.slane %v9758, 4
    %v9761 = vshll.u32 %v9712, 16
    %v9763 = vrot.slane %v9761, 5
    %v9764 = vsel %vm305, %v9759, %v9763
    %v9766 = vshrl.u32 %v9713, 16
    %v9768 = vrot.slane %v9766, 4
    %v9769 = vshll.u32 %v9713, 16
    %v9771 = vrot.slane %v9769, 5
    %v9772 = vor.u32 %v9768, %v9771
    %v9773 = vrot.slane %v9772, 4
    %v9775 = vshll.u32 %v9714, 16
    %v9777 = vrot.slane %v9775, 5
    %v9778 = vsel %vm305, %v9773, %v9777
    %v9780 = vshrl.u32 %v9715, 16
    %v9782 = vrot.slane %v9780, 4
    %v9783 = vshll.u32 %v9715, 16
    %v9785 = vrot.slane %v9783, 5
    %v9786 = vor.u32 %v9782, %v9785
    %v9787 = vrot.slane %v9786, 4
    %v9789 = vshll.u32 %v9716, 16
    %v9791 = vrot.slane %v9789, 5
    %v9792 = vsel %vm305, %v9787, %v9791
    %v9794 = vshrl.u32 %v9717, 16
    %v9796 = vrot.slane %v9794, 4
    %v9797 = vshll.u32 %v9717, 16
    %v9799 = vrot.slane %v9797, 5
    %v9800 = vor.u32 %v9796, %v9799
    %v9801 = vrot.slane %v9800, 4
    %v9803 = vshll.u32 %v9718, 16
    %v9805 = vrot.slane %v9803, 5
    %v9806 = vsel %vm305, %v9801, %v9805
    %v9808 = vshrl.u32 %v9719, 16
    %v9810 = vrot.slane %v9808, 4
    %v9811 = vshll.u32 %v9719, 16
    %v9813 = vrot.slane %v9811, 5
    %v9814 = vor.u32 %v9810, %v9813
    %v9815 = vrot.slane %v9814, 4
    %v9817 = vshll.u32 %v9720, 16
    %v9819 = vrot.slane %v9817, 5
    %v9820 = vsel %vm305, %v9815, %v9819
    %v9822 = vshrl.u32 %v9721, 16
    %v9824 = vrot.slane %v9822, 4
    %v9825 = vshll.u32 %v9721, 16
    %v9827 = vrot.slane %v9825, 5
    %v9828 = vor.u32 %v9824, %v9827
    %v9829 = vrot.slane %v9828, 4
    %v9831 = vshll.u32 %v9722, 16
    %v9833 = vrot.slane %v9831, 5
    %v9834 = vsel %vm305, %v9829, %v9833
    %v9835 = vunpack.c.l.b16 %v9736
    %v9836 = vunpack.c.l.b16 %v9750
    %v9837 = vunpack.c.l.b16 %v9764
    %v9838 = vunpack.c.l.b16 %v9778
    %v9839 = vunpack.c.l.b16 %v9792
    %v9840 = vunpack.c.l.b16 %v9806
    %v9841 = vunpack.c.l.b16 %v9820
    %v9842 = vunpack.c.l.b16 %v9834
    %v9843 = vpack.c.b16 %v9836, %v9835
    %v9844 = vpack.c.b16 %v9838, %v9837
    %v9845 = vpack.c.b16 %v9840, %v9839
    %v9846 = vpack.c.b16 %v9842, %v9841
    %9847 = vrot.lane.b32.xlu0 %v9843, 96
    %v9848 = vpop.permute.xlu0 %9847
    %9849 = vrot.lane.b32.xlu0 %v9844, 96
    %v9850 = vpop.permute.xlu0 %9849
    %9851 = vrot.lane.b32.xlu0 %v9845, 96
    %v9852 = vpop.permute.xlu0 %9851
    %9853 = vrot.lane.b32.xlu0 %v9846, 96
    %v9854 = vpop.permute.xlu0 %9853
    %9859 = vst.msk [vmem:[#allocation4 + $0x8] sm:$0xff] %vm4214, %v9848
    %9860 = vst.msk [vmem:[#allocation4 + $0x20] sm:$0xff] %vm4214, %v9850
    %9861 = vst.msk [vmem:[#allocation4 + $0x38] sm:$0xff] %vm4214, %v9852
    %9862 = vst.msk [vmem:[#allocation4 + $0x50] sm:$0xff] %vm4214, %v9854
    %v9863 = vld [vmem:[%s9662] sm:$0xe]
    %v9864 = vld [vmem:[%s9662 + $0x4] sm:$0x1]
    %v9865 = vld [vmem:[%s9662 + $0x8] sm:$0xe]
    %v9866 = vld [vmem:[%s9662 + $0xc] sm:$0x1]
    %v9867 = vld [vmem:[%s9662 + $0x10] sm:$0xe]
    %v9868 = vld [vmem:[%s9662 + $0x14] sm:$0x1]
    %v9869 = vld [vmem:[%s9662 + $0x18] sm:$0xe]
    %v9870 = vld [vmem:[%s9662 + $0x1c] sm:$0x1]
    %v9871 = vld [vmem:[%s9662 + $0x20] sm:$0xe]
    %v9872 = vld [vmem:[%s9662 + $0x24] sm:$0x1]
    %v9873 = vld [vmem:[%s9662 + $0x28] sm:$0xe]
    %v9874 = vld [vmem:[%s9662 + $0x2c] sm:$0x1]
    %v9875 = vld [vmem:[%s9662 + $0x30] sm:$0xe]
    %v9876 = vld [vmem:[%s9662 + $0x34] sm:$0x1]
    %v9877 = vld [vmem:[%s9662 + $0x38] sm:$0xe]
    %v9878 = vld [vmem:[%s9662 + $0x3c] sm:$0x1]
    %v9895 = vrot.slane %v9863, 5
    %v9896 = vrot.slane %v9895, 4
    %v9897 = vrot.slane %v9864, 5
    %v9898 = vsel %vm901, %v9896, %v9897
    %v9899 = vrot.slane %v9865, 5
    %v9900 = vrot.slane %v9899, 4
    %v9901 = vrot.slane %v9866, 5
    %v9902 = vsel %vm901, %v9900, %v9901
    %v9903 = vrot.slane %v9867, 5
    %v9904 = vrot.slane %v9903, 4
    %v9905 = vrot.slane %v9868, 5
    %v9906 = vsel %vm901, %v9904, %v9905
    %v9907 = vrot.slane %v9869, 5
    %v9908 = vrot.slane %v9907, 4
    %v9909 = vrot.slane %v9870, 5
    %v9910 = vsel %vm901, %v9908, %v9909
    %v9911 = vrot.slane %v9871, 5
    %v9912 = vrot.slane %v9911, 4
    %v9913 = vrot.slane %v9872, 5
    %v9914 = vsel %vm901, %v9912, %v9913
    %v9915 = vrot.slane %v9873, 5
    %v9916 = vrot.slane %v9915, 4
    %v9917 = vrot.slane %v9874, 5
    %v9918 = vsel %vm901, %v9916, %v9917
    %v9919 = vrot.slane %v9875, 5
    %v9920 = vrot.slane %v9919, 4
    %v9921 = vrot.slane %v9876, 5
    %v9922 = vsel %vm901, %v9920, %v9921
    %v9923 = vrot.slane %v9877, 5
    %v9924 = vrot.slane %v9923, 4
    %v9925 = vrot.slane %v9878, 5
    %v9926 = vsel %vm901, %v9924, %v9925
    %v9927 = vunpack.c.l.b16 %v9898
    %v9928 = vunpack.c.l.b16 %v9902
    %v9929 = vunpack.c.l.b16 %v9906
    %v9930 = vunpack.c.l.b16 %v9910
    %v9931 = vunpack.c.l.b16 %v9914
    %v9932 = vunpack.c.l.b16 %v9918
    %v9933 = vunpack.c.l.b16 %v9922
    %v9934 = vunpack.c.l.b16 %v9926
    %v9935 = vpack.c.b16 %v9928, %v9927
    %v9936 = vpack.c.b16 %v9930, %v9929
    %v9937 = vpack.c.b16 %v9932, %v9931
    %v9938 = vpack.c.b16 %v9934, %v9933
    %9943 = vst.msk [vmem:[#allocation4 + $0x10] sm:$0xff] %vm3919, %v9935
    %9944 = vst.msk [vmem:[#allocation4 + $0x28] sm:$0xff] %vm3919, %v9936
    %9945 = vst.msk [vmem:[#allocation4 + $0x40] sm:$0xff] %vm3919, %v9937
    %9946 = vst.msk [vmem:[#allocation4 + $0x58] sm:$0xff] %vm3919, %v9938
    %v9947 = vld [vmem:[#allocation4] sm:$0xff]
    %v9948 = vld [vmem:[#allocation4 + $0x8] sm:$0xff]
    %v9949 = vld [vmem:[#allocation4 + $0x10] sm:$0xff]
    %v9950 = vld [vmem:[#allocation4 + $0x18] sm:$0xff]
    %v9951 = vld [vmem:[#allocation4 + $0x20] sm:$0xff]
    %v9952 = vld [vmem:[#allocation4 + $0x28] sm:$0xff]
    %v9953 = vld [vmem:[#allocation4 + $0x30] sm:$0xff]
    %v9954 = vld [vmem:[#allocation4 + $0x38] sm:$0xff]
    %v9955 = vld [vmem:[#allocation4 + $0x40] sm:$0xff]
    %v9956 = vld [vmem:[#allocation4 + $0x48] sm:$0xff]
    %v9957 = vld [vmem:[#allocation4 + $0x50] sm:$0xff]
    %v9958 = vld [vmem:[#allocation4 + $0x58] sm:$0xff]
    %v9959 = vld [vmem:[%s4] sm:$0xf]
    %v9960 = vld [vmem:[%s4 + $0x4] sm:$0xf]
    %v9961 = vld [vmem:[%s4 + $0x8] sm:$0xf]
    %v9962 = vld [vmem:[%s4 + $0xc] sm:$0xf]
    %v9963 = vld [vmem:[%s4 + $0x10] sm:$0xf]
    %v9964 = vld [vmem:[%s4 + $0x14] sm:$0xf]
    %v9965 = vld [vmem:[%s4 + $0x18] sm:$0xf]
    %v9966 = vld [vmem:[%s4 + $0x1c] sm:$0xf]
    %v9967 = vld [vmem:[%s4 + $0x20] sm:$0xf]
    %v9968 = vld [vmem:[%s4 + $0x24] sm:$0xf]
    %v9969 = vld [vmem:[%s4 + $0x28] sm:$0xf]
    %v9970 = vld [vmem:[%s4 + $0x2c] sm:$0xf]
    %v9971 = vld [vmem:[%s4 + $0x30] sm:$0xf]
    %v9972 = vld [vmem:[%s4 + $0x34] sm:$0xf]
    %v9973 = vld [vmem:[%s4 + $0x38] sm:$0xf]
    %v9974 = vld [vmem:[%s4 + $0x3c] sm:$0xf]
    %v9975 = vld [vmem:[%s4 + $0x40] sm:$0xf]
    %v9976 = vld [vmem:[%s4 + $0x44] sm:$0xf]
    %v9977 = vld [vmem:[%s4 + $0x48] sm:$0xf]
    %v9978 = vld [vmem:[%s4 + $0x4c] sm:$0xf]
    %v9979 = vld [vmem:[%s4 + $0x50] sm:$0xf]
    %v9980 = vld [vmem:[%s4 + $0x54] sm:$0xf]
    %v9981 = vld [vmem:[%s4 + $0x58] sm:$0xf]
    %v9982 = vld [vmem:[%s4 + $0x5c] sm:$0xf]
    %v9983 = vld [vmem:[%s4 + $0x60] sm:$0xf]
    %v9984 = vld [vmem:[%s4 + $0x64] sm:$0xf]
    %v9985 = vld [vmem:[%s4 + $0x68] sm:$0xf]
    %v9986 = vld [vmem:[%s4 + $0x6c] sm:$0xf]
    %v9987 = vld [vmem:[%s4 + $0x70] sm:$0xf]
    %v9988 = vld [vmem:[%s4 + $0x74] sm:$0xf]
    %v9989 = vld [vmem:[%s4 + $0x78] sm:$0xf]
    %v9990 = vld [vmem:[%s4 + $0x7c] sm:$0xf]
    %v9991 = vld [vmem:[%s4 + $0x80] sm:$0xf]
    %v9992 = vld [vmem:[%s4 + $0x84] sm:$0xf]
    %v9993 = vld [vmem:[%s4 + $0x88] sm:$0xf]
    %v9994 = vld [vmem:[%s4 + $0x8c] sm:$0xf]
    %v9995 = vld [vmem:[%s5] sm:$0x1]
    %v9997 = vlaneseq
    %v9998 = vshrl.u32 %v9997, 7
    %v9999 = vsub.s32 0, %v9998
    %v10000 = vrot.slane %v9995, %v9999
    %v10038 = vunpack.c.l.b16 %v9959
    %v10039 = vunpack.c.l.b16 %v9960
    %v10040 = vunpack.c.l.b16 %v9961
    %v10041 = vunpack.c.l.b16 %v9962
    %v10042 = vunpack.c.l.b16 %v9963
    %v10043 = vunpack.c.l.b16 %v9964
    %v10044 = vunpack.c.l.b16 %v9965
    %v10045 = vunpack.c.l.b16 %v9966
    %v10046 = vunpack.c.l.b16 %v9967
    %v10047 = vunpack.c.l.b16 %v9968
    %v10048 = vunpack.c.l.b16 %v9969
    %v10049 = vunpack.c.l.b16 %v9970
    %v10050 = vunpack.c.l.b16 %v9971
    %v10051 = vunpack.c.l.b16 %v9972
    %v10052 = vunpack.c.l.b16 %v9973
    %v10053 = vunpack.c.l.b16 %v9974
    %v10054 = vunpack.c.l.b16 %v9975
    %v10055 = vunpack.c.l.b16 %v9976
    %v10056 = vunpack.c.l.b16 %v9977
    %v10057 = vunpack.c.l.b16 %v9978
    %v10058 = vunpack.c.l.b16 %v9979
    %v10059 = vunpack.c.l.b16 %v9980
    %v10060 = vunpack.c.l.b16 %v9981
    %v10061 = vunpack.c.l.b16 %v9982
    %v10062 = vunpack.c.l.b16 %v9983
    %v10063 = vunpack.c.l.b16 %v9984
    %v10064 = vunpack.c.l.b16 %v9985
    %v10065 = vunpack.c.l.b16 %v9986
    %v10066 = vunpack.c.l.b16 %v9987
    %v10067 = vunpack.c.l.b16 %v9988
    %v10068 = vunpack.c.l.b16 %v9989
    %v10069 = vunpack.c.l.b16 %v9990
    %v10070 = vunpack.c.l.b16 %v9991
    %v10071 = vunpack.c.l.b16 %v9992
    %v10072 = vunpack.c.l.b16 %v9993
    %v10073 = vunpack.c.l.b16 %v9994
    %v10074 = vpack.c.b16 %v10039, %v10038
    %v10075 = vpack.c.b16 %v10041, %v10040
    %v10076 = vpack.c.b16 %v10043, %v10042
    %v10077 = vpack.c.b16 %v10045, %v10044
    %v10078 = vpack.c.b16 %v10047, %v10046
    %v10079 = vpack.c.b16 %v10049, %v10048
    %v10080 = vpack.c.b16 %v10051, %v10050
    %v10081 = vpack.c.b16 %v10053, %v10052
    %v10082 = vpack.c.b16 %v10055, %v10054
    %v10083 = vpack.c.b16 %v10057, %v10056
    %v10084 = vpack.c.b16 %v10059, %v10058
    %v10085 = vpack.c.b16 %v10061, %v10060
    %v10086 = vpack.c.b16 %v10063, %v10062
    %v10087 = vpack.c.b16 %v10065, %v10064
    %v10088 = vpack.c.b16 %v10067, %v10066
    %v10089 = vpack.c.b16 %v10069, %v10068
    %v10090 = vpack.c.b16 %v10071, %v10070
    %v10091 = vpack.c.b16 %v10073, %v10072
    %v10111 = vsel %vm3919, %v9949, 0
    %v10114 = vsel %vm3919, %v9952, 0
    %v10117 = vsel %vm3919, %v9955, 0
    %v10120 = vsel %vm3919, %v9958, 0
    %10122 = vmatprep.subr.bf16.mxu0 0
    %10123 = vmatpush1.bf16.msra.mxu0 %v10074
    %10124 = vmatprep.subr.bf16.mxu0 0
    %10125 = vmatpush1.bf16.msra.mxu0 %v10075
    %10126 = vmatprep.subr.bf16.mxu0 0
    %10127 = vmatpush1.bf16.msra.mxu0 %v10076
    %10128 = vmatprep.subr.bf16.mxu0 0
    %10129 = vmatpush1.bf16.msra.mxu0 %v10077
    %10130 = vmatprep.subr.bf16.mxu0 0
    %10131 = vmatpush1.bf16.msra.mxu0 %v10078
    %10132 = vmatprep.subr.bf16.mxu0 0
    %10133 = vmatpush1.bf16.msra.mxu0 %v10079
    %10134 = vmatprep.subr.bf16.mxu0 0
    %10135 = vmatpush1.bf16.msra.mxu0 %v10080
    %10136 = vmatprep.subr.bf16.mxu0 0
    %10137 = vmatpush1.bf16.msra.mxu0 %v10081
    %10138 = vmatprep.subr.bf16.mxu0 0
    %10139 = vmatpush1.bf16.msra.mxu0 %v10082
    %10140 = vmatprep.subr.bf16.mxu0 0
    %10141 = vmatpush1.bf16.msra.mxu0 %v10083
    %10142 = vmatprep.subr.bf16.mxu0 0
    %10143 = vmatpush1.bf16.msra.mxu0 %v10084
    %10144 = vmatprep.subr.bf16.mxu0 0
    %10145 = vmatpush1.bf16.msra.mxu0 %v10085
    %10146 = vmatprep.subr.bf16.mxu0 0
    %10147 = vmatpush1.bf16.msra.mxu0 %v10086
    %10148 = vmatprep.subr.bf16.mxu0 0
    %10149 = vmatpush1.bf16.msra.mxu0 %v10087
    %10150 = vmatprep.subr.bf16.mxu0 0
    %10151 = vmatpush1.bf16.msra.mxu0 %v10088
    %10152 = vmatprep.subr.bf16.mxu0 0
    %10153 = vmatpush1.bf16.msra.mxu0 %v10089
    %10154 = vmatprep.mubr.bf16.mxu0 %v9948
    %10155 = vmatmul.mubr.bf16.gmra.mrb[0].mxu0 %v9947
    %v10156 = vpop.f32.mrb[0].mxu0
    %v10157 = vadd.f32 %v10000, %v10156
    %v10158 = vpop.f32.mrb[0].mxu0
    %v10159 = vpop.f32.mrb[0].mxu0
    %v10160 = vadd.f32 %v10000, %v10159
    %v10161 = vpop.f32.mrb[0].mxu0
    %10162 = vmatprep.mubr.bf16.mxu0 %v9951
    %10163 = vmatmul.mubr.bf16.gmra.mrb[0].mxu0 %v9950
    %v10164 = vpop.f32.mrb[0].mxu0
    %v10165 = vadd.f32 %v10000, %v10164
    %v10166 = vpop.f32.mrb[0].mxu0
    %v10167 = vpop.f32.mrb[0].mxu0
    %v10168 = vadd.f32 %v10000, %v10167
    %v10169 = vpop.f32.mrb[0].mxu0
    %10170 = vmatprep.mubr.bf16.mxu0 %v9954
    %10171 = vmatmul.mubr.bf16.gmra.mrb[0].mxu0 %v9953
    %v10172 = vpop.f32.mrb[0].mxu0
    %v10173 = vadd.f32 %v10000, %v10172
    %v10174 = vpop.f32.mrb[0].mxu0
    %v10175 = vpop.f32.mrb[0].mxu0
    %v10176 = vadd.f32 %v10000, %v10175
    %v10177 = vpop.f32.mrb[0].mxu0
    %10178 = vmatprep.mubr.bf16.mxu0 %v9957
    %10179 = vmatmul.mubr.bf16.gmra.mrb[0].mxu0 %v9956
    %v10180 = vpop.f32.mrb[0].mxu0
    %v10181 = vadd.f32 %v10000, %v10180
    %v10182 = vpop.f32.mrb[0].mxu0
    %v10183 = vpop.f32.mrb[0].mxu0
    %v10184 = vadd.f32 %v10000, %v10183
    %v10185 = vpop.f32.mrb[0].mxu0
    %10186 = vdwg.mxu0
    %10187 = vmatprep.subr.bf16.mxu0 0
    %10188 = vmatpush1.bf16.msra.mxu0 %v10090
    %10189 = vmatprep.subr.bf16.mxu0 0
    %10190 = vmatpush1.bf16.msra.mxu0 %v10091
    %10191 = vmatprep.subr.bf16.mxu0 0
    %10192 = vmatpush1.bf16.msra.mxu0 0
    %10193 = vmatprep.subr.bf16.mxu0 0
    %10194 = vmatpush1.bf16.msra.mxu0 0
    %10195 = vmatprep.subr.bf16.mxu0 0
    %10196 = vmatpush1.bf16.msra.mxu0 0
    %10197 = vmatprep.subr.bf16.mxu0 0
    %10198 = vmatpush1.bf16.msra.mxu0 0
    %10199 = vmatprep.subr.bf16.mxu0 0
    %10200 = vmatpush1.bf16.msra.mxu0 0
    %10201 = vmatprep.subr.bf16.mxu0 0
    %10202 = vmatpush1.bf16.msra.mxu0 0
    %10203 = vmatprep.subr.bf16.mxu0 0
    %10204 = vmatpush1.bf16.msra.mxu0 0
    %10205 = vmatprep.subr.bf16.mxu0 0
    %10206 = vmatpush1.bf16.msra.mxu0 0
    %10207 = vmatprep.subr.bf16.mxu0 0
    %10208 = vmatpush1.bf16.msra.mxu0 0
    %10209 = vmatprep.subr.bf16.mxu0 0
    %10210 = vmatpush1.bf16.msra.mxu0 0
    %10211 = vmatprep.subr.bf16.mxu0 0
    %10212 = vmatpush1.bf16.msra.mxu0 0
    %10213 = vmatprep.subr.bf16.mxu0 0
    %10214 = vmatpush1.bf16.msra.mxu0 0
    %10215 = vmatprep.subr.bf16.mxu0 0
    %10216 = vmatpush1.bf16.msra.mxu0 0
    %10217 = vmatprep.subr.bf16.mxu0 0
    %10218 = vmatpush1.bf16.msra.mxu0 0
    %10219 = vmatprep.mubr.bf16.mxu0 0
    %10220 = vmatmul.mubr.bf16.gmra.mrb[0].mxu0 %v10111
    %v10221 = vpop.f32.mrb[0].mxu0
    %v10222 = vadd.f32 %v10157, %v10221
    %v10223 = vpop.f32.mrb[0].mxu0
    %v10224 = vpop.f32.mrb[0].mxu0
    %v10225 = vadd.f32 %v10160, %v10224
    %v10226 = vpop.f32.mrb[0].mxu0
    %10227 = vmatprep.mubr.bf16.mxu0 0
    %10228 = vmatmul.mubr.bf16.gmra.mrb[0].mxu0 %v10114
    %v10229 = vpop.f32.mrb[0].mxu0
    %v10230 = vadd.f32 %v10165, %v10229
    %v10231 = vpop.f32.mrb[0].mxu0
    %v10232 = vpop.f32.mrb[0].mxu0
    %v10233 = vadd.f32 %v10168, %v10232
    %v10234 = vpop.f32.mrb[0].mxu0
    %10235 = vmatprep.mubr.bf16.mxu0 0
    %10236 = vmatmul.mubr.bf16.gmra.mrb[0].mxu0 %v10117
    %v10237 = vpop.f32.mrb[0].mxu0
    %v10238 = vadd.f32 %v10173, %v10237
    %v10239 = vpop.f32.mrb[0].mxu0
    %v10240 = vpop.f32.mrb[0].mxu0
    %v10241 = vadd.f32 %v10176, %v10240
    %v10242 = vpop.f32.mrb[0].mxu0
    %10243 = vmatprep.mubr.bf16.mxu0 0
    %10244 = vmatmul.mubr.bf16.gmra.mrb[0].mxu0 %v10120
    %v10245 = vpop.f32.mrb[0].mxu0
    %v10246 = vadd.f32 %v10181, %v10245
    %v10247 = vpop.f32.mrb[0].mxu0
    %v10248 = vpop.f32.mrb[0].mxu0
    %v10249 = vadd.f32 %v10184, %v10248
    %v10250 = vpop.f32.mrb[0].mxu0
    %10251 = vdwg.mxu0
    %v10252 = vmax.f32 %v10222, 0.0
    %v10253 = vmax.f32 %v10225, 0.0
    %v10254 = vmax.f32 %v10230, 0.0
    %v10255 = vmax.f32 %v10233, 0.0
    %v10256 = vmax.f32 %v10238, 0.0
    %v10257 = vmax.f32 %v10241, 0.0
    %v10258 = vmax.f32 %v10246, 0.0
    %v10259 = vmax.f32 %v10249, 0.0
    %v10260 = vmax.f32 %v10252, %v10253
    %v10261 = vmax.f32 %v10254, %v10255
    %v10262 = vmax.f32 %v10256, %v10257
    %v10263 = vmax.f32 %v10258, %v10259
    %v10264 = vpack.c.bf16 %v10261, %v10260
    %v10265 = vpack.c.bf16 %v10263, %v10262
    %v10266 = vld [vmem:[%s17] sm:$0xf]
    %v10267 = vld [vmem:[%s17 + $0x4] sm:$0xf]
    %v10270 = vunpack.c.l.b16 %v10266
    %v10271 = vunpack.c.l.b16 %v10267
    %v10272 = vpack.c.b16 %v10271, %v10270
    %v10274 = vsel %vm3919, %v10272, 0
    %10276 = vmatprep.subr.bf16.mxu0 0
    %10277 = vmatpush1.bf16.msra.mxu0 %v10264
    %10278 = vmatprep.subr.bf16.mxu0 0
    %10279 = vmatpush1.bf16.msra.mxu0 %v10265
    %10280 = vmatprep.subr.bf16.mxu0 0
    %10281 = vmatpush1.bf16.msra.mxu0 0
    %10282 = vmatprep.subr.bf16.mxu0 0
    %10283 = vmatpush1.bf16.msra.mxu0 0
    %10284 = vmatprep.subr.bf16.mxu0 0
    %10285 = vmatpush1.bf16.msra.mxu0 0
    %10286 = vmatprep.subr.bf16.mxu0 0
    %10287 = vmatpush1.bf16.msra.mxu0 0
    %10288 = vmatprep.subr.bf16.mxu0 0
    %10289 = vmatpush1.bf16.msra.mxu0 0
    %10290 = vmatprep.subr.bf16.mxu0 0
    %10291 = vmatpush1.bf16.msra.mxu0 0
    %10292 = vmatprep.subr.bf16.mxu0 0
    %10293 = vmatpush1.bf16.msra.mxu0 0
    %10294 = vmatprep.subr.bf16.mxu0 0
    %10295 = vmatpush1.bf16.msra.mxu0 0
    %10296 = vmatprep.subr.bf16.mxu0 0
    %10297 = vmatpush1.bf16.msra.mxu0 0
    %10298 = vmatprep.subr.bf16.mxu0 0
    %10299 = vmatpush1.bf16.msra.mxu0 0
    %10300 = vmatprep.subr.bf16.mxu0 0
    %10301 = vmatpush1.bf16.msra.mxu0 0
    %10302 = vmatprep.subr.bf16.mxu0 0
    %10303 = vmatpush1.bf16.msra.mxu0 0
    %10304 = vmatprep.subr.bf16.mxu0 0
    %10305 = vmatpush1.bf16.msra.mxu0 0
    %10306 = vmatprep.subr.bf16.mxu0 0
    %10307 = vmatpush1.bf16.msra.mxu0 0
    %10308 = vmatprep.mubr.bf16.mxu0 0
    %10309 = vmatmul.mubr.bf16.gmra.mrb[0].mxu0 %v10274
    %v10310 = vpop.f32.mrb[0].mxu0
    %v10311 = vadd.f32 0.0, %v10310
    %v10312 = vpop.f32.mrb[0].mxu0
    %v10313 = vpop.f32.mrb[0].mxu0
    %v10314 = vadd.f32 0.0, %v10313
    %v10315 = vpop.f32.mrb[0].mxu0
    %10316 = vdwg.mxu0
    %v10317 = vld [vmem:[%s18] sm:$0xf]
    %v10318 = vld [vmem:[%s18 + $0x4] sm:$0xf]
    %v10321 = vunpack.c.l.b16 %v10317
    %v10322 = vunpack.c.l.b16 %v10318
    %v10323 = vpack.c.b16 %v10322, %v10321
    %v10325 = vsel %vm3919, %v10323, 0
    %10327 = vmatprep.subr.bf16.mxu0 0
    %10328 = vmatpush1.bf16.msra.mxu0 %v10264
    %10329 = vmatprep.subr.bf16.mxu0 0
    %10330 = vmatpush1.bf16.msra.mxu0 %v10265
    %10331 = vmatprep.subr.bf16.mxu0 0
    %10332 = vmatpush1.bf16.msra.mxu0 0
    %10333 = vmatprep.subr.bf16.mxu0 0
    %10334 = vmatpush1.bf16.msra.mxu0 0
    %10335 = vmatprep.subr.bf16.mxu0 0
    %10336 = vmatpush1.bf16.msra.mxu0 0
    %10337 = vmatprep.subr.bf16.mxu0 0
    %10338 = vmatpush1.bf16.msra.mxu0 0
    %10339 = vmatprep.subr.bf16.mxu0 0
    %10340 = vmatpush1.bf16.msra.mxu0 0
    %10341 = vmatprep.subr.bf16.mxu0 0
    %10342 = vmatpush1.bf16.msra.mxu0 0
    %10343 = vmatprep.subr.bf16.mxu0 0
    %10344 = vmatpush1.bf16.msra.mxu0 0
    %10345 = vmatprep.subr.bf16.mxu0 0
    %10346 = vmatpush1.bf16.msra.mxu0 0
    %10347 = vmatprep.subr.bf16.mxu0 0
    %10348 = vmatpush1.bf16.msra.mxu0 0
    %10349 = vmatprep.subr.bf16.mxu0 0
    %10350 = vmatpush1.bf16.msra.mxu0 0
    %10351 = vmatprep.subr.bf16.mxu0 0
    %10352 = vmatpush1.bf16.msra.mxu0 0
    %10353 = vmatprep.subr.bf16.mxu0 0
    %10354 = vmatpush1.bf16.msra.mxu0 0
    %10355 = vmatprep.subr.bf16.mxu0 0
    %10356 = vmatpush1.bf16.msra.mxu0 0
    %10357 = vmatprep.subr.bf16.mxu0 0
    %10358 = vmatpush1.bf16.msra.mxu0 0
    %10359 = vmatprep.mubr.bf16.mxu0 0
    %10360 = vmatmul.mubr.bf16.gmra.mrb[0].mxu0 %v10325
    %v10361 = vpop.f32.mrb[0].mxu0
    %v10362 = vadd.f32 0.0, %v10361
    %v10363 = vpop.f32.mrb[0].mxu0
    %v10364 = vpop.f32.mrb[0].mxu0
    %v10365 = vadd.f32 0.0, %v10364
    %v10366 = vpop.f32.mrb[0].mxu0
    %10367 = vdwg.mxu0
    %v10368 = vmax.f32 %v10311, %v10362
    %v10369 = vmax.f32 %v10314, %v10365
    %v10370 = vpack.c.bf16 %v10369, %v10368
    %v10373 = vunpack.c.l.s4 1966171168
    %v10374 = vunpack.c.0.s8 %v10373
    %v10375 = vlaneseq
    %v10376 = vshrl.u32 %v10375, 7
    %v10377 = vsub.s32 %v10374, %v10376
    %v10378 = vrot.slane %v10370, %v10377
    %v10380 = vunpack.c.l.s4 1966171168
    %v10381 = vunpack.c.0.s8 %v10380
    %v10382 = vlaneseq
    %v10383 = vshrl.u32 %v10382, 7
    %v10384 = vsub.s32 %v10381, %v10383
    %v10385 = vrot.slane %v10378, %v10384
    %v10387 = vshll.u32 %v10385, 16
    %vm10390 = vmand %vm5168, %vm3834
    %v10391 = vld [vmem:[#allocation5] sm:$0x1]
    %v10392 = vsel %vm10390, %v10387, %v10391
    %10393 = vst [vmem:[#allocation5] sm:$0x1] %v10392
    %10394 = vrot.lane.b32.xlu0 %v10385, 64
    %v10395 = vpop.permute.xlu0 %10394
    %vm10397 = vmand %vm5196, %vm3834
    %v10398 = vld [vmem:[#allocation5] sm:$0x1]
    %v10399 = vsel %vm10397, %v10395, %v10398
    %10400 = vst [vmem:[#allocation5] sm:$0x1] %v10399
    %v10401 = vcombine.high %v10378, %v10378
    %v10403 = vunpack.c.l.s4 1966171168
    %v10404 = vunpack.c.0.s8 %v10403
    %v10405 = vlaneseq
    %v10406 = vshrl.u32 %v10405, 7
    %v10407 = vsub.s32 %v10404, %v10406
    %v10408 = vrot.slane %v10401, %v10407
    %v10410 = vshll.u32 %v10408, 16
    %v10413 = vld [vmem:[#allocation5 + $0x1] sm:$0x1]
    %v10414 = vsel %vm10390, %v10410, %v10413
    %10415 = vst [vmem:[#allocation5 + $0x1] sm:$0x1] %v10414
    %10416 = vrot.lane.b32.xlu0 %v10408, 64
    %v10417 = vpop.permute.xlu0 %10416
    %v10419 = vld [vmem:[#allocation5 + $0x1] sm:$0x1]
    %v10420 = vsel %vm10397, %v10417, %v10419
    %10421 = vst [vmem:[#allocation5 + $0x1] sm:$0x1] %v10420
    %v10422 = vcombine.high %v10385, %v10385
    %v10424 = vshll.u32 %v10422, 16
    %v10427 = vld [vmem:[#allocation5 + $0x2] sm:$0x1]
    %v10428 = vsel %vm10390, %v10424, %v10427
    %10429 = vst [vmem:[#allocation5 + $0x2] sm:$0x1] %v10428
    %10430 = vrot.lane.b32.xlu0 %v10422, 64
    %v10431 = vpop.permute.xlu0 %10430
    %v10433 = vld [vmem:[#allocation5 + $0x2] sm:$0x1]
    %v10434 = vsel %vm10397, %v10431, %v10433
    %10435 = vst [vmem:[#allocation5 + $0x2] sm:$0x1] %v10434
    %v10436 = vcombine.high %v10408, %v10408
    %v10438 = vshll.u32 %v10436, 16
    %v10441 = vld [vmem:[#allocation5 + $0x3] sm:$0x1]
    %v10442 = vsel %vm10390, %v10438, %v10441
    %10443 = vst [vmem:[#allocation5 + $0x3] sm:$0x1] %v10442
    %10444 = vrot.lane.b32.xlu0 %v10436, 64
    %v10445 = vpop.permute.xlu0 %10444
    %v10447 = vld [vmem:[#allocation5 + $0x3] sm:$0x1]
    %v10448 = vsel %vm10397, %v10445, %v10447
    %10449 = vst [vmem:[#allocation5 + $0x3] sm:$0x1] %v10448
    %v10450 = vcombine.high %v10370, %v10370
    %v10452 = vunpack.c.l.s4 1966171168
    %v10453 = vunpack.c.0.s8 %v10452
    %v10454 = vlaneseq
    %v10455 = vshrl.u32 %v10454, 7
    %v10456 = vsub.s32 %v10453, %v10455
    %v10457 = vrot.slane %v10450, %v10456
    %v10459 = vunpack.c.l.s4 1966171168
    %v10460 = vunpack.c.0.s8 %v10459
    %v10461 = vlaneseq
    %v10462 = vshrl.u32 %v10461, 7
    %v10463 = vsub.s32 %v10460, %v10462
    %v10464 = vrot.slane %v10457, %v10463
    %v10466 = vshll.u32 %v10464, 16
    %v10469 = vld [vmem:[#allocation5 + $0x4] sm:$0x1]
    %v10470 = vsel %vm10390, %v10466, %v10469
    %10471 = vst [vmem:[#allocation5 + $0x4] sm:$0x1] %v10470
    %10472 = vrot.lane.b32.xlu0 %v10464, 64
    %v10473 = vpop.permute.xlu0 %10472
    %v10475 = vld [vmem:[#allocation5 + $0x4] sm:$0x1]
    %v10476 = vsel %vm10397, %v10473, %v10475
    %10477 = vst [vmem:[#allocation5 + $0x4] sm:$0x1] %v10476
    %v10478 = vcombine.high %v10457, %v10457
    %v10480 = vunpack.c.l.s4 1966171168
    %v10481 = vunpack.c.0.s8 %v10480
    %v10482 = vlaneseq
    %v10483 = vshrl.u32 %v10482, 7
    %v10484 = vsub.s32 %v10481, %v10483
    %v10485 = vrot.slane %v10478, %v10484
    %v10487 = vshll.u32 %v10485, 16
    %v10490 = vld [vmem:[#allocation5 + $0x5] sm:$0x1]
    %v10491 = vsel %vm10390, %v10487, %v10490
    %10492 = vst [vmem:[#allocation5 + $0x5] sm:$0x1] %v10491
    %10493 = vrot.lane.b32.xlu0 %v10485, 64
    %v10494 = vpop.permute.xlu0 %10493
    %v10496 = vld [vmem:[#allocation5 + $0x5] sm:$0x1]
    %v10497 = vsel %vm10397, %v10494, %v10496
    %10498 = vst [vmem:[#allocation5 + $0x5] sm:$0x1] %v10497
    %v10499 = vcombine.high %v10464, %v10464
    %v10501 = vshll.u32 %v10499, 16
    %v10504 = vld [vmem:[#allocation5 + $0x6] sm:$0x1]
    %v10505 = vsel %vm10390, %v10501, %v10504
    %10506 = vst [vmem:[#allocation5 + $0x6] sm:$0x1] %v10505
    %10507 = vrot.lane.b32.xlu0 %v10499, 64
    %v10508 = vpop.permute.xlu0 %10507
    %v10510 = vld [vmem:[#allocation5 + $0x6] sm:$0x1]
    %v10511 = vsel %vm10397, %v10508, %v10510
    %10512 = vst [vmem:[#allocation5 + $0x6] sm:$0x1] %v10511
    %v10513 = vcombine.high %v10485, %v10485
    %v10515 = vshll.u32 %v10513, 16
    %v10518 = vld [vmem:[#allocation5 + $0x7] sm:$0x1]
    %v10519 = vsel %vm10390, %v10515, %v10518
    %10520 = vst [vmem:[#allocation5 + $0x7] sm:$0x1] %v10519
    %10521 = vrot.lane.b32.xlu0 %v10513, 64
    %v10522 = vpop.permute.xlu0 %10521
    %v10524 = vld [vmem:[#allocation5 + $0x7] sm:$0x1]
    %v10525 = vsel %vm10397, %v10522, %v10524
    %10526 = vst [vmem:[#allocation5 + $0x7] sm:$0x1] %v10525
    %v10527 = vld [vmem:[%s1] sm:$0x3]
    %v10528 = vpack.c.bf16 %v10527, %v10527
    %v10529 = vld [vmem:[%s6] sm:$0xf]
    %v10530 = vld [vmem:[%s6 + $0x4] sm:$0x1]
    %v10531 = vld [vmem:[%s7] sm:$0x1]
    %v10533 = vlaneseq
    %v10534 = vshrl.u32 %v10533, 7
    %v10535 = vsub.s32 0, %v10534
    %v10536 = vrot.slane %v10531, %v10535
    %v10540 = vunpack.c.l.b16 %v10529
    %v10541 = vunpack.c.l.b16 %v10530
    %v10542 = vpack.c.b16 %v10541, %v10540
    %vm10543 = vcmask 80896
    %v10545 = vsel %vm10543, %v10528, 0
    %v10548 = vsel %vm3302, %v10542, 0
    %10550 = vmatprep.subr.bf16.mxu0 0
    %10551 = vmatpush1.bf16.msra.mxu0 %v10548
    %10552 = vmatprep.subr.bf16.mxu0 0
    %10553 = vmatpush1.bf16.msra.mxu0 0
    %10554 = vmatprep.subr.bf16.mxu0 0
    %10555 = vmatpush1.bf16.msra.mxu0 0
    %10556 = vmatprep.subr.bf16.mxu0 0
    %10557 = vmatpush1.bf16.msra.mxu0 0
    %10558 = vmatprep.subr.bf16.mxu0 0
    %10559 = vmatpush1.bf16.msra.mxu0 0
    %10560 = vmatprep.subr.bf16.mxu0 0
    %10561 = vmatpush1.bf16.msra.mxu0 0
    %10562 = vmatprep.subr.bf16.mxu0 0
    %10563 = vmatpush1.bf16.msra.mxu0 0
    %10564 = vmatprep.subr.bf16.mxu0 0
    %10565 = vmatpush1.bf16.msra.mxu0 0
    %10566 = vmatprep.subr.bf16.mxu0 0
    %10567 = vmatpush1.bf16.msra.mxu0 0
    %10568 = vmatprep.subr.bf16.mxu0 0
    %10569 = vmatpush1.bf16.msra.mxu0 0
    %10570 = vmatprep.subr.bf16.mxu0 0
    %10571 = vmatpush1.bf16.msra.mxu0 0
    %10572 = vmatprep.subr.bf16.mxu0 0
    %10573 = vmatpush1.bf16.msra.mxu0 0
    %10574 = vmatprep.subr.bf16.mxu0 0
    %10575 = vmatpush1.bf16.msra.mxu0 0
    %10576 = vmatprep.subr.bf16.mxu0 0
    %10577 = vmatpush1.bf16.msra.mxu0 0
    %10578 = vmatprep.subr.bf16.mxu0 0
    %10579 = vmatpush1.bf16.msra.mxu0 0
    %10580 = vmatprep.subr.bf16.mxu0 0
    %10581 = vmatpush1.bf16.msra.mxu0 0
    %10582 = vmatprep.mubr.bf16.mxu0 0
    %10583 = vmatmul.mubr.bf16.gmra.mrb[0].mxu0 %v10545
    %v10584 = vpop.f32.mrb[0].mxu0
    %v10585 = vadd.f32 %v10536, %v10584
    %v10586 = vpop.f32.mrb[0].mxu0
    %v10587 = vpop.f32.mrb[0].mxu0
    %v10588 = vpop.f32.mrb[0].mxu0
    %10589 = vdwg.mxu0
    %v10590 = vmax.f32 %v10585, 0.0
    %v10591 = vpack.c.bf16 %v10590, %v10590
    %v10592 = vld [vmem:[%s8] sm:$0xf]
    %v10593 = vld [vmem:[%s8 + $0x4] sm:$0xf]
    %v10594 = vld [vmem:[%s8 + $0x8] sm:$0xf]
    %v10595 = vld [vmem:[%s8 + $0xc] sm:$0xf]
    %v10596 = vld [vmem:[%s8 + $0x10] sm:$0xf]
    %v10597 = vld [vmem:[%s8 + $0x14] sm:$0xf]
    %v10598 = vld [vmem:[%s8 + $0x18] sm:$0xf]
    %v10599 = vld [vmem:[%s8 + $0x1c] sm:$0xf]
    %v10600 = vld [vmem:[%s8 + $0x20] sm:$0xf]
    %v10601 = vld [vmem:[%s8 + $0x24] sm:$0xf]
    %v10602 = vld [vmem:[%s8 + $0x28] sm:$0xf]
    %v10603 = vld [vmem:[%s8 + $0x2c] sm:$0xf]
    %v10604 = vld [vmem:[%s8 + $0x30] sm:$0xf]
    %v10605 = vld [vmem:[%s8 + $0x34] sm:$0xf]
    %v10606 = vld [vmem:[%s8 + $0x38] sm:$0xf]
    %v10607 = vld [vmem:[%s8 + $0x3c] sm:$0xf]
    %v10608 = vld [vmem:[%s9] sm:$0x1]
    %v10610 = vlaneseq
    %v10611 = vshrl.u32 %v10610, 7
    %v10612 = vsub.s32 0, %v10611
    %v10613 = vrot.slane %v10608, %v10612
    %v10631 = vunpack.c.l.b16 %v10592
    %v10632 = vunpack.c.l.b16 %v10593
    %v10633 = vunpack.c.l.b16 %v10594
    %v10634 = vunpack.c.l.b16 %v10595
    %v10635 = vunpack.c.l.b16 %v10596
    %v10636 = vunpack.c.l.b16 %v10597
    %v10637 = vunpack.c.l.b16 %v10598
    %v10638 = vunpack.c.l.b16 %v10599
    %v10639 = vunpack.c.l.b16 %v10600
    %v10640 = vunpack.c.l.b16 %v10601
    %v10641 = vunpack.c.l.b16 %v10602
    %v10642 = vunpack.c.l.b16 %v10603
    %v10643 = vunpack.c.l.b16 %v10604
    %v10644 = vunpack.c.l.b16 %v10605
    %v10645 = vunpack.c.l.b16 %v10606
    %v10646 = vunpack.c.l.b16 %v10607
    %v10647 = vpack.c.b16 %v10632, %v10631
    %v10648 = vpack.c.b16 %v10634, %v10633
    %v10649 = vpack.c.b16 %v10636, %v10635
    %v10650 = vpack.c.b16 %v10638, %v10637
    %v10651 = vpack.c.b16 %v10640, %v10639
    %v10652 = vpack.c.b16 %v10642, %v10641
    %v10653 = vpack.c.b16 %v10644, %v10643
    %v10654 = vpack.c.b16 %v10646, %v10645
    %10663 = vmatprep.subr.bf16.mxu0 0
    %10664 = vmatpush1.bf16.msra.mxu0 %v10647
    %10665 = vmatprep.subr.bf16.mxu0 0
    %10666 = vmatpush1.bf16.msra.mxu0 %v10648
    %10667 = vmatprep.subr.bf16.mxu0 0
    %10668 = vmatpush1.bf16.msra.mxu0 %v10649
    %10669 = vmatprep.subr.bf16.mxu0 0
    %10670 = vmatpush1.bf16.msra.mxu0 %v10650
    %10671 = vmatprep.subr.bf16.mxu0 0
    %10672 = vmatpush1.bf16.msra.mxu0 %v10651
    %10673 = vmatprep.subr.bf16.mxu0 0
    %10674 = vmatpush1.bf16.msra.mxu0 %v10652
    %10675 = vmatprep.subr.bf16.mxu0 0
    %10676 = vmatpush1.bf16.msra.mxu0 %v10653
    %10677 = vmatprep.subr.bf16.mxu0 0
    %10678 = vmatpush1.bf16.msra.mxu0 %v10654
    %10679 = vmatprep.subr.bf16.mxu0 0
    %10680 = vmatpush1.bf16.msra.mxu0 0
    %10681 = vmatprep.subr.bf16.mxu0 0
    %10682 = vmatpush1.bf16.msra.mxu0 0
    %10683 = vmatprep.subr.bf16.mxu0 0
    %10684 = vmatpush1.bf16.msra.mxu0 0
    %10685 = vmatprep.subr.bf16.mxu0 0
    %10686 = vmatpush1.bf16.msra.mxu0 0
    %10687 = vmatprep.subr.bf16.mxu0 0
    %10688 = vmatpush1.bf16.msra.mxu0 0
    %10689 = vmatprep.subr.bf16.mxu0 0
    %10690 = vmatpush1.bf16.msra.mxu0 0
    %10691 = vmatprep.subr.bf16.mxu0 0
    %10692 = vmatpush1.bf16.msra.mxu0 0
    %10693 = vmatprep.subr.bf16.mxu0 0
    %10694 = vmatpush1.bf16.msra.mxu0 0
    %10695 = vmatprep.mubr.bf16.mxu0 0
    %10696 = vmatmul.mubr.bf16.gmra.mrb[0].mxu0 %v10591
    %v10697 = vpop.f32.mrb[0].mxu0
    %v10698 = vadd.f32 %v10613, %v10697
    %v10699 = vpop.f32.mrb[0].mxu0
    %v10700 = vpop.f32.mrb[0].mxu0
    %v10701 = vpop.f32.mrb[0].mxu0
    %10702 = vdwg.mxu0
    %v10703 = vmax.f32 %v10698, 0.0
    %v10704 = vld [vmem:[#allocation5] sm:$0xff]
    %v10705 = vld [vmem:[%s10] sm:$0xf]
    %v10706 = vld [vmem:[%s10 + $0x4] sm:$0xf]
    %v10707 = vld [vmem:[%s10 + $0x8] sm:$0xf]
    %v10708 = vld [vmem:[%s10 + $0xc] sm:$0xf]
    %v10709 = vld [vmem:[%s10 + $0x10] sm:$0xf]
    %v10710 = vld [vmem:[%s10 + $0x14] sm:$0xf]
    %v10711 = vld [vmem:[%s10 + $0x18] sm:$0xf]
    %v10712 = vld [vmem:[%s10 + $0x1c] sm:$0xf]
    %v10713 = vld [vmem:[%s10 + $0x20] sm:$0xf]
    %v10714 = vld [vmem:[%s10 + $0x24] sm:$0xf]
    %v10715 = vld [vmem:[%s10 + $0x28] sm:$0xf]
    %v10716 = vld [vmem:[%s10 + $0x2c] sm:$0xf]
    %v10717 = vld [vmem:[%s10 + $0x30] sm:$0xf]
    %v10718 = vld [vmem:[%s10 + $0x34] sm:$0xf]
    %v10719 = vld [vmem:[%s10 + $0x38] sm:$0xf]
    %v10720 = vld [vmem:[%s10 + $0x3c] sm:$0xf]
    %v10721 = vld [vmem:[%s10 + $0x40] sm:$0xf]
    %v10722 = vld [vmem:[%s10 + $0x44] sm:$0xf]
    %v10723 = vld [vmem:[%s10 + $0x48] sm:$0xf]
    %v10724 = vld [vmem:[%s10 + $0x4c] sm:$0xf]
    %v10725 = vld [vmem:[%s10 + $0x50] sm:$0xf]
    %v10726 = vld [vmem:[%s10 + $0x54] sm:$0xf]
    %v10727 = vld [vmem:[%s10 + $0x58] sm:$0xf]
    %v10728 = vld [vmem:[%s10 + $0x5c] sm:$0xf]
    %v10729 = vld [vmem:[%s10 + $0x60] sm:$0xf]
    %v10730 = vld [vmem:[%s10 + $0x64] sm:$0xf]
    %v10731 = vld [vmem:[%s10 + $0x68] sm:$0xf]
    %v10732 = vld [vmem:[%s10 + $0x6c] sm:$0xf]
    %v10733 = vld [vmem:[%s10 + $0x70] sm:$0xf]
    %v10734 = vld [vmem:[%s10 + $0x74] sm:$0xf]
    %v10735 = vld [vmem:[%s10 + $0x78] sm:$0xf]
    %v10736 = vld [vmem:[%s10 + $0x7c] sm:$0xf]
    %v10737 = vld [vmem:[%s10 + $0x80] sm:$0xf]
    %v10738 = vld [vmem:[%s10 + $0x84] sm:$0xf]
    %v10739 = vld [vmem:[%s10 + $0x88] sm:$0xf]
    %v10740 = vld [vmem:[%s10 + $0x8c] sm:$0xf]
    %v10741 = vld [vmem:[%s10 + $0x90] sm:$0xf]
    %v10742 = vld [vmem:[%s10 + $0x94] sm:$0xf]
    %v10743 = vld [vmem:[%s10 + $0x98] sm:$0xf]
    %v10744 = vld [vmem:[%s10 + $0x9c] sm:$0xf]
    %v10745 = vld [vmem:[%s10 + $0xa0] sm:$0xf]
    %v10746 = vld [vmem:[%s10 + $0xa4] sm:$0xf]
    %v10747 = vld [vmem:[%s10 + $0xa8] sm:$0xf]
    %v10748 = vld [vmem:[%s10 + $0xac] sm:$0xf]
    %v10749 = vld [vmem:[%s10 + $0xb0] sm:$0xf]
    %v10750 = vld [vmem:[%s10 + $0xb4] sm:$0xf]
    %v10751 = vld [vmem:[%s10 + $0xb8] sm:$0xf]
    %v10752 = vld [vmem:[%s10 + $0xbc] sm:$0xf]
    %v10753 = vld [vmem:[%s10 + $0xc0] sm:$0xf]
    %v10754 = vld [vmem:[%s10 + $0xc4] sm:$0xf]
    %v10755 = vld [vmem:[%s10 + $0xc8] sm:$0xf]
    %v10756 = vld [vmem:[%s10 + $0xcc] sm:$0xf]
    %v10757 = vld [vmem:[%s10 + $0xd0] sm:$0xf]
    %v10758 = vld [vmem:[%s10 + $0xd4] sm:$0xf]
    %v10759 = vld [vmem:[%s10 + $0xd8] sm:$0xf]
    %v10760 = vld [vmem:[%s10 + $0xdc] sm:$0xf]
    %v10761 = vld [vmem:[%s10 + $0xe0] sm:$0xf]
    %v10762 = vld [vmem:[%s10 + $0xe4] sm:$0xf]
    %v10763 = vld [vmem:[%s10 + $0xe8] sm:$0xf]
    %v10764 = vld [vmem:[%s10 + $0xec] sm:$0xf]
    %v10765 = vld [vmem:[%s10 + $0xf0] sm:$0xf]
    %v10766 = vld [vmem:[%s10 + $0xf4] sm:$0xf]
    %v10767 = vld [vmem:[%s10 + $0xf8] sm:$0xf]
    %v10768 = vld [vmem:[%s10 + $0xfc] sm:$0xf]
    %v10769 = vld [vmem:[%s10 + $0x100] sm:$0xf]
    %v10770 = vld [vmem:[%s10 + $0x104] sm:$0xf]
    %v10771 = vld [vmem:[%s10 + $0x108] sm:$0xf]
    %v10772 = vld [vmem:[%s10 + $0x10c] sm:$0xf]
    %v10773 = vld [vmem:[%s10 + $0x110] sm:$0xf]
    %v10774 = vld [vmem:[%s10 + $0x114] sm:$0xf]
    %v10775 = vld [vmem:[%s10 + $0x118] sm:$0xf]
    %v10776 = vld [vmem:[%s10 + $0x11c] sm:$0xf]
    %v10777 = vld [vmem:[%s10 + $0x120] sm:$0xf]
    %v10778 = vld [vmem:[%s10 + $0x124] sm:$0xf]
    %v10779 = vld [vmem:[%s10 + $0x128] sm:$0xf]
    %v10780 = vld [vmem:[%s10 + $0x12c] sm:$0xf]
    %v10781 = vld [vmem:[%s10 + $0x130] sm:$0xf]
    %v10782 = vld [vmem:[%s10 + $0x134] sm:$0xf]
    %v10783 = vld [vmem:[%s10 + $0x138] sm:$0xf]
    %v10784 = vld [vmem:[%s10 + $0x13c] sm:$0xf]
    %v10785 = vld [vmem:[%s10 + $0x140] sm:$0xf]
    %v10786 = vld [vmem:[%s10 + $0x144] sm:$0xf]
    %v10787 = vld [vmem:[%s10 + $0x148] sm:$0xf]
    %v10788 = vld [vmem:[%s10 + $0x14c] sm:$0xf]
    %v10789 = vld [vmem:[%s10 + $0x150] sm:$0xf]
    %v10790 = vld [vmem:[%s10 + $0x154] sm:$0xf]
    %v10791 = vld [vmem:[%s10 + $0x158] sm:$0xf]
    %v10792 = vld [vmem:[%s10 + $0x15c] sm:$0xf]
    %v10793 = vld [vmem:[%s10 + $0x160] sm:$0xf]
    %v10794 = vld [vmem:[%s10 + $0x164] sm:$0xf]
    %v10795 = vld [vmem:[%s10 + $0x168] sm:$0xf]
    %v10796 = vld [vmem:[%s10 + $0x16c] sm:$0xf]
    %v10797 = vld [vmem:[%s10 + $0x170] sm:$0xf]
    %v10798 = vld [vmem:[%s10 + $0x174] sm:$0xf]
    %v10799 = vld [vmem:[%s10 + $0x178] sm:$0xf]
    %v10800 = vld [vmem:[%s10 + $0x17c] sm:$0xf]
    %v10801 = vld [vmem:[%s10 + $0x180] sm:$0xf]
    %v10802 = vld [vmem:[%s10 + $0x184] sm:$0xf]
    %v10803 = vld [vmem:[%s10 + $0x188] sm:$0xf]
    %v10804 = vld [vmem:[%s10 + $0x18c] sm:$0xf]
    %v10805 = vld [vmem:[%s10 + $0x190] sm:$0xf]
    %v10806 = vld [vmem:[%s10 + $0x194] sm:$0xf]
    %v10807 = vld [vmem:[%s10 + $0x198] sm:$0xf]
    %v10808 = vld [vmem:[%s10 + $0x19c] sm:$0xf]
    %v10809 = vld [vmem:[%s10 + $0x1a0] sm:$0xf]
    %v10810 = vld [vmem:[%s10 + $0x1a4] sm:$0xf]
    %v10811 = vld [vmem:[%s10 + $0x1a8] sm:$0xf]
    %v10812 = vld [vmem:[%s10 + $0x1ac] sm:$0xf]
    %v10813 = vld [vmem:[%s10 + $0x1b0] sm:$0xf]
    %v10814 = vld [vmem:[%s10 + $0x1b4] sm:$0xf]
    %v10815 = vld [vmem:[%s10 + $0x1b8] sm:$0xf]
    %v10816 = vld [vmem:[%s10 + $0x1bc] sm:$0xf]
    %v10817 = vld [vmem:[%s10 + $0x1c0] sm:$0xf]
    %v10818 = vld [vmem:[%s10 + $0x1c4] sm:$0xf]
    %v10819 = vld [vmem:[%s10 + $0x1c8] sm:$0xf]
    %v10820 = vld [vmem:[%s10 + $0x1cc] sm:$0xf]
    %v10821 = vld [vmem:[%s10 + $0x1d0] sm:$0xf]
    %v10822 = vld [vmem:[%s10 + $0x1d4] sm:$0xf]
    %v10823 = vld [vmem:[%s10 + $0x1d8] sm:$0xf]
    %v10824 = vld [vmem:[%s10 + $0x1dc] sm:$0xf]
    %v10825 = vld [vmem:[%s10 + $0x1e0] sm:$0xf]
    %v10826 = vld [vmem:[%s10 + $0x1e4] sm:$0xf]
    %v10827 = vld [vmem:[%s10 + $0x1e8] sm:$0xf]
    %v10828 = vld [vmem:[%s10 + $0x1ec] sm:$0xf]
    %v10829 = vld [vmem:[%s10 + $0x1f0] sm:$0xf]
    %v10830 = vld [vmem:[%s10 + $0x1f4] sm:$0xf]
    %v10831 = vld [vmem:[%s10 + $0x1f8] sm:$0xf]
    %v10832 = vld [vmem:[%s10 + $0x1fc] sm:$0xf]
    %v10833 = vpack.c.bf16 %v10703, %v10703
    %v10834 = vld [vmem:[%s11] sm:$0xf]
    %v10835 = vld [vmem:[%s11 + $0x4] sm:$0xf]
    %v10836 = vld [vmem:[%s11 + $0x8] sm:$0xf]
    %v10837 = vld [vmem:[%s11 + $0xc] sm:$0xf]
    %v10838 = vld [vmem:[%s11 + $0x10] sm:$0xf]
    %v10839 = vld [vmem:[%s11 + $0x14] sm:$0xf]
    %v10840 = vld [vmem:[%s11 + $0x18] sm:$0xf]
    %v10841 = vld [vmem:[%s11 + $0x1c] sm:$0xf]
    %v10850 = vunpack.c.l.b16 %v10834
    %v10851 = vunpack.c.l.b16 %v10835
    %v10852 = vunpack.c.l.b16 %v10836
    %v10853 = vunpack.c.l.b16 %v10837
    %v10854 = vunpack.c.l.b16 %v10838
    %v10855 = vunpack.c.l.b16 %v10839
    %v10856 = vunpack.c.l.b16 %v10840
    %v10857 = vunpack.c.l.b16 %v10841
    %v10858 = vpack.c.b16 %v10851, %v10850
    %v10859 = vpack.c.b16 %v10853, %v10852
    %v10860 = vpack.c.b16 %v10855, %v10854
    %v10861 = vpack.c.b16 %v10857, %v10856
    %vm10866 = vcmask 523264
    %v10868 = vsel %vm10866, %v10833, 0
    %10870 = vmatprep.subr.bf16.mxu0 0
    %10871 = vmatpush1.bf16.msra.mxu0 %v10858
    %10872 = vmatprep.subr.bf16.mxu0 0
    %10873 = vmatpush1.bf16.msra.mxu0 %v10859
    %10874 = vmatprep.subr.bf16.mxu0 0
    %10875 = vmatpush1.bf16.msra.mxu0 %v10860
    %10876 = vmatprep.subr.bf16.mxu0 0
    %10877 = vmatpush1.bf16.msra.mxu0 %v10861
    %10878 = vmatprep.subr.bf16.mxu0 0
    %10879 = vmatpush1.bf16.msra.mxu0 0
    %10880 = vmatprep.subr.bf16.mxu0 0
    %10881 = vmatpush1.bf16.msra.mxu0 0
    %10882 = vmatprep.subr.bf16.mxu0 0
    %10883 = vmatpush1.bf16.msra.mxu0 0
    %10884 = vmatprep.subr.bf16.mxu0 0
    %10885 = vmatpush1.bf16.msra.mxu0 0
    %10886 = vmatprep.subr.bf16.mxu0 0
    %10887 = vmatpush1.bf16.msra.mxu0 0
    %10888 = vmatprep.subr.bf16.mxu0 0
    %10889 = vmatpush1.bf16.msra.mxu0 0
    %10890 = vmatprep.subr.bf16.mxu0 0
    %10891 = vmatpush1.bf16.msra.mxu0 0
    %10892 = vmatprep.subr.bf16.mxu0 0
    %10893 = vmatpush1.bf16.msra.mxu0 0
    %10894 = vmatprep.subr.bf16.mxu0 0
    %10895 = vmatpush1.bf16.msra.mxu0 0
    %10896 = vmatprep.subr.bf16.mxu0 0
    %10897 = vmatpush1.bf16.msra.mxu0 0
    %10898 = vmatprep.subr.bf16.mxu0 0
    %10899 = vmatpush1.bf16.msra.mxu0 0
    %10900 = vmatprep.subr.bf16.mxu0 0
    %10901 = vmatpush1.bf16.msra.mxu0 0
    %10902 = vmatprep.mubr.bf16.mxu0 0
    %10903 = vmatmul.mubr.bf16.gmra.mrb[0].mxu0 %v10868
    %v10904 = vpop.f32.mrb[0].mxu0
    %v10905 = vadd.f32 0.0, %v10904
    %v10906 = vpop.f32.mrb[0].mxu0
    %v10907 = vpop.f32.mrb[0].mxu0
    %v10908 = vpop.f32.mrb[0].mxu0
    %10909 = vdwg.mxu0
    %v10911 = vcombine.high %v10704, %v10704
    %v10913 = vunpack.c.l.s4 1966171168
    %v10914 = vunpack.c.0.s8 %v10913
    %v10915 = vlaneseq
    %v10916 = vshrl.u32 %v10915, 7
    %v10917 = vsub.s32 %v10914, %v10916
    %v10918 = vrot.slane %v10704, %v10917
    %v10920 = vunpack.c.l.s4 1966171168
    %v10921 = vunpack.c.0.s8 %v10920
    %v10922 = vlaneseq
    %v10923 = vshrl.u32 %v10922, 7
    %v10924 = vsub.s32 %v10921, %v10923
    %v10925 = vrot.slane %v10911, %v10924
    %v10926 = vcombine.high %v10918, %v10918
    %v10927 = vcombine.high %v10925, %v10925
    %v10929 = vunpack.c.l.s4 1966171168
    %v10930 = vunpack.c.0.s8 %v10929
    %v10931 = vlaneseq
    %v10932 = vshrl.u32 %v10931, 7
    %v10933 = vsub.s32 %v10930, %v10932
    %v10934 = vrot.slane %v10918, %v10933
    %v10936 = vunpack.c.l.s4 1966171168
    %v10937 = vunpack.c.0.s8 %v10936
    %v10938 = vlaneseq
    %v10939 = vshrl.u32 %v10938, 7
    %v10940 = vsub.s32 %v10937, %v10939
    %v10941 = vrot.slane %v10925, %v10940
    %v10943 = vunpack.c.l.s4 1966171168
    %v10944 = vunpack.c.0.s8 %v10943
    %v10945 = vlaneseq
    %v10946 = vshrl.u32 %v10945, 7
    %v10947 = vsub.s32 %v10944, %v10946
    %v10948 = vrot.slane %v10926, %v10947
    %v10950 = vunpack.c.l.s4 1966171168
    %v10951 = vunpack.c.0.s8 %v10950
    %v10952 = vlaneseq
    %v10953 = vshrl.u32 %v10952, 7
    %v10954 = vsub.s32 %v10951, %v10953
    %v10955 = vrot.slane %v10927, %v10954
    %v10956 = vcombine.high %v10934, %v10934
    %v10957 = vcombine.high %v10941, %v10941
    %v10958 = vcombine.high %v10948, %v10948
    %v10959 = vcombine.high %v10955, %v10955
    %v11096 = vunpack.c.l.b16 %v10705
    %v11097 = vunpack.c.l.b16 %v10706
    %v11098 = vunpack.c.l.b16 %v10707
    %v11099 = vunpack.c.l.b16 %v10708
    %v11100 = vunpack.c.l.b16 %v10709
    %v11101 = vunpack.c.l.b16 %v10710
    %v11102 = vunpack.c.l.b16 %v10711
    %v11103 = vunpack.c.l.b16 %v10712
    %v11104 = vunpack.c.l.b16 %v10713
    %v11105 = vunpack.c.l.b16 %v10714
    %v11106 = vunpack.c.l.b16 %v10715
    %v11107 = vunpack.c.l.b16 %v10716
    %v11108 = vunpack.c.l.b16 %v10717
    %v11109 = vunpack.c.l.b16 %v10718
    %v11110 = vunpack.c.l.b16 %v10719
    %v11111 = vunpack.c.l.b16 %v10720
    %v11112 = vunpack.c.l.b16 %v10721
    %v11113 = vunpack.c.l.b16 %v10722
    %v11114 = vunpack.c.l.b16 %v10723
    %v11115 = vunpack.c.l.b16 %v10724
    %v11116 = vunpack.c.l.b16 %v10725
    %v11117 = vunpack.c.l.b16 %v10726
    %v11118 = vunpack.c.l.b16 %v10727
    %v11119 = vunpack.c.l.b16 %v10728
    %v11120 = vunpack.c.l.b16 %v10729
    %v11121 = vunpack.c.l.b16 %v10730
    %v11122 = vunpack.c.l.b16 %v10731
    %v11123 = vunpack.c.l.b16 %v10732
    %v11124 = vunpack.c.l.b16 %v10733
    %v11125 = vunpack.c.l.b16 %v10734
    %v11126 = vunpack.c.l.b16 %v10735
    %v11127 = vunpack.c.l.b16 %v10736
    %v11128 = vunpack.c.l.b16 %v10737
    %v11129 = vunpack.c.l.b16 %v10738
    %v11130 = vunpack.c.l.b16 %v10739
    %v11131 = vunpack.c.l.b16 %v10740
    %v11132 = vunpack.c.l.b16 %v10741
    %v11133 = vunpack.c.l.b16 %v10742
    %v11134 = vunpack.c.l.b16 %v10743
    %v11135 = vunpack.c.l.b16 %v10744
    %v11136 = vunpack.c.l.b16 %v10745
    %v11137 = vunpack.c.l.b16 %v10746
    %v11138 = vunpack.c.l.b16 %v10747
    %v11139 = vunpack.c.l.b16 %v10748
    %v11140 = vunpack.c.l.b16 %v10749
    %v11141 = vunpack.c.l.b16 %v10750
    %v11142 = vunpack.c.l.b16 %v10751
    %v11143 = vunpack.c.l.b16 %v10752
    %v11144 = vunpack.c.l.b16 %v10753
    %v11145 = vunpack.c.l.b16 %v10754
    %v11146 = vunpack.c.l.b16 %v10755
    %v11147 = vunpack.c.l.b16 %v10756
    %v11148 = vunpack.c.l.b16 %v10757
    %v11149 = vunpack.c.l.b16 %v10758
    %v11150 = vunpack.c.l.b16 %v10759
    %v11151 = vunpack.c.l.b16 %v10760
    %v11152 = vunpack.c.l.b16 %v10761
    %v11153 = vunpack.c.l.b16 %v10762
    %v11154 = vunpack.c.l.b16 %v10763
    %v11155 = vunpack.c.l.b16 %v10764
    %v11156 = vunpack.c.l.b16 %v10765
    %v11157 = vunpack.c.l.b16 %v10766
    %v11158 = vunpack.c.l.b16 %v10767
    %v11159 = vunpack.c.l.b16 %v10768
    %v11160 = vunpack.c.l.b16 %v10769
    %v11161 = vunpack.c.l.b16 %v10770
    %v11162 = vunpack.c.l.b16 %v10771
    %v11163 = vunpack.c.l.b16 %v10772
    %v11164 = vunpack.c.l.b16 %v10773
    %v11165 = vunpack.c.l.b16 %v10774
    %v11166 = vunpack.c.l.b16 %v10775
    %v11167 = vunpack.c.l.b16 %v10776
    %v11168 = vunpack.c.l.b16 %v10777
    %v11169 = vunpack.c.l.b16 %v10778
    %v11170 = vunpack.c.l.b16 %v10779
    %v11171 = vunpack.c.l.b16 %v10780
    %v11172 = vunpack.c.l.b16 %v10781
    %v11173 = vunpack.c.l.b16 %v10782
    %v11174 = vunpack.c.l.b16 %v10783
    %v11175 = vunpack.c.l.b16 %v10784
    %v11176 = vunpack.c.l.b16 %v10785
    %v11177 = vunpack.c.l.b16 %v10786
    %v11178 = vunpack.c.l.b16 %v10787
    %v11179 = vunpack.c.l.b16 %v10788
    %v11180 = vunpack.c.l.b16 %v10789
    %v11181 = vunpack.c.l.b16 %v10790
    %v11182 = vunpack.c.l.b16 %v10791
    %v11183 = vunpack.c.l.b16 %v10792
    %v11184 = vunpack.c.l.b16 %v10793
    %v11185 = vunpack.c.l.b16 %v10794
    %v11186 = vunpack.c.l.b16 %v10795
    %v11187 = vunpack.c.l.b16 %v10796
    %v11188 = vunpack.c.l.b16 %v10797
    %v11189 = vunpack.c.l.b16 %v10798
    %v11190 = vunpack.c.l.b16 %v10799
    %v11191 = vunpack.c.l.b16 %v10800
    %v11192 = vunpack.c.l.b16 %v10801
    %v11193 = vunpack.c.l.b16 %v10802
    %v11194 = vunpack.c.l.b16 %v10803
    %v11195 = vunpack.c.l.b16 %v10804
    %v11196 = vunpack.c.l.b16 %v10805
    %v11197 = vunpack.c.l.b16 %v10806
    %v11198 = vunpack.c.l.b16 %v10807
    %v11199 = vunpack.c.l.b16 %v10808
    %v11200 = vunpack.c.l.b16 %v10809
    %v11201 = vunpack.c.l.b16 %v10810
    %v11202 = vunpack.c.l.b16 %v10811
    %v11203 = vunpack.c.l.b16 %v10812
    %v11204 = vunpack.c.l.b16 %v10813
    %v11205 = vunpack.c.l.b16 %v10814
    %v11206 = vunpack.c.l.b16 %v10815
    %v11207 = vunpack.c.l.b16 %v10816
    %v11208 = vunpack.c.l.b16 %v10817
    %v11209 = vunpack.c.l.b16 %v10818
    %v11210 = vunpack.c.l.b16 %v10819
    %v11211 = vunpack.c.l.b16 %v10820
    %v11212 = vunpack.c.l.b16 %v10821
    %v11213 = vunpack.c.l.b16 %v10822
    %v11214 = vunpack.c.l.b16 %v10823
    %v11215 = vunpack.c.l.b16 %v10824
    %v11216 = vunpack.c.l.b16 %v10825
    %v11217 = vunpack.c.l.b16 %v10826
    %v11218 = vunpack.c.l.b16 %v10827
    %v11219 = vunpack.c.l.b16 %v10828
    %v11220 = vunpack.c.l.b16 %v10829
    %v11221 = vunpack.c.l.b16 %v10830
    %v11222 = vunpack.c.l.b16 %v10831
    %v11223 = vunpack.c.l.b16 %v10832
    %v11224 = vpack.c.b16 %v11097, %v11096
    %v11225 = vpack.c.b16 %v11099, %v11098
    %v11226 = vpack.c.b16 %v11101, %v11100
    %v11227 = vpack.c.b16 %v11103, %v11102
    %v11228 = vpack.c.b16 %v11105, %v11104
    %v11229 = vpack.c.b16 %v11107, %v11106
    %v11230 = vpack.c.b16 %v11109, %v11108
    %v11231 = vpack.c.b16 %v11111, %v11110
    %v11232 = vpack.c.b16 %v11113, %v11112
    %v11233 = vpack.c.b16 %v11115, %v11114
    %v11234 = vpack.c.b16 %v11117, %v11116
    %v11235 = vpack.c.b16 %v11119, %v11118
    %v11236 = vpack.c.b16 %v11121, %v11120
    %v11237 = vpack.c.b16 %v11123, %v11122
    %v11238 = vpack.c.b16 %v11125, %v11124
    %v11239 = vpack.c.b16 %v11127, %v11126
    %v11240 = vpack.c.b16 %v11129, %v11128
    %v11241 = vpack.c.b16 %v11131, %v11130
    %v11242 = vpack.c.b16 %v11133, %v11132
    %v11243 = vpack.c.b16 %v11135, %v11134
    %v11244 = vpack.c.b16 %v11137, %v11136
    %v11245 = vpack.c.b16 %v11139, %v11138
    %v11246 = vpack.c.b16 %v11141, %v11140
    %v11247 = vpack.c.b16 %v11143, %v11142
    %v11248 = vpack.c.b16 %v11145, %v11144
    %v11249 = vpack.c.b16 %v11147, %v11146
    %v11250 = vpack.c.b16 %v11149, %v11148
    %v11251 = vpack.c.b16 %v11151, %v11150
    %v11252 = vpack.c.b16 %v11153, %v11152
    %v11253 = vpack.c.b16 %v11155, %v11154
    %v11254 = vpack.c.b16 %v11157, %v11156
    %v11255 = vpack.c.b16 %v11159, %v11158
    %v11256 = vpack.c.b16 %v11161, %v11160
    %v11257 = vpack.c.b16 %v11163, %v11162
    %v11258 = vpack.c.b16 %v11165, %v11164
    %v11259 = vpack.c.b16 %v11167, %v11166
    %v11260 = vpack.c.b16 %v11169, %v11168
    %v11261 = vpack.c.b16 %v11171, %v11170
    %v11262 = vpack.c.b16 %v11173, %v11172
    %v11263 = vpack.c.b16 %v11175, %v11174
    %v11264 = vpack.c.b16 %v11177, %v11176
    %v11265 = vpack.c.b16 %v11179, %v11178
    %v11266 = vpack.c.b16 %v11181, %v11180
    %v11267 = vpack.c.b16 %v11183, %v11182
    %v11268 = vpack.c.b16 %v11185, %v11184
    %v11269 = vpack.c.b16 %v11187, %v11186
    %v11270 = vpack.c.b16 %v11189, %v11188
    %v11271 = vpack.c.b16 %v11191, %v11190
    %v11272 = vpack.c.b16 %v11193, %v11192
    %v11273 = vpack.c.b16 %v11195, %v11194
    %v11274 = vpack.c.b16 %v11197, %v11196
    %v11275 = vpack.c.b16 %v11199, %v11198
    %v11276 = vpack.c.b16 %v11201, %v11200
    %v11277 = vpack.c.b16 %v11203, %v11202
    %v11278 = vpack.c.b16 %v11205, %v11204
    %v11279 = vpack.c.b16 %v11207, %v11206
    %v11280 = vpack.c.b16 %v11209, %v11208
    %v11281 = vpack.c.b16 %v11211, %v11210
    %v11282 = vpack.c.b16 %v11213, %v11212
    %v11283 = vpack.c.b16 %v11215, %v11214
    %v11284 = vpack.c.b16 %v11217, %v11216
    %v11285 = vpack.c.b16 %v11219, %v11218
    %v11286 = vpack.c.b16 %v11221, %v11220
    %v11287 = vpack.c.b16 %v11223, %v11222
    %11352 = vmatprep.subr.bf16.mxu0 0
    %11353 = vmatpush1.bf16.msra.mxu0 %v11224
    %11354 = vmatprep.subr.bf16.mxu0 0
    %11355 = vmatpush1.bf16.msra.mxu0 %v11225
    %11356 = vmatprep.subr.bf16.mxu0 0
    %11357 = vmatpush1.bf16.msra.mxu0 %v11226
    %11358 = vmatprep.subr.bf16.mxu0 0
    %11359 = vmatpush1.bf16.msra.mxu0 %v11227
    %11360 = vmatprep.subr.bf16.mxu0 0
    %11361 = vmatpush1.bf16.msra.mxu0 %v11228
    %11362 = vmatprep.subr.bf16.mxu0 0
    %11363 = vmatpush1.bf16.msra.mxu0 %v11229
    %11364 = vmatprep.subr.bf16.mxu0 0
    %11365 = vmatpush1.bf16.msra.mxu0 %v11230
    %11366 = vmatprep.subr.bf16.mxu0 0
    %11367 = vmatpush1.bf16.msra.mxu0 %v11231
    %11368 = vmatprep.subr.bf16.mxu0 0
    %11369 = vmatpush1.bf16.msra.mxu0 %v11232
    %11370 = vmatprep.subr.bf16.mxu0 0
    %11371 = vmatpush1.bf16.msra.mxu0 %v11233
    %11372 = vmatprep.subr.bf16.mxu0 0
    %11373 = vmatpush1.bf16.msra.mxu0 %v11234
    %11374 = vmatprep.subr.bf16.mxu0 0
    %11375 = vmatpush1.bf16.msra.mxu0 %v11235
    %11376 = vmatprep.subr.bf16.mxu0 0
    %11377 = vmatpush1.bf16.msra.mxu0 %v11236
    %11378 = vmatprep.subr.bf16.mxu0 0
    %11379 = vmatpush1.bf16.msra.mxu0 %v11237
    %11380 = vmatprep.subr.bf16.mxu0 0
    %11381 = vmatpush1.bf16.msra.mxu0 %v11238
    %11382 = vmatprep.subr.bf16.mxu0 0
    %11383 = vmatpush1.bf16.msra.mxu0 %v11239
    %11384 = vmatprep.mubr.bf16.mxu0 %v10948
    %11385 = vmatmul.mubr.bf16.gmra.mrb[0].mxu0 %v10934
    %v11386 = vpop.f32.mrb[0].mxu0
    %v11387 = vadd.f32 %v10905, %v11386
    %v11388 = vpop.f32.mrb[0].mxu0
    %v11389 = vpop.f32.mrb[0].mxu0
    %v11390 = vpop.f32.mrb[0].mxu0
    %11391 = vdwg.mxu0
    %11392 = vmatprep.subr.bf16.mxu0 0
    %11393 = vmatpush1.bf16.msra.mxu0 %v11240
    %11394 = vmatprep.subr.bf16.mxu0 0
    %11395 = vmatpush1.bf16.msra.mxu0 %v11241
    %11396 = vmatprep.subr.bf16.mxu0 0
    %11397 = vmatpush1.bf16.msra.mxu0 %v11242
    %11398 = vmatprep.subr.bf16.mxu0 0
    %11399 = vmatpush1.bf16.msra.mxu0 %v11243
    %11400 = vmatprep.subr.bf16.mxu0 0
    %11401 = vmatpush1.bf16.msra.mxu0 %v11244
    %11402 = vmatprep.subr.bf16.mxu0 0
    %11403 = vmatpush1.bf16.msra.mxu0 %v11245
    %11404 = vmatprep.subr.bf16.mxu0 0
    %11405 = vmatpush1.bf16.msra.mxu0 %v11246
    %11406 = vmatprep.subr.bf16.mxu0 0
    %11407 = vmatpush1.bf16.msra.mxu0 %v11247
    %11408 = vmatprep.subr.bf16.mxu0 0
    %11409 = vmatpush1.bf16.msra.mxu0 %v11248
    %11410 = vmatprep.subr.bf16.mxu0 0
    %11411 = vmatpush1.bf16.msra.mxu0 %v11249
    %11412 = vmatprep.subr.bf16.mxu0 0
    %11413 = vmatpush1.bf16.msra.mxu0 %v11250
    %11414 = vmatprep.subr.bf16.mxu0 0
    %11415 = vmatpush1.bf16.msra.mxu0 %v11251
    %11416 = vmatprep.subr.bf16.mxu0 0
    %11417 = vmatpush1.bf16.msra.mxu0 %v11252
    %11418 = vmatprep.subr.bf16.mxu0 0
    %11419 = vmatpush1.bf16.msra.mxu0 %v11253
    %11420 = vmatprep.subr.bf16.mxu0 0
    %11421 = vmatpush1.bf16.msra.mxu0 %v11254
    %11422 = vmatprep.subr.bf16.mxu0 0
    %11423 = vmatpush1.bf16.msra.mxu0 %v11255
    %11424 = vmatprep.mubr.bf16.mxu0 %v10958
    %11425 = vmatmul.mubr.bf16.gmra.mrb[0].mxu0 %v10956
    %v11426 = vpop.f32.mrb[0].mxu0
    %v11427 = vadd.f32 %v11387, %v11426
    %v11428 = vpop.f32.mrb[0].mxu0
    %v11429 = vpop.f32.mrb[0].mxu0
    %v11430 = vpop.f32.mrb[0].mxu0
    %11431 = vdwg.mxu0
    %11432 = vmatprep.subr.bf16.mxu0 0
    %11433 = vmatpush1.bf16.msra.mxu0 %v11256
    %11434 = vmatprep.subr.bf16.mxu0 0
    %11435 = vmatpush1.bf16.msra.mxu0 %v11257
    %11436 = vmatprep.subr.bf16.mxu0 0
    %11437 = vmatpush1.bf16.msra.mxu0 %v11258
    %11438 = vmatprep.subr.bf16.mxu0 0
    %11439 = vmatpush1.bf16.msra.mxu0 %v11259
    %11440 = vmatprep.subr.bf16.mxu0 0
    %11441 = vmatpush1.bf16.msra.mxu0 %v11260
    %11442 = vmatprep.subr.bf16.mxu0 0
    %11443 = vmatpush1.bf16.msra.mxu0 %v11261
    %11444 = vmatprep.subr.bf16.mxu0 0
    %11445 = vmatpush1.bf16.msra.mxu0 %v11262
    %11446 = vmatprep.subr.bf16.mxu0 0
    %11447 = vmatpush1.bf16.msra.mxu0 %v11263
    %11448 = vmatprep.subr.bf16.mxu0 0
    %11449 = vmatpush1.bf16.msra.mxu0 %v11264
    %11450 = vmatprep.subr.bf16.mxu0 0
    %11451 = vmatpush1.bf16.msra.mxu0 %v11265
    %11452 = vmatprep.subr.bf16.mxu0 0
    %11453 = vmatpush1.bf16.msra.mxu0 %v11266
    %11454 = vmatprep.subr.bf16.mxu0 0
    %11455 = vmatpush1.bf16.msra.mxu0 %v11267
    %11456 = vmatprep.subr.bf16.mxu0 0
    %11457 = vmatpush1.bf16.msra.mxu0 %v11268
    %11458 = vmatprep.subr.bf16.mxu0 0
    %11459 = vmatpush1.bf16.msra.mxu0 %v11269
    %11460 = vmatprep.subr.bf16.mxu0 0
    %11461 = vmatpush1.bf16.msra.mxu0 %v11270
    %11462 = vmatprep.subr.bf16.mxu0 0
    %11463 = vmatpush1.bf16.msra.mxu0 %v11271
    %11464 = vmatprep.mubr.bf16.mxu0 %v10955
    %11465 = vmatmul.mubr.bf16.gmra.mrb[0].mxu0 %v10941
    %v11466 = vpop.f32.mrb[0].mxu0
    %v11467 = vadd.f32 %v11427, %v11466
    %v11468 = vpop.f32.mrb[0].mxu0
    %v11469 = vpop.f32.mrb[0].mxu0
    %v11470 = vpop.f32.mrb[0].mxu0
    %11471 = vdwg.mxu0
    %11472 = vmatprep.subr.bf16.mxu0 0
    %11473 = vmatpush1.bf16.msra.mxu0 %v11272
    %11474 = vmatprep.subr.bf16.mxu0 0
    %11475 = vmatpush1.bf16.msra.mxu0 %v11273
    %11476 = vmatprep.subr.bf16.mxu0 0
    %11477 = vmatpush1.bf16.msra.mxu0 %v11274
    %11478 = vmatprep.subr.bf16.mxu0 0
    %11479 = vmatpush1.bf16.msra.mxu0 %v11275
    %11480 = vmatprep.subr.bf16.mxu0 0
    %11481 = vmatpush1.bf16.msra.mxu0 %v11276
    %11482 = vmatprep.subr.bf16.mxu0 0
    %11483 = vmatpush1.bf16.msra.mxu0 %v11277
    %11484 = vmatprep.subr.bf16.mxu0 0
    %11485 = vmatpush1.bf16.msra.mxu0 %v11278
    %11486 = vmatprep.subr.bf16.mxu0 0
    %11487 = vmatpush1.bf16.msra.mxu0 %v11279
    %11488 = vmatprep.subr.bf16.mxu0 0
    %11489 = vmatpush1.bf16.msra.mxu0 %v11280
    %11490 = vmatprep.subr.bf16.mxu0 0
    %11491 = vmatpush1.bf16.msra.mxu0 %v11281
    %11492 = vmatprep.subr.bf16.mxu0 0
    %11493 = vmatpush1.bf16.msra.mxu0 %v11282
    %11494 = vmatprep.subr.bf16.mxu0 0
    %11495 = vmatpush1.bf16.msra.mxu0 %v11283
    %11496 = vmatprep.subr.bf16.mxu0 0
    %11497 = vmatpush1.bf16.msra.mxu0 %v11284
    %11498 = vmatprep.subr.bf16.mxu0 0
    %11499 = vmatpush1.bf16.msra.mxu0 %v11285
    %11500 = vmatprep.subr.bf16.mxu0 0
    %11501 = vmatpush1.bf16.msra.mxu0 %v11286
    %11502 = vmatprep.subr.bf16.mxu0 0
    %11503 = vmatpush1.bf16.msra.mxu0 %v11287
    %11504 = vmatprep.mubr.bf16.mxu0 %v10959
    %11505 = vmatmul.mubr.bf16.gmra.mrb[0].mxu0 %v10957
    %v11506 = vpop.f32.mrb[0].mxu0
    %v11507 = vadd.f32 %v11467, %v11506
    %v11508 = vpop.f32.mrb[0].mxu0
    %v11509 = vpop.f32.mrb[0].mxu0
    %v11510 = vpop.f32.mrb[0].mxu0
    %11511 = vdwg.mxu0
    %v11512 = vld [vmem:[%s12] sm:$0x1]
    %v11514 = vlaneseq
    %v11515 = vshrl.u32 %v11514, 7
    %v11516 = vsub.s32 0, %v11515
    %v11517 = vrot.slane %v11512, %v11516
    %v11519 = vadd.f32 %v11507, %v11517
    %v11520 = vmax.f32 %v11519, 0.0
    %v11521 = vpack.c.bf16 %v11520, %v11520
    %v11522 = vld [vmem:[%s13] sm:$0xf]
    %v11523 = vld [vmem:[%s13 + $0x4] sm:$0xf]
    %v11524 = vld [vmem:[%s13 + $0x8] sm:$0xf]
    %v11525 = vld [vmem:[%s13 + $0xc] sm:$0xf]
    %v11526 = vld [vmem:[%s13 + $0x10] sm:$0xf]
    %v11527 = vld [vmem:[%s13 + $0x14] sm:$0xf]
    %v11528 = vld [vmem:[%s13 + $0x18] sm:$0xf]
    %v11529 = vld [vmem:[%s13 + $0x1c] sm:$0xf]
    %v11530 = vld [vmem:[%s13 + $0x20] sm:$0xf]
    %v11531 = vld [vmem:[%s13 + $0x24] sm:$0xf]
    %v11532 = vld [vmem:[%s13 + $0x28] sm:$0xf]
    %v11533 = vld [vmem:[%s13 + $0x2c] sm:$0xf]
    %v11534 = vld [vmem:[%s13 + $0x30] sm:$0xf]
    %v11535 = vld [vmem:[%s13 + $0x34] sm:$0xf]
    %v11536 = vld [vmem:[%s13 + $0x38] sm:$0xf]
    %v11537 = vld [vmem:[%s13 + $0x3c] sm:$0xf]
    %v11538 = vld [vmem:[%s14] sm:$0x1]
    %v11540 = vlaneseq
    %v11541 = vshrl.u32 %v11540, 7
    %v11542 = vsub.s32 0, %v11541
    %v11543 = vrot.slane %v11538, %v11542
    %v11561 = vunpack.c.l.b16 %v11522
    %v11562 = vunpack.c.l.b16 %v11523
    %v11563 = vunpack.c.l.b16 %v11524
    %v11564 = vunpack.c.l.b16 %v11525
    %v11565 = vunpack.c.l.b16 %v11526
    %v11566 = vunpack.c.l.b16 %v11527
    %v11567 = vunpack.c.l.b16 %v11528
    %v11568 = vunpack.c.l.b16 %v11529
    %v11569 = vunpack.c.l.b16 %v11530
    %v11570 = vunpack.c.l.b16 %v11531
    %v11571 = vunpack.c.l.b16 %v11532
    %v11572 = vunpack.c.l.b16 %v11533
    %v11573 = vunpack.c.l.b16 %v11534
    %v11574 = vunpack.c.l.b16 %v11535
    %v11575 = vunpack.c.l.b16 %v11536
    %v11576 = vunpack.c.l.b16 %v11537
    %v11577 = vpack.c.b16 %v11562, %v11561
    %v11578 = vpack.c.b16 %v11564, %v11563
    %v11579 = vpack.c.b16 %v11566, %v11565
    %v11580 = vpack.c.b16 %v11568, %v11567
    %v11581 = vpack.c.b16 %v11570, %v11569
    %v11582 = vpack.c.b16 %v11572, %v11571
    %v11583 = vpack.c.b16 %v11574, %v11573
    %v11584 = vpack.c.b16 %v11576, %v11575
    %11593 = vmatprep.subr.bf16.mxu0 0
    %11594 = vmatpush1.bf16.msra.mxu0 %v11577
    %11595 = vmatprep.subr.bf16.mxu0 0
    %11596 = vmatpush1.bf16.msra.mxu0 %v11578
    %11597 = vmatprep.subr.bf16.mxu0 0
    %11598 = vmatpush1.bf16.msra.mxu0 %v11579
    %11599 = vmatprep.subr.bf16.mxu0 0
    %11600 = vmatpush1.bf16.msra.mxu0 %v11580
    %11601 = vmatprep.subr.bf16.mxu0 0
    %11602 = vmatpush1.bf16.msra.mxu0 %v11581
    %11603 = vmatprep.subr.bf16.mxu0 0
    %11604 = vmatpush1.bf16.msra.mxu0 %v11582
    %11605 = vmatprep.subr.bf16.mxu0 0
    %11606 = vmatpush1.bf16.msra.mxu0 %v11583
    %11607 = vmatprep.subr.bf16.mxu0 0
    %11608 = vmatpush1.bf16.msra.mxu0 %v11584
    %11609 = vmatprep.subr.bf16.mxu0 0
    %11610 = vmatpush1.bf16.msra.mxu0 0
    %11611 = vmatprep.subr.bf16.mxu0 0
    %11612 = vmatpush1.bf16.msra.mxu0 0
    %11613 = vmatprep.subr.bf16.mxu0 0
    %11614 = vmatpush1.bf16.msra.mxu0 0
    %11615 = vmatprep.subr.bf16.mxu0 0
    %11616 = vmatpush1.bf16.msra.mxu0 0
    %11617 = vmatprep.subr.bf16.mxu0 0
    %11618 = vmatpush1.bf16.msra.mxu0 0
    %11619 = vmatprep.subr.bf16.mxu0 0
    %11620 = vmatpush1.bf16.msra.mxu0 0
    %11621 = vmatprep.subr.bf16.mxu0 0
    %11622 = vmatpush1.bf16.msra.mxu0 0
    %11623 = vmatprep.subr.bf16.mxu0 0
    %11624 = vmatpush1.bf16.msra.mxu0 0
    %11625 = vmatprep.mubr.bf16.mxu0 0
    %11626 = vmatmul.mubr.bf16.gmra.mrb[0].mxu0 %v11521
    %v11627 = vpop.f32.mrb[0].mxu0
    %v11628 = vadd.f32 %v11543, %v11627
    %v11629 = vpop.f32.mrb[0].mxu0
    %v11630 = vpop.f32.mrb[0].mxu0
    %v11631 = vpop.f32.mrb[0].mxu0
    %11632 = vdwg.mxu0
    %vm11633 = vcmask 17408
    %11634 = vst.msk [vmem:[#allocation6] sm:$0x3] %vm11633, %v11628
    // Predicated region
    $region82: #{multimodal_forward.1} parent=1 // pred_check
      _
    $region83: #{multimodal_forward.1} parent=1 // pred_check_branch
      %11636 = sbr.rel (0) target = $region85
    $region84: #{multimodal_forward.1} parent=1 // pred_region
      %s11638 = ssub.s32 32, 32
      %11639 = vsyncadd [#allocation7], %s11638
      %s11641 = sshll.u32 [#allocation6], 4
      %s11642 = int_to_ptr.vmem [resolvable:$true] %s11641
      %11644 = dma.vmem_to_hbm [thread:$0]  %s11642, 32, %s19, [#allocation7]
    $region85: #{multimodal_forward.1} parent=1 // pred_fallthru
      _
    // Predicated region
    $region86: #{multimodal_forward.1} parent=1 // pred_check
      _
    $region87: #{multimodal_forward.1} parent=1 // pred_check_branch
      %11646 = sbr.rel (0) target = $region89
    $region88: #{multimodal_forward.1} parent=1 // pred_region
      %11647 = dma.done [#allocation7], 32
    $region89: #{multimodal_forward.1} parent=1 // pred_fallthru
      _
    %11648 = vsyncpa [#allocation7], 1

</llo_original>
